<compile_context>
chip_gen: v7x
topology: tpu7x:2x2x1
jax: 0.10.0
libtpu: 0.0.40
codegen_flags: <defaults>
</compile_context>

<pallas_src>
import math

import numpy as np

import jax
import jax.numpy as jnp
from jax.experimental import pallas as pl
from jax.experimental.pallas import tpu as pltpu

LRELU_SLOPE = 0.01
BN_EPS = 1e-5


# ------------------------------ small helpers ------------------------------

def bn_scale_shift(gamma, beta, mean, var):
    """Eval-mode BatchNorm as per-channel affine: y = x*scale + shift."""
    scale = gamma / jnp.sqrt(var + BN_EPS)
    shift = beta - mean * scale
    return scale.reshape(1, -1), shift.reshape(1, -1)


def pad_to_agree(x_nhwc, target_h, target_w):
    """Mirror of PadToAgree: per spatial dim, floor-pad low side, ceil-pad
    high side; negative padding = crop."""
    _, H, W, _ = x_nhwc.shape
    off_h = target_h - H
    off_w = target_w - W
    if off_h == 0 and off_w == 0:
        return x_nhwc
    ph0, ph1 = math.floor(off_h / 2), math.ceil(off_h / 2)
    pw0, pw1 = math.floor(off_w / 2), math.ceil(off_w / 2)
    x = jnp.pad(x_nhwc, ((0, 0),
                         (max(ph0, 0), max(ph1, 0)),
                         (max(pw0, 0), max(pw1, 0)),
                         (0, 0)))
    h0, h1 = max(-ph0, 0), x.shape[1] - max(-ph1, 0)
    w0, w1 = max(-pw0, 0), x.shape[2] - max(-pw1, 0)
    return x[:, h0:h1, w0:w1, :]


# --------------------------- fused Pallas kernel ----------------------------

def _make_fused_kernel(H, W, C1, C2, cout2, layer_cfg):
    """Build the fused per-batch-element kernel.

    layer_cfg: list of (cin, mid, growth) for the DenseBlock layers.
    Kernel refs layout:
      [x1, x_rep, sel, up_w,  (s1, b1, w1, b2, w2) * n_layers,  wb,  out, pad_scratch]
    """
    HW = H * W
    n_layers = len(layer_cfg)

    def kernel(*refs):
        x1_ref, xr_ref, sel_ref, upw_ref = refs[:4]
        layer_refs = refs[4:4 + 5 * n_layers]
        wb_ref = refs[4 + 5 * n_layers]
        out_ref = refs[4 + 5 * n_layers + 1]
        pad_ref = refs[4 + 5 * n_layers + 2]

        # ---- up: ConvTranspose2d(k=2, s=2, bias=False) fused as one matmul
        #      over the replicated input + one-hot sub-pixel select.
        x1 = x1_ref[...].reshape(HW, C1)
        xr = xr_ref[...].reshape(HW, C2)
        sel = sel_ref[...]                                     # (HW, 4) one-hot
        y_all = jnp.dot(xr, upw_ref[...],
                        preferred_element_type=jnp.float32)    # (HW, 4*cout2)
        y = sel[:, 0:1] * y_all[:, 0:cout2]
        for s in range(1, 4):
            y = y + sel[:, s:s + 1] * y_all[:, s * cout2:(s + 1) * cout2]

        # ---- pad_to_agree already applied to x_rep in the wrapper; concat.
        h = jnp.concatenate([x1, y], axis=-1)                  # (HW, C1+cout2)

        # ---- DenseBlock ----
        for li, (_cin, mid, _growth) in enumerate(layer_cfg):
            s1_ref, b1_ref, w1_ref, b2_ref, w2_ref = layer_refs[5 * li:5 * li + 5]

            # BN1 (eval affine) -> LeakyReLU -> Conv1x1 (BN2 scale folded into
            # w1) -> +BN2 shift -> LeakyReLU.
            a = h * s1_ref[...] + b1_ref[...]
            a = jnp.maximum(a, LRELU_SLOPE * a)
            m = jnp.dot(a, w1_ref[...],
                        preferred_element_type=jnp.float32) + b2_ref[...]
            m = jnp.maximum(m, LRELU_SLOPE * m)                # (HW, mid)

            # Conv3x3(pad=1) as a single im2col matmul, halo handled via a
            # zero-padded VMEM scratch (no jnp.pad / HBM round trip).
            pad_ref[...] = jnp.zeros((H + 2, W + 2, mid), jnp.float32)
            pad_ref[1:H + 1, 1:W + 1, :] = m.reshape(H, W, mid)
            xpad = pad_ref[...]
            cols = jnp.concatenate(
                [xpad[dy:dy + H, dx:dx + W, :].reshape(HW, mid)
                 for dy in range(3) for dx in range(3)],
                axis=-1)                                       # (HW, 9*mid)
            g = jnp.dot(cols, w2_ref[...],
                        preferred_element_type=jnp.float32)    # (HW, growth)

            h = jnp.concatenate([h, g], axis=-1)

        # ---- bottleneck 1x1 conv ----
        out = jnp.dot(h, wb_ref[...], preferred_element_type=jnp.float32)
        out_ref[...] = out.reshape(H, W, out.shape[-1]).astype(out_ref.dtype)

    return kernel


def dense_unet_up_pallas(params, inputs1_nchw, inputs2_nchw):
    """Fused forward.  Inputs/outputs in PyTorch NCHW layout."""
    x1 = jnp.transpose(inputs1_nchw, (0, 2, 3, 1)).astype(jnp.float32)
    x2 = jnp.transpose(inputs2_nchw, (0, 2, 3, 1)).astype(jnp.float32)
    N, H1, W1, C1 = x1.shape
    _, H2, W2, C2 = x2.shape
    cout2 = params["up_cout"]
    HW = H1 * W1

    # Nearest-neighbour replicate inputs2 to the output grid + PadToAgree.
    # This turns the ConvTranspose into a per-output-pixel matmul + a static
    # one-hot sub-pixel select inside the kernel (zero rows stay zero).
    xr = jnp.repeat(jnp.repeat(x2, 2, axis=1), 2, axis=2)
    xr = pad_to_agree(xr, H1, W1)
    ph0 = (H1 - 2 * H2) // 2          # floor; may be negative (crop)
    pw0 = (W1 - 2 * W2) // 2

    # Static one-hot sub-pixel selector (trace-time constant, one tiny input).
    rr = (np.arange(H1)[:, None] - ph0) % 2
    cc = (np.arange(W1)[None, :] - pw0) % 2
    s_idx = (rr * 2 + cc).reshape(HW)
    sel_np = np.zeros((HW, 4), np.float32)
    sel_np[np.arange(HW), s_idx] = 1.0
    sel = jnp.asarray(sel_np)

    # ConvTranspose2d weight (C2, cout2, 2, 2) -> (C2, 4*cout2), block s=ky*2+kx.
    up_w = jnp.transpose(params["up_w_t"], (0, 2, 3, 1)).reshape(C2, 4 * cout2)

    layer_cfg = []
    flat_w = []
    mids = set()
    cin = C1 + cout2
    for lp in params["layers"]:
        mid = lp["conv1_w_t"].shape[0]
        growth = lp["conv2_w_t"].shape[0]
        s1, b1 = bn_scale_shift(*lp["bn1"])                    # (1, cin)
        s2, b2 = bn_scale_shift(*lp["bn2"])                    # (1, mid)
        # Fold BN2 scale into the 1x1 conv weight (conv -> BN2 is linear).
        w1 = jnp.transpose(lp["conv1_w_t"], (1, 0)) * s2       # (cin, mid)
        # 3x3 conv weight (growth, mid, 3, 3) -> im2col layout (9*mid, growth).
        w2 = jnp.transpose(lp["conv2_w_t"], (2, 3, 1, 0)).reshape(9 * mid, growth)
        flat_w += [s1, b1, w1, b2, w2]
        layer_cfg.append((cin, mid, growth))
        mids.add(mid)
        cin += growth
    assert len(mids) == 1, "shared conv-pad scratch assumes equal bottleneck widths"
    mid = mids.pop()

    wb = jnp.transpose(params["bneck_w_t"], (1, 0))            # (cin_final, bneck)
    bneck = wb.shape[1]

    kernel = _make_fused_kernel(H1, W1, C1, C2, cout2, layer_cfg)

    def whole(arr):
        nd = arr.ndim
        return pl.BlockSpec(arr.shape, lambda n, _nd=nd: (0,) * _nd)

    in_specs = (
        [pl.BlockSpec((None, H1, W1, C1), lambda n: (n, 0, 0, 0)),
         pl.BlockSpec((None, H1, W1, C2), lambda n: (n, 0, 0, 0))]
        + [whole(a) for a in [sel, up_w] + flat_w + [wb]]
    )

    out = pl.pallas_call(
        kernel,
        out_shape=jax.ShapeDtypeStruct((N, H1, W1, bneck), jnp.float32),
        grid=(N,),
        in_specs=in_specs,
        out_specs=pl.BlockSpec((None, H1, W1, bneck), lambda n: (n, 0, 0, 0)),
        scratch_shapes=[pltpu.VMEM((H1 + 2, W1 + 2, mid), jnp.float32)],
        compiler_params=pltpu.CompilerParams(
            dimension_semantics=("parallel",)),   # shards batch across TCs (v7x)
    )(x1, xr, sel, up_w, *flat_w, wb)

    return jnp.transpose(out, (0, 3, 1, 2))       # back to NCHW


# --------------------------- pure-jnp reference -----------------------------

def _conv3x3_ref(x, w):
    N, H, W, Cin = x.shape
    Cout = w.shape[-1]
    xp = jnp.pad(x, ((0, 0), (1, 1), (1, 1), (0, 0)))
    acc = jnp.zeros((N, H, W, Cout), jnp.float32)
    for dy in range(3):
        for dx in range(3):
            acc = acc + jnp.einsum(
                "nhwc,co->nhwo", xp[:, dy:dy + H, dx:dx + W, :], w[dy, dx])
    return acc


def dense_unet_up_reference(params, inputs1_nchw, inputs2_nchw):
    x1 = jnp.transpose(inputs1_nchw, (0, 2, 3, 1)).astype(jnp.float32)
    x2 = jnp.transpose(inputs2_nchw, (0, 2, 3, 1)).astype(jnp.float32)
    N, H1, W1, _ = x1.shape
    _, H2, W2, C2 = x2.shape
    cout2 = params["up_cout"]

    up_w = jnp.transpose(params["up_w_t"], (0, 2, 3, 1)).reshape(C2, 4 * cout2)
    y = jnp.dot(x2.reshape(N * H2 * W2, C2), up_w)
    y = y.reshape(N, H2, W2, 2, 2, cout2)
    y = jnp.transpose(y, (0, 1, 3, 2, 4, 5)).reshape(N, 2 * H2, 2 * W2, cout2)
    y = pad_to_agree(y, H1, W1)
    h = jnp.concatenate([x1, y], axis=-1)

    for lp in params["layers"]:
        s1, b1 = bn_scale_shift(*lp["bn1"])
        s2, b2 = bn_scale_shift(*lp["bn2"])
        a = h * s1.reshape(1, 1, 1, -1) + b1.reshape(1, 1, 1, -1)
        a = jnp.maximum(a, LRELU_SLOPE * a)
        w1 = jnp.transpose(lp["conv1_w_t"], (1, 0))
        m = jnp.einsum("nhwc,cm->nhwm", a, w1)
        m = m * s2.reshape(1, 1, 1, -1) + b2.reshape(1, 1, 1, -1)
        m = jnp.maximum(m, LRELU_SLOPE * m)
        w2 = jnp.transpose(lp["conv2_w_t"], (2, 3, 1, 0))
        g = _conv3x3_ref(m, w2)
        h = jnp.concatenate([h, g], axis=-1)

    wb = jnp.transpose(params["bneck_w_t"], (1, 0))
    out = jnp.einsum("nhwc,co->nhwo", h, wb)
    return jnp.transpose(out, (0, 3, 1, 2))


# ----------------------------- parameter init -------------------------------

def init_params(key, in_size1, in_size2, compress=0.5, num_layers=2,
                growth_rate=4, bn_size=4):
    out_size2 = int(compress * in_size2)
    in_size = in_size1 + out_size2
    bneck_size = int(in_size1 * compress)

    keys = iter(jax.random.split(key, 64))

    def nrm(shape, scale=0.1):
        return scale * jax.random.normal(next(keys), shape, jnp.float32)

    params = {"up_cout": out_size2, "bneck_size": bneck_size}
    # torch ConvTranspose2d layout: (Cin, Cout, kH, kW)
    params["up_w_t"] = nrm((in_size2, out_size2, 2, 2))

    layers = []
    cin = in_size
    for _ in range(num_layers):
        mid = bn_size * growth_rate
        lp = {
            "bn1": (1.0 + nrm((cin,)), nrm((cin,)), nrm((cin,)),
                    1.0 + 0.5 * jnp.abs(nrm((cin,), 1.0))),
            "conv1_w_t": nrm((mid, cin)),                 # torch (out, in) 1x1
            "bn2": (1.0 + nrm((mid,)), nrm((mid,)), nrm((mid,)),
                    1.0 + 0.5 * jnp.abs(nrm((mid,), 1.0))),
            "conv2_w_t": nrm((growth_rate, mid, 3, 3)),   # torch (out, in, kh, kw)
        }
        layers.append(lp)
        cin += growth_rate
    params["layers"] = layers
    params["bneck_w_t"] = nrm((bneck_size, cin))          # torch (out, in) 1x1
    return params


# ----------------------------------- main ------------------------------------

if __name__ == "__main__":
    key = jax.random.PRNGKey(0)
    kp, k1, k2 = jax.random.split(key, 3)

    # Small, forward-consistent shapes: inputs2 spatial is half of inputs1.
    in_size1, in_size2 = 8, 16
    N, H1, W1 = 2, 16, 16
    H2, W2 = 8, 8

    params = init_params(kp, in_size1, in_size2)
    inputs1 = jax.random.normal(k1, (N, in_size1, H1, W1), jnp.float32)
    inputs2 = jax.random.normal(k2, (N, in_size2, H2, W2), jnp.float32)

    fwd = jax.jit(lambda a, b: dense_unet_up_pallas(params, a, b))
    out = jax.block_until_ready(fwd(inputs1, inputs2))

    ref = jax.block_until_ready(dense_unet_up_reference(params, inputs1, inputs2))

    expected_shape = (N, params["bneck_size"], H1, W1)   # (2, 4, 16, 16)
    assert out.shape == expected_shape, (out.shape, expected_shape)
    max_err = float(jnp.max(jnp.abs(out - ref)))
    assert jnp.allclose(out, ref, atol=2e-4, rtol=2e-4), max_err

    print("KERNEL_OK")
</pallas_src>

<mosaic_0001>
module attributes {stable_mosaic.version = 11 : i64} {
  func.func @kernel(%arg0: i32, %arg1: memref<1x16x16x8xf32, #tpu.memory_space<vmem>>, %arg2: memref<1x16x16x16xf32, #tpu.memory_space<vmem>>, %arg3: memref<256x4xf32, #tpu.memory_space<vmem>>, %arg4: memref<16x32xf32, #tpu.memory_space<vmem>>, %arg5: memref<1x16xf32, #tpu.memory_space<vmem>>, %arg6: memref<1x16xf32, #tpu.memory_space<vmem>>, %arg7: memref<16x16xf32, #tpu.memory_space<vmem>>, %arg8: memref<1x16xf32, #tpu.memory_space<vmem>>, %arg9: memref<144x4xf32, #tpu.memory_space<vmem>>, %arg10: memref<1x20xf32, #tpu.memory_space<vmem>>, %arg11: memref<1x20xf32, #tpu.memory_space<vmem>>, %arg12: memref<20x16xf32, #tpu.memory_space<vmem>>, %arg13: memref<1x16xf32, #tpu.memory_space<vmem>>, %arg14: memref<144x4xf32, #tpu.memory_space<vmem>>, %arg15: memref<24x4xf32, #tpu.memory_space<vmem>>, %arg16: memref<1x16x16x4xf32, #tpu.memory_space<vmem>>, %arg17: memref<18x18x16xf32, #tpu.memory_space<vmem>>) attributes {dimension_semantics = [#tpu.dimension_semantics<parallel>], iteration_bounds = array<i64: 2>, scalar_prefetch = 0 : i64, scratch_operands = 1 : i64, tpu.core_type = #tpu.core_type<tc>, window_params = [{transform_indices = @transform_0, window_bounds = array<i64: 1, 16, 16, 8>}, {transform_indices = @transform_1, window_bounds = array<i64: 1, 16, 16, 16>}, {pipeline_mode = #tpu.pipeline_mode<synchronous>, transform_indices = @transform_2, window_bounds = array<i64: 256, 4>}, {pipeline_mode = #tpu.pipeline_mode<synchronous>, transform_indices = @transform_3, window_bounds = array<i64: 16, 32>}, {pipeline_mode = #tpu.pipeline_mode<synchronous>, transform_indices = @transform_4, window_bounds = array<i64: 1, 16>}, {pipeline_mode = #tpu.pipeline_mode<synchronous>, transform_indices = @transform_5, window_bounds = array<i64: 1, 16>}, {pipeline_mode = #tpu.pipeline_mode<synchronous>, transform_indices = @transform_6, window_bounds = array<i64: 16, 16>}, {pipeline_mode = #tpu.pipeline_mode<synchronous>, transform_indices = @transform_7, window_bounds = array<i64: 1, 16>}, {pipeline_mode = #tpu.pipeline_mode<synchronous>, transform_indices = @transform_8, window_bounds = array<i64: 144, 4>}, {pipeline_mode = #tpu.pipeline_mode<synchronous>, transform_indices = @transform_9, window_bounds = array<i64: 1, 20>}, {pipeline_mode = #tpu.pipeline_mode<synchronous>, transform_indices = @transform_10, window_bounds = array<i64: 1, 20>}, {pipeline_mode = #tpu.pipeline_mode<synchronous>, transform_indices = @transform_11, window_bounds = array<i64: 20, 16>}, {pipeline_mode = #tpu.pipeline_mode<synchronous>, transform_indices = @transform_12, window_bounds = array<i64: 1, 16>}, {pipeline_mode = #tpu.pipeline_mode<synchronous>, transform_indices = @transform_13, window_bounds = array<i64: 144, 4>}, {pipeline_mode = #tpu.pipeline_mode<synchronous>, transform_indices = @transform_14, window_bounds = array<i64: 24, 4>}, {transform_indices = @transform_15, window_bounds = array<i64: 1, 16, 16, 4>}]} {
    %c0 = arith.constant 0 : index
    %c0_0 = arith.constant 0 : index
    %c0_1 = arith.constant 0 : index
    %c0_2 = arith.constant 0 : index
    %0 = vector.load %arg1[%c0, %c0_0, %c0_1, %c0_2] : memref<1x16x16x8xf32, #tpu.memory_space<vmem>>, vector<1x16x16x8xf32>
    %1 = vector.shape_cast %0 : vector<1x16x16x8xf32> to vector<16x16x8xf32>
    %2 = vector.shape_cast %1 : vector<16x16x8xf32> to vector<256x8xf32>
    %c0_3 = arith.constant 0 : index
    %c0_4 = arith.constant 0 : index
    %c0_5 = arith.constant 0 : index
    %c0_6 = arith.constant 0 : index
    %3 = vector.load %arg2[%c0_3, %c0_4, %c0_5, %c0_6] : memref<1x16x16x16xf32, #tpu.memory_space<vmem>>, vector<1x16x16x16xf32>
    %4 = vector.shape_cast %3 : vector<1x16x16x16xf32> to vector<16x16x16xf32>
    %5 = vector.shape_cast %4 : vector<16x16x16xf32> to vector<256x16xf32>
    %c0_7 = arith.constant 0 : index
    %c0_8 = arith.constant 0 : index
    %6 = vector.load %arg3[%c0_7, %c0_8] : memref<256x4xf32, #tpu.memory_space<vmem>>, vector<256x4xf32>
    %c0_9 = arith.constant 0 : index
    %c0_10 = arith.constant 0 : index
    %7 = vector.load %arg4[%c0_9, %c0_10] : memref<16x32xf32, #tpu.memory_space<vmem>>, vector<16x32xf32>
    %cst = arith.constant dense<0.000000e+00> : vector<256x32xf32>
    %8 = tpu.matmul %5, %7, %cst {dimension_numbers = #tpu.dot_dimension_numbers<[1], [0], [0], [1], [0, 0, 1, 1], [], []>} : vector<256x16xf32>, vector<16x32xf32>, vector<256x32xf32> -> vector<256x32xf32>
    %9 = vector.extract_strided_slice %6 {offsets = [0, 0], sizes = [256, 1], strides = [1, 1]} : vector<256x4xf32> to vector<256x1xf32>
    %10 = vector.extract_strided_slice %8 {offsets = [0, 0], sizes = [256, 8], strides = [1, 1]} : vector<256x32xf32> to vector<256x8xf32>
    %11 = vector.broadcast %9 : vector<256x1xf32> to vector<256x8xf32>
    %12 = arith.mulf %11, %10 : vector<256x8xf32>
    %13 = vector.extract_strided_slice %6 {offsets = [0, 1], sizes = [256, 1], strides = [1, 1]} : vector<256x4xf32> to vector<256x1xf32>
    %14 = vector.extract_strided_slice %8 {offsets = [0, 8], sizes = [256, 8], strides = [1, 1]} : vector<256x32xf32> to vector<256x8xf32>
    %15 = vector.broadcast %13 : vector<256x1xf32> to vector<256x8xf32>
    %16 = arith.mulf %15, %14 : vector<256x8xf32>
    %17 = arith.addf %12, %16 : vector<256x8xf32>
    %18 = vector.extract_strided_slice %6 {offsets = [0, 2], sizes = [256, 1], strides = [1, 1]} : vector<256x4xf32> to vector<256x1xf32>
    %19 = vector.extract_strided_slice %8 {offsets = [0, 16], sizes = [256, 8], strides = [1, 1]} : vector<256x32xf32> to vector<256x8xf32>
    %20 = vector.broadcast %18 : vector<256x1xf32> to vector<256x8xf32>
    %21 = arith.mulf %20, %19 : vector<256x8xf32>
    %22 = arith.addf %17, %21 : vector<256x8xf32>
    %23 = vector.extract_strided_slice %6 {offsets = [0, 3], sizes = [256, 1], strides = [1, 1]} : vector<256x4xf32> to vector<256x1xf32>
    %24 = vector.extract_strided_slice %8 {offsets = [0, 24], sizes = [256, 8], strides = [1, 1]} : vector<256x32xf32> to vector<256x8xf32>
    %25 = vector.broadcast %23 : vector<256x1xf32> to vector<256x8xf32>
    %26 = arith.mulf %25, %24 : vector<256x8xf32>
    %27 = arith.addf %22, %26 : vector<256x8xf32>
    %28 = tpu.concatenate %2, %27 in 1 : vector<256x8xf32>, vector<256x8xf32> -> vector<256x16xf32>
    %c0_11 = arith.constant 0 : index
    %c0_12 = arith.constant 0 : index
    %29 = vector.load %arg5[%c0_11, %c0_12] : memref<1x16xf32, #tpu.memory_space<vmem>>, vector<1x16xf32>
    %30 = vector.broadcast %29 : vector<1x16xf32> to vector<256x16xf32>
    %31 = arith.mulf %28, %30 : vector<256x16xf32>
    %c0_13 = arith.constant 0 : index
    %c0_14 = arith.constant 0 : index
    %32 = vector.load %arg6[%c0_13, %c0_14] : memref<1x16xf32, #tpu.memory_space<vmem>>, vector<1x16xf32>
    %33 = vector.broadcast %32 : vector<1x16xf32> to vector<256x16xf32>
    %34 = arith.addf %31, %33 : vector<256x16xf32>
    %cst_15 = arith.constant 0.00999999977 : f32
    %35 = vector.broadcast %cst_15 : f32 to vector<256x16xf32>
    %36 = arith.mulf %35, %34 : vector<256x16xf32>
    %37 = arith.maximumf %34, %36 : vector<256x16xf32>
    %c0_16 = arith.constant 0 : index
    %c0_17 = arith.constant 0 : index
    %38 = vector.load %arg7[%c0_16, %c0_17] : memref<16x16xf32, #tpu.memory_space<vmem>>, vector<16x16xf32>
    %cst_18 = arith.constant dense<0.000000e+00> : vector<256x16xf32>
    %39 = tpu.matmul %37, %38, %cst_18 {dimension_numbers = #tpu.dot_dimension_numbers<[1], [0], [0], [1], [0, 0, 1, 1], [], []>} : vector<256x16xf32>, vector<16x16xf32>, vector<256x16xf32> -> vector<256x16xf32>
    %c0_19 = arith.constant 0 : index
    %c0_20 = arith.constant 0 : index
    %40 = vector.load %arg8[%c0_19, %c0_20] : memref<1x16xf32, #tpu.memory_space<vmem>>, vector<1x16xf32>
    %41 = vector.broadcast %40 : vector<1x16xf32> to vector<256x16xf32>
    %42 = arith.addf %39, %41 : vector<256x16xf32>
    %cst_21 = arith.constant 0.00999999977 : f32
    %43 = vector.broadcast %cst_21 : f32 to vector<256x16xf32>
    %44 = arith.mulf %43, %42 : vector<256x16xf32>
    %45 = arith.maximumf %42, %44 : vector<256x16xf32>
    %cst_22 = arith.constant 0.000000e+00 : f32
    %46 = vector.broadcast %cst_22 : f32 to vector<18x18x16xf32>
    %c0_23 = arith.constant 0 : index
    %c0_24 = arith.constant 0 : index
    %c0_25 = arith.constant 0 : index
    %47 = vector.load %arg17[%c0_23, %c0_24, %c0_25] : memref<18x18x16xf32, #tpu.memory_space<vmem>>, vector<18x18x16xf32>
    tpu.vector_store %arg17[%c0_23, %c0_24, %c0_25], %46 {strides = array<i32>} : memref<18x18x16xf32, #tpu.memory_space<vmem>>, vector<18x18x16xf32>,
    %48 = vector.shape_cast %45 : vector<256x16xf32> to vector<16x16x16xf32>
    %c1 = arith.constant 1 : index
    %c1_26 = arith.constant 1 : index
    %c0_27 = arith.constant 0 : index
    %49 = vector.load %arg17[%c1, %c1_26, %c0_27] : memref<18x18x16xf32, #tpu.memory_space<vmem>>, vector<16x16x16xf32>
    tpu.vector_store %arg17[%c1, %c1_26, %c0_27], %48 {strides = array<i32>} : memref<18x18x16xf32, #tpu.memory_space<vmem>>, vector<16x16x16xf32>,
    %c0_28 = arith.constant 0 : index
    %c0_29 = arith.constant 0 : index
    %c0_30 = arith.constant 0 : index
    %50 = vector.load %arg17[%c0_28, %c0_29, %c0_30] : memref<18x18x16xf32, #tpu.memory_space<vmem>>, vector<18x18x16xf32>
    %51 = vector.extract_strided_slice %50 {offsets = [0, 0, 0], sizes = [16, 16, 16], strides = [1, 1, 1]} : vector<18x18x16xf32> to vector<16x16x16xf32>
    %52 = vector.shape_cast %51 : vector<16x16x16xf32> to vector<256x16xf32>
    %53 = vector.extract_strided_slice %50 {offsets = [0, 1, 0], sizes = [16, 16, 16], strides = [1, 1, 1]} : vector<18x18x16xf32> to vector<16x16x16xf32>
    %54 = vector.shape_cast %53 : vector<16x16x16xf32> to vector<256x16xf32>
    %55 = vector.extract_strided_slice %50 {offsets = [0, 2, 0], sizes = [16, 16, 16], strides = [1, 1, 1]} : vector<18x18x16xf32> to vector<16x16x16xf32>
    %56 = vector.shape_cast %55 : vector<16x16x16xf32> to vector<256x16xf32>
    %57 = vector.extract_strided_slice %50 {offsets = [1, 0, 0], sizes = [16, 16, 16], strides = [1, 1, 1]} : vector<18x18x16xf32> to vector<16x16x16xf32>
    %58 = vector.shape_cast %57 : vector<16x16x16xf32> to vector<256x16xf32>
    %59 = vector.extract_strided_slice %50 {offsets = [1, 1, 0], sizes = [16, 16, 16], strides = [1, 1, 1]} : vector<18x18x16xf32> to vector<16x16x16xf32>
    %60 = vector.shape_cast %59 : vector<16x16x16xf32> to vector<256x16xf32>
    %61 = vector.extract_strided_slice %50 {offsets = [1, 2, 0], sizes = [16, 16, 16], strides = [1, 1, 1]} : vector<18x18x16xf32> to vector<16x16x16xf32>
    %62 = vector.shape_cast %61 : vector<16x16x16xf32> to vector<256x16xf32>
    %63 = vector.extract_strided_slice %50 {offsets = [2, 0, 0], sizes = [16, 16, 16], strides = [1, 1, 1]} : vector<18x18x16xf32> to vector<16x16x16xf32>
    %64 = vector.shape_cast %63 : vector<16x16x16xf32> to vector<256x16xf32>
    %65 = vector.extract_strided_slice %50 {offsets = [2, 1, 0], sizes = [16, 16, 16], strides = [1, 1, 1]} : vector<18x18x16xf32> to vector<16x16x16xf32>
    %66 = vector.shape_cast %65 : vector<16x16x16xf32> to vector<256x16xf32>
    %67 = vector.extract_strided_slice %50 {offsets = [2, 2, 0], sizes = [16, 16, 16], strides = [1, 1, 1]} : vector<18x18x16xf32> to vector<16x16x16xf32>
    %68 = vector.shape_cast %67 : vector<16x16x16xf32> to vector<256x16xf32>
    %69 = tpu.concatenate %52, %54, %56, %58, %60, %62, %64, %66, %68 in 1 : vector<256x16xf32>, vector<256x16xf32>, vector<256x16xf32>, vector<256x16xf32>, vector<256x16xf32>, vector<256x16xf32>, vector<256x16xf32>, vector<256x16xf32>, vector<256x16xf32> -> vector<256x144xf32>
    %c0_31 = arith.constant 0 : index
    %c0_32 = arith.constant 0 : index
    %70 = vector.load %arg9[%c0_31, %c0_32] : memref<144x4xf32, #tpu.memory_space<vmem>>, vector<144x4xf32>
    %cst_33 = arith.constant dense<0.000000e+00> : vector<256x4xf32>
    %71 = tpu.matmul %69, %70, %cst_33 {dimension_numbers = #tpu.dot_dimension_numbers<[1], [0], [0], [1], [0, 0, 1, 1], [], []>} : vector<256x144xf32>, vector<144x4xf32>, vector<256x4xf32> -> vector<256x4xf32>
    %72 = tpu.concatenate %28, %71 in 1 : vector<256x16xf32>, vector<256x4xf32> -> vector<256x20xf32>
    %c0_34 = arith.constant 0 : index
    %c0_35 = arith.constant 0 : index
    %73 = vector.load %arg10[%c0_34, %c0_35] : memref<1x20xf32, #tpu.memory_space<vmem>>, vector<1x20xf32>
    %74 = vector.broadcast %73 : vector<1x20xf32> to vector<256x20xf32>
    %75 = arith.mulf %72, %74 : vector<256x20xf32>
    %c0_36 = arith.constant 0 : index
    %c0_37 = arith.constant 0 : index
    %76 = vector.load %arg11[%c0_36, %c0_37] : memref<1x20xf32, #tpu.memory_space<vmem>>, vector<1x20xf32>
    %77 = vector.broadcast %76 : vector<1x20xf32> to vector<256x20xf32>
    %78 = arith.addf %75, %77 : vector<256x20xf32>
    %cst_38 = arith.constant 0.00999999977 : f32
    %79 = vector.broadcast %cst_38 : f32 to vector<256x20xf32>
    %80 = arith.mulf %79, %78 : vector<256x20xf32>
    %81 = arith.maximumf %78, %80 : vector<256x20xf32>
    %c0_39 = arith.constant 0 : index
    %c0_40 = arith.constant 0 : index
    %82 = vector.load %arg12[%c0_39, %c0_40] : memref<20x16xf32, #tpu.memory_space<vmem>>, vector<20x16xf32>
    %cst_41 = arith.constant dense<0.000000e+00> : vector<256x16xf32>
    %83 = tpu.matmul %81, %82, %cst_41 {dimension_numbers = #tpu.dot_dimension_numbers<[1], [0], [0], [1], [0, 0, 1, 1], [], []>} : vector<256x20xf32>, vector<20x16xf32>, vector<256x16xf32> -> vector<256x16xf32>
    %c0_42 = arith.constant 0 : index
    %c0_43 = arith.constant 0 : index
    %84 = vector.load %arg13[%c0_42, %c0_43] : memref<1x16xf32, #tpu.memory_space<vmem>>, vector<1x16xf32>
    %85 = vector.broadcast %84 : vector<1x16xf32> to vector<256x16xf32>
    %86 = arith.addf %83, %85 : vector<256x16xf32>
    %cst_44 = arith.constant 0.00999999977 : f32
    %87 = vector.broadcast %cst_44 : f32 to vector<256x16xf32>
    %88 = arith.mulf %87, %86 : vector<256x16xf32>
    %89 = arith.maximumf %86, %88 : vector<256x16xf32>
    %cst_45 = arith.constant 0.000000e+00 : f32
    %90 = vector.broadcast %cst_45 : f32 to vector<18x18x16xf32>
    %c0_46 = arith.constant 0 : index
    %c0_47 = arith.constant 0 : index
    %c0_48 = arith.constant 0 : index
    %91 = vector.load %arg17[%c0_46, %c0_47, %c0_48] : memref<18x18x16xf32, #tpu.memory_space<vmem>>, vector<18x18x16xf32>
    tpu.vector_store %arg17[%c0_46, %c0_47, %c0_48], %90 {strides = array<i32>} : memref<18x18x16xf32, #tpu.memory_space<vmem>>, vector<18x18x16xf32>,
    %92 = vector.shape_cast %89 : vector<256x16xf32> to vector<16x16x16xf32>
    %c1_49 = arith.constant 1 : index
    %c1_50 = arith.constant 1 : index
    %c0_51 = arith.constant 0 : index
    %93 = vector.load %arg17[%c1_49, %c1_50, %c0_51] : memref<18x18x16xf32, #tpu.memory_space<vmem>>, vector<16x16x16xf32>
    tpu.vector_store %arg17[%c1_49, %c1_50, %c0_51], %92 {strides = array<i32>} : memref<18x18x16xf32, #tpu.memory_space<vmem>>, vector<16x16x16xf32>,
    %c0_52 = arith.constant 0 : index
    %c0_53 = arith.constant 0 : index
    %c0_54 = arith.constant 0 : index
    %94 = vector.load %arg17[%c0_52, %c0_53, %c0_54] : memref<18x18x16xf32, #tpu.memory_space<vmem>>, vector<18x18x16xf32>
    %95 = vector.extract_strided_slice %94 {offsets = [0, 0, 0], sizes = [16, 16, 16], strides = [1, 1, 1]} : vector<18x18x16xf32> to vector<16x16x16xf32>
    %96 = vector.shape_cast %95 : vector<16x16x16xf32> to vector<256x16xf32>
    %97 = vector.extract_strided_slice %94 {offsets = [0, 1, 0], sizes = [16, 16, 16], strides = [1, 1, 1]} : vector<18x18x16xf32> to vector<16x16x16xf32>
    %98 = vector.shape_cast %97 : vector<16x16x16xf32> to vector<256x16xf32>
    %99 = vector.extract_strided_slice %94 {offsets = [0, 2, 0], sizes = [16, 16, 16], strides = [1, 1, 1]} : vector<18x18x16xf32> to vector<16x16x16xf32>
    %100 = vector.shape_cast %99 : vector<16x16x16xf32> to vector<256x16xf32>
    %101 = vector.extract_strided_slice %94 {offsets = [1, 0, 0], sizes = [16, 16, 16], strides = [1, 1, 1]} : vector<18x18x16xf32> to vector<16x16x16xf32>
    %102 = vector.shape_cast %101 : vector<16x16x16xf32> to vector<256x16xf32>
    %103 = vector.extract_strided_slice %94 {offsets = [1, 1, 0], sizes = [16, 16, 16], strides = [1, 1, 1]} : vector<18x18x16xf32> to vector<16x16x16xf32>
    %104 = vector.shape_cast %103 : vector<16x16x16xf32> to vector<256x16xf32>
    %105 = vector.extract_strided_slice %94 {offsets = [1, 2, 0], sizes = [16, 16, 16], strides = [1, 1, 1]} : vector<18x18x16xf32> to vector<16x16x16xf32>
    %106 = vector.shape_cast %105 : vector<16x16x16xf32> to vector<256x16xf32>
    %107 = vector.extract_strided_slice %94 {offsets = [2, 0, 0], sizes = [16, 16, 16], strides = [1, 1, 1]} : vector<18x18x16xf32> to vector<16x16x16xf32>
    %108 = vector.shape_cast %107 : vector<16x16x16xf32> to vector<256x16xf32>
    %109 = vector.extract_strided_slice %94 {offsets = [2, 1, 0], sizes = [16, 16, 16], strides = [1, 1, 1]} : vector<18x18x16xf32> to vector<16x16x16xf32>
    %110 = vector.shape_cast %109 : vector<16x16x16xf32> to vector<256x16xf32>
    %111 = vector.extract_strided_slice %94 {offsets = [2, 2, 0], sizes = [16, 16, 16], strides = [1, 1, 1]} : vector<18x18x16xf32> to vector<16x16x16xf32>
    %112 = vector.shape_cast %111 : vector<16x16x16xf32> to vector<256x16xf32>
    %113 = tpu.concatenate %96, %98, %100, %102, %104, %106, %108, %110, %112 in 1 : vector<256x16xf32>, vector<256x16xf32>, vector<256x16xf32>, vector<256x16xf32>, vector<256x16xf32>, vector<256x16xf32>, vector<256x16xf32>, vector<256x16xf32>, vector<256x16xf32> -> vector<256x144xf32>
    %c0_55 = arith.constant 0 : index
    %c0_56 = arith.constant 0 : index
    %114 = vector.load %arg14[%c0_55, %c0_56] : memref<144x4xf32, #tpu.memory_space<vmem>>, vector<144x4xf32>
    %cst_57 = arith.constant dense<0.000000e+00> : vector<256x4xf32>
    %115 = tpu.matmul %113, %114, %cst_57 {dimension_numbers = #tpu.dot_dimension_numbers<[1], [0], [0], [1], [0, 0, 1, 1], [], []>} : vector<256x144xf32>, vector<144x4xf32>, vector<256x4xf32> -> vector<256x4xf32>
    %116 = tpu.concatenate %72, %115 in 1 : vector<256x20xf32>, vector<256x4xf32> -> vector<256x24xf32>
    %c0_58 = arith.constant 0 : index
    %c0_59 = arith.constant 0 : index
    %117 = vector.load %arg15[%c0_58, %c0_59] : memref<24x4xf32, #tpu.memory_space<vmem>>, vector<24x4xf32>
    %cst_60 = arith.constant dense<0.000000e+00> : vector<256x4xf32>
    %118 = tpu.matmul %116, %117, %cst_60 {dimension_numbers = #tpu.dot_dimension_numbers<[1], [0], [0], [1], [0, 0, 1, 1], [], []>} : vector<256x24xf32>, vector<24x4xf32>, vector<256x4xf32> -> vector<256x4xf32>
    %119 = vector.shape_cast %118 : vector<256x4xf32> to vector<16x16x4xf32>
    %c0_61 = arith.constant 0 : index
    %c0_62 = arith.constant 0 : index
    %c0_63 = arith.constant 0 : index
    %c0_64 = arith.constant 0 : index
    %120 = vector.load %arg16[%c0_61, %c0_62, %c0_63, %c0_64] : memref<1x16x16x4xf32, #tpu.memory_space<vmem>>, vector<1x16x16x4xf32>
    %121 = vector.shape_cast %120 : vector<1x16x16x4xf32> to vector<16x16x4xf32>
    %122 = vector.shape_cast %119 : vector<16x16x4xf32> to vector<1x16x16x4xf32>
    tpu.vector_store %arg16[%c0_61, %c0_62, %c0_63, %c0_64], %122 {strides = array<i32>} : memref<1x16x16x4xf32, #tpu.memory_space<vmem>>, vector<1x16x16x4xf32>,
    return
  }
  func.func @transform_0(%arg0: i32) -> (i32, i32, i32, i32) {
    %c0_i32 = arith.constant 0 : i32
    %c0_i32_0 = arith.constant 0 : i32
    %c0_i32_1 = arith.constant 0 : i32
    %c0_i32_2 = arith.constant 0 : i32
    return %arg0, %c0_i32, %c0_i32_0, %c0_i32_1 : i32, i32, i32, i32
  }
  func.func @transform_1(%arg0: i32) -> (i32, i32, i32, i32) {
    %c0_i32 = arith.constant 0 : i32
    %c0_i32_0 = arith.constant 0 : i32
    %c0_i32_1 = arith.constant 0 : i32
    %c0_i32_2 = arith.constant 0 : i32
    return %arg0, %c0_i32, %c0_i32_0, %c0_i32_1 : i32, i32, i32, i32
  }
  func.func @transform_2(%arg0: i32) -> (i32, i32) {
    %c0_i32 = arith.constant 0 : i32
    %c0_i32_0 = arith.constant 0 : i32
    %c0_i32_1 = arith.constant 0 : i32
    return %c0_i32, %c0_i32_0 : i32, i32
  }
  func.func @transform_3(%arg0: i32) -> (i32, i32) {
    %c0_i32 = arith.constant 0 : i32
    %c0_i32_0 = arith.constant 0 : i32
    %c0_i32_1 = arith.constant 0 : i32
    return %c0_i32, %c0_i32_0 : i32, i32
  }
  func.func @transform_4(%arg0: i32) -> (i32, i32) {
    %c0_i32 = arith.constant 0 : i32
    %c0_i32_0 = arith.constant 0 : i32
    %c0_i32_1 = arith.constant 0 : i32
    return %c0_i32, %c0_i32_0 : i32, i32
  }
  func.func @transform_5(%arg0: i32) -> (i32, i32) {
    %c0_i32 = arith.constant 0 : i32
    %c0_i32_0 = arith.constant 0 : i32
    %c0_i32_1 = arith.constant 0 : i32
    return %c0_i32, %c0_i32_0 : i32, i32
  }
  func.func @transform_6(%arg0: i32) -> (i32, i32) {
    %c0_i32 = arith.constant 0 : i32
    %c0_i32_0 = arith.constant 0 : i32
    %c0_i32_1 = arith.constant 0 : i32
    return %c0_i32, %c0_i32_0 : i32, i32
  }
  func.func @transform_7(%arg0: i32) -> (i32, i32) {
    %c0_i32 = arith.constant 0 : i32
    %c0_i32_0 = arith.constant 0 : i32
    %c0_i32_1 = arith.constant 0 : i32
    return %c0_i32, %c0_i32_0 : i32, i32
  }
  func.func @transform_8(%arg0: i32) -> (i32, i32) {
    %c0_i32 = arith.constant 0 : i32
    %c0_i32_0 = arith.constant 0 : i32
    %c0_i32_1 = arith.constant 0 : i32
    return %c0_i32, %c0_i32_0 : i32, i32
  }
  func.func @transform_9(%arg0: i32) -> (i32, i32) {
    %c0_i32 = arith.constant 0 : i32
    %c0_i32_0 = arith.constant 0 : i32
    %c0_i32_1 = arith.constant 0 : i32
    return %c0_i32, %c0_i32_0 : i32, i32
  }
  func.func @transform_10(%arg0: i32) -> (i32, i32) {
    %c0_i32 = arith.constant 0 : i32
    %c0_i32_0 = arith.constant 0 : i32
    %c0_i32_1 = arith.constant 0 : i32
    return %c0_i32, %c0_i32_0 : i32, i32
  }
  func.func @transform_11(%arg0: i32) -> (i32, i32) {
    %c0_i32 = arith.constant 0 : i32
    %c0_i32_0 = arith.constant 0 : i32
    %c0_i32_1 = arith.constant 0 : i32
    return %c0_i32, %c0_i32_0 : i32, i32
  }
  func.func @transform_12(%arg0: i32) -> (i32, i32) {
    %c0_i32 = arith.constant 0 : i32
    %c0_i32_0 = arith.constant 0 : i32
    %c0_i32_1 = arith.constant 0 : i32
    return %c0_i32, %c0_i32_0 : i32, i32
  }
  func.func @transform_13(%arg0: i32) -> (i32, i32) {
    %c0_i32 = arith.constant 0 : i32
    %c0_i32_0 = arith.constant 0 : i32
    %c0_i32_1 = arith.constant 0 : i32
    return %c0_i32, %c0_i32_0 : i32, i32
  }
  func.func @transform_14(%arg0: i32) -> (i32, i32) {
    %c0_i32 = arith.constant 0 : i32
    %c0_i32_0 = arith.constant 0 : i32
    %c0_i32_1 = arith.constant 0 : i32
    return %c0_i32, %c0_i32_0 : i32, i32
  }
  func.func @transform_15(%arg0: i32) -> (i32, i32, i32, i32) {
    %c0_i32 = arith.constant 0 : i32
    %c0_i32_0 = arith.constant 0 : i32
    %c0_i32_1 = arith.constant 0 : i32
    %c0_i32_2 = arith.constant 0 : i32
    return %arg0, %c0_i32, %c0_i32_0, %c0_i32_1 : i32, i32, i32, i32
  }
}

</mosaic_0001>

<llo_original>
// kernel: _lambda_.1
$region0: #{_lambda_.1}
  #allocation0 [shape = 'u32[]', space=smem, size = 0x4, offset = 0x4, fixed_abs, tag = 'smem constant byte address 0x4 - core index']
  #allocation1 [shape = 'u32[144,128]{1,0:T(1,128)}', space=vmem, size = 0x12000, scoped, tag = 'internal scratch']
  #allocation2 [shape = 'f32[18,18,16]{2,1,0:T(8,128)}', space=vmem, size = 0x36000, scoped, tag = 'scratch operand']
  %s0 = inlined_call_operand.vmem [shape: f32[2,16,16,8], index: 0, kind: input, shape index: {}]
  %s1 = inlined_call_operand.vmem [shape: f32[2,16,16,16], index: 1, kind: input, shape index: {}]
  %s2 = inlined_call_operand.vmem [shape: f32[256,4], index: 2, kind: input, shape index: {}]
  %s3 = inlined_call_operand.vmem [shape: f32[16,32], index: 3, kind: input, shape index: {}]
  %s4 = inlined_call_operand.vmem [shape: f32[1,16], index: 4, kind: input, shape index: {}]
  %s5 = inlined_call_operand.vmem [shape: f32[1,16], index: 5, kind: input, shape index: {}]
  %s6 = inlined_call_operand.vmem [shape: f32[16,16], index: 6, kind: input, shape index: {}]
  %s7 = inlined_call_operand.vmem [shape: f32[1,16], index: 7, kind: input, shape index: {}]
  %s8 = inlined_call_operand.vmem [shape: f32[144,4], index: 8, kind: input, shape index: {}]
  %s9 = inlined_call_operand.vmem [shape: f32[1,20], index: 9, kind: input, shape index: {}]
  %s10 = inlined_call_operand.vmem [shape: f32[1,20], index: 10, kind: input, shape index: {}]
  %s11 = inlined_call_operand.vmem [shape: f32[20,16], index: 11, kind: input, shape index: {}]
  %s12 = inlined_call_operand.vmem [shape: f32[1,16], index: 12, kind: input, shape index: {}]
  %s13 = inlined_call_operand.vmem [shape: f32[144,4], index: 13, kind: input, shape index: {}]
  %s14 = inlined_call_operand.vmem [shape: f32[24,4], index: 14, kind: input, shape index: {}]
  %s15 = inlined_call_operand.vmem [shape: f32[2,16,16,4], index: 15, kind: output, shape index: {}]
  %s16 = sld [smem:[#allocation0]]
  $region93: #{_lambda_.1} parent=0
    _
  %s18 = ssub.s32 1, %s16
  %s19 = scalar_select 0, %s18, %s16
  loop: start=0, step=1, limit=4
  $region2: #{_lambda_.1} parent=0 // loop_pre_header
    _
  $region3: #{_lambda_.1} parent=0 // loop_header
    %s21 = sphi 0, %s25
    %p22 = scmp.ge.s32.totalorder %s21, 4
    %s31 = sphi 0, %s33
    %s34 = sphi 0, %s31
    %s35 = sphi 0, %s34
    %s51 = sphi 0, %s35
    %s57 = sphi 0, %s59
    %s60 = sphi 0, %s57
    %s61 = sphi 0, %s60
    %s77 = sphi 0, %s61
    %s81 = sphi 0, %s81
    %s83 = sphi 0, %s81
    %s84 = sphi 0, %s83
    %s98 = sphi 0, %s84
    %s102 = sphi 0, %s102
    %s104 = sphi 0, %s102
    %s105 = sphi 0, %s104
    %s119 = sphi 0, %s105
    %s123 = sphi 0, %s123
    %s125 = sphi 0, %s123
    %s126 = sphi 0, %s125
    %s140 = sphi 0, %s126
    %s144 = sphi 0, %s144
    %s146 = sphi 0, %s144
    %s147 = sphi 0, %s146
    %s161 = sphi 0, %s147
    %s165 = sphi 0, %s165
    %s167 = sphi 0, %s165
    %s168 = sphi 0, %s167
    %s182 = sphi 0, %s168
    %s186 = sphi 0, %s186
    %s188 = sphi 0, %s186
    %s189 = sphi 0, %s188
    %s203 = sphi 0, %s189
    %s207 = sphi 0, %s207
    %s209 = sphi 0, %s207
    %s210 = sphi 0, %s209
    %s224 = sphi 0, %s210
    %s228 = sphi 0, %s228
    %s230 = sphi 0, %s228
    %s231 = sphi 0, %s230
    %s245 = sphi 0, %s231
    %s249 = sphi 0, %s249
    %s251 = sphi 0, %s249
    %s252 = sphi 0, %s251
    %s266 = sphi 0, %s252
    %s270 = sphi 0, %s270
    %s272 = sphi 0, %s270
    %s273 = sphi 0, %s272
    %s287 = sphi 0, %s273
    %s291 = sphi 0, %s291
    %s293 = sphi 0, %s291
    %s294 = sphi 0, %s293
    %s308 = sphi 0, %s294
    %s312 = sphi 0, %s312
    %s314 = sphi 0, %s312
    %s315 = sphi 0, %s314
    %s329 = sphi 0, %s315
    %s333 = sphi 0, %s333
    %s335 = sphi 0, %s333
    %s336 = sphi 0, %s335
    %s350 = sphi 0, %s336
    %s356 = sphi 0, %s358
    %s359 = sphi 0, %s356
    %s360 = sphi 0, %s359
    %s376 = sphi 0, %s360
  $region4: #{_lambda_.1} parent=0 // loop_header_branch
    %24 = sbr.rel (%p22) target = $region8
  $region5: #{_lambda_.1} parent=0 // loop_body
    %s26 = ssub.s32 %s21, 1
    %s27 = ssub.s32 %s21, 2
    %s28 = sadd.s32 %s21, 1
    %s29 = ssub.s32 %s21, %s28
    %p30 = scmp.eq.s32.totalorder %s29, 0
    %s32 = sadd.s32 %s31, 1
    %s33 = scalar_select %p30, %s31, %s32
    %p36 = pneg %p30
    %p37 = scmp.eq.s32.totalorder %s21, 1
    %p38 = por %p36, %p37
    %p39 = scmp.ne.s32.totalorder %s31, %s34
    %p40 = scmp.eq.s32.totalorder %s21, 0
    %p41 = por %p39, %p40
    %p42 = scmp.ne.s32.totalorder %s31, %s34
    %p43 = scmp.eq.s32.totalorder %s26, 1
    %p44 = por %p42, %p43
    %p45 = scmp.ne.s32.totalorder %s34, %s35
    %p46 = scmp.eq.s32.totalorder %s26, 0
    %p47 = por %p45, %p46
    %p48 = scmp.ne.s32.totalorder %s34, %s35
    %p49 = scmp.eq.s32.totalorder %s27, 1
    %p50 = por %p48, %p49
    %p52 = scmp.ne.s32.totalorder %s35, %s51
    %p53 = scmp.eq.s32.totalorder %s27, 0
    %p54 = por %p52, %p53
    %s55 = ssub.s32 %s21, %s28
    %p56 = scmp.eq.s32.totalorder %s55, 0
    %s58 = sadd.s32 %s57, 1
    %s59 = scalar_select %p56, %s57, %s58
    %p62 = pneg %p56
    %p63 = scmp.eq.s32.totalorder %s21, 1
    %p64 = por %p62, %p63
    %p65 = scmp.ne.s32.totalorder %s57, %s60
    %p66 = scmp.eq.s32.totalorder %s21, 0
    %p67 = por %p65, %p66
    %p68 = scmp.ne.s32.totalorder %s57, %s60
    %p69 = scmp.eq.s32.totalorder %s26, 1
    %p70 = por %p68, %p69
    %p71 = scmp.ne.s32.totalorder %s60, %s61
    %p72 = scmp.eq.s32.totalorder %s26, 0
    %p73 = por %p71, %p72
    %p74 = scmp.ne.s32.totalorder %s60, %s61
    %p75 = scmp.eq.s32.totalorder %s27, 1
    %p76 = por %p74, %p75
    %p78 = scmp.ne.s32.totalorder %s61, %s77
    %p79 = scmp.eq.s32.totalorder %s27, 0
    %p80 = por %p78, %p79
    %s82 = sadd.s32 %s81, 1
    %p85 = scmp.eq.s32.totalorder %s21, 1
    %p86 = scmp.ne.s32.totalorder %s81, %s83
    %p87 = scmp.eq.s32.totalorder %s21, 0
    %p88 = por %p86, %p87
    %p89 = scmp.ne.s32.totalorder %s81, %s83
    %p90 = scmp.eq.s32.totalorder %s26, 1
    %p91 = por %p89, %p90
    %p92 = scmp.ne.s32.totalorder %s83, %s84
    %p93 = scmp.eq.s32.totalorder %s26, 0
    %p94 = por %p92, %p93
    %p95 = scmp.ne.s32.totalorder %s83, %s84
    %p96 = scmp.eq.s32.totalorder %s27, 1
    %p97 = por %p95, %p96
    %p99 = scmp.ne.s32.totalorder %s84, %s98
    %p100 = scmp.eq.s32.totalorder %s27, 0
    %p101 = por %p99, %p100
    %s103 = sadd.s32 %s102, 1
    %p106 = scmp.eq.s32.totalorder %s21, 1
    %p107 = scmp.ne.s32.totalorder %s102, %s104
    %p108 = scmp.eq.s32.totalorder %s21, 0
    %p109 = por %p107, %p108
    %p110 = scmp.ne.s32.totalorder %s102, %s104
    %p111 = scmp.eq.s32.totalorder %s26, 1
    %p112 = por %p110, %p111
    %p113 = scmp.ne.s32.totalorder %s104, %s105
    %p114 = scmp.eq.s32.totalorder %s26, 0
    %p115 = por %p113, %p114
    %p116 = scmp.ne.s32.totalorder %s104, %s105
    %p117 = scmp.eq.s32.totalorder %s27, 1
    %p118 = por %p116, %p117
    %p120 = scmp.ne.s32.totalorder %s105, %s119
    %p121 = scmp.eq.s32.totalorder %s27, 0
    %p122 = por %p120, %p121
    %s124 = sadd.s32 %s123, 1
    %p127 = scmp.eq.s32.totalorder %s21, 1
    %p128 = scmp.ne.s32.totalorder %s123, %s125
    %p129 = scmp.eq.s32.totalorder %s21, 0
    %p130 = por %p128, %p129
    %p131 = scmp.ne.s32.totalorder %s123, %s125
    %p132 = scmp.eq.s32.totalorder %s26, 1
    %p133 = por %p131, %p132
    %p134 = scmp.ne.s32.totalorder %s125, %s126
    %p135 = scmp.eq.s32.totalorder %s26, 0
    %p136 = por %p134, %p135
    %p137 = scmp.ne.s32.totalorder %s125, %s126
    %p138 = scmp.eq.s32.totalorder %s27, 1
    %p139 = por %p137, %p138
    %p141 = scmp.ne.s32.totalorder %s126, %s140
    %p142 = scmp.eq.s32.totalorder %s27, 0
    %p143 = por %p141, %p142
    %s145 = sadd.s32 %s144, 1
    %p148 = scmp.eq.s32.totalorder %s21, 1
    %p149 = scmp.ne.s32.totalorder %s144, %s146
    %p150 = scmp.eq.s32.totalorder %s21, 0
    %p151 = por %p149, %p150
    %p152 = scmp.ne.s32.totalorder %s144, %s146
    %p153 = scmp.eq.s32.totalorder %s26, 1
    %p154 = por %p152, %p153
    %p155 = scmp.ne.s32.totalorder %s146, %s147
    %p156 = scmp.eq.s32.totalorder %s26, 0
    %p157 = por %p155, %p156
    %p158 = scmp.ne.s32.totalorder %s146, %s147
    %p159 = scmp.eq.s32.totalorder %s27, 1
    %p160 = por %p158, %p159
    %p162 = scmp.ne.s32.totalorder %s147, %s161
    %p163 = scmp.eq.s32.totalorder %s27, 0
    %p164 = por %p162, %p163
    %s166 = sadd.s32 %s165, 1
    %p169 = scmp.eq.s32.totalorder %s21, 1
    %p170 = scmp.ne.s32.totalorder %s165, %s167
    %p171 = scmp.eq.s32.totalorder %s21, 0
    %p172 = por %p170, %p171
    %p173 = scmp.ne.s32.totalorder %s165, %s167
    %p174 = scmp.eq.s32.totalorder %s26, 1
    %p175 = por %p173, %p174
    %p176 = scmp.ne.s32.totalorder %s167, %s168
    %p177 = scmp.eq.s32.totalorder %s26, 0
    %p178 = por %p176, %p177
    %p179 = scmp.ne.s32.totalorder %s167, %s168
    %p180 = scmp.eq.s32.totalorder %s27, 1
    %p181 = por %p179, %p180
    %p183 = scmp.ne.s32.totalorder %s168, %s182
    %p184 = scmp.eq.s32.totalorder %s27, 0
    %p185 = por %p183, %p184
    %s187 = sadd.s32 %s186, 1
    %p190 = scmp.eq.s32.totalorder %s21, 1
    %p191 = scmp.ne.s32.totalorder %s186, %s188
    %p192 = scmp.eq.s32.totalorder %s21, 0
    %p193 = por %p191, %p192
    %p194 = scmp.ne.s32.totalorder %s186, %s188
    %p195 = scmp.eq.s32.totalorder %s26, 1
    %p196 = por %p194, %p195
    %p197 = scmp.ne.s32.totalorder %s188, %s189
    %p198 = scmp.eq.s32.totalorder %s26, 0
    %p199 = por %p197, %p198
    %p200 = scmp.ne.s32.totalorder %s188, %s189
    %p201 = scmp.eq.s32.totalorder %s27, 1
    %p202 = por %p200, %p201
    %p204 = scmp.ne.s32.totalorder %s189, %s203
    %p205 = scmp.eq.s32.totalorder %s27, 0
    %p206 = por %p204, %p205
    %s208 = sadd.s32 %s207, 1
    %p211 = scmp.eq.s32.totalorder %s21, 1
    %p212 = scmp.ne.s32.totalorder %s207, %s209
    %p213 = scmp.eq.s32.totalorder %s21, 0
    %p214 = por %p212, %p213
    %p215 = scmp.ne.s32.totalorder %s207, %s209
    %p216 = scmp.eq.s32.totalorder %s26, 1
    %p217 = por %p215, %p216
    %p218 = scmp.ne.s32.totalorder %s209, %s210
    %p219 = scmp.eq.s32.totalorder %s26, 0
    %p220 = por %p218, %p219
    %p221 = scmp.ne.s32.totalorder %s209, %s210
    %p222 = scmp.eq.s32.totalorder %s27, 1
    %p223 = por %p221, %p222
    %p225 = scmp.ne.s32.totalorder %s210, %s224
    %p226 = scmp.eq.s32.totalorder %s27, 0
    %p227 = por %p225, %p226
    %s229 = sadd.s32 %s228, 1
    %p232 = scmp.eq.s32.totalorder %s21, 1
    %p233 = scmp.ne.s32.totalorder %s228, %s230
    %p234 = scmp.eq.s32.totalorder %s21, 0
    %p235 = por %p233, %p234
    %p236 = scmp.ne.s32.totalorder %s228, %s230
    %p237 = scmp.eq.s32.totalorder %s26, 1
    %p238 = por %p236, %p237
    %p239 = scmp.ne.s32.totalorder %s230, %s231
    %p240 = scmp.eq.s32.totalorder %s26, 0
    %p241 = por %p239, %p240
    %p242 = scmp.ne.s32.totalorder %s230, %s231
    %p243 = scmp.eq.s32.totalorder %s27, 1
    %p244 = por %p242, %p243
    %p246 = scmp.ne.s32.totalorder %s231, %s245
    %p247 = scmp.eq.s32.totalorder %s27, 0
    %p248 = por %p246, %p247
    %s250 = sadd.s32 %s249, 1
    %p253 = scmp.eq.s32.totalorder %s21, 1
    %p254 = scmp.ne.s32.totalorder %s249, %s251
    %p255 = scmp.eq.s32.totalorder %s21, 0
    %p256 = por %p254, %p255
    %p257 = scmp.ne.s32.totalorder %s249, %s251
    %p258 = scmp.eq.s32.totalorder %s26, 1
    %p259 = por %p257, %p258
    %p260 = scmp.ne.s32.totalorder %s251, %s252
    %p261 = scmp.eq.s32.totalorder %s26, 0
    %p262 = por %p260, %p261
    %p263 = scmp.ne.s32.totalorder %s251, %s252
    %p264 = scmp.eq.s32.totalorder %s27, 1
    %p265 = por %p263, %p264
    %p267 = scmp.ne.s32.totalorder %s252, %s266
    %p268 = scmp.eq.s32.totalorder %s27, 0
    %p269 = por %p267, %p268
    %s271 = sadd.s32 %s270, 1
    %p274 = scmp.eq.s32.totalorder %s21, 1
    %p275 = scmp.ne.s32.totalorder %s270, %s272
    %p276 = scmp.eq.s32.totalorder %s21, 0
    %p277 = por %p275, %p276
    %p278 = scmp.ne.s32.totalorder %s270, %s272
    %p279 = scmp.eq.s32.totalorder %s26, 1
    %p280 = por %p278, %p279
    %p281 = scmp.ne.s32.totalorder %s272, %s273
    %p282 = scmp.eq.s32.totalorder %s26, 0
    %p283 = por %p281, %p282
    %p284 = scmp.ne.s32.totalorder %s272, %s273
    %p285 = scmp.eq.s32.totalorder %s27, 1
    %p286 = por %p284, %p285
    %p288 = scmp.ne.s32.totalorder %s273, %s287
    %p289 = scmp.eq.s32.totalorder %s27, 0
    %p290 = por %p288, %p289
    %s292 = sadd.s32 %s291, 1
    %p295 = scmp.eq.s32.totalorder %s21, 1
    %p296 = scmp.ne.s32.totalorder %s291, %s293
    %p297 = scmp.eq.s32.totalorder %s21, 0
    %p298 = por %p296, %p297
    %p299 = scmp.ne.s32.totalorder %s291, %s293
    %p300 = scmp.eq.s32.totalorder %s26, 1
    %p301 = por %p299, %p300
    %p302 = scmp.ne.s32.totalorder %s293, %s294
    %p303 = scmp.eq.s32.totalorder %s26, 0
    %p304 = por %p302, %p303
    %p305 = scmp.ne.s32.totalorder %s293, %s294
    %p306 = scmp.eq.s32.totalorder %s27, 1
    %p307 = por %p305, %p306
    %p309 = scmp.ne.s32.totalorder %s294, %s308
    %p310 = scmp.eq.s32.totalorder %s27, 0
    %p311 = por %p309, %p310
    %s313 = sadd.s32 %s312, 1
    %p316 = scmp.eq.s32.totalorder %s21, 1
    %p317 = scmp.ne.s32.totalorder %s312, %s314
    %p318 = scmp.eq.s32.totalorder %s21, 0
    %p319 = por %p317, %p318
    %p320 = scmp.ne.s32.totalorder %s312, %s314
    %p321 = scmp.eq.s32.totalorder %s26, 1
    %p322 = por %p320, %p321
    %p323 = scmp.ne.s32.totalorder %s314, %s315
    %p324 = scmp.eq.s32.totalorder %s26, 0
    %p325 = por %p323, %p324
    %p326 = scmp.ne.s32.totalorder %s314, %s315
    %p327 = scmp.eq.s32.totalorder %s27, 1
    %p328 = por %p326, %p327
    %p330 = scmp.ne.s32.totalorder %s315, %s329
    %p331 = scmp.eq.s32.totalorder %s27, 0
    %p332 = por %p330, %p331
    %s334 = sadd.s32 %s333, 1
    %p337 = scmp.eq.s32.totalorder %s21, 1
    %p338 = scmp.ne.s32.totalorder %s333, %s335
    %p339 = scmp.eq.s32.totalorder %s21, 0
    %p340 = por %p338, %p339
    %p341 = scmp.ne.s32.totalorder %s333, %s335
    %p342 = scmp.eq.s32.totalorder %s26, 1
    %p343 = por %p341, %p342
    %p344 = scmp.ne.s32.totalorder %s335, %s336
    %p345 = scmp.eq.s32.totalorder %s26, 0
    %p346 = por %p344, %p345
    %p347 = scmp.ne.s32.totalorder %s335, %s336
    %p348 = scmp.eq.s32.totalorder %s27, 1
    %p349 = por %p347, %p348
    %p351 = scmp.ne.s32.totalorder %s336, %s350
    %p352 = scmp.eq.s32.totalorder %s27, 0
    %p353 = por %p351, %p352
    %s354 = ssub.s32 %s21, %s28
    %p355 = scmp.eq.s32.totalorder %s354, 0
    %s357 = sadd.s32 %s356, 1
    %s358 = scalar_select %p355, %s356, %s357
    %p361 = pneg %p355
    %p362 = scmp.eq.s32.totalorder %s21, 1
    %p363 = por %p361, %p362
    %p364 = scmp.ne.s32.totalorder %s356, %s359
    %p365 = scmp.eq.s32.totalorder %s21, 0
    %p366 = por %p364, %p365
    %p367 = scmp.ne.s32.totalorder %s356, %s359
    %p368 = scmp.eq.s32.totalorder %s26, 1
    %p369 = por %p367, %p368
    %p370 = scmp.ne.s32.totalorder %s359, %s360
    %p371 = scmp.eq.s32.totalorder %s26, 0
    %p372 = por %p370, %p371
    %p373 = scmp.ne.s32.totalorder %s359, %s360
    %p374 = scmp.eq.s32.totalorder %s27, 1
    %p375 = por %p373, %p374
    %p377 = scmp.ne.s32.totalorder %s360, %s376
    %p378 = scmp.eq.s32.totalorder %s27, 0
    %p379 = por %p377, %p378
    %p380 = scmp.le.s32.totalorder 1, %s21
    %p381 = scmp.lt.s32.totalorder %s21, 3
    %p382 = pnand %p380, %p381
    %p383 = pneg %p382
    // Predicated region
    $region9: #{_lambda_.1} parent=5 // pred_check
      _
    $region10: #{_lambda_.1} parent=5 // pred_check_branch
      %385 = sbr.rel (%p382) target = $region12
    $region11: #{_lambda_.1} parent=5 // pred_region
      %s386 = ssub.s32 %s21, 1
      // Predicated region
      $region13: #{_lambda_.1} parent=11 // pred_check
        %p387 = pneg %p94
      $region14: #{_lambda_.1} parent=11 // pred_check_branch
        %389 = sbr.rel (%p387) target = $region16
      $region15: #{_lambda_.1} parent=11 // pred_region
        _
      $region16: #{_lambda_.1} parent=11 // pred_fallthru
        _
      // Predicated region
      $region17: #{_lambda_.1} parent=11 // pred_check
        %p390 = pneg %p115
      $region18: #{_lambda_.1} parent=11 // pred_check_branch
        %392 = sbr.rel (%p390) target = $region20
      $region19: #{_lambda_.1} parent=11 // pred_region
        _
      $region20: #{_lambda_.1} parent=11 // pred_fallthru
        _
      // Predicated region
      $region21: #{_lambda_.1} parent=11 // pred_check
        %p393 = pneg %p136
      $region22: #{_lambda_.1} parent=11 // pred_check_branch
        %395 = sbr.rel (%p393) target = $region24
      $region23: #{_lambda_.1} parent=11 // pred_region
        _
      $region24: #{_lambda_.1} parent=11 // pred_fallthru
        _
      // Predicated region
      $region25: #{_lambda_.1} parent=11 // pred_check
        %p396 = pneg %p157
      $region26: #{_lambda_.1} parent=11 // pred_check_branch
        %398 = sbr.rel (%p396) target = $region28
      $region27: #{_lambda_.1} parent=11 // pred_region
        _
      $region28: #{_lambda_.1} parent=11 // pred_fallthru
        _
      // Predicated region
      $region29: #{_lambda_.1} parent=11 // pred_check
        %p399 = pneg %p178
      $region30: #{_lambda_.1} parent=11 // pred_check_branch
        %401 = sbr.rel (%p399) target = $region32
      $region31: #{_lambda_.1} parent=11 // pred_region
        _
      $region32: #{_lambda_.1} parent=11 // pred_fallthru
        _
      // Predicated region
      $region33: #{_lambda_.1} parent=11 // pred_check
        %p402 = pneg %p199
      $region34: #{_lambda_.1} parent=11 // pred_check_branch
        %404 = sbr.rel (%p402) target = $region36
      $region35: #{_lambda_.1} parent=11 // pred_region
        _
      $region36: #{_lambda_.1} parent=11 // pred_fallthru
        _
      // Predicated region
      $region37: #{_lambda_.1} parent=11 // pred_check
        %p405 = pneg %p220
      $region38: #{_lambda_.1} parent=11 // pred_check_branch
        %407 = sbr.rel (%p405) target = $region40
      $region39: #{_lambda_.1} parent=11 // pred_region
        _
      $region40: #{_lambda_.1} parent=11 // pred_fallthru
        _
      // Predicated region
      $region41: #{_lambda_.1} parent=11 // pred_check
        %p408 = pneg %p241
      $region42: #{_lambda_.1} parent=11 // pred_check_branch
        %410 = sbr.rel (%p408) target = $region44
      $region43: #{_lambda_.1} parent=11 // pred_region
        _
      $region44: #{_lambda_.1} parent=11 // pred_fallthru
        _
      // Predicated region
      $region45: #{_lambda_.1} parent=11 // pred_check
        %p411 = pneg %p262
      $region46: #{_lambda_.1} parent=11 // pred_check_branch
        %413 = sbr.rel (%p411) target = $region48
      $region47: #{_lambda_.1} parent=11 // pred_region
        _
      $region48: #{_lambda_.1} parent=11 // pred_fallthru
        _
      // Predicated region
      $region49: #{_lambda_.1} parent=11 // pred_check
        %p414 = pneg %p283
      $region50: #{_lambda_.1} parent=11 // pred_check_branch
        %416 = sbr.rel (%p414) target = $region52
      $region51: #{_lambda_.1} parent=11 // pred_region
        _
      $region52: #{_lambda_.1} parent=11 // pred_fallthru
        _
      // Predicated region
      $region53: #{_lambda_.1} parent=11 // pred_check
        %p417 = pneg %p304
      $region54: #{_lambda_.1} parent=11 // pred_check_branch
        %419 = sbr.rel (%p417) target = $region56
      $region55: #{_lambda_.1} parent=11 // pred_region
        _
      $region56: #{_lambda_.1} parent=11 // pred_fallthru
        _
      // Predicated region
      $region57: #{_lambda_.1} parent=11 // pred_check
        %p420 = pneg %p325
      $region58: #{_lambda_.1} parent=11 // pred_check_branch
        %422 = sbr.rel (%p420) target = $region60
      $region59: #{_lambda_.1} parent=11 // pred_region
        _
      $region60: #{_lambda_.1} parent=11 // pred_fallthru
        _
      // Predicated region
      $region61: #{_lambda_.1} parent=11 // pred_check
        %p423 = pneg %p346
      $region62: #{_lambda_.1} parent=11 // pred_check_branch
        %425 = sbr.rel (%p423) target = $region64
      $region63: #{_lambda_.1} parent=11 // pred_region
        _
      $region64: #{_lambda_.1} parent=11 // pred_fallthru
        _
    $region12: #{_lambda_.1} parent=5 // pred_fallthru
      _
    %p426 = scmp.lt.s32.totalorder %s21, 2
    // Predicated region
    $region65: #{_lambda_.1} parent=5 // pred_check
      %p427 = pneg %p426
    $region66: #{_lambda_.1} parent=5 // pred_check_branch
      %429 = sbr.rel (%p427) target = $region68
    $region67: #{_lambda_.1} parent=5 // pred_region
      // Predicated region
      $region69: #{_lambda_.1} parent=67 // pred_check
        %p430 = pneg %p41
      $region70: #{_lambda_.1} parent=67 // pred_check_branch
        %432 = sbr.rel (%p430) target = $region72
      $region71: #{_lambda_.1} parent=67 // pred_region
        %p433 = scmp.lt.s32.totalorder %s21, 1
        %s434 = scalar_select %p433, %s21, 1
        %s435 = smul.addr %s434, 32
        %s436 = smul.addr %s435, 8
        %s437 = scalar_lea.vmem %s0, %s436
      $region72: #{_lambda_.1} parent=67 // pred_fallthru
        _
      // Predicated region
      $region73: #{_lambda_.1} parent=67 // pred_check
        %p438 = pneg %p67
      $region74: #{_lambda_.1} parent=67 // pred_check_branch
        %440 = sbr.rel (%p438) target = $region76
      $region75: #{_lambda_.1} parent=67 // pred_region
        %p441 = scmp.lt.s32.totalorder %s21, 1
        %s442 = scalar_select %p441, %s21, 1
        %s443 = smul.addr %s442, 32
        %s444 = smul.addr %s443, 8
        %s445 = scalar_lea.vmem %s1, %s444
      $region76: #{_lambda_.1} parent=67 // pred_fallthru
        _
    $region68: #{_lambda_.1} parent=5 // pred_fallthru
      _
    %p446 = scmp.le.s32.totalorder 1, %s21
    %p447 = scmp.lt.s32.totalorder %s21, 3
    %p448 = pnand %p446, %p447
    %p449 = pneg %p448
    // Predicated region
    $region77: #{_lambda_.1} parent=5 // pred_check
      _
    $region78: #{_lambda_.1} parent=5 // pred_check_branch
      %451 = sbr.rel (%p448) target = $region80
    $region79: #{_lambda_.1} parent=5 // pred_region
      %s452 = ssub.s32 %s21, 1
      %p453 = scmp.lt.s32.totalorder %s26, 1
      %s454 = scalar_select %p453, %s26, 1
      %s455 = smul.addr %s454, 32
      %s456 = smul.addr %s455, 8
      %s457 = scalar_lea.vmem %s0, %s456
      %p458 = pneg %p47
      %p459 = pneg %p44
      %p460 = scmp.lt.s32.totalorder %s26, 1
      %s461 = scalar_select %p460, %s26, 1
      %s462 = smul.addr %s461, 32
      %s463 = smul.addr %s462, 8
      %s464 = scalar_lea.vmem %s1, %s463
      %p465 = pneg %p73
      %p466 = pneg %p70
      %p467 = pneg %p94
      %p468 = pneg %p91
      %p469 = pneg %p115
      %p470 = pneg %p112
      %p471 = pneg %p136
      %p472 = pneg %p133
      %p473 = pneg %p157
      %p474 = pneg %p154
      %p475 = pneg %p178
      %p476 = pneg %p175
      %p477 = pneg %p199
      %p478 = pneg %p196
      %p479 = pneg %p220
      %p480 = pneg %p217
      %p481 = pneg %p241
      %p482 = pneg %p238
      %p483 = pneg %p262
      %p484 = pneg %p259
      %p485 = pneg %p283
      %p486 = pneg %p280
      %p487 = pneg %p304
      %p488 = pneg %p301
      %p489 = pneg %p325
      %p490 = pneg %p322
      %p491 = pneg %p346
      %p492 = pneg %p343
      %p493 = pneg %p372
      %p494 = pneg %p369
      %p495 = scmp.lt.s32.totalorder %s26, 1
      %s496 = scalar_select %p495, %s26, 1
      %s497 = smul.addr %s496, 32
      %s498 = smul.addr %s497, 8
      %s499 = scalar_lea.vmem %s15, %s498
      %p500 = scmp.lt.s32.totalorder %s26, 1
      %s501 = scalar_select %p500, %s26, 1
      %s502 = smul.addr %s501, 32
      %s503 = smul.addr %s502, 8
      %s504 = scalar_lea.vmem %s0, %s503
      %p505 = scmp.lt.s32.totalorder %s26, 1
      %s506 = scalar_select %p505, %s26, 1
      %s507 = smul.addr %s506, 32
      %s508 = smul.addr %s507, 8
      %s509 = scalar_lea.vmem %s1, %s508
      %p510 = scmp.lt.s32.totalorder %s26, 1
      %s511 = scalar_select %p510, %s26, 1
      %s512 = smul.addr %s511, 32
      %s513 = smul.addr %s512, 8
      %s514 = scalar_lea.vmem %s15, %s513
      %v515 = vld [vmem:[%s504] sm:$0xff]
      %v516 = vld [vmem:[%s504 + $0x8] sm:$0xff]
      %v517 = vld [vmem:[%s504 + $0x10] sm:$0xff]
      %v518 = vld [vmem:[%s504 + $0x18] sm:$0xff]
      %v519 = vld [vmem:[%s504 + $0x20] sm:$0xff]
      %v520 = vld [vmem:[%s504 + $0x28] sm:$0xff]
      %v521 = vld [vmem:[%s504 + $0x30] sm:$0xff]
      %v522 = vld [vmem:[%s504 + $0x38] sm:$0xff]
      %v523 = vld [vmem:[%s504 + $0x40] sm:$0xff]
      %v524 = vld [vmem:[%s504 + $0x48] sm:$0xff]
      %v525 = vld [vmem:[%s504 + $0x50] sm:$0xff]
      %v526 = vld [vmem:[%s504 + $0x58] sm:$0xff]
      %v527 = vld [vmem:[%s504 + $0x60] sm:$0xff]
      %v528 = vld [vmem:[%s504 + $0x68] sm:$0xff]
      %v529 = vld [vmem:[%s504 + $0x70] sm:$0xff]
      %v530 = vld [vmem:[%s504 + $0x78] sm:$0xff]
      %v531 = vld [vmem:[%s504 + $0x80] sm:$0xff]
      %v532 = vld [vmem:[%s504 + $0x88] sm:$0xff]
      %v533 = vld [vmem:[%s504 + $0x90] sm:$0xff]
      %v534 = vld [vmem:[%s504 + $0x98] sm:$0xff]
      %v535 = vld [vmem:[%s504 + $0xa0] sm:$0xff]
      %v536 = vld [vmem:[%s504 + $0xa8] sm:$0xff]
      %v537 = vld [vmem:[%s504 + $0xb0] sm:$0xff]
      %v538 = vld [vmem:[%s504 + $0xb8] sm:$0xff]
      %v539 = vld [vmem:[%s504 + $0xc0] sm:$0xff]
      %v540 = vld [vmem:[%s504 + $0xc8] sm:$0xff]
      %v541 = vld [vmem:[%s504 + $0xd0] sm:$0xff]
      %v542 = vld [vmem:[%s504 + $0xd8] sm:$0xff]
      %v543 = vld [vmem:[%s504 + $0xe0] sm:$0xff]
      %v544 = vld [vmem:[%s504 + $0xe8] sm:$0xff]
      %v545 = vld [vmem:[%s504 + $0xf0] sm:$0xff]
      %v546 = vld [vmem:[%s504 + $0xf8] sm:$0xff]
      %v547 = vld [vmem:[%s509] sm:$0xff]
      %v548 = vld [vmem:[%s509 + $0x8] sm:$0xff]
      %v549 = vld [vmem:[%s509 + $0x10] sm:$0xff]
      %v550 = vld [vmem:[%s509 + $0x18] sm:$0xff]
      %v551 = vld [vmem:[%s509 + $0x20] sm:$0xff]
      %v552 = vld [vmem:[%s509 + $0x28] sm:$0xff]
      %v553 = vld [vmem:[%s509 + $0x30] sm:$0xff]
      %v554 = vld [vmem:[%s509 + $0x38] sm:$0xff]
      %v555 = vld [vmem:[%s509 + $0x40] sm:$0xff]
      %v556 = vld [vmem:[%s509 + $0x48] sm:$0xff]
      %v557 = vld [vmem:[%s509 + $0x50] sm:$0xff]
      %v558 = vld [vmem:[%s509 + $0x58] sm:$0xff]
      %v559 = vld [vmem:[%s509 + $0x60] sm:$0xff]
      %v560 = vld [vmem:[%s509 + $0x68] sm:$0xff]
      %v561 = vld [vmem:[%s509 + $0x70] sm:$0xff]
      %v562 = vld [vmem:[%s509 + $0x78] sm:$0xff]
      %v563 = vld [vmem:[%s509 + $0x80] sm:$0xff]
      %v564 = vld [vmem:[%s509 + $0x88] sm:$0xff]
      %v565 = vld [vmem:[%s509 + $0x90] sm:$0xff]
      %v566 = vld [vmem:[%s509 + $0x98] sm:$0xff]
      %v567 = vld [vmem:[%s509 + $0xa0] sm:$0xff]
      %v568 = vld [vmem:[%s509 + $0xa8] sm:$0xff]
      %v569 = vld [vmem:[%s509 + $0xb0] sm:$0xff]
      %v570 = vld [vmem:[%s509 + $0xb8] sm:$0xff]
      %v571 = vld [vmem:[%s509 + $0xc0] sm:$0xff]
      %v572 = vld [vmem:[%s509 + $0xc8] sm:$0xff]
      %v573 = vld [vmem:[%s509 + $0xd0] sm:$0xff]
      %v574 = vld [vmem:[%s509 + $0xd8] sm:$0xff]
      %v575 = vld [vmem:[%s509 + $0xe0] sm:$0xff]
      %v576 = vld [vmem:[%s509 + $0xe8] sm:$0xff]
      %v577 = vld [vmem:[%s509 + $0xf0] sm:$0xff]
      %v578 = vld [vmem:[%s509 + $0xf8] sm:$0xff]
      %v579 = vld [vmem:[%s2] sm:$0xff]
      %v580 = vld [vmem:[%s2 + $0x8] sm:$0xff]
      %v581 = vld [vmem:[%s2 + $0x10] sm:$0xff]
      %v582 = vld [vmem:[%s2 + $0x18] sm:$0xff]
      %v583 = vld [vmem:[%s2 + $0x20] sm:$0xff]
      %v584 = vld [vmem:[%s2 + $0x28] sm:$0xff]
      %v585 = vld [vmem:[%s2 + $0x30] sm:$0xff]
      %v586 = vld [vmem:[%s2 + $0x38] sm:$0xff]
      %v587 = vld [vmem:[%s2 + $0x40] sm:$0xff]
      %v588 = vld [vmem:[%s2 + $0x48] sm:$0xff]
      %v589 = vld [vmem:[%s2 + $0x50] sm:$0xff]
      %v590 = vld [vmem:[%s2 + $0x58] sm:$0xff]
      %v591 = vld [vmem:[%s2 + $0x60] sm:$0xff]
      %v592 = vld [vmem:[%s2 + $0x68] sm:$0xff]
      %v593 = vld [vmem:[%s2 + $0x70] sm:$0xff]
      %v594 = vld [vmem:[%s2 + $0x78] sm:$0xff]
      %v595 = vld [vmem:[%s2 + $0x80] sm:$0xff]
      %v596 = vld [vmem:[%s2 + $0x88] sm:$0xff]
      %v597 = vld [vmem:[%s2 + $0x90] sm:$0xff]
      %v598 = vld [vmem:[%s2 + $0x98] sm:$0xff]
      %v599 = vld [vmem:[%s2 + $0xa0] sm:$0xff]
      %v600 = vld [vmem:[%s2 + $0xa8] sm:$0xff]
      %v601 = vld [vmem:[%s2 + $0xb0] sm:$0xff]
      %v602 = vld [vmem:[%s2 + $0xb8] sm:$0xff]
      %v603 = vld [vmem:[%s2 + $0xc0] sm:$0xff]
      %v604 = vld [vmem:[%s2 + $0xc8] sm:$0xff]
      %v605 = vld [vmem:[%s2 + $0xd0] sm:$0xff]
      %v606 = vld [vmem:[%s2 + $0xd8] sm:$0xff]
      %v607 = vld [vmem:[%s2 + $0xe0] sm:$0xff]
      %v608 = vld [vmem:[%s2 + $0xe8] sm:$0xff]
      %v609 = vld [vmem:[%s2 + $0xf0] sm:$0xff]
      %v610 = vld [vmem:[%s2 + $0xf8] sm:$0xff]
      %v611 = vld [vmem:[%s3] sm:$0xff]
      %v612 = vld [vmem:[%s3 + $0x8] sm:$0xff]
      %vm613 = vcmask 130048
      %v615 = vsel %vm613, %v547, 0
      %v618 = vsel %vm613, %v548, 0
      %v621 = vsel %vm613, %v549, 0
      %v624 = vsel %vm613, %v550, 0
      %v627 = vsel %vm613, %v551, 0
      %v630 = vsel %vm613, %v552, 0
      %v633 = vsel %vm613, %v553, 0
      %v636 = vsel %vm613, %v554, 0
      %v639 = vsel %vm613, %v555, 0
      %v642 = vsel %vm613, %v556, 0
      %v645 = vsel %vm613, %v557, 0
      %v648 = vsel %vm613, %v558, 0
      %v651 = vsel %vm613, %v559, 0
      %v654 = vsel %vm613, %v560, 0
      %v657 = vsel %vm613, %v561, 0
      %v660 = vsel %vm613, %v562, 0
      %v663 = vsel %vm613, %v563, 0
      %v666 = vsel %vm613, %v564, 0
      %v669 = vsel %vm613, %v565, 0
      %v672 = vsel %vm613, %v566, 0
      %v675 = vsel %vm613, %v567, 0
      %v678 = vsel %vm613, %v568, 0
      %v681 = vsel %vm613, %v569, 0
      %v684 = vsel %vm613, %v570, 0
      %v687 = vsel %vm613, %v571, 0
      %v690 = vsel %vm613, %v572, 0
      %v693 = vsel %vm613, %v573, 0
      %v696 = vsel %vm613, %v574, 0
      %v699 = vsel %vm613, %v575, 0
      %v702 = vsel %vm613, %v576, 0
      %v705 = vsel %vm613, %v577, 0
      %v708 = vsel %vm613, %v578, 0
      %710 = vmatprep.subr.mxu0 0.0
      %711 = vmatpush1.msra.mxu0 %v611
      %712 = vmatprep.subr.mxu0 0.0
      %713 = vmatpush1.msra.mxu0 %v612
      %714 = vmatprep.subr.mxu0 0.0
      %715 = vmatpush1.msra.mxu0 0.0
      %716 = vmatprep.subr.mxu0 0.0
      %717 = vmatpush1.msra.mxu0 0.0
      %718 = vmatprep.subr.mxu0 0.0
      %719 = vmatpush1.msra.mxu0 0.0
      %720 = vmatprep.subr.mxu0 0.0
      %721 = vmatpush1.msra.mxu0 0.0
      %722 = vmatprep.subr.mxu0 0.0
      %723 = vmatpush1.msra.mxu0 0.0
      %724 = vmatprep.subr.mxu0 0.0
      %725 = vmatpush1.msra.mxu0 0.0
      %726 = vmatprep.subr.mxu0 0.0
      %727 = vmatpush1.msra.mxu0 0.0
      %728 = vmatprep.subr.mxu0 0.0
      %729 = vmatpush1.msra.mxu0 0.0
      %730 = vmatprep.subr.mxu0 0.0
      %731 = vmatpush1.msra.mxu0 0.0
      %732 = vmatprep.subr.mxu0 0.0
      %733 = vmatpush1.msra.mxu0 0.0
      %734 = vmatprep.subr.mxu0 0.0
      %735 = vmatpush1.msra.mxu0 0.0
      %736 = vmatprep.subr.mxu0 0.0
      %737 = vmatpush1.msra.mxu0 0.0
      %738 = vmatprep.subr.mxu0 0.0
      %739 = vmatpush1.msra.mxu0 0.0
      %740 = vmatprep.subr.mxu0 0.0
      %741 = vmatpush1.msra.mxu0 0.0
      %742 = vmatprep.subr.mxu0 0.0
      %743 = vmatpush1.msra.mxu0 0.0
      %744 = vmatprep.subr.mxu0 0.0
      %745 = vmatpush1.msra.mxu0 0.0
      %746 = vmatprep.subr.mxu0 0.0
      %747 = vmatpush1.msra.mxu0 0.0
      %748 = vmatprep.subr.mxu0 0.0
      %749 = vmatpush1.msra.mxu0 0.0
      %750 = vmatprep.subr.mxu0 0.0
      %751 = vmatpush1.msra.mxu0 0.0
      %752 = vmatprep.subr.mxu0 0.0
      %753 = vmatpush1.msra.mxu0 0.0
      %754 = vmatprep.subr.mxu0 0.0
      %755 = vmatpush1.msra.mxu0 0.0
      %756 = vmatprep.subr.mxu0 0.0
      %757 = vmatpush1.msra.mxu0 0.0
      %758 = vmatprep.subr.mxu0 0.0
      %759 = vmatpush1.msra.mxu0 0.0
      %760 = vmatprep.subr.mxu0 0.0
      %761 = vmatpush1.msra.mxu0 0.0
      %762 = vmatprep.subr.mxu0 0.0
      %763 = vmatpush1.msra.mxu0 0.0
      %764 = vmatprep.subr.mxu0 0.0
      %765 = vmatpush1.msra.mxu0 0.0
      %766 = vmatprep.subr.mxu0 0.0
      %767 = vmatpush1.msra.mxu0 0.0
      %768 = vmatprep.subr.mxu0 0.0
      %769 = vmatpush1.msra.mxu0 0.0
      %770 = vmatprep.subr.mxu0 0.0
      %771 = vmatpush1.msra.mxu0 0.0
      %772 = vmatprep.subr.mxu0 0.0
      %773 = vmatpush1.msra.mxu0 0.0
      %774 = vmatprep.mubr.f32.mxu0 0.0
      %775 = vmatmul.mubr.f32.gmra.mrb[0].mxu0 %v615
      %v776 = vpop.f32.mrb[0].mxu0
      %v777 = vadd.f32 0.0, %v776
      %v778 = vpop.f32.mrb[0].mxu0
      %779 = vmatprep.mubr.f32.mxu0 0.0
      %780 = vmatmul.mubr.f32.gmra.mrb[0].mxu0 %v618
      %v781 = vpop.f32.mrb[0].mxu0
      %v782 = vadd.f32 0.0, %v781
      %v783 = vpop.f32.mrb[0].mxu0
      %784 = vmatprep.mubr.f32.mxu0 0.0
      %785 = vmatmul.mubr.f32.gmra.mrb[0].mxu0 %v621
      %v786 = vpop.f32.mrb[0].mxu0
      %v787 = vadd.f32 0.0, %v786
      %v788 = vpop.f32.mrb[0].mxu0
      %789 = vmatprep.mubr.f32.mxu0 0.0
      %790 = vmatmul.mubr.f32.gmra.mrb[0].mxu0 %v624
      %v791 = vpop.f32.mrb[0].mxu0
      %v792 = vadd.f32 0.0, %v791
      %v793 = vpop.f32.mrb[0].mxu0
      %794 = vmatprep.mubr.f32.mxu0 0.0
      %795 = vmatmul.mubr.f32.gmra.mrb[0].mxu0 %v627
      %v796 = vpop.f32.mrb[0].mxu0
      %v797 = vadd.f32 0.0, %v796
      %v798 = vpop.f32.mrb[0].mxu0
      %799 = vmatprep.mubr.f32.mxu0 0.0
      %800 = vmatmul.mubr.f32.gmra.mrb[0].mxu0 %v630
      %v801 = vpop.f32.mrb[0].mxu0
      %v802 = vadd.f32 0.0, %v801
      %v803 = vpop.f32.mrb[0].mxu0
      %804 = vmatprep.mubr.f32.mxu0 0.0
      %805 = vmatmul.mubr.f32.gmra.mrb[0].mxu0 %v633
      %v806 = vpop.f32.mrb[0].mxu0
      %v807 = vadd.f32 0.0, %v806
      %v808 = vpop.f32.mrb[0].mxu0
      %809 = vmatprep.mubr.f32.mxu0 0.0
      %810 = vmatmul.mubr.f32.gmra.mrb[0].mxu0 %v636
      %v811 = vpop.f32.mrb[0].mxu0
      %v812 = vadd.f32 0.0, %v811
      %v813 = vpop.f32.mrb[0].mxu0
      %814 = vmatprep.mubr.f32.mxu0 0.0
      %815 = vmatmul.mubr.f32.gmra.mrb[0].mxu0 %v639
      %v816 = vpop.f32.mrb[0].mxu0
      %v817 = vadd.f32 0.0, %v816
      %v818 = vpop.f32.mrb[0].mxu0
      %819 = vmatprep.mubr.f32.mxu0 0.0
      %820 = vmatmul.mubr.f32.gmra.mrb[0].mxu0 %v642
      %v821 = vpop.f32.mrb[0].mxu0
      %v822 = vadd.f32 0.0, %v821
      %v823 = vpop.f32.mrb[0].mxu0
      %824 = vmatprep.mubr.f32.mxu0 0.0
      %825 = vmatmul.mubr.f32.gmra.mrb[0].mxu0 %v645
      %v826 = vpop.f32.mrb[0].mxu0
      %v827 = vadd.f32 0.0, %v826
      %v828 = vpop.f32.mrb[0].mxu0
      %829 = vmatprep.mubr.f32.mxu0 0.0
      %830 = vmatmul.mubr.f32.gmra.mrb[0].mxu0 %v648
      %v831 = vpop.f32.mrb[0].mxu0
      %v832 = vadd.f32 0.0, %v831
      %v833 = vpop.f32.mrb[0].mxu0
      %834 = vmatprep.mubr.f32.mxu0 0.0
      %835 = vmatmul.mubr.f32.gmra.mrb[0].mxu0 %v651
      %v836 = vpop.f32.mrb[0].mxu0
      %v837 = vadd.f32 0.0, %v836
      %v838 = vpop.f32.mrb[0].mxu0
      %839 = vmatprep.mubr.f32.mxu0 0.0
      %840 = vmatmul.mubr.f32.gmra.mrb[0].mxu0 %v654
      %v841 = vpop.f32.mrb[0].mxu0
      %v842 = vadd.f32 0.0, %v841
      %v843 = vpop.f32.mrb[0].mxu0
      %844 = vmatprep.mubr.f32.mxu0 0.0
      %845 = vmatmul.mubr.f32.gmra.mrb[0].mxu0 %v657
      %v846 = vpop.f32.mrb[0].mxu0
      %v847 = vadd.f32 0.0, %v846
      %v848 = vpop.f32.mrb[0].mxu0
      %849 = vmatprep.mubr.f32.mxu0 0.0
      %850 = vmatmul.mubr.f32.gmra.mrb[0].mxu0 %v660
      %v851 = vpop.f32.mrb[0].mxu0
      %v852 = vadd.f32 0.0, %v851
      %v853 = vpop.f32.mrb[0].mxu0
      %854 = vmatprep.mubr.f32.mxu0 0.0
      %855 = vmatmul.mubr.f32.gmra.mrb[0].mxu0 %v663
      %v856 = vpop.f32.mrb[0].mxu0
      %v857 = vadd.f32 0.0, %v856
      %v858 = vpop.f32.mrb[0].mxu0
      %859 = vmatprep.mubr.f32.mxu0 0.0
      %860 = vmatmul.mubr.f32.gmra.mrb[0].mxu0 %v666
      %v861 = vpop.f32.mrb[0].mxu0
      %v862 = vadd.f32 0.0, %v861
      %v863 = vpop.f32.mrb[0].mxu0
      %864 = vmatprep.mubr.f32.mxu0 0.0
      %865 = vmatmul.mubr.f32.gmra.mrb[0].mxu0 %v669
      %v866 = vpop.f32.mrb[0].mxu0
      %v867 = vadd.f32 0.0, %v866
      %v868 = vpop.f32.mrb[0].mxu0
      %869 = vmatprep.mubr.f32.mxu0 0.0
      %870 = vmatmul.mubr.f32.gmra.mrb[0].mxu0 %v672
      %v871 = vpop.f32.mrb[0].mxu0
      %v872 = vadd.f32 0.0, %v871
      %v873 = vpop.f32.mrb[0].mxu0
      %874 = vmatprep.mubr.f32.mxu0 0.0
      %875 = vmatmul.mubr.f32.gmra.mrb[0].mxu0 %v675
      %v876 = vpop.f32.mrb[0].mxu0
      %v877 = vadd.f32 0.0, %v876
      %v878 = vpop.f32.mrb[0].mxu0
      %879 = vmatprep.mubr.f32.mxu0 0.0
      %880 = vmatmul.mubr.f32.gmra.mrb[0].mxu0 %v678
      %v881 = vpop.f32.mrb[0].mxu0
      %v882 = vadd.f32 0.0, %v881
      %v883 = vpop.f32.mrb[0].mxu0
      %884 = vmatprep.mubr.f32.mxu0 0.0
      %885 = vmatmul.mubr.f32.gmra.mrb[0].mxu0 %v681
      %v886 = vpop.f32.mrb[0].mxu0
      %v887 = vadd.f32 0.0, %v886
      %v888 = vpop.f32.mrb[0].mxu0
      %889 = vmatprep.mubr.f32.mxu0 0.0
      %890 = vmatmul.mubr.f32.gmra.mrb[0].mxu0 %v684
      %v891 = vpop.f32.mrb[0].mxu0
      %v892 = vadd.f32 0.0, %v891
      %v893 = vpop.f32.mrb[0].mxu0
      %894 = vmatprep.mubr.f32.mxu0 0.0
      %895 = vmatmul.mubr.f32.gmra.mrb[0].mxu0 %v687
      %v896 = vpop.f32.mrb[0].mxu0
      %v897 = vadd.f32 0.0, %v896
      %v898 = vpop.f32.mrb[0].mxu0
      %899 = vmatprep.mubr.f32.mxu0 0.0
      %900 = vmatmul.mubr.f32.gmra.mrb[0].mxu0 %v690
      %v901 = vpop.f32.mrb[0].mxu0
      %v902 = vadd.f32 0.0, %v901
      %v903 = vpop.f32.mrb[0].mxu0
      %904 = vmatprep.mubr.f32.mxu0 0.0
      %905 = vmatmul.mubr.f32.gmra.mrb[0].mxu0 %v693
      %v906 = vpop.f32.mrb[0].mxu0
      %v907 = vadd.f32 0.0, %v906
      %v908 = vpop.f32.mrb[0].mxu0
      %909 = vmatprep.mubr.f32.mxu0 0.0
      %910 = vmatmul.mubr.f32.gmra.mrb[0].mxu0 %v696
      %v911 = vpop.f32.mrb[0].mxu0
      %v912 = vadd.f32 0.0, %v911
      %v913 = vpop.f32.mrb[0].mxu0
      %914 = vmatprep.mubr.f32.mxu0 0.0
      %915 = vmatmul.mubr.f32.gmra.mrb[0].mxu0 %v699
      %v916 = vpop.f32.mrb[0].mxu0
      %v917 = vadd.f32 0.0, %v916
      %v918 = vpop.f32.mrb[0].mxu0
      %919 = vmatprep.mubr.f32.mxu0 0.0
      %920 = vmatmul.mubr.f32.gmra.mrb[0].mxu0 %v702
      %v921 = vpop.f32.mrb[0].mxu0
      %v922 = vadd.f32 0.0, %v921
      %v923 = vpop.f32.mrb[0].mxu0
      %924 = vmatprep.mubr.f32.mxu0 0.0
      %925 = vmatmul.mubr.f32.gmra.mrb[0].mxu0 %v705
      %v926 = vpop.f32.mrb[0].mxu0
      %v927 = vadd.f32 0.0, %v926
      %v928 = vpop.f32.mrb[0].mxu0
      %929 = vmatprep.mubr.f32.mxu0 0.0
      %930 = vmatmul.mubr.f32.gmra.mrb[0].mxu0 %v708
      %v931 = vpop.f32.mrb[0].mxu0
      %v932 = vadd.f32 0.0, %v931
      %v933 = vpop.f32.mrb[0].mxu0
      %934 = vdwg.mxu0
      %936 = vset.pattern.permute.xlu0 0
      %937 = vperm.xlu0 %936, %v579
      %v938 = vpop.permute.xlu0 %937
      %941 = vset.pattern.permute.xlu0 0
      %942 = vperm.xlu0 %941, %v580
      %v943 = vpop.permute.xlu0 %942
      %946 = vset.pattern.permute.xlu0 0
      %947 = vperm.xlu0 %946, %v581
      %v948 = vpop.permute.xlu0 %947
      %951 = vset.pattern.permute.xlu0 0
      %952 = vperm.xlu0 %951, %v582
      %v953 = vpop.permute.xlu0 %952
      %956 = vset.pattern.permute.xlu0 0
      %957 = vperm.xlu0 %956, %v583
      %v958 = vpop.permute.xlu0 %957
      %961 = vset.pattern.permute.xlu0 0
      %962 = vperm.xlu0 %961, %v584
      %v963 = vpop.permute.xlu0 %962
      %966 = vset.pattern.permute.xlu0 0
      %967 = vperm.xlu0 %966, %v585
      %v968 = vpop.permute.xlu0 %967
      %971 = vset.pattern.permute.xlu0 0
      %972 = vperm.xlu0 %971, %v586
      %v973 = vpop.permute.xlu0 %972
      %976 = vset.pattern.permute.xlu0 0
      %977 = vperm.xlu0 %976, %v587
      %v978 = vpop.permute.xlu0 %977
      %981 = vset.pattern.permute.xlu0 0
      %982 = vperm.xlu0 %981, %v588
      %v983 = vpop.permute.xlu0 %982
      %986 = vset.pattern.permute.xlu0 0
      %987 = vperm.xlu0 %986, %v589
      %v988 = vpop.permute.xlu0 %987
      %991 = vset.pattern.permute.xlu0 0
      %992 = vperm.xlu0 %991, %v590
      %v993 = vpop.permute.xlu0 %992
      %996 = vset.pattern.permute.xlu0 0
      %997 = vperm.xlu0 %996, %v591
      %v998 = vpop.permute.xlu0 %997
      %1001 = vset.pattern.permute.xlu0 0
      %1002 = vperm.xlu0 %1001, %v592
      %v1003 = vpop.permute.xlu0 %1002
      %1006 = vset.pattern.permute.xlu0 0
      %1007 = vperm.xlu0 %1006, %v593
      %v1008 = vpop.permute.xlu0 %1007
      %1011 = vset.pattern.permute.xlu0 0
      %1012 = vperm.xlu0 %1011, %v594
      %v1013 = vpop.permute.xlu0 %1012
      %1016 = vset.pattern.permute.xlu0 0
      %1017 = vperm.xlu0 %1016, %v595
      %v1018 = vpop.permute.xlu0 %1017
      %1021 = vset.pattern.permute.xlu0 0
      %1022 = vperm.xlu0 %1021, %v596
      %v1023 = vpop.permute.xlu0 %1022
      %1026 = vset.pattern.permute.xlu0 0
      %1027 = vperm.xlu0 %1026, %v597
      %v1028 = vpop.permute.xlu0 %1027
      %1031 = vset.pattern.permute.xlu0 0
      %1032 = vperm.xlu0 %1031, %v598
      %v1033 = vpop.permute.xlu0 %1032
      %1036 = vset.pattern.permute.xlu0 0
      %1037 = vperm.xlu0 %1036, %v599
      %v1038 = vpop.permute.xlu0 %1037
      %1041 = vset.pattern.permute.xlu0 0
      %1042 = vperm.xlu0 %1041, %v600
      %v1043 = vpop.permute.xlu0 %1042
      %1046 = vset.pattern.permute.xlu0 0
      %1047 = vperm.xlu0 %1046, %v601
      %v1048 = vpop.permute.xlu0 %1047
      %1051 = vset.pattern.permute.xlu0 0
      %1052 = vperm.xlu0 %1051, %v602
      %v1053 = vpop.permute.xlu0 %1052
      %1056 = vset.pattern.permute.xlu0 0
      %1057 = vperm.xlu0 %1056, %v603
      %v1058 = vpop.permute.xlu0 %1057
      %1061 = vset.pattern.permute.xlu0 0
      %1062 = vperm.xlu0 %1061, %v604
      %v1063 = vpop.permute.xlu0 %1062
      %1066 = vset.pattern.permute.xlu0 0
      %1067 = vperm.xlu0 %1066, %v605
      %v1068 = vpop.permute.xlu0 %1067
      %1071 = vset.pattern.permute.xlu0 0
      %1072 = vperm.xlu0 %1071, %v606
      %v1073 = vpop.permute.xlu0 %1072
      %1076 = vset.pattern.permute.xlu0 0
      %1077 = vperm.xlu0 %1076, %v607
      %v1078 = vpop.permute.xlu0 %1077
      %1081 = vset.pattern.permute.xlu0 0
      %1082 = vperm.xlu0 %1081, %v608
      %v1083 = vpop.permute.xlu0 %1082
      %1086 = vset.pattern.permute.xlu0 0
      %1087 = vperm.xlu0 %1086, %v609
      %v1088 = vpop.permute.xlu0 %1087
      %1091 = vset.pattern.permute.xlu0 0
      %1092 = vperm.xlu0 %1091, %v610
      %v1093 = vpop.permute.xlu0 %1092
      %v1095 = vmul.f32 %v938, %v777
      %v1096 = vmul.f32 %v943, %v782
      %v1097 = vmul.f32 %v948, %v787
      %v1098 = vmul.f32 %v953, %v792
      %v1099 = vmul.f32 %v958, %v797
      %v1100 = vmul.f32 %v963, %v802
      %v1101 = vmul.f32 %v968, %v807
      %v1102 = vmul.f32 %v973, %v812
      %v1103 = vmul.f32 %v978, %v817
      %v1104 = vmul.f32 %v983, %v822
      %v1105 = vmul.f32 %v988, %v827
      %v1106 = vmul.f32 %v993, %v832
      %v1107 = vmul.f32 %v998, %v837
      %v1108 = vmul.f32 %v1003, %v842
      %v1109 = vmul.f32 %v1008, %v847
      %v1110 = vmul.f32 %v1013, %v852
      %v1111 = vmul.f32 %v1018, %v857
      %v1112 = vmul.f32 %v1023, %v862
      %v1113 = vmul.f32 %v1028, %v867
      %v1114 = vmul.f32 %v1033, %v872
      %v1115 = vmul.f32 %v1038, %v877
      %v1116 = vmul.f32 %v1043, %v882
      %v1117 = vmul.f32 %v1048, %v887
      %v1118 = vmul.f32 %v1053, %v892
      %v1119 = vmul.f32 %v1058, %v897
      %v1120 = vmul.f32 %v1063, %v902
      %v1121 = vmul.f32 %v1068, %v907
      %v1122 = vmul.f32 %v1073, %v912
      %v1123 = vmul.f32 %v1078, %v917
      %v1124 = vmul.f32 %v1083, %v922
      %v1125 = vmul.f32 %v1088, %v927
      %v1126 = vmul.f32 %v1093, %v932
      %1127 = vset.pattern.permute.xlu0 1
      %1128 = vperm.xlu0 %1127, %v579
      %v1129 = vpop.permute.xlu0 %1128
      %1131 = vset.pattern.permute.xlu0 1
      %1132 = vperm.xlu0 %1131, %v580
      %v1133 = vpop.permute.xlu0 %1132
      %1135 = vset.pattern.permute.xlu0 1
      %1136 = vperm.xlu0 %1135, %v581
      %v1137 = vpop.permute.xlu0 %1136
      %1139 = vset.pattern.permute.xlu0 1
      %1140 = vperm.xlu0 %1139, %v582
      %v1141 = vpop.permute.xlu0 %1140
      %1143 = vset.pattern.permute.xlu0 1
      %1144 = vperm.xlu0 %1143, %v583
      %v1145 = vpop.permute.xlu0 %1144
      %1147 = vset.pattern.permute.xlu0 1
      %1148 = vperm.xlu0 %1147, %v584
      %v1149 = vpop.permute.xlu0 %1148
      %1151 = vset.pattern.permute.xlu0 1
      %1152 = vperm.xlu0 %1151, %v585
      %v1153 = vpop.permute.xlu0 %1152
      %1155 = vset.pattern.permute.xlu0 1
      %1156 = vperm.xlu0 %1155, %v586
      %v1157 = vpop.permute.xlu0 %1156
      %1159 = vset.pattern.permute.xlu0 1
      %1160 = vperm.xlu0 %1159, %v587
      %v1161 = vpop.permute.xlu0 %1160
      %1163 = vset.pattern.permute.xlu0 1
      %1164 = vperm.xlu0 %1163, %v588
      %v1165 = vpop.permute.xlu0 %1164
      %1167 = vset.pattern.permute.xlu0 1
      %1168 = vperm.xlu0 %1167, %v589
      %v1169 = vpop.permute.xlu0 %1168
      %1171 = vset.pattern.permute.xlu0 1
      %1172 = vperm.xlu0 %1171, %v590
      %v1173 = vpop.permute.xlu0 %1172
      %1175 = vset.pattern.permute.xlu0 1
      %1176 = vperm.xlu0 %1175, %v591
      %v1177 = vpop.permute.xlu0 %1176
      %1179 = vset.pattern.permute.xlu0 1
      %1180 = vperm.xlu0 %1179, %v592
      %v1181 = vpop.permute.xlu0 %1180
      %1183 = vset.pattern.permute.xlu0 1
      %1184 = vperm.xlu0 %1183, %v593
      %v1185 = vpop.permute.xlu0 %1184
      %1187 = vset.pattern.permute.xlu0 1
      %1188 = vperm.xlu0 %1187, %v594
      %v1189 = vpop.permute.xlu0 %1188
      %1191 = vset.pattern.permute.xlu0 1
      %1192 = vperm.xlu0 %1191, %v595
      %v1193 = vpop.permute.xlu0 %1192
      %1195 = vset.pattern.permute.xlu0 1
      %1196 = vperm.xlu0 %1195, %v596
      %v1197 = vpop.permute.xlu0 %1196
      %1199 = vset.pattern.permute.xlu0 1
      %1200 = vperm.xlu0 %1199, %v597
      %v1201 = vpop.permute.xlu0 %1200
      %1203 = vset.pattern.permute.xlu0 1
      %1204 = vperm.xlu0 %1203, %v598
      %v1205 = vpop.permute.xlu0 %1204
      %1207 = vset.pattern.permute.xlu0 1
      %1208 = vperm.xlu0 %1207, %v599
      %v1209 = vpop.permute.xlu0 %1208
      %1211 = vset.pattern.permute.xlu0 1
      %1212 = vperm.xlu0 %1211, %v600
      %v1213 = vpop.permute.xlu0 %1212
      %1215 = vset.pattern.permute.xlu0 1
      %1216 = vperm.xlu0 %1215, %v601
      %v1217 = vpop.permute.xlu0 %1216
      %1219 = vset.pattern.permute.xlu0 1
      %1220 = vperm.xlu0 %1219, %v602
      %v1221 = vpop.permute.xlu0 %1220
      %1223 = vset.pattern.permute.xlu0 1
      %1224 = vperm.xlu0 %1223, %v603
      %v1225 = vpop.permute.xlu0 %1224
      %1227 = vset.pattern.permute.xlu0 1
      %1228 = vperm.xlu0 %1227, %v604
      %v1229 = vpop.permute.xlu0 %1228
      %1231 = vset.pattern.permute.xlu0 1
      %1232 = vperm.xlu0 %1231, %v605
      %v1233 = vpop.permute.xlu0 %1232
      %1235 = vset.pattern.permute.xlu0 1
      %1236 = vperm.xlu0 %1235, %v606
      %v1237 = vpop.permute.xlu0 %1236
      %1239 = vset.pattern.permute.xlu0 1
      %1240 = vperm.xlu0 %1239, %v607
      %v1241 = vpop.permute.xlu0 %1240
      %1243 = vset.pattern.permute.xlu0 1
      %1244 = vperm.xlu0 %1243, %v608
      %v1245 = vpop.permute.xlu0 %1244
      %1247 = vset.pattern.permute.xlu0 1
      %1248 = vperm.xlu0 %1247, %v609
      %v1249 = vpop.permute.xlu0 %1248
      %1251 = vset.pattern.permute.xlu0 1
      %1252 = vperm.xlu0 %1251, %v610
      %v1253 = vpop.permute.xlu0 %1252
      %v1255 = vmul.f32 %v1129, %v777
      %v1256 = vmul.f32 %v1133, %v782
      %v1257 = vmul.f32 %v1137, %v787
      %v1258 = vmul.f32 %v1141, %v792
      %v1259 = vmul.f32 %v1145, %v797
      %v1260 = vmul.f32 %v1149, %v802
      %v1261 = vmul.f32 %v1153, %v807
      %v1262 = vmul.f32 %v1157, %v812
      %v1263 = vmul.f32 %v1161, %v817
      %v1264 = vmul.f32 %v1165, %v822
      %v1265 = vmul.f32 %v1169, %v827
      %v1266 = vmul.f32 %v1173, %v832
      %v1267 = vmul.f32 %v1177, %v837
      %v1268 = vmul.f32 %v1181, %v842
      %v1269 = vmul.f32 %v1185, %v847
      %v1270 = vmul.f32 %v1189, %v852
      %v1271 = vmul.f32 %v1193, %v857
      %v1272 = vmul.f32 %v1197, %v862
      %v1273 = vmul.f32 %v1201, %v867
      %v1274 = vmul.f32 %v1205, %v872
      %v1275 = vmul.f32 %v1209, %v877
      %v1276 = vmul.f32 %v1213, %v882
      %v1277 = vmul.f32 %v1217, %v887
      %v1278 = vmul.f32 %v1221, %v892
      %v1279 = vmul.f32 %v1225, %v897
      %v1280 = vmul.f32 %v1229, %v902
      %v1281 = vmul.f32 %v1233, %v907
      %v1282 = vmul.f32 %v1237, %v912
      %v1283 = vmul.f32 %v1241, %v917
      %v1284 = vmul.f32 %v1245, %v922
      %v1285 = vmul.f32 %v1249, %v927
      %v1286 = vmul.f32 %v1253, %v932
      %1319 = vrot.lane.b32.xlu0 %v1255, 120
      %v1320 = vpop.permute.xlu0 %1319
      %1321 = vrot.lane.b32.xlu0 %v1256, 120
      %v1322 = vpop.permute.xlu0 %1321
      %1323 = vrot.lane.b32.xlu0 %v1257, 120
      %v1324 = vpop.permute.xlu0 %1323
      %1325 = vrot.lane.b32.xlu0 %v1258, 120
      %v1326 = vpop.permute.xlu0 %1325
      %1327 = vrot.lane.b32.xlu0 %v1259, 120
      %v1328 = vpop.permute.xlu0 %1327
      %1329 = vrot.lane.b32.xlu0 %v1260, 120
      %v1330 = vpop.permute.xlu0 %1329
      %1331 = vrot.lane.b32.xlu0 %v1261, 120
      %v1332 = vpop.permute.xlu0 %1331
      %1333 = vrot.lane.b32.xlu0 %v1262, 120
      %v1334 = vpop.permute.xlu0 %1333
      %1335 = vrot.lane.b32.xlu0 %v1263, 120
      %v1336 = vpop.permute.xlu0 %1335
      %1337 = vrot.lane.b32.xlu0 %v1264, 120
      %v1338 = vpop.permute.xlu0 %1337
      %1339 = vrot.lane.b32.xlu0 %v1265, 120
      %v1340 = vpop.permute.xlu0 %1339
      %1341 = vrot.lane.b32.xlu0 %v1266, 120
      %v1342 = vpop.permute.xlu0 %1341
      %1343 = vrot.lane.b32.xlu0 %v1267, 120
      %v1344 = vpop.permute.xlu0 %1343
      %1345 = vrot.lane.b32.xlu0 %v1268, 120
      %v1346 = vpop.permute.xlu0 %1345
      %1347 = vrot.lane.b32.xlu0 %v1269, 120
      %v1348 = vpop.permute.xlu0 %1347
      %1349 = vrot.lane.b32.xlu0 %v1270, 120
      %v1350 = vpop.permute.xlu0 %1349
      %1351 = vrot.lane.b32.xlu0 %v1271, 120
      %v1352 = vpop.permute.xlu0 %1351
      %1353 = vrot.lane.b32.xlu0 %v1272, 120
      %v1354 = vpop.permute.xlu0 %1353
      %1355 = vrot.lane.b32.xlu0 %v1273, 120
      %v1356 = vpop.permute.xlu0 %1355
      %1357 = vrot.lane.b32.xlu0 %v1274, 120
      %v1358 = vpop.permute.xlu0 %1357
      %1359 = vrot.lane.b32.xlu0 %v1275, 120
      %v1360 = vpop.permute.xlu0 %1359
      %1361 = vrot.lane.b32.xlu0 %v1276, 120
      %v1362 = vpop.permute.xlu0 %1361
      %1363 = vrot.lane.b32.xlu0 %v1277, 120
      %v1364 = vpop.permute.xlu0 %1363
      %1365 = vrot.lane.b32.xlu0 %v1278, 120
      %v1366 = vpop.permute.xlu0 %1365
      %1367 = vrot.lane.b32.xlu0 %v1279, 120
      %v1368 = vpop.permute.xlu0 %1367
      %1369 = vrot.lane.b32.xlu0 %v1280, 120
      %v1370 = vpop.permute.xlu0 %1369
      %1371 = vrot.lane.b32.xlu0 %v1281, 120
      %v1372 = vpop.permute.xlu0 %1371
      %1373 = vrot.lane.b32.xlu0 %v1282, 120
      %v1374 = vpop.permute.xlu0 %1373
      %1375 = vrot.lane.b32.xlu0 %v1283, 120
      %v1376 = vpop.permute.xlu0 %1375
      %1377 = vrot.lane.b32.xlu0 %v1284, 120
      %v1378 = vpop.permute.xlu0 %1377
      %1379 = vrot.lane.b32.xlu0 %v1285, 120
      %v1380 = vpop.permute.xlu0 %1379
      %1381 = vrot.lane.b32.xlu0 %v1286, 120
      %v1382 = vpop.permute.xlu0 %1381
      %v1415 = vadd.f32 %v1095, %v1320
      %v1416 = vadd.f32 %v1096, %v1322
      %v1417 = vadd.f32 %v1097, %v1324
      %v1418 = vadd.f32 %v1098, %v1326
      %v1419 = vadd.f32 %v1099, %v1328
      %v1420 = vadd.f32 %v1100, %v1330
      %v1421 = vadd.f32 %v1101, %v1332
      %v1422 = vadd.f32 %v1102, %v1334
      %v1423 = vadd.f32 %v1103, %v1336
      %v1424 = vadd.f32 %v1104, %v1338
      %v1425 = vadd.f32 %v1105, %v1340
      %v1426 = vadd.f32 %v1106, %v1342
      %v1427 = vadd.f32 %v1107, %v1344
      %v1428 = vadd.f32 %v1108, %v1346
      %v1429 = vadd.f32 %v1109, %v1348
      %v1430 = vadd.f32 %v1110, %v1350
      %v1431 = vadd.f32 %v1111, %v1352
      %v1432 = vadd.f32 %v1112, %v1354
      %v1433 = vadd.f32 %v1113, %v1356
      %v1434 = vadd.f32 %v1114, %v1358
      %v1435 = vadd.f32 %v1115, %v1360
      %v1436 = vadd.f32 %v1116, %v1362
      %v1437 = vadd.f32 %v1117, %v1364
      %v1438 = vadd.f32 %v1118, %v1366
      %v1439 = vadd.f32 %v1119, %v1368
      %v1440 = vadd.f32 %v1120, %v1370
      %v1441 = vadd.f32 %v1121, %v1372
      %v1442 = vadd.f32 %v1122, %v1374
      %v1443 = vadd.f32 %v1123, %v1376
      %v1444 = vadd.f32 %v1124, %v1378
      %v1445 = vadd.f32 %v1125, %v1380
      %v1446 = vadd.f32 %v1126, %v1382
      %1447 = vset.pattern.permute.xlu0 2
      %1448 = vperm.xlu0 %1447, %v579
      %v1449 = vpop.permute.xlu0 %1448
      %1451 = vset.pattern.permute.xlu0 2
      %1452 = vperm.xlu0 %1451, %v580
      %v1453 = vpop.permute.xlu0 %1452
      %1455 = vset.pattern.permute.xlu0 2
      %1456 = vperm.xlu0 %1455, %v581
      %v1457 = vpop.permute.xlu0 %1456
      %1459 = vset.pattern.permute.xlu0 2
      %1460 = vperm.xlu0 %1459, %v582
      %v1461 = vpop.permute.xlu0 %1460
      %1463 = vset.pattern.permute.xlu0 2
      %1464 = vperm.xlu0 %1463, %v583
      %v1465 = vpop.permute.xlu0 %1464
      %1467 = vset.pattern.permute.xlu0 2
      %1468 = vperm.xlu0 %1467, %v584
      %v1469 = vpop.permute.xlu0 %1468
      %1471 = vset.pattern.permute.xlu0 2
      %1472 = vperm.xlu0 %1471, %v585
      %v1473 = vpop.permute.xlu0 %1472
      %1475 = vset.pattern.permute.xlu0 2
      %1476 = vperm.xlu0 %1475, %v586
      %v1477 = vpop.permute.xlu0 %1476
      %1479 = vset.pattern.permute.xlu0 2
      %1480 = vperm.xlu0 %1479, %v587
      %v1481 = vpop.permute.xlu0 %1480
      %1483 = vset.pattern.permute.xlu0 2
      %1484 = vperm.xlu0 %1483, %v588
      %v1485 = vpop.permute.xlu0 %1484
      %1487 = vset.pattern.permute.xlu0 2
      %1488 = vperm.xlu0 %1487, %v589
      %v1489 = vpop.permute.xlu0 %1488
      %1491 = vset.pattern.permute.xlu0 2
      %1492 = vperm.xlu0 %1491, %v590
      %v1493 = vpop.permute.xlu0 %1492
      %1495 = vset.pattern.permute.xlu0 2
      %1496 = vperm.xlu0 %1495, %v591
      %v1497 = vpop.permute.xlu0 %1496
      %1499 = vset.pattern.permute.xlu0 2
      %1500 = vperm.xlu0 %1499, %v592
      %v1501 = vpop.permute.xlu0 %1500
      %1503 = vset.pattern.permute.xlu0 2
      %1504 = vperm.xlu0 %1503, %v593
      %v1505 = vpop.permute.xlu0 %1504
      %1507 = vset.pattern.permute.xlu0 2
      %1508 = vperm.xlu0 %1507, %v594
      %v1509 = vpop.permute.xlu0 %1508
      %1511 = vset.pattern.permute.xlu0 2
      %1512 = vperm.xlu0 %1511, %v595
      %v1513 = vpop.permute.xlu0 %1512
      %1515 = vset.pattern.permute.xlu0 2
      %1516 = vperm.xlu0 %1515, %v596
      %v1517 = vpop.permute.xlu0 %1516
      %1519 = vset.pattern.permute.xlu0 2
      %1520 = vperm.xlu0 %1519, %v597
      %v1521 = vpop.permute.xlu0 %1520
      %1523 = vset.pattern.permute.xlu0 2
      %1524 = vperm.xlu0 %1523, %v598
      %v1525 = vpop.permute.xlu0 %1524
      %1527 = vset.pattern.permute.xlu0 2
      %1528 = vperm.xlu0 %1527, %v599
      %v1529 = vpop.permute.xlu0 %1528
      %1531 = vset.pattern.permute.xlu0 2
      %1532 = vperm.xlu0 %1531, %v600
      %v1533 = vpop.permute.xlu0 %1532
      %1535 = vset.pattern.permute.xlu0 2
      %1536 = vperm.xlu0 %1535, %v601
      %v1537 = vpop.permute.xlu0 %1536
      %1539 = vset.pattern.permute.xlu0 2
      %1540 = vperm.xlu0 %1539, %v602
      %v1541 = vpop.permute.xlu0 %1540
      %1543 = vset.pattern.permute.xlu0 2
      %1544 = vperm.xlu0 %1543, %v603
      %v1545 = vpop.permute.xlu0 %1544
      %1547 = vset.pattern.permute.xlu0 2
      %1548 = vperm.xlu0 %1547, %v604
      %v1549 = vpop.permute.xlu0 %1548
      %1551 = vset.pattern.permute.xlu0 2
      %1552 = vperm.xlu0 %1551, %v605
      %v1553 = vpop.permute.xlu0 %1552
      %1555 = vset.pattern.permute.xlu0 2
      %1556 = vperm.xlu0 %1555, %v606
      %v1557 = vpop.permute.xlu0 %1556
      %1559 = vset.pattern.permute.xlu0 2
      %1560 = vperm.xlu0 %1559, %v607
      %v1561 = vpop.permute.xlu0 %1560
      %1563 = vset.pattern.permute.xlu0 2
      %1564 = vperm.xlu0 %1563, %v608
      %v1565 = vpop.permute.xlu0 %1564
      %1567 = vset.pattern.permute.xlu0 2
      %1568 = vperm.xlu0 %1567, %v609
      %v1569 = vpop.permute.xlu0 %1568
      %1571 = vset.pattern.permute.xlu0 2
      %1572 = vperm.xlu0 %1571, %v610
      %v1573 = vpop.permute.xlu0 %1572
      %v1575 = vmul.f32 %v1449, %v777
      %v1576 = vmul.f32 %v1453, %v782
      %v1577 = vmul.f32 %v1457, %v787
      %v1578 = vmul.f32 %v1461, %v792
      %v1579 = vmul.f32 %v1465, %v797
      %v1580 = vmul.f32 %v1469, %v802
      %v1581 = vmul.f32 %v1473, %v807
      %v1582 = vmul.f32 %v1477, %v812
      %v1583 = vmul.f32 %v1481, %v817
      %v1584 = vmul.f32 %v1485, %v822
      %v1585 = vmul.f32 %v1489, %v827
      %v1586 = vmul.f32 %v1493, %v832
      %v1587 = vmul.f32 %v1497, %v837
      %v1588 = vmul.f32 %v1501, %v842
      %v1589 = vmul.f32 %v1505, %v847
      %v1590 = vmul.f32 %v1509, %v852
      %v1591 = vmul.f32 %v1513, %v857
      %v1592 = vmul.f32 %v1517, %v862
      %v1593 = vmul.f32 %v1521, %v867
      %v1594 = vmul.f32 %v1525, %v872
      %v1595 = vmul.f32 %v1529, %v877
      %v1596 = vmul.f32 %v1533, %v882
      %v1597 = vmul.f32 %v1537, %v887
      %v1598 = vmul.f32 %v1541, %v892
      %v1599 = vmul.f32 %v1545, %v897
      %v1600 = vmul.f32 %v1549, %v902
      %v1601 = vmul.f32 %v1553, %v907
      %v1602 = vmul.f32 %v1557, %v912
      %v1603 = vmul.f32 %v1561, %v917
      %v1604 = vmul.f32 %v1565, %v922
      %v1605 = vmul.f32 %v1569, %v927
      %v1606 = vmul.f32 %v1573, %v932
      %1639 = vrot.lane.b32.xlu0 %v1575, 112
      %v1640 = vpop.permute.xlu0 %1639
      %1641 = vrot.lane.b32.xlu0 %v1576, 112
      %v1642 = vpop.permute.xlu0 %1641
      %1643 = vrot.lane.b32.xlu0 %v1577, 112
      %v1644 = vpop.permute.xlu0 %1643
      %1645 = vrot.lane.b32.xlu0 %v1578, 112
      %v1646 = vpop.permute.xlu0 %1645
      %1647 = vrot.lane.b32.xlu0 %v1579, 112
      %v1648 = vpop.permute.xlu0 %1647
      %1649 = vrot.lane.b32.xlu0 %v1580, 112
      %v1650 = vpop.permute.xlu0 %1649
      %1651 = vrot.lane.b32.xlu0 %v1581, 112
      %v1652 = vpop.permute.xlu0 %1651
      %1653 = vrot.lane.b32.xlu0 %v1582, 112
      %v1654 = vpop.permute.xlu0 %1653
      %1655 = vrot.lane.b32.xlu0 %v1583, 112
      %v1656 = vpop.permute.xlu0 %1655
      %1657 = vrot.lane.b32.xlu0 %v1584, 112
      %v1658 = vpop.permute.xlu0 %1657
      %1659 = vrot.lane.b32.xlu0 %v1585, 112
      %v1660 = vpop.permute.xlu0 %1659
      %1661 = vrot.lane.b32.xlu0 %v1586, 112
      %v1662 = vpop.permute.xlu0 %1661
      %1663 = vrot.lane.b32.xlu0 %v1587, 112
      %v1664 = vpop.permute.xlu0 %1663
      %1665 = vrot.lane.b32.xlu0 %v1588, 112
      %v1666 = vpop.permute.xlu0 %1665
      %1667 = vrot.lane.b32.xlu0 %v1589, 112
      %v1668 = vpop.permute.xlu0 %1667
      %1669 = vrot.lane.b32.xlu0 %v1590, 112
      %v1670 = vpop.permute.xlu0 %1669
      %1671 = vrot.lane.b32.xlu0 %v1591, 112
      %v1672 = vpop.permute.xlu0 %1671
      %1673 = vrot.lane.b32.xlu0 %v1592, 112
      %v1674 = vpop.permute.xlu0 %1673
      %1675 = vrot.lane.b32.xlu0 %v1593, 112
      %v1676 = vpop.permute.xlu0 %1675
      %1677 = vrot.lane.b32.xlu0 %v1594, 112
      %v1678 = vpop.permute.xlu0 %1677
      %1679 = vrot.lane.b32.xlu0 %v1595, 112
      %v1680 = vpop.permute.xlu0 %1679
      %1681 = vrot.lane.b32.xlu0 %v1596, 112
      %v1682 = vpop.permute.xlu0 %1681
      %1683 = vrot.lane.b32.xlu0 %v1597, 112
      %v1684 = vpop.permute.xlu0 %1683
      %1685 = vrot.lane.b32.xlu0 %v1598, 112
      %v1686 = vpop.permute.xlu0 %1685
      %1687 = vrot.lane.b32.xlu0 %v1599, 112
      %v1688 = vpop.permute.xlu0 %1687
      %1689 = vrot.lane.b32.xlu0 %v1600, 112
      %v1690 = vpop.permute.xlu0 %1689
      %1691 = vrot.lane.b32.xlu0 %v1601, 112
      %v1692 = vpop.permute.xlu0 %1691
      %1693 = vrot.lane.b32.xlu0 %v1602, 112
      %v1694 = vpop.permute.xlu0 %1693
      %1695 = vrot.lane.b32.xlu0 %v1603, 112
      %v1696 = vpop.permute.xlu0 %1695
      %1697 = vrot.lane.b32.xlu0 %v1604, 112
      %v1698 = vpop.permute.xlu0 %1697
      %1699 = vrot.lane.b32.xlu0 %v1605, 112
      %v1700 = vpop.permute.xlu0 %1699
      %1701 = vrot.lane.b32.xlu0 %v1606, 112
      %v1702 = vpop.permute.xlu0 %1701
      %v1735 = vadd.f32 %v1415, %v1640
      %v1736 = vadd.f32 %v1416, %v1642
      %v1737 = vadd.f32 %v1417, %v1644
      %v1738 = vadd.f32 %v1418, %v1646
      %v1739 = vadd.f32 %v1419, %v1648
      %v1740 = vadd.f32 %v1420, %v1650
      %v1741 = vadd.f32 %v1421, %v1652
      %v1742 = vadd.f32 %v1422, %v1654
      %v1743 = vadd.f32 %v1423, %v1656
      %v1744 = vadd.f32 %v1424, %v1658
      %v1745 = vadd.f32 %v1425, %v1660
      %v1746 = vadd.f32 %v1426, %v1662
      %v1747 = vadd.f32 %v1427, %v1664
      %v1748 = vadd.f32 %v1428, %v1666
      %v1749 = vadd.f32 %v1429, %v1668
      %v1750 = vadd.f32 %v1430, %v1670
      %v1751 = vadd.f32 %v1431, %v1672
      %v1752 = vadd.f32 %v1432, %v1674
      %v1753 = vadd.f32 %v1433, %v1676
      %v1754 = vadd.f32 %v1434, %v1678
      %v1755 = vadd.f32 %v1435, %v1680
      %v1756 = vadd.f32 %v1436, %v1682
      %v1757 = vadd.f32 %v1437, %v1684
      %v1758 = vadd.f32 %v1438, %v1686
      %v1759 = vadd.f32 %v1439, %v1688
      %v1760 = vadd.f32 %v1440, %v1690
      %v1761 = vadd.f32 %v1441, %v1692
      %v1762 = vadd.f32 %v1442, %v1694
      %v1763 = vadd.f32 %v1443, %v1696
      %v1764 = vadd.f32 %v1444, %v1698
      %v1765 = vadd.f32 %v1445, %v1700
      %v1766 = vadd.f32 %v1446, %v1702
      %1767 = vset.pattern.permute.xlu0 3
      %1768 = vperm.xlu0 %1767, %v579
      %v1769 = vpop.permute.xlu0 %1768
      %1771 = vset.pattern.permute.xlu0 3
      %1772 = vperm.xlu0 %1771, %v580
      %v1773 = vpop.permute.xlu0 %1772
      %1775 = vset.pattern.permute.xlu0 3
      %1776 = vperm.xlu0 %1775, %v581
      %v1777 = vpop.permute.xlu0 %1776
      %1779 = vset.pattern.permute.xlu0 3
      %1780 = vperm.xlu0 %1779, %v582
      %v1781 = vpop.permute.xlu0 %1780
      %1783 = vset.pattern.permute.xlu0 3
      %1784 = vperm.xlu0 %1783, %v583
      %v1785 = vpop.permute.xlu0 %1784
      %1787 = vset.pattern.permute.xlu0 3
      %1788 = vperm.xlu0 %1787, %v584
      %v1789 = vpop.permute.xlu0 %1788
      %1791 = vset.pattern.permute.xlu0 3
      %1792 = vperm.xlu0 %1791, %v585
      %v1793 = vpop.permute.xlu0 %1792
      %1795 = vset.pattern.permute.xlu0 3
      %1796 = vperm.xlu0 %1795, %v586
      %v1797 = vpop.permute.xlu0 %1796
      %1799 = vset.pattern.permute.xlu0 3
      %1800 = vperm.xlu0 %1799, %v587
      %v1801 = vpop.permute.xlu0 %1800
      %1803 = vset.pattern.permute.xlu0 3
      %1804 = vperm.xlu0 %1803, %v588
      %v1805 = vpop.permute.xlu0 %1804
      %1807 = vset.pattern.permute.xlu0 3
      %1808 = vperm.xlu0 %1807, %v589
      %v1809 = vpop.permute.xlu0 %1808
      %1811 = vset.pattern.permute.xlu0 3
      %1812 = vperm.xlu0 %1811, %v590
      %v1813 = vpop.permute.xlu0 %1812
      %1815 = vset.pattern.permute.xlu0 3
      %1816 = vperm.xlu0 %1815, %v591
      %v1817 = vpop.permute.xlu0 %1816
      %1819 = vset.pattern.permute.xlu0 3
      %1820 = vperm.xlu0 %1819, %v592
      %v1821 = vpop.permute.xlu0 %1820
      %1823 = vset.pattern.permute.xlu0 3
      %1824 = vperm.xlu0 %1823, %v593
      %v1825 = vpop.permute.xlu0 %1824
      %1827 = vset.pattern.permute.xlu0 3
      %1828 = vperm.xlu0 %1827, %v594
      %v1829 = vpop.permute.xlu0 %1828
      %1831 = vset.pattern.permute.xlu0 3
      %1832 = vperm.xlu0 %1831, %v595
      %v1833 = vpop.permute.xlu0 %1832
      %1835 = vset.pattern.permute.xlu0 3
      %1836 = vperm.xlu0 %1835, %v596
      %v1837 = vpop.permute.xlu0 %1836
      %1839 = vset.pattern.permute.xlu0 3
      %1840 = vperm.xlu0 %1839, %v597
      %v1841 = vpop.permute.xlu0 %1840
      %1843 = vset.pattern.permute.xlu0 3
      %1844 = vperm.xlu0 %1843, %v598
      %v1845 = vpop.permute.xlu0 %1844
      %1847 = vset.pattern.permute.xlu0 3
      %1848 = vperm.xlu0 %1847, %v599
      %v1849 = vpop.permute.xlu0 %1848
      %1851 = vset.pattern.permute.xlu0 3
      %1852 = vperm.xlu0 %1851, %v600
      %v1853 = vpop.permute.xlu0 %1852
      %1855 = vset.pattern.permute.xlu0 3
      %1856 = vperm.xlu0 %1855, %v601
      %v1857 = vpop.permute.xlu0 %1856
      %1859 = vset.pattern.permute.xlu0 3
      %1860 = vperm.xlu0 %1859, %v602
      %v1861 = vpop.permute.xlu0 %1860
      %1863 = vset.pattern.permute.xlu0 3
      %1864 = vperm.xlu0 %1863, %v603
      %v1865 = vpop.permute.xlu0 %1864
      %1867 = vset.pattern.permute.xlu0 3
      %1868 = vperm.xlu0 %1867, %v604
      %v1869 = vpop.permute.xlu0 %1868
      %1871 = vset.pattern.permute.xlu0 3
      %1872 = vperm.xlu0 %1871, %v605
      %v1873 = vpop.permute.xlu0 %1872
      %1875 = vset.pattern.permute.xlu0 3
      %1876 = vperm.xlu0 %1875, %v606
      %v1877 = vpop.permute.xlu0 %1876
      %1879 = vset.pattern.permute.xlu0 3
      %1880 = vperm.xlu0 %1879, %v607
      %v1881 = vpop.permute.xlu0 %1880
      %1883 = vset.pattern.permute.xlu0 3
      %1884 = vperm.xlu0 %1883, %v608
      %v1885 = vpop.permute.xlu0 %1884
      %1887 = vset.pattern.permute.xlu0 3
      %1888 = vperm.xlu0 %1887, %v609
      %v1889 = vpop.permute.xlu0 %1888
      %1891 = vset.pattern.permute.xlu0 3
      %1892 = vperm.xlu0 %1891, %v610
      %v1893 = vpop.permute.xlu0 %1892
      %v1895 = vmul.f32 %v1769, %v777
      %v1896 = vmul.f32 %v1773, %v782
      %v1897 = vmul.f32 %v1777, %v787
      %v1898 = vmul.f32 %v1781, %v792
      %v1899 = vmul.f32 %v1785, %v797
      %v1900 = vmul.f32 %v1789, %v802
      %v1901 = vmul.f32 %v1793, %v807
      %v1902 = vmul.f32 %v1797, %v812
      %v1903 = vmul.f32 %v1801, %v817
      %v1904 = vmul.f32 %v1805, %v822
      %v1905 = vmul.f32 %v1809, %v827
      %v1906 = vmul.f32 %v1813, %v832
      %v1907 = vmul.f32 %v1817, %v837
      %v1908 = vmul.f32 %v1821, %v842
      %v1909 = vmul.f32 %v1825, %v847
      %v1910 = vmul.f32 %v1829, %v852
      %v1911 = vmul.f32 %v1833, %v857
      %v1912 = vmul.f32 %v1837, %v862
      %v1913 = vmul.f32 %v1841, %v867
      %v1914 = vmul.f32 %v1845, %v872
      %v1915 = vmul.f32 %v1849, %v877
      %v1916 = vmul.f32 %v1853, %v882
      %v1917 = vmul.f32 %v1857, %v887
      %v1918 = vmul.f32 %v1861, %v892
      %v1919 = vmul.f32 %v1865, %v897
      %v1920 = vmul.f32 %v1869, %v902
      %v1921 = vmul.f32 %v1873, %v907
      %v1922 = vmul.f32 %v1877, %v912
      %v1923 = vmul.f32 %v1881, %v917
      %v1924 = vmul.f32 %v1885, %v922
      %v1925 = vmul.f32 %v1889, %v927
      %v1926 = vmul.f32 %v1893, %v932
      %1959 = vrot.lane.b32.xlu0 %v1895, 104
      %v1960 = vpop.permute.xlu0 %1959
      %1961 = vrot.lane.b32.xlu0 %v1896, 104
      %v1962 = vpop.permute.xlu0 %1961
      %1963 = vrot.lane.b32.xlu0 %v1897, 104
      %v1964 = vpop.permute.xlu0 %1963
      %1965 = vrot.lane.b32.xlu0 %v1898, 104
      %v1966 = vpop.permute.xlu0 %1965
      %1967 = vrot.lane.b32.xlu0 %v1899, 104
      %v1968 = vpop.permute.xlu0 %1967
      %1969 = vrot.lane.b32.xlu0 %v1900, 104
      %v1970 = vpop.permute.xlu0 %1969
      %1971 = vrot.lane.b32.xlu0 %v1901, 104
      %v1972 = vpop.permute.xlu0 %1971
      %1973 = vrot.lane.b32.xlu0 %v1902, 104
      %v1974 = vpop.permute.xlu0 %1973
      %1975 = vrot.lane.b32.xlu0 %v1903, 104
      %v1976 = vpop.permute.xlu0 %1975
      %1977 = vrot.lane.b32.xlu0 %v1904, 104
      %v1978 = vpop.permute.xlu0 %1977
      %1979 = vrot.lane.b32.xlu0 %v1905, 104
      %v1980 = vpop.permute.xlu0 %1979
      %1981 = vrot.lane.b32.xlu0 %v1906, 104
      %v1982 = vpop.permute.xlu0 %1981
      %1983 = vrot.lane.b32.xlu0 %v1907, 104
      %v1984 = vpop.permute.xlu0 %1983
      %1985 = vrot.lane.b32.xlu0 %v1908, 104
      %v1986 = vpop.permute.xlu0 %1985
      %1987 = vrot.lane.b32.xlu0 %v1909, 104
      %v1988 = vpop.permute.xlu0 %1987
      %1989 = vrot.lane.b32.xlu0 %v1910, 104
      %v1990 = vpop.permute.xlu0 %1989
      %1991 = vrot.lane.b32.xlu0 %v1911, 104
      %v1992 = vpop.permute.xlu0 %1991
      %1993 = vrot.lane.b32.xlu0 %v1912, 104
      %v1994 = vpop.permute.xlu0 %1993
      %1995 = vrot.lane.b32.xlu0 %v1913, 104
      %v1996 = vpop.permute.xlu0 %1995
      %1997 = vrot.lane.b32.xlu0 %v1914, 104
      %v1998 = vpop.permute.xlu0 %1997
      %1999 = vrot.lane.b32.xlu0 %v1915, 104
      %v2000 = vpop.permute.xlu0 %1999
      %2001 = vrot.lane.b32.xlu0 %v1916, 104
      %v2002 = vpop.permute.xlu0 %2001
      %2003 = vrot.lane.b32.xlu0 %v1917, 104
      %v2004 = vpop.permute.xlu0 %2003
      %2005 = vrot.lane.b32.xlu0 %v1918, 104
      %v2006 = vpop.permute.xlu0 %2005
      %2007 = vrot.lane.b32.xlu0 %v1919, 104
      %v2008 = vpop.permute.xlu0 %2007
      %2009 = vrot.lane.b32.xlu0 %v1920, 104
      %v2010 = vpop.permute.xlu0 %2009
      %2011 = vrot.lane.b32.xlu0 %v1921, 104
      %v2012 = vpop.permute.xlu0 %2011
      %2013 = vrot.lane.b32.xlu0 %v1922, 104
      %v2014 = vpop.permute.xlu0 %2013
      %2015 = vrot.lane.b32.xlu0 %v1923, 104
      %v2016 = vpop.permute.xlu0 %2015
      %2017 = vrot.lane.b32.xlu0 %v1924, 104
      %v2018 = vpop.permute.xlu0 %2017
      %2019 = vrot.lane.b32.xlu0 %v1925, 104
      %v2020 = vpop.permute.xlu0 %2019
      %2021 = vrot.lane.b32.xlu0 %v1926, 104
      %v2022 = vpop.permute.xlu0 %2021
      %v2055 = vadd.f32 %v1735, %v1960
      %v2056 = vadd.f32 %v1736, %v1962
      %v2057 = vadd.f32 %v1737, %v1964
      %v2058 = vadd.f32 %v1738, %v1966
      %v2059 = vadd.f32 %v1739, %v1968
      %v2060 = vadd.f32 %v1740, %v1970
      %v2061 = vadd.f32 %v1741, %v1972
      %v2062 = vadd.f32 %v1742, %v1974
      %v2063 = vadd.f32 %v1743, %v1976
      %v2064 = vadd.f32 %v1744, %v1978
      %v2065 = vadd.f32 %v1745, %v1980
      %v2066 = vadd.f32 %v1746, %v1982
      %v2067 = vadd.f32 %v1747, %v1984
      %v2068 = vadd.f32 %v1748, %v1986
      %v2069 = vadd.f32 %v1749, %v1988
      %v2070 = vadd.f32 %v1750, %v1990
      %v2071 = vadd.f32 %v1751, %v1992
      %v2072 = vadd.f32 %v1752, %v1994
      %v2073 = vadd.f32 %v1753, %v1996
      %v2074 = vadd.f32 %v1754, %v1998
      %v2075 = vadd.f32 %v1755, %v2000
      %v2076 = vadd.f32 %v1756, %v2002
      %v2077 = vadd.f32 %v1757, %v2004
      %v2078 = vadd.f32 %v1758, %v2006
      %v2079 = vadd.f32 %v1759, %v2008
      %v2080 = vadd.f32 %v1760, %v2010
      %v2081 = vadd.f32 %v1761, %v2012
      %v2082 = vadd.f32 %v1762, %v2014
      %v2083 = vadd.f32 %v1763, %v2016
      %v2084 = vadd.f32 %v1764, %v2018
      %v2085 = vadd.f32 %v1765, %v2020
      %v2086 = vadd.f32 %v1766, %v2022
      %2119 = vrot.lane.b32.xlu0 %v2055, 8
      %v2120 = vpop.permute.xlu0 %2119
      %2121 = vrot.lane.b32.xlu0 %v2056, 8
      %v2122 = vpop.permute.xlu0 %2121
      %2123 = vrot.lane.b32.xlu0 %v2057, 8
      %v2124 = vpop.permute.xlu0 %2123
      %2125 = vrot.lane.b32.xlu0 %v2058, 8
      %v2126 = vpop.permute.xlu0 %2125
      %2127 = vrot.lane.b32.xlu0 %v2059, 8
      %v2128 = vpop.permute.xlu0 %2127
      %2129 = vrot.lane.b32.xlu0 %v2060, 8
      %v2130 = vpop.permute.xlu0 %2129
      %2131 = vrot.lane.b32.xlu0 %v2061, 8
      %v2132 = vpop.permute.xlu0 %2131
      %2133 = vrot.lane.b32.xlu0 %v2062, 8
      %v2134 = vpop.permute.xlu0 %2133
      %2135 = vrot.lane.b32.xlu0 %v2063, 8
      %v2136 = vpop.permute.xlu0 %2135
      %2137 = vrot.lane.b32.xlu0 %v2064, 8
      %v2138 = vpop.permute.xlu0 %2137
      %2139 = vrot.lane.b32.xlu0 %v2065, 8
      %v2140 = vpop.permute.xlu0 %2139
      %2141 = vrot.lane.b32.xlu0 %v2066, 8
      %v2142 = vpop.permute.xlu0 %2141
      %2143 = vrot.lane.b32.xlu0 %v2067, 8
      %v2144 = vpop.permute.xlu0 %2143
      %2145 = vrot.lane.b32.xlu0 %v2068, 8
      %v2146 = vpop.permute.xlu0 %2145
      %2147 = vrot.lane.b32.xlu0 %v2069, 8
      %v2148 = vpop.permute.xlu0 %2147
      %2149 = vrot.lane.b32.xlu0 %v2070, 8
      %v2150 = vpop.permute.xlu0 %2149
      %2151 = vrot.lane.b32.xlu0 %v2071, 8
      %v2152 = vpop.permute.xlu0 %2151
      %2153 = vrot.lane.b32.xlu0 %v2072, 8
      %v2154 = vpop.permute.xlu0 %2153
      %2155 = vrot.lane.b32.xlu0 %v2073, 8
      %v2156 = vpop.permute.xlu0 %2155
      %2157 = vrot.lane.b32.xlu0 %v2074, 8
      %v2158 = vpop.permute.xlu0 %2157
      %2159 = vrot.lane.b32.xlu0 %v2075, 8
      %v2160 = vpop.permute.xlu0 %2159
      %2161 = vrot.lane.b32.xlu0 %v2076, 8
      %v2162 = vpop.permute.xlu0 %2161
      %2163 = vrot.lane.b32.xlu0 %v2077, 8
      %v2164 = vpop.permute.xlu0 %2163
      %2165 = vrot.lane.b32.xlu0 %v2078, 8
      %v2166 = vpop.permute.xlu0 %2165
      %2167 = vrot.lane.b32.xlu0 %v2079, 8
      %v2168 = vpop.permute.xlu0 %2167
      %2169 = vrot.lane.b32.xlu0 %v2080, 8
      %v2170 = vpop.permute.xlu0 %2169
      %2171 = vrot.lane.b32.xlu0 %v2081, 8
      %v2172 = vpop.permute.xlu0 %2171
      %2173 = vrot.lane.b32.xlu0 %v2082, 8
      %v2174 = vpop.permute.xlu0 %2173
      %2175 = vrot.lane.b32.xlu0 %v2083, 8
      %v2176 = vpop.permute.xlu0 %2175
      %2177 = vrot.lane.b32.xlu0 %v2084, 8
      %v2178 = vpop.permute.xlu0 %2177
      %2179 = vrot.lane.b32.xlu0 %v2085, 8
      %v2180 = vpop.permute.xlu0 %2179
      %2181 = vrot.lane.b32.xlu0 %v2086, 8
      %v2182 = vpop.permute.xlu0 %2181
      %vm2215 = vcmask 64512
      %v2216 = vsel %vm2215, %v515, %v2120
      %v2217 = vsel %vm2215, %v516, %v2122
      %v2218 = vsel %vm2215, %v517, %v2124
      %v2219 = vsel %vm2215, %v518, %v2126
      %v2220 = vsel %vm2215, %v519, %v2128
      %v2221 = vsel %vm2215, %v520, %v2130
      %v2222 = vsel %vm2215, %v521, %v2132
      %v2223 = vsel %vm2215, %v522, %v2134
      %v2224 = vsel %vm2215, %v523, %v2136
      %v2225 = vsel %vm2215, %v524, %v2138
      %v2226 = vsel %vm2215, %v525, %v2140
      %v2227 = vsel %vm2215, %v526, %v2142
      %v2228 = vsel %vm2215, %v527, %v2144
      %v2229 = vsel %vm2215, %v528, %v2146
      %v2230 = vsel %vm2215, %v529, %v2148
      %v2231 = vsel %vm2215, %v530, %v2150
      %v2232 = vsel %vm2215, %v531, %v2152
      %v2233 = vsel %vm2215, %v532, %v2154
      %v2234 = vsel %vm2215, %v533, %v2156
      %v2235 = vsel %vm2215, %v534, %v2158
      %v2236 = vsel %vm2215, %v535, %v2160
      %v2237 = vsel %vm2215, %v536, %v2162
      %v2238 = vsel %vm2215, %v537, %v2164
      %v2239 = vsel %vm2215, %v538, %v2166
      %v2240 = vsel %vm2215, %v539, %v2168
      %v2241 = vsel %vm2215, %v540, %v2170
      %v2242 = vsel %vm2215, %v541, %v2172
      %v2243 = vsel %vm2215, %v542, %v2174
      %v2244 = vsel %vm2215, %v543, %v2176
      %v2245 = vsel %vm2215, %v544, %v2178
      %v2246 = vsel %vm2215, %v545, %v2180
      %v2247 = vsel %vm2215, %v546, %v2182
      %v2248 = vld [vmem:[%s4] sm:$0x1]
      %v2250 = vlaneseq
      %v2251 = vshrl.u32 %v2250, 7
      %v2252 = vsub.s32 0, %v2251
      %v2253 = vrot.slane %v2248, %v2252
      %v2255 = vmul.f32 %v2216, %v2253
      %v2256 = vmul.f32 %v2217, %v2253
      %v2257 = vmul.f32 %v2218, %v2253
      %v2258 = vmul.f32 %v2219, %v2253
      %v2259 = vmul.f32 %v2220, %v2253
      %v2260 = vmul.f32 %v2221, %v2253
      %v2261 = vmul.f32 %v2222, %v2253
      %v2262 = vmul.f32 %v2223, %v2253
      %v2263 = vmul.f32 %v2224, %v2253
      %v2264 = vmul.f32 %v2225, %v2253
      %v2265 = vmul.f32 %v2226, %v2253
      %v2266 = vmul.f32 %v2227, %v2253
      %v2267 = vmul.f32 %v2228, %v2253
      %v2268 = vmul.f32 %v2229, %v2253
      %v2269 = vmul.f32 %v2230, %v2253
      %v2270 = vmul.f32 %v2231, %v2253
      %v2271 = vmul.f32 %v2232, %v2253
      %v2272 = vmul.f32 %v2233, %v2253
      %v2273 = vmul.f32 %v2234, %v2253
      %v2274 = vmul.f32 %v2235, %v2253
      %v2275 = vmul.f32 %v2236, %v2253
      %v2276 = vmul.f32 %v2237, %v2253
      %v2277 = vmul.f32 %v2238, %v2253
      %v2278 = vmul.f32 %v2239, %v2253
      %v2279 = vmul.f32 %v2240, %v2253
      %v2280 = vmul.f32 %v2241, %v2253
      %v2281 = vmul.f32 %v2242, %v2253
      %v2282 = vmul.f32 %v2243, %v2253
      %v2283 = vmul.f32 %v2244, %v2253
      %v2284 = vmul.f32 %v2245, %v2253
      %v2285 = vmul.f32 %v2246, %v2253
      %v2286 = vmul.f32 %v2247, %v2253
      %v2287 = vld [vmem:[%s5] sm:$0x1]
      %v2289 = vlaneseq
      %v2290 = vshrl.u32 %v2289, 7
      %v2291 = vsub.s32 0, %v2290
      %v2292 = vrot.slane %v2287, %v2291
      %v2294 = vadd.f32 %v2255, %v2292
      %v2295 = vadd.f32 %v2256, %v2292
      %v2296 = vadd.f32 %v2257, %v2292
      %v2297 = vadd.f32 %v2258, %v2292
      %v2298 = vadd.f32 %v2259, %v2292
      %v2299 = vadd.f32 %v2260, %v2292
      %v2300 = vadd.f32 %v2261, %v2292
      %v2301 = vadd.f32 %v2262, %v2292
      %v2302 = vadd.f32 %v2263, %v2292
      %v2303 = vadd.f32 %v2264, %v2292
      %v2304 = vadd.f32 %v2265, %v2292
      %v2305 = vadd.f32 %v2266, %v2292
      %v2306 = vadd.f32 %v2267, %v2292
      %v2307 = vadd.f32 %v2268, %v2292
      %v2308 = vadd.f32 %v2269, %v2292
      %v2309 = vadd.f32 %v2270, %v2292
      %v2310 = vadd.f32 %v2271, %v2292
      %v2311 = vadd.f32 %v2272, %v2292
      %v2312 = vadd.f32 %v2273, %v2292
      %v2313 = vadd.f32 %v2274, %v2292
      %v2314 = vadd.f32 %v2275, %v2292
      %v2315 = vadd.f32 %v2276, %v2292
      %v2316 = vadd.f32 %v2277, %v2292
      %v2317 = vadd.f32 %v2278, %v2292
      %v2318 = vadd.f32 %v2279, %v2292
      %v2319 = vadd.f32 %v2280, %v2292
      %v2320 = vadd.f32 %v2281, %v2292
      %v2321 = vadd.f32 %v2282, %v2292
      %v2322 = vadd.f32 %v2283, %v2292
      %v2323 = vadd.f32 %v2284, %v2292
      %v2324 = vadd.f32 %v2285, %v2292
      %v2325 = vadd.f32 %v2286, %v2292
      %v2326 = vmul.f32 %v2294, 0.01
      %v2327 = vmul.f32 %v2295, 0.01
      %v2328 = vmul.f32 %v2296, 0.01
      %v2329 = vmul.f32 %v2297, 0.01
      %v2330 = vmul.f32 %v2298, 0.01
      %v2331 = vmul.f32 %v2299, 0.01
      %v2332 = vmul.f32 %v2300, 0.01
      %v2333 = vmul.f32 %v2301, 0.01
      %v2334 = vmul.f32 %v2302, 0.01
      %v2335 = vmul.f32 %v2303, 0.01
      %v2336 = vmul.f32 %v2304, 0.01
      %v2337 = vmul.f32 %v2305, 0.01
      %v2338 = vmul.f32 %v2306, 0.01
      %v2339 = vmul.f32 %v2307, 0.01
      %v2340 = vmul.f32 %v2308, 0.01
      %v2341 = vmul.f32 %v2309, 0.01
      %v2342 = vmul.f32 %v2310, 0.01
      %v2343 = vmul.f32 %v2311, 0.01
      %v2344 = vmul.f32 %v2312, 0.01
      %v2345 = vmul.f32 %v2313, 0.01
      %v2346 = vmul.f32 %v2314, 0.01
      %v2347 = vmul.f32 %v2315, 0.01
      %v2348 = vmul.f32 %v2316, 0.01
      %v2349 = vmul.f32 %v2317, 0.01
      %v2350 = vmul.f32 %v2318, 0.01
      %v2351 = vmul.f32 %v2319, 0.01
      %v2352 = vmul.f32 %v2320, 0.01
      %v2353 = vmul.f32 %v2321, 0.01
      %v2354 = vmul.f32 %v2322, 0.01
      %v2355 = vmul.f32 %v2323, 0.01
      %v2356 = vmul.f32 %v2324, 0.01
      %v2357 = vmul.f32 %v2325, 0.01
      %v2358 = vmax.f32 %v2294, %v2326
      %v2359 = vmax.f32 %v2295, %v2327
      %v2360 = vmax.f32 %v2296, %v2328
      %v2361 = vmax.f32 %v2297, %v2329
      %v2362 = vmax.f32 %v2298, %v2330
      %v2363 = vmax.f32 %v2299, %v2331
      %v2364 = vmax.f32 %v2300, %v2332
      %v2365 = vmax.f32 %v2301, %v2333
      %v2366 = vmax.f32 %v2302, %v2334
      %v2367 = vmax.f32 %v2303, %v2335
      %v2368 = vmax.f32 %v2304, %v2336
      %v2369 = vmax.f32 %v2305, %v2337
      %v2370 = vmax.f32 %v2306, %v2338
      %v2371 = vmax.f32 %v2307, %v2339
      %v2372 = vmax.f32 %v2308, %v2340
      %v2373 = vmax.f32 %v2309, %v2341
      %v2374 = vmax.f32 %v2310, %v2342
      %v2375 = vmax.f32 %v2311, %v2343
      %v2376 = vmax.f32 %v2312, %v2344
      %v2377 = vmax.f32 %v2313, %v2345
      %v2378 = vmax.f32 %v2314, %v2346
      %v2379 = vmax.f32 %v2315, %v2347
      %v2380 = vmax.f32 %v2316, %v2348
      %v2381 = vmax.f32 %v2317, %v2349
      %v2382 = vmax.f32 %v2318, %v2350
      %v2383 = vmax.f32 %v2319, %v2351
      %v2384 = vmax.f32 %v2320, %v2352
      %v2385 = vmax.f32 %v2321, %v2353
      %v2386 = vmax.f32 %v2322, %v2354
      %v2387 = vmax.f32 %v2323, %v2355
      %v2388 = vmax.f32 %v2324, %v2356
      %v2389 = vmax.f32 %v2325, %v2357
      %v2390 = vld [vmem:[%s6] sm:$0xff]
      %v2391 = vld [vmem:[%s6 + $0x8] sm:$0xff]
      %v2392 = vld [vmem:[%s7] sm:$0x1]
      %v2394 = vlaneseq
      %v2395 = vshrl.u32 %v2394, 7
      %v2396 = vsub.s32 0, %v2395
      %v2397 = vrot.slane %v2392, %v2396
      %v2400 = vsel %vm613, %v2358, 0
      %v2403 = vsel %vm613, %v2359, 0
      %v2406 = vsel %vm613, %v2360, 0
      %v2409 = vsel %vm613, %v2361, 0
      %v2412 = vsel %vm613, %v2362, 0
      %v2415 = vsel %vm613, %v2363, 0
      %v2418 = vsel %vm613, %v2364, 0
      %v2421 = vsel %vm613, %v2365, 0
      %v2424 = vsel %vm613, %v2366, 0
      %v2427 = vsel %vm613, %v2367, 0
      %v2430 = vsel %vm613, %v2368, 0
      %v2433 = vsel %vm613, %v2369, 0
      %v2436 = vsel %vm613, %v2370, 0
      %v2439 = vsel %vm613, %v2371, 0
      %v2442 = vsel %vm613, %v2372, 0
      %v2445 = vsel %vm613, %v2373, 0
      %v2448 = vsel %vm613, %v2374, 0
      %v2451 = vsel %vm613, %v2375, 0
      %v2454 = vsel %vm613, %v2376, 0
      %v2457 = vsel %vm613, %v2377, 0
      %v2460 = vsel %vm613, %v2378, 0
      %v2463 = vsel %vm613, %v2379, 0
      %v2466 = vsel %vm613, %v2380, 0
      %v2469 = vsel %vm613, %v2381, 0
      %v2472 = vsel %vm613, %v2382, 0
      %v2475 = vsel %vm613, %v2383, 0
      %v2478 = vsel %vm613, %v2384, 0
      %v2481 = vsel %vm613, %v2385, 0
      %v2484 = vsel %vm613, %v2386, 0
      %v2487 = vsel %vm613, %v2387, 0
      %v2490 = vsel %vm613, %v2388, 0
      %v2493 = vsel %vm613, %v2389, 0
      %2495 = vmatprep.subr.mxu0 0.0
      %2496 = vmatpush1.msra.mxu0 %v2390
      %2497 = vmatprep.subr.mxu0 0.0
      %2498 = vmatpush1.msra.mxu0 %v2391
      %2499 = vmatprep.subr.mxu0 0.0
      %2500 = vmatpush1.msra.mxu0 0.0
      %2501 = vmatprep.subr.mxu0 0.0
      %2502 = vmatpush1.msra.mxu0 0.0
      %2503 = vmatprep.subr.mxu0 0.0
      %2504 = vmatpush1.msra.mxu0 0.0
      %2505 = vmatprep.subr.mxu0 0.0
      %2506 = vmatpush1.msra.mxu0 0.0
      %2507 = vmatprep.subr.mxu0 0.0
      %2508 = vmatpush1.msra.mxu0 0.0
      %2509 = vmatprep.subr.mxu0 0.0
      %2510 = vmatpush1.msra.mxu0 0.0
      %2511 = vmatprep.subr.mxu0 0.0
      %2512 = vmatpush1.msra.mxu0 0.0
      %2513 = vmatprep.subr.mxu0 0.0
      %2514 = vmatpush1.msra.mxu0 0.0
      %2515 = vmatprep.subr.mxu0 0.0
      %2516 = vmatpush1.msra.mxu0 0.0
      %2517 = vmatprep.subr.mxu0 0.0
      %2518 = vmatpush1.msra.mxu0 0.0
      %2519 = vmatprep.subr.mxu0 0.0
      %2520 = vmatpush1.msra.mxu0 0.0
      %2521 = vmatprep.subr.mxu0 0.0
      %2522 = vmatpush1.msra.mxu0 0.0
      %2523 = vmatprep.subr.mxu0 0.0
      %2524 = vmatpush1.msra.mxu0 0.0
      %2525 = vmatprep.subr.mxu0 0.0
      %2526 = vmatpush1.msra.mxu0 0.0
      %2527 = vmatprep.subr.mxu0 0.0
      %2528 = vmatpush1.msra.mxu0 0.0
      %2529 = vmatprep.subr.mxu0 0.0
      %2530 = vmatpush1.msra.mxu0 0.0
      %2531 = vmatprep.subr.mxu0 0.0
      %2532 = vmatpush1.msra.mxu0 0.0
      %2533 = vmatprep.subr.mxu0 0.0
      %2534 = vmatpush1.msra.mxu0 0.0
      %2535 = vmatprep.subr.mxu0 0.0
      %2536 = vmatpush1.msra.mxu0 0.0
      %2537 = vmatprep.subr.mxu0 0.0
      %2538 = vmatpush1.msra.mxu0 0.0
      %2539 = vmatprep.subr.mxu0 0.0
      %2540 = vmatpush1.msra.mxu0 0.0
      %2541 = vmatprep.subr.mxu0 0.0
      %2542 = vmatpush1.msra.mxu0 0.0
      %2543 = vmatprep.subr.mxu0 0.0
      %2544 = vmatpush1.msra.mxu0 0.0
      %2545 = vmatprep.subr.mxu0 0.0
      %2546 = vmatpush1.msra.mxu0 0.0
      %2547 = vmatprep.subr.mxu0 0.0
      %2548 = vmatpush1.msra.mxu0 0.0
      %2549 = vmatprep.subr.mxu0 0.0
      %2550 = vmatpush1.msra.mxu0 0.0
      %2551 = vmatprep.subr.mxu0 0.0
      %2552 = vmatpush1.msra.mxu0 0.0
      %2553 = vmatprep.subr.mxu0 0.0
      %2554 = vmatpush1.msra.mxu0 0.0
      %2555 = vmatprep.subr.mxu0 0.0
      %2556 = vmatpush1.msra.mxu0 0.0
      %2557 = vmatprep.subr.mxu0 0.0
      %2558 = vmatpush1.msra.mxu0 0.0
      %2559 = vmatprep.mubr.f32.mxu0 0.0
      %2560 = vmatmul.mubr.f32.gmra.mrb[0].mxu0 %v2400
      %v2561 = vpop.f32.mrb[0].mxu0
      %v2562 = vadd.f32 %v2397, %v2561
      %v2563 = vpop.f32.mrb[0].mxu0
      %2564 = vmatprep.mubr.f32.mxu0 0.0
      %2565 = vmatmul.mubr.f32.gmra.mrb[0].mxu0 %v2403
      %v2566 = vpop.f32.mrb[0].mxu0
      %v2567 = vadd.f32 %v2397, %v2566
      %v2568 = vpop.f32.mrb[0].mxu0
      %2569 = vmatprep.mubr.f32.mxu0 0.0
      %2570 = vmatmul.mubr.f32.gmra.mrb[0].mxu0 %v2406
      %v2571 = vpop.f32.mrb[0].mxu0
      %v2572 = vadd.f32 %v2397, %v2571
      %v2573 = vpop.f32.mrb[0].mxu0
      %2574 = vmatprep.mubr.f32.mxu0 0.0
      %2575 = vmatmul.mubr.f32.gmra.mrb[0].mxu0 %v2409
      %v2576 = vpop.f32.mrb[0].mxu0
      %v2577 = vadd.f32 %v2397, %v2576
      %v2578 = vpop.f32.mrb[0].mxu0
      %2579 = vmatprep.mubr.f32.mxu0 0.0
      %2580 = vmatmul.mubr.f32.gmra.mrb[0].mxu0 %v2412
      %v2581 = vpop.f32.mrb[0].mxu0
      %v2582 = vadd.f32 %v2397, %v2581
      %v2583 = vpop.f32.mrb[0].mxu0
      %2584 = vmatprep.mubr.f32.mxu0 0.0
      %2585 = vmatmul.mubr.f32.gmra.mrb[0].mxu0 %v2415
      %v2586 = vpop.f32.mrb[0].mxu0
      %v2587 = vadd.f32 %v2397, %v2586
      %v2588 = vpop.f32.mrb[0].mxu0
      %2589 = vmatprep.mubr.f32.mxu0 0.0
      %2590 = vmatmul.mubr.f32.gmra.mrb[0].mxu0 %v2418
      %v2591 = vpop.f32.mrb[0].mxu0
      %v2592 = vadd.f32 %v2397, %v2591
      %v2593 = vpop.f32.mrb[0].mxu0
      %2594 = vmatprep.mubr.f32.mxu0 0.0
      %2595 = vmatmul.mubr.f32.gmra.mrb[0].mxu0 %v2421
      %v2596 = vpop.f32.mrb[0].mxu0
      %v2597 = vadd.f32 %v2397, %v2596
      %v2598 = vpop.f32.mrb[0].mxu0
      %2599 = vmatprep.mubr.f32.mxu0 0.0
      %2600 = vmatmul.mubr.f32.gmra.mrb[0].mxu0 %v2424
      %v2601 = vpop.f32.mrb[0].mxu0
      %v2602 = vadd.f32 %v2397, %v2601
      %v2603 = vpop.f32.mrb[0].mxu0
      %2604 = vmatprep.mubr.f32.mxu0 0.0
      %2605 = vmatmul.mubr.f32.gmra.mrb[0].mxu0 %v2427
      %v2606 = vpop.f32.mrb[0].mxu0
      %v2607 = vadd.f32 %v2397, %v2606
      %v2608 = vpop.f32.mrb[0].mxu0
      %2609 = vmatprep.mubr.f32.mxu0 0.0
      %2610 = vmatmul.mubr.f32.gmra.mrb[0].mxu0 %v2430
      %v2611 = vpop.f32.mrb[0].mxu0
      %v2612 = vadd.f32 %v2397, %v2611
      %v2613 = vpop.f32.mrb[0].mxu0
      %2614 = vmatprep.mubr.f32.mxu0 0.0
      %2615 = vmatmul.mubr.f32.gmra.mrb[0].mxu0 %v2433
      %v2616 = vpop.f32.mrb[0].mxu0
      %v2617 = vadd.f32 %v2397, %v2616
      %v2618 = vpop.f32.mrb[0].mxu0
      %2619 = vmatprep.mubr.f32.mxu0 0.0
      %2620 = vmatmul.mubr.f32.gmra.mrb[0].mxu0 %v2436
      %v2621 = vpop.f32.mrb[0].mxu0
      %v2622 = vadd.f32 %v2397, %v2621
      %v2623 = vpop.f32.mrb[0].mxu0
      %2624 = vmatprep.mubr.f32.mxu0 0.0
      %2625 = vmatmul.mubr.f32.gmra.mrb[0].mxu0 %v2439
      %v2626 = vpop.f32.mrb[0].mxu0
      %v2627 = vadd.f32 %v2397, %v2626
      %v2628 = vpop.f32.mrb[0].mxu0
      %2629 = vmatprep.mubr.f32.mxu0 0.0
      %2630 = vmatmul.mubr.f32.gmra.mrb[0].mxu0 %v2442
      %v2631 = vpop.f32.mrb[0].mxu0
      %v2632 = vadd.f32 %v2397, %v2631
      %v2633 = vpop.f32.mrb[0].mxu0
      %2634 = vmatprep.mubr.f32.mxu0 0.0
      %2635 = vmatmul.mubr.f32.gmra.mrb[0].mxu0 %v2445
      %v2636 = vpop.f32.mrb[0].mxu0
      %v2637 = vadd.f32 %v2397, %v2636
      %v2638 = vpop.f32.mrb[0].mxu0
      %2639 = vmatprep.mubr.f32.mxu0 0.0
      %2640 = vmatmul.mubr.f32.gmra.mrb[0].mxu0 %v2448
      %v2641 = vpop.f32.mrb[0].mxu0
      %v2642 = vadd.f32 %v2397, %v2641
      %v2643 = vpop.f32.mrb[0].mxu0
      %2644 = vmatprep.mubr.f32.mxu0 0.0
      %2645 = vmatmul.mubr.f32.gmra.mrb[0].mxu0 %v2451
      %v2646 = vpop.f32.mrb[0].mxu0
      %v2647 = vadd.f32 %v2397, %v2646
      %v2648 = vpop.f32.mrb[0].mxu0
      %2649 = vmatprep.mubr.f32.mxu0 0.0
      %2650 = vmatmul.mubr.f32.gmra.mrb[0].mxu0 %v2454
      %v2651 = vpop.f32.mrb[0].mxu0
      %v2652 = vadd.f32 %v2397, %v2651
      %v2653 = vpop.f32.mrb[0].mxu0
      %2654 = vmatprep.mubr.f32.mxu0 0.0
      %2655 = vmatmul.mubr.f32.gmra.mrb[0].mxu0 %v2457
      %v2656 = vpop.f32.mrb[0].mxu0
      %v2657 = vadd.f32 %v2397, %v2656
      %v2658 = vpop.f32.mrb[0].mxu0
      %2659 = vmatprep.mubr.f32.mxu0 0.0
      %2660 = vmatmul.mubr.f32.gmra.mrb[0].mxu0 %v2460
      %v2661 = vpop.f32.mrb[0].mxu0
      %v2662 = vadd.f32 %v2397, %v2661
      %v2663 = vpop.f32.mrb[0].mxu0
      %2664 = vmatprep.mubr.f32.mxu0 0.0
      %2665 = vmatmul.mubr.f32.gmra.mrb[0].mxu0 %v2463
      %v2666 = vpop.f32.mrb[0].mxu0
      %v2667 = vadd.f32 %v2397, %v2666
      %v2668 = vpop.f32.mrb[0].mxu0
      %2669 = vmatprep.mubr.f32.mxu0 0.0
      %2670 = vmatmul.mubr.f32.gmra.mrb[0].mxu0 %v2466
      %v2671 = vpop.f32.mrb[0].mxu0
      %v2672 = vadd.f32 %v2397, %v2671
      %v2673 = vpop.f32.mrb[0].mxu0
      %2674 = vmatprep.mubr.f32.mxu0 0.0
      %2675 = vmatmul.mubr.f32.gmra.mrb[0].mxu0 %v2469
      %v2676 = vpop.f32.mrb[0].mxu0
      %v2677 = vadd.f32 %v2397, %v2676
      %v2678 = vpop.f32.mrb[0].mxu0
      %2679 = vmatprep.mubr.f32.mxu0 0.0
      %2680 = vmatmul.mubr.f32.gmra.mrb[0].mxu0 %v2472
      %v2681 = vpop.f32.mrb[0].mxu0
      %v2682 = vadd.f32 %v2397, %v2681
      %v2683 = vpop.f32.mrb[0].mxu0
      %2684 = vmatprep.mubr.f32.mxu0 0.0
      %2685 = vmatmul.mubr.f32.gmra.mrb[0].mxu0 %v2475
      %v2686 = vpop.f32.mrb[0].mxu0
      %v2687 = vadd.f32 %v2397, %v2686
      %v2688 = vpop.f32.mrb[0].mxu0
      %2689 = vmatprep.mubr.f32.mxu0 0.0
      %2690 = vmatmul.mubr.f32.gmra.mrb[0].mxu0 %v2478
      %v2691 = vpop.f32.mrb[0].mxu0
      %v2692 = vadd.f32 %v2397, %v2691
      %v2693 = vpop.f32.mrb[0].mxu0
      %2694 = vmatprep.mubr.f32.mxu0 0.0
      %2695 = vmatmul.mubr.f32.gmra.mrb[0].mxu0 %v2481
      %v2696 = vpop.f32.mrb[0].mxu0
      %v2697 = vadd.f32 %v2397, %v2696
      %v2698 = vpop.f32.mrb[0].mxu0
      %2699 = vmatprep.mubr.f32.mxu0 0.0
      %2700 = vmatmul.mubr.f32.gmra.mrb[0].mxu0 %v2484
      %v2701 = vpop.f32.mrb[0].mxu0
      %v2702 = vadd.f32 %v2397, %v2701
      %v2703 = vpop.f32.mrb[0].mxu0
      %2704 = vmatprep.mubr.f32.mxu0 0.0
      %2705 = vmatmul.mubr.f32.gmra.mrb[0].mxu0 %v2487
      %v2706 = vpop.f32.mrb[0].mxu0
      %v2707 = vadd.f32 %v2397, %v2706
      %v2708 = vpop.f32.mrb[0].mxu0
      %2709 = vmatprep.mubr.f32.mxu0 0.0
      %2710 = vmatmul.mubr.f32.gmra.mrb[0].mxu0 %v2490
      %v2711 = vpop.f32.mrb[0].mxu0
      %v2712 = vadd.f32 %v2397, %v2711
      %v2713 = vpop.f32.mrb[0].mxu0
      %2714 = vmatprep.mubr.f32.mxu0 0.0
      %2715 = vmatmul.mubr.f32.gmra.mrb[0].mxu0 %v2493
      %v2716 = vpop.f32.mrb[0].mxu0
      %v2717 = vadd.f32 %v2397, %v2716
      %v2718 = vpop.f32.mrb[0].mxu0
      %2719 = vdwg.mxu0
      %v2720 = vmul.f32 %v2562, 0.01
      %v2721 = vmul.f32 %v2567, 0.01
      %v2722 = vmul.f32 %v2572, 0.01
      %v2723 = vmul.f32 %v2577, 0.01
      %v2724 = vmul.f32 %v2582, 0.01
      %v2725 = vmul.f32 %v2587, 0.01
      %v2726 = vmul.f32 %v2592, 0.01
      %v2727 = vmul.f32 %v2597, 0.01
      %v2728 = vmul.f32 %v2602, 0.01
      %v2729 = vmul.f32 %v2607, 0.01
      %v2730 = vmul.f32 %v2612, 0.01
      %v2731 = vmul.f32 %v2617, 0.01
      %v2732 = vmul.f32 %v2622, 0.01
      %v2733 = vmul.f32 %v2627, 0.01
      %v2734 = vmul.f32 %v2632, 0.01
      %v2735 = vmul.f32 %v2637, 0.01
      %v2736 = vmul.f32 %v2642, 0.01
      %v2737 = vmul.f32 %v2647, 0.01
      %v2738 = vmul.f32 %v2652, 0.01
      %v2739 = vmul.f32 %v2657, 0.01
      %v2740 = vmul.f32 %v2662, 0.01
      %v2741 = vmul.f32 %v2667, 0.01
      %v2742 = vmul.f32 %v2672, 0.01
      %v2743 = vmul.f32 %v2677, 0.01
      %v2744 = vmul.f32 %v2682, 0.01
      %v2745 = vmul.f32 %v2687, 0.01
      %v2746 = vmul.f32 %v2692, 0.01
      %v2747 = vmul.f32 %v2697, 0.01
      %v2748 = vmul.f32 %v2702, 0.01
      %v2749 = vmul.f32 %v2707, 0.01
      %v2750 = vmul.f32 %v2712, 0.01
      %v2751 = vmul.f32 %v2717, 0.01
      %v2752 = vmax.f32 %v2562, %v2720
      %v2753 = vmax.f32 %v2567, %v2721
      %v2754 = vmax.f32 %v2572, %v2722
      %v2755 = vmax.f32 %v2577, %v2723
      %v2756 = vmax.f32 %v2582, %v2724
      %v2757 = vmax.f32 %v2587, %v2725
      %v2758 = vmax.f32 %v2592, %v2726
      %v2759 = vmax.f32 %v2597, %v2727
      %v2760 = vmax.f32 %v2602, %v2728
      %v2761 = vmax.f32 %v2607, %v2729
      %v2762 = vmax.f32 %v2612, %v2730
      %v2763 = vmax.f32 %v2617, %v2731
      %v2764 = vmax.f32 %v2622, %v2732
      %v2765 = vmax.f32 %v2627, %v2733
      %v2766 = vmax.f32 %v2632, %v2734
      %v2767 = vmax.f32 %v2637, %v2735
      %v2768 = vmax.f32 %v2642, %v2736
      %v2769 = vmax.f32 %v2647, %v2737
      %v2770 = vmax.f32 %v2652, %v2738
      %v2771 = vmax.f32 %v2657, %v2739
      %v2772 = vmax.f32 %v2662, %v2740
      %v2773 = vmax.f32 %v2667, %v2741
      %v2774 = vmax.f32 %v2672, %v2742
      %v2775 = vmax.f32 %v2677, %v2743
      %v2776 = vmax.f32 %v2682, %v2744
      %v2777 = vmax.f32 %v2687, %v2745
      %v2778 = vmax.f32 %v2692, %v2746
      %v2779 = vmax.f32 %v2697, %v2747
      %v2780 = vmax.f32 %v2702, %v2748
      %v2781 = vmax.f32 %v2707, %v2749
      %v2782 = vmax.f32 %v2712, %v2750
      %v2783 = vmax.f32 %v2717, %v2751
      %2784 = vst.msk [vmem:[#allocation2] sm:$0xff] %vm613, 0.0
      %2785 = vst.msk [vmem:[#allocation2 + $0x8] sm:$0xff] %vm613, 0.0
      %vm2786 = vcmask 123904
      %2787 = vst.msk [vmem:[#allocation2 + $0x10] sm:$0x3] %vm2786, 0.0
      %2788 = vst.msk [vmem:[#allocation2 + $0x18] sm:$0xff] %vm613, 0.0
      %2789 = vst.msk [vmem:[#allocation2 + $0x20] sm:$0xff] %vm613, 0.0
      %2790 = vst.msk [vmem:[#allocation2 + $0x28] sm:$0x3] %vm2786, 0.0
      %2791 = vst.msk [vmem:[#allocation2 + $0x30] sm:$0xff] %vm613, 0.0
      %2792 = vst.msk [vmem:[#allocation2 + $0x38] sm:$0xff] %vm613, 0.0
      %2793 = vst.msk [vmem:[#allocation2 + $0x40] sm:$0x3] %vm2786, 0.0
      %2794 = vst.msk [vmem:[#allocation2 + $0x48] sm:$0xff] %vm613, 0.0
      %2795 = vst.msk [vmem:[#allocation2 + $0x50] sm:$0xff] %vm613, 0.0
      %2796 = vst.msk [vmem:[#allocation2 + $0x58] sm:$0x3] %vm2786, 0.0
      %2797 = vst.msk [vmem:[#allocation2 + $0x60] sm:$0xff] %vm613, 0.0
      %2798 = vst.msk [vmem:[#allocation2 + $0x68] sm:$0xff] %vm613, 0.0
      %2799 = vst.msk [vmem:[#allocation2 + $0x70] sm:$0x3] %vm2786, 0.0
      %2800 = vst.msk [vmem:[#allocation2 + $0x78] sm:$0xff] %vm613, 0.0
      %2801 = vst.msk [vmem:[#allocation2 + $0x80] sm:$0xff] %vm613, 0.0
      %2802 = vst.msk [vmem:[#allocation2 + $0x88] sm:$0x3] %vm2786, 0.0
      %2803 = vst.msk [vmem:[#allocation2 + $0x90] sm:$0xff] %vm613, 0.0
      %2804 = vst.msk [vmem:[#allocation2 + $0x98] sm:$0xff] %vm613, 0.0
      %2805 = vst.msk [vmem:[#allocation2 + $0xa0] sm:$0x3] %vm2786, 0.0
      %2806 = vst.msk [vmem:[#allocation2 + $0xa8] sm:$0xff] %vm613, 0.0
      %2807 = vst.msk [vmem:[#allocation2 + $0xb0] sm:$0xff] %vm613, 0.0
      %2808 = vst.msk [vmem:[#allocation2 + $0xb8] sm:$0x3] %vm2786, 0.0
      %2809 = vst.msk [vmem:[#allocation2 + $0xc0] sm:$0xff] %vm613, 0.0
      %2810 = vst.msk [vmem:[#allocation2 + $0xc8] sm:$0xff] %vm613, 0.0
      %2811 = vst.msk [vmem:[#allocation2 + $0xd0] sm:$0x3] %vm2786, 0.0
      %2812 = vst.msk [vmem:[#allocation2 + $0xd8] sm:$0xff] %vm613, 0.0
      %2813 = vst.msk [vmem:[#allocation2 + $0xe0] sm:$0xff] %vm613, 0.0
      %2814 = vst.msk [vmem:[#allocation2 + $0xe8] sm:$0x3] %vm2786, 0.0
      %2815 = vst.msk [vmem:[#allocation2 + $0xf0] sm:$0xff] %vm613, 0.0
      %2816 = vst.msk [vmem:[#allocation2 + $0xf8] sm:$0xff] %vm613, 0.0
      %2817 = vst.msk [vmem:[#allocation2 + $0x100] sm:$0x3] %vm2786, 0.0
      %2818 = vst.msk [vmem:[#allocation2 + $0x108] sm:$0xff] %vm613, 0.0
      %2819 = vst.msk [vmem:[#allocation2 + $0x110] sm:$0xff] %vm613, 0.0
      %2820 = vst.msk [vmem:[#allocation2 + $0x118] sm:$0x3] %vm2786, 0.0
      %2821 = vst.msk [vmem:[#allocation2 + $0x120] sm:$0xff] %vm613, 0.0
      %2822 = vst.msk [vmem:[#allocation2 + $0x128] sm:$0xff] %vm613, 0.0
      %2823 = vst.msk [vmem:[#allocation2 + $0x130] sm:$0x3] %vm2786, 0.0
      %2824 = vst.msk [vmem:[#allocation2 + $0x138] sm:$0xff] %vm613, 0.0
      %2825 = vst.msk [vmem:[#allocation2 + $0x140] sm:$0xff] %vm613, 0.0
      %2826 = vst.msk [vmem:[#allocation2 + $0x148] sm:$0x3] %vm2786, 0.0
      %2827 = vst.msk [vmem:[#allocation2 + $0x150] sm:$0xff] %vm613, 0.0
      %2828 = vst.msk [vmem:[#allocation2 + $0x158] sm:$0xff] %vm613, 0.0
      %2829 = vst.msk [vmem:[#allocation2 + $0x160] sm:$0x3] %vm2786, 0.0
      %2830 = vst.msk [vmem:[#allocation2 + $0x168] sm:$0xff] %vm613, 0.0
      %2831 = vst.msk [vmem:[#allocation2 + $0x170] sm:$0xff] %vm613, 0.0
      %2832 = vst.msk [vmem:[#allocation2 + $0x178] sm:$0x3] %vm2786, 0.0
      %2833 = vst.msk [vmem:[#allocation2 + $0x180] sm:$0xff] %vm613, 0.0
      %2834 = vst.msk [vmem:[#allocation2 + $0x188] sm:$0xff] %vm613, 0.0
      %2835 = vst.msk [vmem:[#allocation2 + $0x190] sm:$0x3] %vm2786, 0.0
      %2836 = vst.msk [vmem:[#allocation2 + $0x198] sm:$0xff] %vm613, 0.0
      %2837 = vst.msk [vmem:[#allocation2 + $0x1a0] sm:$0xff] %vm613, 0.0
      %2838 = vst.msk [vmem:[#allocation2 + $0x1a8] sm:$0x3] %vm2786, 0.0
      %s2839 = scalar_lea.vmem [#allocation2], 24
      %2840 = vst.msk [vmem:[%s2839 + $0x1] sm:$0xff] %vm613, %v2752
      %2841 = vst.msk [vmem:[%s2839 + $0x9] sm:$0xff] %vm613, %v2753
      %2842 = vst.msk [vmem:[%s2839 + $0x19] sm:$0xff] %vm613, %v2754
      %2843 = vst.msk [vmem:[%s2839 + $0x21] sm:$0xff] %vm613, %v2755
      %2844 = vst.msk [vmem:[%s2839 + $0x31] sm:$0xff] %vm613, %v2756
      %2845 = vst.msk [vmem:[%s2839 + $0x39] sm:$0xff] %vm613, %v2757
      %2846 = vst.msk [vmem:[%s2839 + $0x49] sm:$0xff] %vm613, %v2758
      %2847 = vst.msk [vmem:[%s2839 + $0x51] sm:$0xff] %vm613, %v2759
      %2848 = vst.msk [vmem:[%s2839 + $0x61] sm:$0xff] %vm613, %v2760
      %2849 = vst.msk [vmem:[%s2839 + $0x69] sm:$0xff] %vm613, %v2761
      %2850 = vst.msk [vmem:[%s2839 + $0x79] sm:$0xff] %vm613, %v2762
      %2851 = vst.msk [vmem:[%s2839 + $0x81] sm:$0xff] %vm613, %v2763
      %2852 = vst.msk [vmem:[%s2839 + $0x91] sm:$0xff] %vm613, %v2764
      %2853 = vst.msk [vmem:[%s2839 + $0x99] sm:$0xff] %vm613, %v2765
      %2854 = vst.msk [vmem:[%s2839 + $0xa9] sm:$0xff] %vm613, %v2766
      %2855 = vst.msk [vmem:[%s2839 + $0xb1] sm:$0xff] %vm613, %v2767
      %2856 = vst.msk [vmem:[%s2839 + $0xc1] sm:$0xff] %vm613, %v2768
      %2857 = vst.msk [vmem:[%s2839 + $0xc9] sm:$0xff] %vm613, %v2769
      %2858 = vst.msk [vmem:[%s2839 + $0xd9] sm:$0xff] %vm613, %v2770
      %2859 = vst.msk [vmem:[%s2839 + $0xe1] sm:$0xff] %vm613, %v2771
      %2860 = vst.msk [vmem:[%s2839 + $0xf1] sm:$0xff] %vm613, %v2772
      %2861 = vst.msk [vmem:[%s2839 + $0xf9] sm:$0xff] %vm613, %v2773
      %2862 = vst.msk [vmem:[%s2839 + $0x109] sm:$0xff] %vm613, %v2774
      %2863 = vst.msk [vmem:[%s2839 + $0x111] sm:$0xff] %vm613, %v2775
      %2864 = vst.msk [vmem:[%s2839 + $0x121] sm:$0xff] %vm613, %v2776
      %2865 = vst.msk [vmem:[%s2839 + $0x129] sm:$0xff] %vm613, %v2777
      %2866 = vst.msk [vmem:[%s2839 + $0x139] sm:$0xff] %vm613, %v2778
      %2867 = vst.msk [vmem:[%s2839 + $0x141] sm:$0xff] %vm613, %v2779
      %2868 = vst.msk [vmem:[%s2839 + $0x151] sm:$0xff] %vm613, %v2780
      %2869 = vst.msk [vmem:[%s2839 + $0x159] sm:$0xff] %vm613, %v2781
      %2870 = vst.msk [vmem:[%s2839 + $0x169] sm:$0xff] %vm613, %v2782
      %2871 = vst.msk [vmem:[%s2839 + $0x171] sm:$0xff] %vm613, %v2783
      %v2872 = vld [vmem:[#allocation2] sm:$0xff]
      %v2873 = vld [vmem:[#allocation2 + $0x8] sm:$0xff]
      %v2874 = vld [vmem:[#allocation2 + $0x10] sm:$0x3]
      %v2875 = vld [vmem:[#allocation2 + $0x18] sm:$0xff]
      %v2876 = vld [vmem:[#allocation2 + $0x20] sm:$0xff]
      %v2877 = vld [vmem:[#allocation2 + $0x28] sm:$0x3]
      %v2878 = vld [vmem:[#allocation2 + $0x30] sm:$0xff]
      %v2879 = vld [vmem:[#allocation2 + $0x38] sm:$0xff]
      %v2880 = vld [vmem:[#allocation2 + $0x40] sm:$0x3]
      %v2881 = vld [vmem:[#allocation2 + $0x48] sm:$0xff]
      %v2882 = vld [vmem:[#allocation2 + $0x50] sm:$0xff]
      %v2883 = vld [vmem:[#allocation2 + $0x58] sm:$0x3]
      %v2884 = vld [vmem:[#allocation2 + $0x60] sm:$0xff]
      %v2885 = vld [vmem:[#allocation2 + $0x68] sm:$0xff]
      %v2886 = vld [vmem:[#allocation2 + $0x70] sm:$0x3]
      %v2887 = vld [vmem:[#allocation2 + $0x78] sm:$0xff]
      %v2888 = vld [vmem:[#allocation2 + $0x80] sm:$0xff]
      %v2889 = vld [vmem:[#allocation2 + $0x88] sm:$0x3]
      %v2890 = vld [vmem:[#allocation2 + $0x90] sm:$0xff]
      %v2891 = vld [vmem:[#allocation2 + $0x98] sm:$0xff]
      %v2892 = vld [vmem:[#allocation2 + $0xa0] sm:$0x3]
      %v2893 = vld [vmem:[#allocation2 + $0xa8] sm:$0xff]
      %v2894 = vld [vmem:[#allocation2 + $0xb0] sm:$0xff]
      %v2895 = vld [vmem:[#allocation2 + $0xb8] sm:$0x3]
      %v2896 = vld [vmem:[#allocation2 + $0xc0] sm:$0xff]
      %v2897 = vld [vmem:[#allocation2 + $0xc8] sm:$0xff]
      %v2898 = vld [vmem:[#allocation2 + $0xd0] sm:$0x3]
      %v2899 = vld [vmem:[#allocation2 + $0xd8] sm:$0xff]
      %v2900 = vld [vmem:[#allocation2 + $0xe0] sm:$0xff]
      %v2901 = vld [vmem:[#allocation2 + $0xe8] sm:$0x3]
      %v2902 = vld [vmem:[#allocation2 + $0xf0] sm:$0xff]
      %v2903 = vld [vmem:[#allocation2 + $0xf8] sm:$0xff]
      %v2904 = vld [vmem:[#allocation2 + $0x100] sm:$0x3]
      %v2905 = vld [vmem:[#allocation2 + $0x108] sm:$0xff]
      %v2906 = vld [vmem:[#allocation2 + $0x110] sm:$0xff]
      %v2907 = vld [vmem:[#allocation2 + $0x118] sm:$0x3]
      %v2908 = vld [vmem:[#allocation2 + $0x120] sm:$0xff]
      %v2909 = vld [vmem:[#allocation2 + $0x128] sm:$0xff]
      %v2910 = vld [vmem:[#allocation2 + $0x130] sm:$0x3]
      %v2911 = vld [vmem:[#allocation2 + $0x138] sm:$0xff]
      %v2912 = vld [vmem:[#allocation2 + $0x140] sm:$0xff]
      %v2913 = vld [vmem:[#allocation2 + $0x148] sm:$0x3]
      %v2914 = vld [vmem:[#allocation2 + $0x150] sm:$0xff]
      %v2915 = vld [vmem:[#allocation2 + $0x158] sm:$0xff]
      %v2916 = vld [vmem:[#allocation2 + $0x160] sm:$0x3]
      %v2917 = vld [vmem:[#allocation2 + $0x168] sm:$0xff]
      %v2918 = vld [vmem:[#allocation2 + $0x170] sm:$0xff]
      %v2919 = vld [vmem:[#allocation2 + $0x178] sm:$0x3]
      %v2920 = vld [vmem:[#allocation2 + $0x180] sm:$0xff]
      %v2921 = vld [vmem:[#allocation2 + $0x188] sm:$0xff]
      %v2922 = vld [vmem:[#allocation2 + $0x190] sm:$0x3]
      %v2923 = vld [vmem:[#allocation2 + $0x198] sm:$0xff]
      %v2924 = vld [vmem:[#allocation2 + $0x1a0] sm:$0xff]
      %v2925 = vld [vmem:[#allocation2 + $0x1a8] sm:$0x3]
      %vm2974 = vcmask 1046528
      %v2975 = vrot.slane %v2872, 1
      %v2976 = vrot.slane %v2873, 1
      %v2977 = vsel %vm2974, %v2975, %v2976
      %v2978 = vrot.slane %v2874, 1
      %v2979 = vsel %vm2974, %v2976, %v2978
      %v2980 = vrot.slane %v2875, 1
      %v2981 = vrot.slane %v2876, 1
      %v2982 = vsel %vm2974, %v2980, %v2981
      %v2983 = vrot.slane %v2877, 1
      %v2984 = vsel %vm2974, %v2981, %v2983
      %v2985 = vrot.slane %v2878, 1
      %v2986 = vrot.slane %v2879, 1
      %v2987 = vsel %vm2974, %v2985, %v2986
      %v2988 = vrot.slane %v2880, 1
      %v2989 = vsel %vm2974, %v2986, %v2988
      %v2990 = vrot.slane %v2881, 1
      %v2991 = vrot.slane %v2882, 1
      %v2992 = vsel %vm2974, %v2990, %v2991
      %v2993 = vrot.slane %v2883, 1
      %v2994 = vsel %vm2974, %v2991, %v2993
      %v2995 = vrot.slane %v2884, 1
      %v2996 = vrot.slane %v2885, 1
      %v2997 = vsel %vm2974, %v2995, %v2996
      %v2998 = vrot.slane %v2886, 1
      %v2999 = vsel %vm2974, %v2996, %v2998
      %v3000 = vrot.slane %v2887, 1
      %v3001 = vrot.slane %v2888, 1
      %v3002 = vsel %vm2974, %v3000, %v3001
      %v3003 = vrot.slane %v2889, 1
      %v3004 = vsel %vm2974, %v3001, %v3003
      %v3005 = vrot.slane %v2890, 1
      %v3006 = vrot.slane %v2891, 1
      %v3007 = vsel %vm2974, %v3005, %v3006
      %v3008 = vrot.slane %v2892, 1
      %v3009 = vsel %vm2974, %v3006, %v3008
      %v3010 = vrot.slane %v2893, 1
      %v3011 = vrot.slane %v2894, 1
      %v3012 = vsel %vm2974, %v3010, %v3011
      %v3013 = vrot.slane %v2895, 1
      %v3014 = vsel %vm2974, %v3011, %v3013
      %v3015 = vrot.slane %v2896, 1
      %v3016 = vrot.slane %v2897, 1
      %v3017 = vsel %vm2974, %v3015, %v3016
      %v3018 = vrot.slane %v2898, 1
      %v3019 = vsel %vm2974, %v3016, %v3018
      %v3020 = vrot.slane %v2899, 1
      %v3021 = vrot.slane %v2900, 1
      %v3022 = vsel %vm2974, %v3020, %v3021
      %v3023 = vrot.slane %v2901, 1
      %v3024 = vsel %vm2974, %v3021, %v3023
      %v3025 = vrot.slane %v2902, 1
      %v3026 = vrot.slane %v2903, 1
      %v3027 = vsel %vm2974, %v3025, %v3026
      %v3028 = vrot.slane %v2904, 1
      %v3029 = vsel %vm2974, %v3026, %v3028
      %v3030 = vrot.slane %v2905, 1
      %v3031 = vrot.slane %v2906, 1
      %v3032 = vsel %vm2974, %v3030, %v3031
      %v3033 = vrot.slane %v2907, 1
      %v3034 = vsel %vm2974, %v3031, %v3033
      %v3035 = vrot.slane %v2908, 1
      %v3036 = vrot.slane %v2909, 1
      %v3037 = vsel %vm2974, %v3035, %v3036
      %v3038 = vrot.slane %v2910, 1
      %v3039 = vsel %vm2974, %v3036, %v3038
      %v3040 = vrot.slane %v2911, 1
      %v3041 = vrot.slane %v2912, 1
      %v3042 = vsel %vm2974, %v3040, %v3041
      %v3043 = vrot.slane %v2913, 1
      %v3044 = vsel %vm2974, %v3041, %v3043
      %v3045 = vrot.slane %v2914, 1
      %v3046 = vrot.slane %v2915, 1
      %v3047 = vsel %vm2974, %v3045, %v3046
      %v3048 = vrot.slane %v2916, 1
      %v3049 = vsel %vm2974, %v3046, %v3048
      %v3050 = vrot.slane %v2917, 1
      %v3051 = vrot.slane %v2918, 1
      %v3052 = vsel %vm2974, %v3050, %v3051
      %v3053 = vrot.slane %v2919, 1
      %v3054 = vsel %vm2974, %v3051, %v3053
      %vm3055 = vcmask 1045504
      %v3056 = vrot.slane %v2872, 2
      %v3057 = vrot.slane %v2873, 2
      %v3058 = vsel %vm3055, %v3056, %v3057
      %v3059 = vrot.slane %v2874, 2
      %v3060 = vsel %vm3055, %v3057, %v3059
      %v3061 = vrot.slane %v2875, 2
      %v3062 = vrot.slane %v2876, 2
      %v3063 = vsel %vm3055, %v3061, %v3062
      %v3064 = vrot.slane %v2877, 2
      %v3065 = vsel %vm3055, %v3062, %v3064
      %v3066 = vrot.slane %v2878, 2
      %v3067 = vrot.slane %v2879, 2
      %v3068 = vsel %vm3055, %v3066, %v3067
      %v3069 = vrot.slane %v2880, 2
      %v3070 = vsel %vm3055, %v3067, %v3069
      %v3071 = vrot.slane %v2881, 2
      %v3072 = vrot.slane %v2882, 2
      %v3073 = vsel %vm3055, %v3071, %v3072
      %v3074 = vrot.slane %v2883, 2
      %v3075 = vsel %vm3055, %v3072, %v3074
      %v3076 = vrot.slane %v2884, 2
      %v3077 = vrot.slane %v2885, 2
      %v3078 = vsel %vm3055, %v3076, %v3077
      %v3079 = vrot.slane %v2886, 2
      %v3080 = vsel %vm3055, %v3077, %v3079
      %v3081 = vrot.slane %v2887, 2
      %v3082 = vrot.slane %v2888, 2
      %v3083 = vsel %vm3055, %v3081, %v3082
      %v3084 = vrot.slane %v2889, 2
      %v3085 = vsel %vm3055, %v3082, %v3084
      %v3086 = vrot.slane %v2890, 2
      %v3087 = vrot.slane %v2891, 2
      %v3088 = vsel %vm3055, %v3086, %v3087
      %v3089 = vrot.slane %v2892, 2
      %v3090 = vsel %vm3055, %v3087, %v3089
      %v3091 = vrot.slane %v2893, 2
      %v3092 = vrot.slane %v2894, 2
      %v3093 = vsel %vm3055, %v3091, %v3092
      %v3094 = vrot.slane %v2895, 2
      %v3095 = vsel %vm3055, %v3092, %v3094
      %v3096 = vrot.slane %v2896, 2
      %v3097 = vrot.slane %v2897, 2
      %v3098 = vsel %vm3055, %v3096, %v3097
      %v3099 = vrot.slane %v2898, 2
      %v3100 = vsel %vm3055, %v3097, %v3099
      %v3101 = vrot.slane %v2899, 2
      %v3102 = vrot.slane %v2900, 2
      %v3103 = vsel %vm3055, %v3101, %v3102
      %v3104 = vrot.slane %v2901, 2
      %v3105 = vsel %vm3055, %v3102, %v3104
      %v3106 = vrot.slane %v2902, 2
      %v3107 = vrot.slane %v2903, 2
      %v3108 = vsel %vm3055, %v3106, %v3107
      %v3109 = vrot.slane %v2904, 2
      %v3110 = vsel %vm3055, %v3107, %v3109
      %v3111 = vrot.slane %v2905, 2
      %v3112 = vrot.slane %v2906, 2
      %v3113 = vsel %vm3055, %v3111, %v3112
      %v3114 = vrot.slane %v2907, 2
      %v3115 = vsel %vm3055, %v3112, %v3114
      %v3116 = vrot.slane %v2908, 2
      %v3117 = vrot.slane %v2909, 2
      %v3118 = vsel %vm3055, %v3116, %v3117
      %v3119 = vrot.slane %v2910, 2
      %v3120 = vsel %vm3055, %v3117, %v3119
      %v3121 = vrot.slane %v2911, 2
      %v3122 = vrot.slane %v2912, 2
      %v3123 = vsel %vm3055, %v3121, %v3122
      %v3124 = vrot.slane %v2913, 2
      %v3125 = vsel %vm3055, %v3122, %v3124
      %v3126 = vrot.slane %v2914, 2
      %v3127 = vrot.slane %v2915, 2
      %v3128 = vsel %vm3055, %v3126, %v3127
      %v3129 = vrot.slane %v2916, 2
      %v3130 = vsel %vm3055, %v3127, %v3129
      %v3131 = vrot.slane %v2917, 2
      %v3132 = vrot.slane %v2918, 2
      %v3133 = vsel %vm3055, %v3131, %v3132
      %v3134 = vrot.slane %v2919, 2
      %v3135 = vsel %vm3055, %v3132, %v3134
      %v3139 = vrot.slane %v2920, 1
      %v3140 = vrot.slane %v2921, 1
      %v3141 = vsel %vm2974, %v3139, %v3140
      %v3142 = vrot.slane %v2922, 1
      %v3143 = vsel %vm2974, %v3140, %v3142
      %v3144 = vrot.slane %v2920, 2
      %v3145 = vrot.slane %v2921, 2
      %v3146 = vsel %vm3055, %v3144, %v3145
      %v3147 = vrot.slane %v2922, 2
      %v3148 = vsel %vm3055, %v3145, %v3147
      %v3152 = vrot.slane %v2923, 1
      %v3153 = vrot.slane %v2924, 1
      %v3154 = vsel %vm2974, %v3152, %v3153
      %v3155 = vrot.slane %v2925, 1
      %v3156 = vsel %vm2974, %v3153, %v3155
      %v3157 = vrot.slane %v2923, 2
      %v3158 = vrot.slane %v2924, 2
      %v3159 = vsel %vm3055, %v3157, %v3158
      %v3160 = vrot.slane %v2925, 2
      %v3161 = vsel %vm3055, %v3158, %v3160
      %3162 = vrot.lane.b32.xlu0 %v2977, 16
      %v3163 = vpop.permute.xlu0 %3162
      %3164 = vrot.lane.b32.xlu0 %v2979, 16
      %v3165 = vpop.permute.xlu0 %3164
      %3166 = vrot.lane.b32.xlu0 %v2982, 16
      %v3167 = vpop.permute.xlu0 %3166
      %3168 = vrot.lane.b32.xlu0 %v2984, 16
      %v3169 = vpop.permute.xlu0 %3168
      %3170 = vrot.lane.b32.xlu0 %v2987, 16
      %v3171 = vpop.permute.xlu0 %3170
      %3172 = vrot.lane.b32.xlu0 %v2989, 16
      %v3173 = vpop.permute.xlu0 %3172
      %3174 = vrot.lane.b32.xlu0 %v2992, 16
      %v3175 = vpop.permute.xlu0 %3174
      %3176 = vrot.lane.b32.xlu0 %v2994, 16
      %v3177 = vpop.permute.xlu0 %3176
      %3178 = vrot.lane.b32.xlu0 %v2997, 16
      %v3179 = vpop.permute.xlu0 %3178
      %3180 = vrot.lane.b32.xlu0 %v2999, 16
      %v3181 = vpop.permute.xlu0 %3180
      %3182 = vrot.lane.b32.xlu0 %v3002, 16
      %v3183 = vpop.permute.xlu0 %3182
      %3184 = vrot.lane.b32.xlu0 %v3004, 16
      %v3185 = vpop.permute.xlu0 %3184
      %3186 = vrot.lane.b32.xlu0 %v3007, 16
      %v3187 = vpop.permute.xlu0 %3186
      %3188 = vrot.lane.b32.xlu0 %v3009, 16
      %v3189 = vpop.permute.xlu0 %3188
      %3190 = vrot.lane.b32.xlu0 %v3012, 16
      %v3191 = vpop.permute.xlu0 %3190
      %3192 = vrot.lane.b32.xlu0 %v3014, 16
      %v3193 = vpop.permute.xlu0 %3192
      %3194 = vrot.lane.b32.xlu0 %v3017, 16
      %v3195 = vpop.permute.xlu0 %3194
      %3196 = vrot.lane.b32.xlu0 %v3019, 16
      %v3197 = vpop.permute.xlu0 %3196
      %3198 = vrot.lane.b32.xlu0 %v3022, 16
      %v3199 = vpop.permute.xlu0 %3198
      %3200 = vrot.lane.b32.xlu0 %v3024, 16
      %v3201 = vpop.permute.xlu0 %3200
      %3202 = vrot.lane.b32.xlu0 %v3027, 16
      %v3203 = vpop.permute.xlu0 %3202
      %3204 = vrot.lane.b32.xlu0 %v3029, 16
      %v3205 = vpop.permute.xlu0 %3204
      %3206 = vrot.lane.b32.xlu0 %v3032, 16
      %v3207 = vpop.permute.xlu0 %3206
      %3208 = vrot.lane.b32.xlu0 %v3034, 16
      %v3209 = vpop.permute.xlu0 %3208
      %3210 = vrot.lane.b32.xlu0 %v3037, 16
      %v3211 = vpop.permute.xlu0 %3210
      %3212 = vrot.lane.b32.xlu0 %v3039, 16
      %v3213 = vpop.permute.xlu0 %3212
      %3214 = vrot.lane.b32.xlu0 %v3042, 16
      %v3215 = vpop.permute.xlu0 %3214
      %3216 = vrot.lane.b32.xlu0 %v3044, 16
      %v3217 = vpop.permute.xlu0 %3216
      %3218 = vrot.lane.b32.xlu0 %v3047, 16
      %v3219 = vpop.permute.xlu0 %3218
      %3220 = vrot.lane.b32.xlu0 %v3049, 16
      %v3221 = vpop.permute.xlu0 %3220
      %3222 = vrot.lane.b32.xlu0 %v3052, 16
      %v3223 = vpop.permute.xlu0 %3222
      %3224 = vrot.lane.b32.xlu0 %v3054, 16
      %v3225 = vpop.permute.xlu0 %3224
      %3258 = vrot.lane.b32.xlu0 %v3058, 32
      %v3259 = vpop.permute.xlu0 %3258
      %3260 = vrot.lane.b32.xlu0 %v3060, 32
      %v3261 = vpop.permute.xlu0 %3260
      %3262 = vrot.lane.b32.xlu0 %v3063, 32
      %v3263 = vpop.permute.xlu0 %3262
      %3264 = vrot.lane.b32.xlu0 %v3065, 32
      %v3265 = vpop.permute.xlu0 %3264
      %3266 = vrot.lane.b32.xlu0 %v3068, 32
      %v3267 = vpop.permute.xlu0 %3266
      %3268 = vrot.lane.b32.xlu0 %v3070, 32
      %v3269 = vpop.permute.xlu0 %3268
      %3270 = vrot.lane.b32.xlu0 %v3073, 32
      %v3271 = vpop.permute.xlu0 %3270
      %3272 = vrot.lane.b32.xlu0 %v3075, 32
      %v3273 = vpop.permute.xlu0 %3272
      %3274 = vrot.lane.b32.xlu0 %v3078, 32
      %v3275 = vpop.permute.xlu0 %3274
      %3276 = vrot.lane.b32.xlu0 %v3080, 32
      %v3277 = vpop.permute.xlu0 %3276
      %3278 = vrot.lane.b32.xlu0 %v3083, 32
      %v3279 = vpop.permute.xlu0 %3278
      %3280 = vrot.lane.b32.xlu0 %v3085, 32
      %v3281 = vpop.permute.xlu0 %3280
      %3282 = vrot.lane.b32.xlu0 %v3088, 32
      %v3283 = vpop.permute.xlu0 %3282
      %3284 = vrot.lane.b32.xlu0 %v3090, 32
      %v3285 = vpop.permute.xlu0 %3284
      %3286 = vrot.lane.b32.xlu0 %v3093, 32
      %v3287 = vpop.permute.xlu0 %3286
      %3288 = vrot.lane.b32.xlu0 %v3095, 32
      %v3289 = vpop.permute.xlu0 %3288
      %3290 = vrot.lane.b32.xlu0 %v3098, 32
      %v3291 = vpop.permute.xlu0 %3290
      %3292 = vrot.lane.b32.xlu0 %v3100, 32
      %v3293 = vpop.permute.xlu0 %3292
      %3294 = vrot.lane.b32.xlu0 %v3103, 32
      %v3295 = vpop.permute.xlu0 %3294
      %3296 = vrot.lane.b32.xlu0 %v3105, 32
      %v3297 = vpop.permute.xlu0 %3296
      %3298 = vrot.lane.b32.xlu0 %v3108, 32
      %v3299 = vpop.permute.xlu0 %3298
      %3300 = vrot.lane.b32.xlu0 %v3110, 32
      %v3301 = vpop.permute.xlu0 %3300
      %3302 = vrot.lane.b32.xlu0 %v3113, 32
      %v3303 = vpop.permute.xlu0 %3302
      %3304 = vrot.lane.b32.xlu0 %v3115, 32
      %v3305 = vpop.permute.xlu0 %3304
      %3306 = vrot.lane.b32.xlu0 %v3118, 32
      %v3307 = vpop.permute.xlu0 %3306
      %3308 = vrot.lane.b32.xlu0 %v3120, 32
      %v3309 = vpop.permute.xlu0 %3308
      %3310 = vrot.lane.b32.xlu0 %v3123, 32
      %v3311 = vpop.permute.xlu0 %3310
      %3312 = vrot.lane.b32.xlu0 %v3125, 32
      %v3313 = vpop.permute.xlu0 %3312
      %3314 = vrot.lane.b32.xlu0 %v3128, 32
      %v3315 = vpop.permute.xlu0 %3314
      %3316 = vrot.lane.b32.xlu0 %v3130, 32
      %v3317 = vpop.permute.xlu0 %3316
      %3318 = vrot.lane.b32.xlu0 %v3133, 32
      %v3319 = vpop.permute.xlu0 %3318
      %3320 = vrot.lane.b32.xlu0 %v3135, 32
      %v3321 = vpop.permute.xlu0 %3320
      %3354 = vrot.lane.b32.xlu0 %v2875, 48
      %v3355 = vpop.permute.xlu0 %3354
      %3356 = vrot.lane.b32.xlu0 %v2876, 48
      %v3357 = vpop.permute.xlu0 %3356
      %3358 = vrot.lane.b32.xlu0 %v2878, 48
      %v3359 = vpop.permute.xlu0 %3358
      %3360 = vrot.lane.b32.xlu0 %v2879, 48
      %v3361 = vpop.permute.xlu0 %3360
      %3362 = vrot.lane.b32.xlu0 %v2881, 48
      %v3363 = vpop.permute.xlu0 %3362
      %3364 = vrot.lane.b32.xlu0 %v2882, 48
      %v3365 = vpop.permute.xlu0 %3364
      %3366 = vrot.lane.b32.xlu0 %v2884, 48
      %v3367 = vpop.permute.xlu0 %3366
      %3368 = vrot.lane.b32.xlu0 %v2885, 48
      %v3369 = vpop.permute.xlu0 %3368
      %3370 = vrot.lane.b32.xlu0 %v2887, 48
      %v3371 = vpop.permute.xlu0 %3370
      %3372 = vrot.lane.b32.xlu0 %v2888, 48
      %v3373 = vpop.permute.xlu0 %3372
      %3374 = vrot.lane.b32.xlu0 %v2890, 48
      %v3375 = vpop.permute.xlu0 %3374
      %3376 = vrot.lane.b32.xlu0 %v2891, 48
      %v3377 = vpop.permute.xlu0 %3376
      %3378 = vrot.lane.b32.xlu0 %v2893, 48
      %v3379 = vpop.permute.xlu0 %3378
      %3380 = vrot.lane.b32.xlu0 %v2894, 48
      %v3381 = vpop.permute.xlu0 %3380
      %3382 = vrot.lane.b32.xlu0 %v2896, 48
      %v3383 = vpop.permute.xlu0 %3382
      %3384 = vrot.lane.b32.xlu0 %v2897, 48
      %v3385 = vpop.permute.xlu0 %3384
      %3386 = vrot.lane.b32.xlu0 %v2899, 48
      %v3387 = vpop.permute.xlu0 %3386
      %3388 = vrot.lane.b32.xlu0 %v2900, 48
      %v3389 = vpop.permute.xlu0 %3388
      %3390 = vrot.lane.b32.xlu0 %v2902, 48
      %v3391 = vpop.permute.xlu0 %3390
      %3392 = vrot.lane.b32.xlu0 %v2903, 48
      %v3393 = vpop.permute.xlu0 %3392
      %3394 = vrot.lane.b32.xlu0 %v2905, 48
      %v3395 = vpop.permute.xlu0 %3394
      %3396 = vrot.lane.b32.xlu0 %v2906, 48
      %v3397 = vpop.permute.xlu0 %3396
      %3398 = vrot.lane.b32.xlu0 %v2908, 48
      %v3399 = vpop.permute.xlu0 %3398
      %3400 = vrot.lane.b32.xlu0 %v2909, 48
      %v3401 = vpop.permute.xlu0 %3400
      %3402 = vrot.lane.b32.xlu0 %v2911, 48
      %v3403 = vpop.permute.xlu0 %3402
      %3404 = vrot.lane.b32.xlu0 %v2912, 48
      %v3405 = vpop.permute.xlu0 %3404
      %3406 = vrot.lane.b32.xlu0 %v2914, 48
      %v3407 = vpop.permute.xlu0 %3406
      %3408 = vrot.lane.b32.xlu0 %v2915, 48
      %v3409 = vpop.permute.xlu0 %3408
      %3410 = vrot.lane.b32.xlu0 %v2917, 48
      %v3411 = vpop.permute.xlu0 %3410
      %3412 = vrot.lane.b32.xlu0 %v2918, 48
      %v3413 = vpop.permute.xlu0 %3412
      %3414 = vrot.lane.b32.xlu0 %v2920, 48
      %v3415 = vpop.permute.xlu0 %3414
      %3416 = vrot.lane.b32.xlu0 %v2921, 48
      %v3417 = vpop.permute.xlu0 %3416
      %3450 = vrot.lane.b32.xlu0 %v2982, 64
      %v3451 = vpop.permute.xlu0 %3450
      %3452 = vrot.lane.b32.xlu0 %v2984, 64
      %v3453 = vpop.permute.xlu0 %3452
      %3454 = vrot.lane.b32.xlu0 %v2987, 64
      %v3455 = vpop.permute.xlu0 %3454
      %3456 = vrot.lane.b32.xlu0 %v2989, 64
      %v3457 = vpop.permute.xlu0 %3456
      %3458 = vrot.lane.b32.xlu0 %v2992, 64
      %v3459 = vpop.permute.xlu0 %3458
      %3460 = vrot.lane.b32.xlu0 %v2994, 64
      %v3461 = vpop.permute.xlu0 %3460
      %3462 = vrot.lane.b32.xlu0 %v2997, 64
      %v3463 = vpop.permute.xlu0 %3462
      %3464 = vrot.lane.b32.xlu0 %v2999, 64
      %v3465 = vpop.permute.xlu0 %3464
      %3466 = vrot.lane.b32.xlu0 %v3002, 64
      %v3467 = vpop.permute.xlu0 %3466
      %3468 = vrot.lane.b32.xlu0 %v3004, 64
      %v3469 = vpop.permute.xlu0 %3468
      %3470 = vrot.lane.b32.xlu0 %v3007, 64
      %v3471 = vpop.permute.xlu0 %3470
      %3472 = vrot.lane.b32.xlu0 %v3009, 64
      %v3473 = vpop.permute.xlu0 %3472
      %3474 = vrot.lane.b32.xlu0 %v3012, 64
      %v3475 = vpop.permute.xlu0 %3474
      %3476 = vrot.lane.b32.xlu0 %v3014, 64
      %v3477 = vpop.permute.xlu0 %3476
      %3478 = vrot.lane.b32.xlu0 %v3017, 64
      %v3479 = vpop.permute.xlu0 %3478
      %3480 = vrot.lane.b32.xlu0 %v3019, 64
      %v3481 = vpop.permute.xlu0 %3480
      %3482 = vrot.lane.b32.xlu0 %v3022, 64
      %v3483 = vpop.permute.xlu0 %3482
      %3484 = vrot.lane.b32.xlu0 %v3024, 64
      %v3485 = vpop.permute.xlu0 %3484
      %3486 = vrot.lane.b32.xlu0 %v3027, 64
      %v3487 = vpop.permute.xlu0 %3486
      %3488 = vrot.lane.b32.xlu0 %v3029, 64
      %v3489 = vpop.permute.xlu0 %3488
      %3490 = vrot.lane.b32.xlu0 %v3032, 64
      %v3491 = vpop.permute.xlu0 %3490
      %3492 = vrot.lane.b32.xlu0 %v3034, 64
      %v3493 = vpop.permute.xlu0 %3492
      %3494 = vrot.lane.b32.xlu0 %v3037, 64
      %v3495 = vpop.permute.xlu0 %3494
      %3496 = vrot.lane.b32.xlu0 %v3039, 64
      %v3497 = vpop.permute.xlu0 %3496
      %3498 = vrot.lane.b32.xlu0 %v3042, 64
      %v3499 = vpop.permute.xlu0 %3498
      %3500 = vrot.lane.b32.xlu0 %v3044, 64
      %v3501 = vpop.permute.xlu0 %3500
      %3502 = vrot.lane.b32.xlu0 %v3047, 64
      %v3503 = vpop.permute.xlu0 %3502
      %3504 = vrot.lane.b32.xlu0 %v3049, 64
      %v3505 = vpop.permute.xlu0 %3504
      %3506 = vrot.lane.b32.xlu0 %v3052, 64
      %v3507 = vpop.permute.xlu0 %3506
      %3508 = vrot.lane.b32.xlu0 %v3054, 64
      %v3509 = vpop.permute.xlu0 %3508
      %3510 = vrot.lane.b32.xlu0 %v3141, 64
      %v3511 = vpop.permute.xlu0 %3510
      %3512 = vrot.lane.b32.xlu0 %v3143, 64
      %v3513 = vpop.permute.xlu0 %3512
      %3546 = vrot.lane.b32.xlu0 %v3063, 80
      %v3547 = vpop.permute.xlu0 %3546
      %3548 = vrot.lane.b32.xlu0 %v3065, 80
      %v3549 = vpop.permute.xlu0 %3548
      %3550 = vrot.lane.b32.xlu0 %v3068, 80
      %v3551 = vpop.permute.xlu0 %3550
      %3552 = vrot.lane.b32.xlu0 %v3070, 80
      %v3553 = vpop.permute.xlu0 %3552
      %3554 = vrot.lane.b32.xlu0 %v3073, 80
      %v3555 = vpop.permute.xlu0 %3554
      %3556 = vrot.lane.b32.xlu0 %v3075, 80
      %v3557 = vpop.permute.xlu0 %3556
      %3558 = vrot.lane.b32.xlu0 %v3078, 80
      %v3559 = vpop.permute.xlu0 %3558
      %3560 = vrot.lane.b32.xlu0 %v3080, 80
      %v3561 = vpop.permute.xlu0 %3560
      %3562 = vrot.lane.b32.xlu0 %v3083, 80
      %v3563 = vpop.permute.xlu0 %3562
      %3564 = vrot.lane.b32.xlu0 %v3085, 80
      %v3565 = vpop.permute.xlu0 %3564
      %3566 = vrot.lane.b32.xlu0 %v3088, 80
      %v3567 = vpop.permute.xlu0 %3566
      %3568 = vrot.lane.b32.xlu0 %v3090, 80
      %v3569 = vpop.permute.xlu0 %3568
      %3570 = vrot.lane.b32.xlu0 %v3093, 80
      %v3571 = vpop.permute.xlu0 %3570
      %3572 = vrot.lane.b32.xlu0 %v3095, 80
      %v3573 = vpop.permute.xlu0 %3572
      %3574 = vrot.lane.b32.xlu0 %v3098, 80
      %v3575 = vpop.permute.xlu0 %3574
      %3576 = vrot.lane.b32.xlu0 %v3100, 80
      %v3577 = vpop.permute.xlu0 %3576
      %3578 = vrot.lane.b32.xlu0 %v3103, 80
      %v3579 = vpop.permute.xlu0 %3578
      %3580 = vrot.lane.b32.xlu0 %v3105, 80
      %v3581 = vpop.permute.xlu0 %3580
      %3582 = vrot.lane.b32.xlu0 %v3108, 80
      %v3583 = vpop.permute.xlu0 %3582
      %3584 = vrot.lane.b32.xlu0 %v3110, 80
      %v3585 = vpop.permute.xlu0 %3584
      %3586 = vrot.lane.b32.xlu0 %v3113, 80
      %v3587 = vpop.permute.xlu0 %3586
      %3588 = vrot.lane.b32.xlu0 %v3115, 80
      %v3589 = vpop.permute.xlu0 %3588
      %3590 = vrot.lane.b32.xlu0 %v3118, 80
      %v3591 = vpop.permute.xlu0 %3590
      %3592 = vrot.lane.b32.xlu0 %v3120, 80
      %v3593 = vpop.permute.xlu0 %3592
      %3594 = vrot.lane.b32.xlu0 %v3123, 80
      %v3595 = vpop.permute.xlu0 %3594
      %3596 = vrot.lane.b32.xlu0 %v3125, 80
      %v3597 = vpop.permute.xlu0 %3596
      %3598 = vrot.lane.b32.xlu0 %v3128, 80
      %v3599 = vpop.permute.xlu0 %3598
      %3600 = vrot.lane.b32.xlu0 %v3130, 80
      %v3601 = vpop.permute.xlu0 %3600
      %3602 = vrot.lane.b32.xlu0 %v3133, 80
      %v3603 = vpop.permute.xlu0 %3602
      %3604 = vrot.lane.b32.xlu0 %v3135, 80
      %v3605 = vpop.permute.xlu0 %3604
      %3606 = vrot.lane.b32.xlu0 %v3146, 80
      %v3607 = vpop.permute.xlu0 %3606
      %3608 = vrot.lane.b32.xlu0 %v3148, 80
      %v3609 = vpop.permute.xlu0 %3608
      %3642 = vrot.lane.b32.xlu0 %v2878, 96
      %v3643 = vpop.permute.xlu0 %3642
      %3644 = vrot.lane.b32.xlu0 %v2879, 96
      %v3645 = vpop.permute.xlu0 %3644
      %3646 = vrot.lane.b32.xlu0 %v2881, 96
      %v3647 = vpop.permute.xlu0 %3646
      %3648 = vrot.lane.b32.xlu0 %v2882, 96
      %v3649 = vpop.permute.xlu0 %3648
      %3650 = vrot.lane.b32.xlu0 %v2884, 96
      %v3651 = vpop.permute.xlu0 %3650
      %3652 = vrot.lane.b32.xlu0 %v2885, 96
      %v3653 = vpop.permute.xlu0 %3652
      %3654 = vrot.lane.b32.xlu0 %v2887, 96
      %v3655 = vpop.permute.xlu0 %3654
      %3656 = vrot.lane.b32.xlu0 %v2888, 96
      %v3657 = vpop.permute.xlu0 %3656
      %3658 = vrot.lane.b32.xlu0 %v2890, 96
      %v3659 = vpop.permute.xlu0 %3658
      %3660 = vrot.lane.b32.xlu0 %v2891, 96
      %v3661 = vpop.permute.xlu0 %3660
      %3662 = vrot.lane.b32.xlu0 %v2893, 96
      %v3663 = vpop.permute.xlu0 %3662
      %3664 = vrot.lane.b32.xlu0 %v2894, 96
      %v3665 = vpop.permute.xlu0 %3664
      %3666 = vrot.lane.b32.xlu0 %v2896, 96
      %v3667 = vpop.permute.xlu0 %3666
      %3668 = vrot.lane.b32.xlu0 %v2897, 96
      %v3669 = vpop.permute.xlu0 %3668
      %3670 = vrot.lane.b32.xlu0 %v2899, 96
      %v3671 = vpop.permute.xlu0 %3670
      %3672 = vrot.lane.b32.xlu0 %v2900, 96
      %v3673 = vpop.permute.xlu0 %3672
      %3674 = vrot.lane.b32.xlu0 %v2902, 96
      %v3675 = vpop.permute.xlu0 %3674
      %3676 = vrot.lane.b32.xlu0 %v2903, 96
      %v3677 = vpop.permute.xlu0 %3676
      %3678 = vrot.lane.b32.xlu0 %v2905, 96
      %v3679 = vpop.permute.xlu0 %3678
      %3680 = vrot.lane.b32.xlu0 %v2906, 96
      %v3681 = vpop.permute.xlu0 %3680
      %3682 = vrot.lane.b32.xlu0 %v2908, 96
      %v3683 = vpop.permute.xlu0 %3682
      %3684 = vrot.lane.b32.xlu0 %v2909, 96
      %v3685 = vpop.permute.xlu0 %3684
      %3686 = vrot.lane.b32.xlu0 %v2911, 96
      %v3687 = vpop.permute.xlu0 %3686
      %3688 = vrot.lane.b32.xlu0 %v2912, 96
      %v3689 = vpop.permute.xlu0 %3688
      %3690 = vrot.lane.b32.xlu0 %v2914, 96
      %v3691 = vpop.permute.xlu0 %3690
      %3692 = vrot.lane.b32.xlu0 %v2915, 96
      %v3693 = vpop.permute.xlu0 %3692
      %3694 = vrot.lane.b32.xlu0 %v2917, 96
      %v3695 = vpop.permute.xlu0 %3694
      %3696 = vrot.lane.b32.xlu0 %v2918, 96
      %v3697 = vpop.permute.xlu0 %3696
      %3698 = vrot.lane.b32.xlu0 %v2920, 96
      %v3699 = vpop.permute.xlu0 %3698
      %3700 = vrot.lane.b32.xlu0 %v2921, 96
      %v3701 = vpop.permute.xlu0 %3700
      %3702 = vrot.lane.b32.xlu0 %v2923, 96
      %v3703 = vpop.permute.xlu0 %3702
      %3704 = vrot.lane.b32.xlu0 %v2924, 96
      %v3705 = vpop.permute.xlu0 %3704
      %3738 = vrot.lane.b32.xlu0 %v2987, 112
      %v3739 = vpop.permute.xlu0 %3738
      %3740 = vrot.lane.b32.xlu0 %v2989, 112
      %v3741 = vpop.permute.xlu0 %3740
      %3742 = vrot.lane.b32.xlu0 %v2992, 112
      %v3743 = vpop.permute.xlu0 %3742
      %3744 = vrot.lane.b32.xlu0 %v2994, 112
      %v3745 = vpop.permute.xlu0 %3744
      %3746 = vrot.lane.b32.xlu0 %v2997, 112
      %v3747 = vpop.permute.xlu0 %3746
      %3748 = vrot.lane.b32.xlu0 %v2999, 112
      %v3749 = vpop.permute.xlu0 %3748
      %3750 = vrot.lane.b32.xlu0 %v3002, 112
      %v3751 = vpop.permute.xlu0 %3750
      %3752 = vrot.lane.b32.xlu0 %v3004, 112
      %v3753 = vpop.permute.xlu0 %3752
      %3754 = vrot.lane.b32.xlu0 %v3007, 112
      %v3755 = vpop.permute.xlu0 %3754
      %3756 = vrot.lane.b32.xlu0 %v3009, 112
      %v3757 = vpop.permute.xlu0 %3756
      %3758 = vrot.lane.b32.xlu0 %v3012, 112
      %v3759 = vpop.permute.xlu0 %3758
      %3760 = vrot.lane.b32.xlu0 %v3014, 112
      %v3761 = vpop.permute.xlu0 %3760
      %3762 = vrot.lane.b32.xlu0 %v3017, 112
      %v3763 = vpop.permute.xlu0 %3762
      %3764 = vrot.lane.b32.xlu0 %v3019, 112
      %v3765 = vpop.permute.xlu0 %3764
      %3766 = vrot.lane.b32.xlu0 %v3022, 112
      %v3767 = vpop.permute.xlu0 %3766
      %3768 = vrot.lane.b32.xlu0 %v3024, 112
      %v3769 = vpop.permute.xlu0 %3768
      %3770 = vrot.lane.b32.xlu0 %v3027, 112
      %v3771 = vpop.permute.xlu0 %3770
      %3772 = vrot.lane.b32.xlu0 %v3029, 112
      %v3773 = vpop.permute.xlu0 %3772
      %3774 = vrot.lane.b32.xlu0 %v3032, 112
      %v3775 = vpop.permute.xlu0 %3774
      %3776 = vrot.lane.b32.xlu0 %v3034, 112
      %v3777 = vpop.permute.xlu0 %3776
      %3778 = vrot.lane.b32.xlu0 %v3037, 112
      %v3779 = vpop.permute.xlu0 %3778
      %3780 = vrot.lane.b32.xlu0 %v3039, 112
      %v3781 = vpop.permute.xlu0 %3780
      %3782 = vrot.lane.b32.xlu0 %v3042, 112
      %v3783 = vpop.permute.xlu0 %3782
      %3784 = vrot.lane.b32.xlu0 %v3044, 112
      %v3785 = vpop.permute.xlu0 %3784
      %3786 = vrot.lane.b32.xlu0 %v3047, 112
      %v3787 = vpop.permute.xlu0 %3786
      %3788 = vrot.lane.b32.xlu0 %v3049, 112
      %v3789 = vpop.permute.xlu0 %3788
      %3790 = vrot.lane.b32.xlu0 %v3052, 112
      %v3791 = vpop.permute.xlu0 %3790
      %3792 = vrot.lane.b32.xlu0 %v3054, 112
      %v3793 = vpop.permute.xlu0 %3792
      %3794 = vrot.lane.b32.xlu0 %v3141, 112
      %v3795 = vpop.permute.xlu0 %3794
      %3796 = vrot.lane.b32.xlu0 %v3143, 112
      %v3797 = vpop.permute.xlu0 %3796
      %3798 = vrot.lane.b32.xlu0 %v3154, 112
      %v3799 = vpop.permute.xlu0 %3798
      %3800 = vrot.lane.b32.xlu0 %v3156, 112
      %v3801 = vpop.permute.xlu0 %3800
      %v3834 = vsel %vm613, %v2872, %v3163
      %v3835 = vsel %vm613, %v2873, %v3165
      %v3836 = vsel %vm613, %v2875, %v3167
      %v3837 = vsel %vm613, %v2876, %v3169
      %v3838 = vsel %vm613, %v2878, %v3171
      %v3839 = vsel %vm613, %v2879, %v3173
      %v3840 = vsel %vm613, %v2881, %v3175
      %v3841 = vsel %vm613, %v2882, %v3177
      %v3842 = vsel %vm613, %v2884, %v3179
      %v3843 = vsel %vm613, %v2885, %v3181
      %v3844 = vsel %vm613, %v2887, %v3183
      %v3845 = vsel %vm613, %v2888, %v3185
      %v3846 = vsel %vm613, %v2890, %v3187
      %v3847 = vsel %vm613, %v2891, %v3189
      %v3848 = vsel %vm613, %v2893, %v3191
      %v3849 = vsel %vm613, %v2894, %v3193
      %v3850 = vsel %vm613, %v2896, %v3195
      %v3851 = vsel %vm613, %v2897, %v3197
      %v3852 = vsel %vm613, %v2899, %v3199
      %v3853 = vsel %vm613, %v2900, %v3201
      %v3854 = vsel %vm613, %v2902, %v3203
      %v3855 = vsel %vm613, %v2903, %v3205
      %v3856 = vsel %vm613, %v2905, %v3207
      %v3857 = vsel %vm613, %v2906, %v3209
      %v3858 = vsel %vm613, %v2908, %v3211
      %v3859 = vsel %vm613, %v2909, %v3213
      %v3860 = vsel %vm613, %v2911, %v3215
      %v3861 = vsel %vm613, %v2912, %v3217
      %v3862 = vsel %vm613, %v2914, %v3219
      %v3863 = vsel %vm613, %v2915, %v3221
      %v3864 = vsel %vm613, %v2917, %v3223
      %v3865 = vsel %vm613, %v2918, %v3225
      %vm3866 = vcmask 261120
      %v3867 = vsel %vm3866, %v3834, %v3259
      %v3868 = vsel %vm3866, %v3835, %v3261
      %v3869 = vsel %vm3866, %v3836, %v3263
      %v3870 = vsel %vm3866, %v3837, %v3265
      %v3871 = vsel %vm3866, %v3838, %v3267
      %v3872 = vsel %vm3866, %v3839, %v3269
      %v3873 = vsel %vm3866, %v3840, %v3271
      %v3874 = vsel %vm3866, %v3841, %v3273
      %v3875 = vsel %vm3866, %v3842, %v3275
      %v3876 = vsel %vm3866, %v3843, %v3277
      %v3877 = vsel %vm3866, %v3844, %v3279
      %v3878 = vsel %vm3866, %v3845, %v3281
      %v3879 = vsel %vm3866, %v3846, %v3283
      %v3880 = vsel %vm3866, %v3847, %v3285
      %v3881 = vsel %vm3866, %v3848, %v3287
      %v3882 = vsel %vm3866, %v3849, %v3289
      %v3883 = vsel %vm3866, %v3850, %v3291
      %v3884 = vsel %vm3866, %v3851, %v3293
      %v3885 = vsel %vm3866, %v3852, %v3295
      %v3886 = vsel %vm3866, %v3853, %v3297
      %v3887 = vsel %vm3866, %v3854, %v3299
      %v3888 = vsel %vm3866, %v3855, %v3301
      %v3889 = vsel %vm3866, %v3856, %v3303
      %v3890 = vsel %vm3866, %v3857, %v3305
      %v3891 = vsel %vm3866, %v3858, %v3307
      %v3892 = vsel %vm3866, %v3859, %v3309
      %v3893 = vsel %vm3866, %v3860, %v3311
      %v3894 = vsel %vm3866, %v3861, %v3313
      %v3895 = vsel %vm3866, %v3862, %v3315
      %v3896 = vsel %vm3866, %v3863, %v3317
      %v3897 = vsel %vm3866, %v3864, %v3319
      %v3898 = vsel %vm3866, %v3865, %v3321
      %vm3899 = vcmask 392192
      %v3900 = vsel %vm3899, %v3867, %v3355
      %v3901 = vsel %vm3899, %v3868, %v3357
      %v3902 = vsel %vm3899, %v3869, %v3359
      %v3903 = vsel %vm3899, %v3870, %v3361
      %v3904 = vsel %vm3899, %v3871, %v3363
      %v3905 = vsel %vm3899, %v3872, %v3365
      %v3906 = vsel %vm3899, %v3873, %v3367
      %v3907 = vsel %vm3899, %v3874, %v3369
      %v3908 = vsel %vm3899, %v3875, %v3371
      %v3909 = vsel %vm3899, %v3876, %v3373
      %v3910 = vsel %vm3899, %v3877, %v3375
      %v3911 = vsel %vm3899, %v3878, %v3377
      %v3912 = vsel %vm3899, %v3879, %v3379
      %v3913 = vsel %vm3899, %v3880, %v3381
      %v3914 = vsel %vm3899, %v3881, %v3383
      %v3915 = vsel %vm3899, %v3882, %v3385
      %v3916 = vsel %vm3899, %v3883, %v3387
      %v3917 = vsel %vm3899, %v3884, %v3389
      %v3918 = vsel %vm3899, %v3885, %v3391
      %v3919 = vsel %vm3899, %v3886, %v3393
      %v3920 = vsel %vm3899, %v3887, %v3395
      %v3921 = vsel %vm3899, %v3888, %v3397
      %v3922 = vsel %vm3899, %v3889, %v3399
      %v3923 = vsel %vm3899, %v3890, %v3401
      %v3924 = vsel %vm3899, %v3891, %v3403
      %v3925 = vsel %vm3899, %v3892, %v3405
      %v3926 = vsel %vm3899, %v3893, %v3407
      %v3927 = vsel %vm3899, %v3894, %v3409
      %v3928 = vsel %vm3899, %v3895, %v3411
      %v3929 = vsel %vm3899, %v3896, %v3413
      %v3930 = vsel %vm3899, %v3897, %v3415
      %v3931 = vsel %vm3899, %v3898, %v3417
      %vm3932 = vcmask 523264
      %v3933 = vsel %vm3932, %v3900, %v3451
      %v3934 = vsel %vm3932, %v3901, %v3453
      %v3935 = vsel %vm3932, %v3902, %v3455
      %v3936 = vsel %vm3932, %v3903, %v3457
      %v3937 = vsel %vm3932, %v3904, %v3459
      %v3938 = vsel %vm3932, %v3905, %v3461
      %v3939 = vsel %vm3932, %v3906, %v3463
      %v3940 = vsel %vm3932, %v3907, %v3465
      %v3941 = vsel %vm3932, %v3908, %v3467
      %v3942 = vsel %vm3932, %v3909, %v3469
      %v3943 = vsel %vm3932, %v3910, %v3471
      %v3944 = vsel %vm3932, %v3911, %v3473
      %v3945 = vsel %vm3932, %v3912, %v3475
      %v3946 = vsel %vm3932, %v3913, %v3477
      %v3947 = vsel %vm3932, %v3914, %v3479
      %v3948 = vsel %vm3932, %v3915, %v3481
      %v3949 = vsel %vm3932, %v3916, %v3483
      %v3950 = vsel %vm3932, %v3917, %v3485
      %v3951 = vsel %vm3932, %v3918, %v3487
      %v3952 = vsel %vm3932, %v3919, %v3489
      %v3953 = vsel %vm3932, %v3920, %v3491
      %v3954 = vsel %vm3932, %v3921, %v3493
      %v3955 = vsel %vm3932, %v3922, %v3495
      %v3956 = vsel %vm3932, %v3923, %v3497
      %v3957 = vsel %vm3932, %v3924, %v3499
      %v3958 = vsel %vm3932, %v3925, %v3501
      %v3959 = vsel %vm3932, %v3926, %v3503
      %v3960 = vsel %vm3932, %v3927, %v3505
      %v3961 = vsel %vm3932, %v3928, %v3507
      %v3962 = vsel %vm3932, %v3929, %v3509
      %v3963 = vsel %vm3932, %v3930, %v3511
      %v3964 = vsel %vm3932, %v3931, %v3513
      %vm3965 = vcmask 654336
      %v3966 = vsel %vm3965, %v3933, %v3547
      %v3967 = vsel %vm3965, %v3934, %v3549
      %v3968 = vsel %vm3965, %v3935, %v3551
      %v3969 = vsel %vm3965, %v3936, %v3553
      %v3970 = vsel %vm3965, %v3937, %v3555
      %v3971 = vsel %vm3965, %v3938, %v3557
      %v3972 = vsel %vm3965, %v3939, %v3559
      %v3973 = vsel %vm3965, %v3940, %v3561
      %v3974 = vsel %vm3965, %v3941, %v3563
      %v3975 = vsel %vm3965, %v3942, %v3565
      %v3976 = vsel %vm3965, %v3943, %v3567
      %v3977 = vsel %vm3965, %v3944, %v3569
      %v3978 = vsel %vm3965, %v3945, %v3571
      %v3979 = vsel %vm3965, %v3946, %v3573
      %v3980 = vsel %vm3965, %v3947, %v3575
      %v3981 = vsel %vm3965, %v3948, %v3577
      %v3982 = vsel %vm3965, %v3949, %v3579
      %v3983 = vsel %vm3965, %v3950, %v3581
      %v3984 = vsel %vm3965, %v3951, %v3583
      %v3985 = vsel %vm3965, %v3952, %v3585
      %v3986 = vsel %vm3965, %v3953, %v3587
      %v3987 = vsel %vm3965, %v3954, %v3589
      %v3988 = vsel %vm3965, %v3955, %v3591
      %v3989 = vsel %vm3965, %v3956, %v3593
      %v3990 = vsel %vm3965, %v3957, %v3595
      %v3991 = vsel %vm3965, %v3958, %v3597
      %v3992 = vsel %vm3965, %v3959, %v3599
      %v3993 = vsel %vm3965, %v3960, %v3601
      %v3994 = vsel %vm3965, %v3961, %v3603
      %v3995 = vsel %vm3965, %v3962, %v3605
      %v3996 = vsel %vm3965, %v3963, %v3607
      %v3997 = vsel %vm3965, %v3964, %v3609
      %vm3998 = vcmask 785408
      %v3999 = vsel %vm3998, %v3966, %v3643
      %v4000 = vsel %vm3998, %v3967, %v3645
      %v4001 = vsel %vm3998, %v3968, %v3647
      %v4002 = vsel %vm3998, %v3969, %v3649
      %v4003 = vsel %vm3998, %v3970, %v3651
      %v4004 = vsel %vm3998, %v3971, %v3653
      %v4005 = vsel %vm3998, %v3972, %v3655
      %v4006 = vsel %vm3998, %v3973, %v3657
      %v4007 = vsel %vm3998, %v3974, %v3659
      %v4008 = vsel %vm3998, %v3975, %v3661
      %v4009 = vsel %vm3998, %v3976, %v3663
      %v4010 = vsel %vm3998, %v3977, %v3665
      %v4011 = vsel %vm3998, %v3978, %v3667
      %v4012 = vsel %vm3998, %v3979, %v3669
      %v4013 = vsel %vm3998, %v3980, %v3671
      %v4014 = vsel %vm3998, %v3981, %v3673
      %v4015 = vsel %vm3998, %v3982, %v3675
      %v4016 = vsel %vm3998, %v3983, %v3677
      %v4017 = vsel %vm3998, %v3984, %v3679
      %v4018 = vsel %vm3998, %v3985, %v3681
      %v4019 = vsel %vm3998, %v3986, %v3683
      %v4020 = vsel %vm3998, %v3987, %v3685
      %v4021 = vsel %vm3998, %v3988, %v3687
      %v4022 = vsel %vm3998, %v3989, %v3689
      %v4023 = vsel %vm3998, %v3990, %v3691
      %v4024 = vsel %vm3998, %v3991, %v3693
      %v4025 = vsel %vm3998, %v3992, %v3695
      %v4026 = vsel %vm3998, %v3993, %v3697
      %v4027 = vsel %vm3998, %v3994, %v3699
      %v4028 = vsel %vm3998, %v3995, %v3701
      %v4029 = vsel %vm3998, %v3996, %v3703
      %v4030 = vsel %vm3998, %v3997, %v3705
      %vm4031 = vcmask 916480
      %v4032 = vsel %vm4031, %v3999, %v3739
      %v4033 = vsel %vm4031, %v4000, %v3741
      %v4034 = vsel %vm4031, %v4001, %v3743
      %v4035 = vsel %vm4031, %v4002, %v3745
      %v4036 = vsel %vm4031, %v4003, %v3747
      %v4037 = vsel %vm4031, %v4004, %v3749
      %v4038 = vsel %vm4031, %v4005, %v3751
      %v4039 = vsel %vm4031, %v4006, %v3753
      %v4040 = vsel %vm4031, %v4007, %v3755
      %v4041 = vsel %vm4031, %v4008, %v3757
      %v4042 = vsel %vm4031, %v4009, %v3759
      %v4043 = vsel %vm4031, %v4010, %v3761
      %v4044 = vsel %vm4031, %v4011, %v3763
      %v4045 = vsel %vm4031, %v4012, %v3765
      %v4046 = vsel %vm4031, %v4013, %v3767
      %v4047 = vsel %vm4031, %v4014, %v3769
      %v4048 = vsel %vm4031, %v4015, %v3771
      %v4049 = vsel %vm4031, %v4016, %v3773
      %v4050 = vsel %vm4031, %v4017, %v3775
      %v4051 = vsel %vm4031, %v4018, %v3777
      %v4052 = vsel %vm4031, %v4019, %v3779
      %v4053 = vsel %vm4031, %v4020, %v3781
      %v4054 = vsel %vm4031, %v4021, %v3783
      %v4055 = vsel %vm4031, %v4022, %v3785
      %v4056 = vsel %vm4031, %v4023, %v3787
      %v4057 = vsel %vm4031, %v4024, %v3789
      %v4058 = vsel %vm4031, %v4025, %v3791
      %v4059 = vsel %vm4031, %v4026, %v3793
      %v4060 = vsel %vm4031, %v4027, %v3795
      %v4061 = vsel %vm4031, %v4028, %v3797
      %v4062 = vsel %vm4031, %v4029, %v3799
      %v4063 = vsel %vm4031, %v4030, %v3801
      %v4064 = vld [vmem:[%s8] sm:$0xff]
      %v4065 = vld [vmem:[%s8 + $0x8] sm:$0xff]
      %v4066 = vld [vmem:[%s8 + $0x10] sm:$0xff]
      %v4067 = vld [vmem:[%s8 + $0x18] sm:$0xff]
      %v4068 = vld [vmem:[%s8 + $0x20] sm:$0xff]
      %v4069 = vld [vmem:[%s8 + $0x28] sm:$0xff]
      %v4070 = vld [vmem:[%s8 + $0x30] sm:$0xff]
      %v4071 = vld [vmem:[%s8 + $0x38] sm:$0xff]
      %v4072 = vld [vmem:[%s8 + $0x40] sm:$0xff]
      %v4073 = vld [vmem:[%s8 + $0x48] sm:$0xff]
      %v4074 = vld [vmem:[%s8 + $0x50] sm:$0xff]
      %v4075 = vld [vmem:[%s8 + $0x58] sm:$0xff]
      %v4076 = vld [vmem:[%s8 + $0x60] sm:$0xff]
      %v4077 = vld [vmem:[%s8 + $0x68] sm:$0xff]
      %v4078 = vld [vmem:[%s8 + $0x70] sm:$0xff]
      %v4079 = vld [vmem:[%s8 + $0x78] sm:$0xff]
      %v4080 = vld [vmem:[%s8 + $0x80] sm:$0xff]
      %v4081 = vld [vmem:[%s8 + $0x88] sm:$0xff]
      %v4082 = vsel %vm613, %v3068, 0
      %v4084 = vsel %vm613, %v3070, 0
      %v4086 = vsel %vm613, %v3073, 0
      %v4088 = vsel %vm613, %v3075, 0
      %v4090 = vsel %vm613, %v3078, 0
      %v4092 = vsel %vm613, %v3080, 0
      %v4094 = vsel %vm613, %v3083, 0
      %v4096 = vsel %vm613, %v3085, 0
      %v4098 = vsel %vm613, %v3088, 0
      %v4100 = vsel %vm613, %v3090, 0
      %v4102 = vsel %vm613, %v3093, 0
      %v4104 = vsel %vm613, %v3095, 0
      %v4106 = vsel %vm613, %v3098, 0
      %v4108 = vsel %vm613, %v3100, 0
      %v4110 = vsel %vm613, %v3103, 0
      %v4112 = vsel %vm613, %v3105, 0
      %v4114 = vsel %vm613, %v3108, 0
      %v4116 = vsel %vm613, %v3110, 0
      %v4118 = vsel %vm613, %v3113, 0
      %v4120 = vsel %vm613, %v3115, 0
      %v4122 = vsel %vm613, %v3118, 0
      %v4124 = vsel %vm613, %v3120, 0
      %v4126 = vsel %vm613, %v3123, 0
      %v4128 = vsel %vm613, %v3125, 0
      %v4130 = vsel %vm613, %v3128, 0
      %v4132 = vsel %vm613, %v3130, 0
      %v4134 = vsel %vm613, %v3133, 0
      %v4136 = vsel %vm613, %v3135, 0
      %v4138 = vsel %vm613, %v3146, 0
      %v4140 = vsel %vm613, %v3148, 0
      %v4142 = vsel %vm613, %v3159, 0
      %v4144 = vsel %vm613, %v3161, 0
      %4146 = vmatprep.subr.mxu0 0.0
      %4147 = vmatpush1.msra.mxu0 %v4064
      %4148 = vmatprep.subr.mxu0 0.0
      %4149 = vmatpush1.msra.mxu0 %v4065
      %4150 = vmatprep.subr.mxu0 0.0
      %4151 = vmatpush1.msra.mxu0 %v4066
      %4152 = vmatprep.subr.mxu0 0.0
      %4153 = vmatpush1.msra.mxu0 %v4067
      %4154 = vmatprep.subr.mxu0 0.0
      %4155 = vmatpush1.msra.mxu0 %v4068
      %4156 = vmatprep.subr.mxu0 0.0
      %4157 = vmatpush1.msra.mxu0 %v4069
      %4158 = vmatprep.subr.mxu0 0.0
      %4159 = vmatpush1.msra.mxu0 %v4070
      %4160 = vmatprep.subr.mxu0 0.0
      %4161 = vmatpush1.msra.mxu0 %v4071
      %4162 = vmatprep.subr.mxu0 0.0
      %4163 = vmatpush1.msra.mxu0 %v4072
      %4164 = vmatprep.subr.mxu0 0.0
      %4165 = vmatpush1.msra.mxu0 %v4073
      %4166 = vmatprep.subr.mxu0 0.0
      %4167 = vmatpush1.msra.mxu0 %v4074
      %4168 = vmatprep.subr.mxu0 0.0
      %4169 = vmatpush1.msra.mxu0 %v4075
      %4170 = vmatprep.subr.mxu0 0.0
      %4171 = vmatpush1.msra.mxu0 %v4076
      %4172 = vmatprep.subr.mxu0 0.0
      %4173 = vmatpush1.msra.mxu0 %v4077
      %4174 = vmatprep.subr.mxu0 0.0
      %4175 = vmatpush1.msra.mxu0 %v4078
      %4176 = vmatprep.subr.mxu0 0.0
      %4177 = vmatpush1.msra.mxu0 %v4079
      %4178 = vmatprep.subr.mxu0 0.0
      %4179 = vmatpush1.msra.mxu0 %v4080
      %4180 = vmatprep.subr.mxu0 0.0
      %4181 = vmatpush1.msra.mxu0 %v4081
      %4182 = vmatprep.subr.mxu0 0.0
      %4183 = vmatpush1.msra.mxu0 0.0
      %4184 = vmatprep.subr.mxu0 0.0
      %4185 = vmatpush1.msra.mxu0 0.0
      %4186 = vmatprep.subr.mxu0 0.0
      %4187 = vmatpush1.msra.mxu0 0.0
      %4188 = vmatprep.subr.mxu0 0.0
      %4189 = vmatpush1.msra.mxu0 0.0
      %4190 = vmatprep.subr.mxu0 0.0
      %4191 = vmatpush1.msra.mxu0 0.0
      %4192 = vmatprep.subr.mxu0 0.0
      %4193 = vmatpush1.msra.mxu0 0.0
      %4194 = vmatprep.subr.mxu0 0.0
      %4195 = vmatpush1.msra.mxu0 0.0
      %4196 = vmatprep.subr.mxu0 0.0
      %4197 = vmatpush1.msra.mxu0 0.0
      %4198 = vmatprep.subr.mxu0 0.0
      %4199 = vmatpush1.msra.mxu0 0.0
      %4200 = vmatprep.subr.mxu0 0.0
      %4201 = vmatpush1.msra.mxu0 0.0
      %4202 = vmatprep.subr.mxu0 0.0
      %4203 = vmatpush1.msra.mxu0 0.0
      %4204 = vmatprep.subr.mxu0 0.0
      %4205 = vmatpush1.msra.mxu0 0.0
      %4206 = vmatprep.subr.mxu0 0.0
      %4207 = vmatpush1.msra.mxu0 0.0
      %4208 = vmatprep.subr.mxu0 0.0
      %4209 = vmatpush1.msra.mxu0 0.0
      %4210 = vmatprep.mubr.f32.mxu0 %v4082
      %4211 = vmatmul.mubr.f32.gmra.mrb[0].mxu0 %v4032
      %v4212 = vpop.f32.mrb[0].mxu0
      %v4213 = vadd.f32 0.0, %v4212
      %v4214 = vpop.f32.mrb[0].mxu0
      %4215 = vmatprep.mubr.f32.mxu0 %v4084
      %4216 = vmatmul.mubr.f32.gmra.mrb[0].mxu0 %v4033
      %v4217 = vpop.f32.mrb[0].mxu0
      %v4218 = vadd.f32 0.0, %v4217
      %v4219 = vpop.f32.mrb[0].mxu0
      %4220 = vmatprep.mubr.f32.mxu0 %v4086
      %4221 = vmatmul.mubr.f32.gmra.mrb[0].mxu0 %v4034
      %v4222 = vpop.f32.mrb[0].mxu0
      %v4223 = vadd.f32 0.0, %v4222
      %v4224 = vpop.f32.mrb[0].mxu0
      %4225 = vmatprep.mubr.f32.mxu0 %v4088
      %4226 = vmatmul.mubr.f32.gmra.mrb[0].mxu0 %v4035
      %v4227 = vpop.f32.mrb[0].mxu0
      %v4228 = vadd.f32 0.0, %v4227
      %v4229 = vpop.f32.mrb[0].mxu0
      %4230 = vmatprep.mubr.f32.mxu0 %v4090
      %4231 = vmatmul.mubr.f32.gmra.mrb[0].mxu0 %v4036
      %v4232 = vpop.f32.mrb[0].mxu0
      %v4233 = vadd.f32 0.0, %v4232
      %v4234 = vpop.f32.mrb[0].mxu0
      %4235 = vmatprep.mubr.f32.mxu0 %v4092
      %4236 = vmatmul.mubr.f32.gmra.mrb[0].mxu0 %v4037
      %v4237 = vpop.f32.mrb[0].mxu0
      %v4238 = vadd.f32 0.0, %v4237
      %v4239 = vpop.f32.mrb[0].mxu0
      %4240 = vmatprep.mubr.f32.mxu0 %v4094
      %4241 = vmatmul.mubr.f32.gmra.mrb[0].mxu0 %v4038
      %v4242 = vpop.f32.mrb[0].mxu0
      %v4243 = vadd.f32 0.0, %v4242
      %v4244 = vpop.f32.mrb[0].mxu0
      %4245 = vmatprep.mubr.f32.mxu0 %v4096
      %4246 = vmatmul.mubr.f32.gmra.mrb[0].mxu0 %v4039
      %v4247 = vpop.f32.mrb[0].mxu0
      %v4248 = vadd.f32 0.0, %v4247
      %v4249 = vpop.f32.mrb[0].mxu0
      %4250 = vmatprep.mubr.f32.mxu0 %v4098
      %4251 = vmatmul.mubr.f32.gmra.mrb[0].mxu0 %v4040
      %v4252 = vpop.f32.mrb[0].mxu0
      %v4253 = vadd.f32 0.0, %v4252
      %v4254 = vpop.f32.mrb[0].mxu0
      %4255 = vmatprep.mubr.f32.mxu0 %v4100
      %4256 = vmatmul.mubr.f32.gmra.mrb[0].mxu0 %v4041
      %v4257 = vpop.f32.mrb[0].mxu0
      %v4258 = vadd.f32 0.0, %v4257
      %v4259 = vpop.f32.mrb[0].mxu0
      %4260 = vmatprep.mubr.f32.mxu0 %v4102
      %4261 = vmatmul.mubr.f32.gmra.mrb[0].mxu0 %v4042
      %v4262 = vpop.f32.mrb[0].mxu0
      %v4263 = vadd.f32 0.0, %v4262
      %v4264 = vpop.f32.mrb[0].mxu0
      %4265 = vmatprep.mubr.f32.mxu0 %v4104
      %4266 = vmatmul.mubr.f32.gmra.mrb[0].mxu0 %v4043
      %v4267 = vpop.f32.mrb[0].mxu0
      %v4268 = vadd.f32 0.0, %v4267
      %v4269 = vpop.f32.mrb[0].mxu0
      %4270 = vmatprep.mubr.f32.mxu0 %v4106
      %4271 = vmatmul.mubr.f32.gmra.mrb[0].mxu0 %v4044
      %v4272 = vpop.f32.mrb[0].mxu0
      %v4273 = vadd.f32 0.0, %v4272
      %v4274 = vpop.f32.mrb[0].mxu0
      %4275 = vmatprep.mubr.f32.mxu0 %v4108
      %4276 = vmatmul.mubr.f32.gmra.mrb[0].mxu0 %v4045
      %v4277 = vpop.f32.mrb[0].mxu0
      %v4278 = vadd.f32 0.0, %v4277
      %v4279 = vpop.f32.mrb[0].mxu0
      %4280 = vmatprep.mubr.f32.mxu0 %v4110
      %4281 = vmatmul.mubr.f32.gmra.mrb[0].mxu0 %v4046
      %v4282 = vpop.f32.mrb[0].mxu0
      %v4283 = vadd.f32 0.0, %v4282
      %v4284 = vpop.f32.mrb[0].mxu0
      %4285 = vmatprep.mubr.f32.mxu0 %v4112
      %4286 = vmatmul.mubr.f32.gmra.mrb[0].mxu0 %v4047
      %v4287 = vpop.f32.mrb[0].mxu0
      %v4288 = vadd.f32 0.0, %v4287
      %v4289 = vpop.f32.mrb[0].mxu0
      %4290 = vmatprep.mubr.f32.mxu0 %v4114
      %4291 = vmatmul.mubr.f32.gmra.mrb[0].mxu0 %v4048
      %v4292 = vpop.f32.mrb[0].mxu0
      %v4293 = vadd.f32 0.0, %v4292
      %v4294 = vpop.f32.mrb[0].mxu0
      %4295 = vmatprep.mubr.f32.mxu0 %v4116
      %4296 = vmatmul.mubr.f32.gmra.mrb[0].mxu0 %v4049
      %v4297 = vpop.f32.mrb[0].mxu0
      %v4298 = vadd.f32 0.0, %v4297
      %v4299 = vpop.f32.mrb[0].mxu0
      %4300 = vmatprep.mubr.f32.mxu0 %v4118
      %4301 = vmatmul.mubr.f32.gmra.mrb[0].mxu0 %v4050
      %v4302 = vpop.f32.mrb[0].mxu0
      %v4303 = vadd.f32 0.0, %v4302
      %v4304 = vpop.f32.mrb[0].mxu0
      %4305 = vmatprep.mubr.f32.mxu0 %v4120
      %4306 = vmatmul.mubr.f32.gmra.mrb[0].mxu0 %v4051
      %v4307 = vpop.f32.mrb[0].mxu0
      %v4308 = vadd.f32 0.0, %v4307
      %v4309 = vpop.f32.mrb[0].mxu0
      %4310 = vmatprep.mubr.f32.mxu0 %v4122
      %4311 = vmatmul.mubr.f32.gmra.mrb[0].mxu0 %v4052
      %v4312 = vpop.f32.mrb[0].mxu0
      %v4313 = vadd.f32 0.0, %v4312
      %v4314 = vpop.f32.mrb[0].mxu0
      %4315 = vmatprep.mubr.f32.mxu0 %v4124
      %4316 = vmatmul.mubr.f32.gmra.mrb[0].mxu0 %v4053
      %v4317 = vpop.f32.mrb[0].mxu0
      %v4318 = vadd.f32 0.0, %v4317
      %v4319 = vpop.f32.mrb[0].mxu0
      %4320 = vmatprep.mubr.f32.mxu0 %v4126
      %4321 = vmatmul.mubr.f32.gmra.mrb[0].mxu0 %v4054
      %v4322 = vpop.f32.mrb[0].mxu0
      %v4323 = vadd.f32 0.0, %v4322
      %v4324 = vpop.f32.mrb[0].mxu0
      %4325 = vmatprep.mubr.f32.mxu0 %v4128
      %4326 = vmatmul.mubr.f32.gmra.mrb[0].mxu0 %v4055
      %v4327 = vpop.f32.mrb[0].mxu0
      %v4328 = vadd.f32 0.0, %v4327
      %v4329 = vpop.f32.mrb[0].mxu0
      %4330 = vmatprep.mubr.f32.mxu0 %v4130
      %4331 = vmatmul.mubr.f32.gmra.mrb[0].mxu0 %v4056
      %v4332 = vpop.f32.mrb[0].mxu0
      %v4333 = vadd.f32 0.0, %v4332
      %v4334 = vpop.f32.mrb[0].mxu0
      %4335 = vmatprep.mubr.f32.mxu0 %v4132
      %4336 = vmatmul.mubr.f32.gmra.mrb[0].mxu0 %v4057
      %v4337 = vpop.f32.mrb[0].mxu0
      %v4338 = vadd.f32 0.0, %v4337
      %v4339 = vpop.f32.mrb[0].mxu0
      %4340 = vmatprep.mubr.f32.mxu0 %v4134
      %4341 = vmatmul.mubr.f32.gmra.mrb[0].mxu0 %v4058
      %v4342 = vpop.f32.mrb[0].mxu0
      %v4343 = vadd.f32 0.0, %v4342
      %v4344 = vpop.f32.mrb[0].mxu0
      %4345 = vmatprep.mubr.f32.mxu0 %v4136
      %4346 = vmatmul.mubr.f32.gmra.mrb[0].mxu0 %v4059
      %v4347 = vpop.f32.mrb[0].mxu0
      %v4348 = vadd.f32 0.0, %v4347
      %v4349 = vpop.f32.mrb[0].mxu0
      %4350 = vmatprep.mubr.f32.mxu0 %v4138
      %4351 = vmatmul.mubr.f32.gmra.mrb[0].mxu0 %v4060
      %v4352 = vpop.f32.mrb[0].mxu0
      %v4353 = vadd.f32 0.0, %v4352
      %v4354 = vpop.f32.mrb[0].mxu0
      %4355 = vmatprep.mubr.f32.mxu0 %v4140
      %4356 = vmatmul.mubr.f32.gmra.mrb[0].mxu0 %v4061
      %v4357 = vpop.f32.mrb[0].mxu0
      %v4358 = vadd.f32 0.0, %v4357
      %v4359 = vpop.f32.mrb[0].mxu0
      %4360 = vmatprep.mubr.f32.mxu0 %v4142
      %4361 = vmatmul.mubr.f32.gmra.mrb[0].mxu0 %v4062
      %v4362 = vpop.f32.mrb[0].mxu0
      %v4363 = vadd.f32 0.0, %v4362
      %v4364 = vpop.f32.mrb[0].mxu0
      %4365 = vmatprep.mubr.f32.mxu0 %v4144
      %4366 = vmatmul.mubr.f32.gmra.mrb[0].mxu0 %v4063
      %v4367 = vpop.f32.mrb[0].mxu0
      %v4368 = vadd.f32 0.0, %v4367
      %v4369 = vpop.f32.mrb[0].mxu0
      %4370 = vdwg.mxu0
      %4403 = vrot.lane.b32.xlu0 %v4213, 16
      %v4404 = vpop.permute.xlu0 %4403
      %4405 = vrot.lane.b32.xlu0 %v4218, 16
      %v4406 = vpop.permute.xlu0 %4405
      %4407 = vrot.lane.b32.xlu0 %v4223, 16
      %v4408 = vpop.permute.xlu0 %4407
      %4409 = vrot.lane.b32.xlu0 %v4228, 16
      %v4410 = vpop.permute.xlu0 %4409
      %4411 = vrot.lane.b32.xlu0 %v4233, 16
      %v4412 = vpop.permute.xlu0 %4411
      %4413 = vrot.lane.b32.xlu0 %v4238, 16
      %v4414 = vpop.permute.xlu0 %4413
      %4415 = vrot.lane.b32.xlu0 %v4243, 16
      %v4416 = vpop.permute.xlu0 %4415
      %4417 = vrot.lane.b32.xlu0 %v4248, 16
      %v4418 = vpop.permute.xlu0 %4417
      %4419 = vrot.lane.b32.xlu0 %v4253, 16
      %v4420 = vpop.permute.xlu0 %4419
      %4421 = vrot.lane.b32.xlu0 %v4258, 16
      %v4422 = vpop.permute.xlu0 %4421
      %4423 = vrot.lane.b32.xlu0 %v4263, 16
      %v4424 = vpop.permute.xlu0 %4423
      %4425 = vrot.lane.b32.xlu0 %v4268, 16
      %v4426 = vpop.permute.xlu0 %4425
      %4427 = vrot.lane.b32.xlu0 %v4273, 16
      %v4428 = vpop.permute.xlu0 %4427
      %4429 = vrot.lane.b32.xlu0 %v4278, 16
      %v4430 = vpop.permute.xlu0 %4429
      %4431 = vrot.lane.b32.xlu0 %v4283, 16
      %v4432 = vpop.permute.xlu0 %4431
      %4433 = vrot.lane.b32.xlu0 %v4288, 16
      %v4434 = vpop.permute.xlu0 %4433
      %4435 = vrot.lane.b32.xlu0 %v4293, 16
      %v4436 = vpop.permute.xlu0 %4435
      %4437 = vrot.lane.b32.xlu0 %v4298, 16
      %v4438 = vpop.permute.xlu0 %4437
      %4439 = vrot.lane.b32.xlu0 %v4303, 16
      %v4440 = vpop.permute.xlu0 %4439
      %4441 = vrot.lane.b32.xlu0 %v4308, 16
      %v4442 = vpop.permute.xlu0 %4441
      %4443 = vrot.lane.b32.xlu0 %v4313, 16
      %v4444 = vpop.permute.xlu0 %4443
      %4445 = vrot.lane.b32.xlu0 %v4318, 16
      %v4446 = vpop.permute.xlu0 %4445
      %4447 = vrot.lane.b32.xlu0 %v4323, 16
      %v4448 = vpop.permute.xlu0 %4447
      %4449 = vrot.lane.b32.xlu0 %v4328, 16
      %v4450 = vpop.permute.xlu0 %4449
      %4451 = vrot.lane.b32.xlu0 %v4333, 16
      %v4452 = vpop.permute.xlu0 %4451
      %4453 = vrot.lane.b32.xlu0 %v4338, 16
      %v4454 = vpop.permute.xlu0 %4453
      %4455 = vrot.lane.b32.xlu0 %v4343, 16
      %v4456 = vpop.permute.xlu0 %4455
      %4457 = vrot.lane.b32.xlu0 %v4348, 16
      %v4458 = vpop.permute.xlu0 %4457
      %4459 = vrot.lane.b32.xlu0 %v4353, 16
      %v4460 = vpop.permute.xlu0 %4459
      %4461 = vrot.lane.b32.xlu0 %v4358, 16
      %v4462 = vpop.permute.xlu0 %4461
      %4463 = vrot.lane.b32.xlu0 %v4363, 16
      %v4464 = vpop.permute.xlu0 %4463
      %4465 = vrot.lane.b32.xlu0 %v4368, 16
      %v4466 = vpop.permute.xlu0 %4465
      %v4499 = vsel %vm613, %v2216, %v4404
      %v4500 = vsel %vm613, %v2217, %v4406
      %v4501 = vsel %vm613, %v2218, %v4408
      %v4502 = vsel %vm613, %v2219, %v4410
      %v4503 = vsel %vm613, %v2220, %v4412
      %v4504 = vsel %vm613, %v2221, %v4414
      %v4505 = vsel %vm613, %v2222, %v4416
      %v4506 = vsel %vm613, %v2223, %v4418
      %v4507 = vsel %vm613, %v2224, %v4420
      %v4508 = vsel %vm613, %v2225, %v4422
      %v4509 = vsel %vm613, %v2226, %v4424
      %v4510 = vsel %vm613, %v2227, %v4426
      %v4511 = vsel %vm613, %v2228, %v4428
      %v4512 = vsel %vm613, %v2229, %v4430
      %v4513 = vsel %vm613, %v2230, %v4432
      %v4514 = vsel %vm613, %v2231, %v4434
      %v4515 = vsel %vm613, %v2232, %v4436
      %v4516 = vsel %vm613, %v2233, %v4438
      %v4517 = vsel %vm613, %v2234, %v4440
      %v4518 = vsel %vm613, %v2235, %v4442
      %v4519 = vsel %vm613, %v2236, %v4444
      %v4520 = vsel %vm613, %v2237, %v4446
      %v4521 = vsel %vm613, %v2238, %v4448
      %v4522 = vsel %vm613, %v2239, %v4450
      %v4523 = vsel %vm613, %v2240, %v4452
      %v4524 = vsel %vm613, %v2241, %v4454
      %v4525 = vsel %vm613, %v2242, %v4456
      %v4526 = vsel %vm613, %v2243, %v4458
      %v4527 = vsel %vm613, %v2244, %v4460
      %v4528 = vsel %vm613, %v2245, %v4462
      %v4529 = vsel %vm613, %v2246, %v4464
      %v4530 = vsel %vm613, %v2247, %v4466
      %v4531 = vld [vmem:[%s9] sm:$0x1]
      %v4533 = vlaneseq
      %v4534 = vshrl.u32 %v4533, 7
      %v4535 = vsub.s32 0, %v4534
      %v4536 = vrot.slane %v4531, %v4535
      %v4538 = vmul.f32 %v4499, %v4536
      %v4539 = vmul.f32 %v4500, %v4536
      %v4540 = vmul.f32 %v4501, %v4536
      %v4541 = vmul.f32 %v4502, %v4536
      %v4542 = vmul.f32 %v4503, %v4536
      %v4543 = vmul.f32 %v4504, %v4536
      %v4544 = vmul.f32 %v4505, %v4536
      %v4545 = vmul.f32 %v4506, %v4536
      %v4546 = vmul.f32 %v4507, %v4536
      %v4547 = vmul.f32 %v4508, %v4536
      %v4548 = vmul.f32 %v4509, %v4536
      %v4549 = vmul.f32 %v4510, %v4536
      %v4550 = vmul.f32 %v4511, %v4536
      %v4551 = vmul.f32 %v4512, %v4536
      %v4552 = vmul.f32 %v4513, %v4536
      %v4553 = vmul.f32 %v4514, %v4536
      %v4554 = vmul.f32 %v4515, %v4536
      %v4555 = vmul.f32 %v4516, %v4536
      %v4556 = vmul.f32 %v4517, %v4536
      %v4557 = vmul.f32 %v4518, %v4536
      %v4558 = vmul.f32 %v4519, %v4536
      %v4559 = vmul.f32 %v4520, %v4536
      %v4560 = vmul.f32 %v4521, %v4536
      %v4561 = vmul.f32 %v4522, %v4536
      %v4562 = vmul.f32 %v4523, %v4536
      %v4563 = vmul.f32 %v4524, %v4536
      %v4564 = vmul.f32 %v4525, %v4536
      %v4565 = vmul.f32 %v4526, %v4536
      %v4566 = vmul.f32 %v4527, %v4536
      %v4567 = vmul.f32 %v4528, %v4536
      %v4568 = vmul.f32 %v4529, %v4536
      %v4569 = vmul.f32 %v4530, %v4536
      %v4570 = vld [vmem:[%s10] sm:$0x1]
      %v4572 = vlaneseq
      %v4573 = vshrl.u32 %v4572, 7
      %v4574 = vsub.s32 0, %v4573
      %v4575 = vrot.slane %v4570, %v4574
      %v4577 = vadd.f32 %v4538, %v4575
      %v4578 = vadd.f32 %v4539, %v4575
      %v4579 = vadd.f32 %v4540, %v4575
      %v4580 = vadd.f32 %v4541, %v4575
      %v4581 = vadd.f32 %v4542, %v4575
      %v4582 = vadd.f32 %v4543, %v4575
      %v4583 = vadd.f32 %v4544, %v4575
      %v4584 = vadd.f32 %v4545, %v4575
      %v4585 = vadd.f32 %v4546, %v4575
      %v4586 = vadd.f32 %v4547, %v4575
      %v4587 = vadd.f32 %v4548, %v4575
      %v4588 = vadd.f32 %v4549, %v4575
      %v4589 = vadd.f32 %v4550, %v4575
      %v4590 = vadd.f32 %v4551, %v4575
      %v4591 = vadd.f32 %v4552, %v4575
      %v4592 = vadd.f32 %v4553, %v4575
      %v4593 = vadd.f32 %v4554, %v4575
      %v4594 = vadd.f32 %v4555, %v4575
      %v4595 = vadd.f32 %v4556, %v4575
      %v4596 = vadd.f32 %v4557, %v4575
      %v4597 = vadd.f32 %v4558, %v4575
      %v4598 = vadd.f32 %v4559, %v4575
      %v4599 = vadd.f32 %v4560, %v4575
      %v4600 = vadd.f32 %v4561, %v4575
      %v4601 = vadd.f32 %v4562, %v4575
      %v4602 = vadd.f32 %v4563, %v4575
      %v4603 = vadd.f32 %v4564, %v4575
      %v4604 = vadd.f32 %v4565, %v4575
      %v4605 = vadd.f32 %v4566, %v4575
      %v4606 = vadd.f32 %v4567, %v4575
      %v4607 = vadd.f32 %v4568, %v4575
      %v4608 = vadd.f32 %v4569, %v4575
      %v4609 = vmul.f32 %v4577, 0.01
      %v4610 = vmul.f32 %v4578, 0.01
      %v4611 = vmul.f32 %v4579, 0.01
      %v4612 = vmul.f32 %v4580, 0.01
      %v4613 = vmul.f32 %v4581, 0.01
      %v4614 = vmul.f32 %v4582, 0.01
      %v4615 = vmul.f32 %v4583, 0.01
      %v4616 = vmul.f32 %v4584, 0.01
      %v4617 = vmul.f32 %v4585, 0.01
      %v4618 = vmul.f32 %v4586, 0.01
      %v4619 = vmul.f32 %v4587, 0.01
      %v4620 = vmul.f32 %v4588, 0.01
      %v4621 = vmul.f32 %v4589, 0.01
      %v4622 = vmul.f32 %v4590, 0.01
      %v4623 = vmul.f32 %v4591, 0.01
      %v4624 = vmul.f32 %v4592, 0.01
      %v4625 = vmul.f32 %v4593, 0.01
      %v4626 = vmul.f32 %v4594, 0.01
      %v4627 = vmul.f32 %v4595, 0.01
      %v4628 = vmul.f32 %v4596, 0.01
      %v4629 = vmul.f32 %v4597, 0.01
      %v4630 = vmul.f32 %v4598, 0.01
      %v4631 = vmul.f32 %v4599, 0.01
      %v4632 = vmul.f32 %v4600, 0.01
      %v4633 = vmul.f32 %v4601, 0.01
      %v4634 = vmul.f32 %v4602, 0.01
      %v4635 = vmul.f32 %v4603, 0.01
      %v4636 = vmul.f32 %v4604, 0.01
      %v4637 = vmul.f32 %v4605, 0.01
      %v4638 = vmul.f32 %v4606, 0.01
      %v4639 = vmul.f32 %v4607, 0.01
      %v4640 = vmul.f32 %v4608, 0.01
      %v4641 = vmax.f32 %v4577, %v4609
      %v4642 = vmax.f32 %v4578, %v4610
      %v4643 = vmax.f32 %v4579, %v4611
      %v4644 = vmax.f32 %v4580, %v4612
      %v4645 = vmax.f32 %v4581, %v4613
      %v4646 = vmax.f32 %v4582, %v4614
      %v4647 = vmax.f32 %v4583, %v4615
      %v4648 = vmax.f32 %v4584, %v4616
      %v4649 = vmax.f32 %v4585, %v4617
      %v4650 = vmax.f32 %v4586, %v4618
      %v4651 = vmax.f32 %v4587, %v4619
      %v4652 = vmax.f32 %v4588, %v4620
      %v4653 = vmax.f32 %v4589, %v4621
      %v4654 = vmax.f32 %v4590, %v4622
      %v4655 = vmax.f32 %v4591, %v4623
      %v4656 = vmax.f32 %v4592, %v4624
      %v4657 = vmax.f32 %v4593, %v4625
      %v4658 = vmax.f32 %v4594, %v4626
      %v4659 = vmax.f32 %v4595, %v4627
      %v4660 = vmax.f32 %v4596, %v4628
      %v4661 = vmax.f32 %v4597, %v4629
      %v4662 = vmax.f32 %v4598, %v4630
      %v4663 = vmax.f32 %v4599, %v4631
      %v4664 = vmax.f32 %v4600, %v4632
      %v4665 = vmax.f32 %v4601, %v4633
      %v4666 = vmax.f32 %v4602, %v4634
      %v4667 = vmax.f32 %v4603, %v4635
      %v4668 = vmax.f32 %v4604, %v4636
      %v4669 = vmax.f32 %v4605, %v4637
      %v4670 = vmax.f32 %v4606, %v4638
      %v4671 = vmax.f32 %v4607, %v4639
      %v4672 = vmax.f32 %v4608, %v4640
      %v4673 = vld [vmem:[%s11] sm:$0xff]
      %v4674 = vld [vmem:[%s11 + $0x8] sm:$0xff]
      %v4675 = vld [vmem:[%s11 + $0x10] sm:$0xf]
      %v4676 = vld [vmem:[%s12] sm:$0x1]
      %v4678 = vlaneseq
      %v4679 = vshrl.u32 %v4678, 7
      %v4680 = vsub.s32 0, %v4679
      %v4681 = vrot.slane %v4676, %v4680
      %vm4683 = vcmask 162816
      %v4685 = vsel %vm4683, %v4641, 0
      %v4688 = vsel %vm4683, %v4642, 0
      %v4691 = vsel %vm4683, %v4643, 0
      %v4694 = vsel %vm4683, %v4644, 0
      %v4697 = vsel %vm4683, %v4645, 0
      %v4700 = vsel %vm4683, %v4646, 0
      %v4703 = vsel %vm4683, %v4647, 0
      %v4706 = vsel %vm4683, %v4648, 0
      %v4709 = vsel %vm4683, %v4649, 0
      %v4712 = vsel %vm4683, %v4650, 0
      %v4715 = vsel %vm4683, %v4651, 0
      %v4718 = vsel %vm4683, %v4652, 0
      %v4721 = vsel %vm4683, %v4653, 0
      %v4724 = vsel %vm4683, %v4654, 0
      %v4727 = vsel %vm4683, %v4655, 0
      %v4730 = vsel %vm4683, %v4656, 0
      %v4733 = vsel %vm4683, %v4657, 0
      %v4736 = vsel %vm4683, %v4658, 0
      %v4739 = vsel %vm4683, %v4659, 0
      %v4742 = vsel %vm4683, %v4660, 0
      %v4745 = vsel %vm4683, %v4661, 0
      %v4748 = vsel %vm4683, %v4662, 0
      %v4751 = vsel %vm4683, %v4663, 0
      %v4754 = vsel %vm4683, %v4664, 0
      %v4757 = vsel %vm4683, %v4665, 0
      %v4760 = vsel %vm4683, %v4666, 0
      %v4763 = vsel %vm4683, %v4667, 0
      %v4766 = vsel %vm4683, %v4668, 0
      %v4769 = vsel %vm4683, %v4669, 0
      %v4772 = vsel %vm4683, %v4670, 0
      %v4775 = vsel %vm4683, %v4671, 0
      %v4778 = vsel %vm4683, %v4672, 0
      %vm4780 = vcmask 1043456
      %v4782 = vsel %vm4780, %v4675, 0
      %4784 = vmatprep.subr.mxu0 0.0
      %4785 = vmatpush1.msra.mxu0 %v4673
      %4786 = vmatprep.subr.mxu0 0.0
      %4787 = vmatpush1.msra.mxu0 %v4674
      %4788 = vmatprep.subr.mxu0 0.0
      %4789 = vmatpush1.msra.mxu0 %v4782
      %4790 = vmatprep.subr.mxu0 0.0
      %4791 = vmatpush1.msra.mxu0 0.0
      %4792 = vmatprep.subr.mxu0 0.0
      %4793 = vmatpush1.msra.mxu0 0.0
      %4794 = vmatprep.subr.mxu0 0.0
      %4795 = vmatpush1.msra.mxu0 0.0
      %4796 = vmatprep.subr.mxu0 0.0
      %4797 = vmatpush1.msra.mxu0 0.0
      %4798 = vmatprep.subr.mxu0 0.0
      %4799 = vmatpush1.msra.mxu0 0.0
      %4800 = vmatprep.subr.mxu0 0.0
      %4801 = vmatpush1.msra.mxu0 0.0
      %4802 = vmatprep.subr.mxu0 0.0
      %4803 = vmatpush1.msra.mxu0 0.0
      %4804 = vmatprep.subr.mxu0 0.0
      %4805 = vmatpush1.msra.mxu0 0.0
      %4806 = vmatprep.subr.mxu0 0.0
      %4807 = vmatpush1.msra.mxu0 0.0
      %4808 = vmatprep.subr.mxu0 0.0
      %4809 = vmatpush1.msra.mxu0 0.0
      %4810 = vmatprep.subr.mxu0 0.0
      %4811 = vmatpush1.msra.mxu0 0.0
      %4812 = vmatprep.subr.mxu0 0.0
      %4813 = vmatpush1.msra.mxu0 0.0
      %4814 = vmatprep.subr.mxu0 0.0
      %4815 = vmatpush1.msra.mxu0 0.0
      %4816 = vmatprep.subr.mxu0 0.0
      %4817 = vmatpush1.msra.mxu0 0.0
      %4818 = vmatprep.subr.mxu0 0.0
      %4819 = vmatpush1.msra.mxu0 0.0
      %4820 = vmatprep.subr.mxu0 0.0
      %4821 = vmatpush1.msra.mxu0 0.0
      %4822 = vmatprep.subr.mxu0 0.0
      %4823 = vmatpush1.msra.mxu0 0.0
      %4824 = vmatprep.subr.mxu0 0.0
      %4825 = vmatpush1.msra.mxu0 0.0
      %4826 = vmatprep.subr.mxu0 0.0
      %4827 = vmatpush1.msra.mxu0 0.0
      %4828 = vmatprep.subr.mxu0 0.0
      %4829 = vmatpush1.msra.mxu0 0.0
      %4830 = vmatprep.subr.mxu0 0.0
      %4831 = vmatpush1.msra.mxu0 0.0
      %4832 = vmatprep.subr.mxu0 0.0
      %4833 = vmatpush1.msra.mxu0 0.0
      %4834 = vmatprep.subr.mxu0 0.0
      %4835 = vmatpush1.msra.mxu0 0.0
      %4836 = vmatprep.subr.mxu0 0.0
      %4837 = vmatpush1.msra.mxu0 0.0
      %4838 = vmatprep.subr.mxu0 0.0
      %4839 = vmatpush1.msra.mxu0 0.0
      %4840 = vmatprep.subr.mxu0 0.0
      %4841 = vmatpush1.msra.mxu0 0.0
      %4842 = vmatprep.subr.mxu0 0.0
      %4843 = vmatpush1.msra.mxu0 0.0
      %4844 = vmatprep.subr.mxu0 0.0
      %4845 = vmatpush1.msra.mxu0 0.0
      %4846 = vmatprep.subr.mxu0 0.0
      %4847 = vmatpush1.msra.mxu0 0.0
      %4848 = vmatprep.mubr.f32.mxu0 0.0
      %4849 = vmatmul.mubr.f32.gmra.mrb[0].mxu0 %v4685
      %v4850 = vpop.f32.mrb[0].mxu0
      %v4851 = vadd.f32 %v4681, %v4850
      %v4852 = vpop.f32.mrb[0].mxu0
      %4853 = vmatprep.mubr.f32.mxu0 0.0
      %4854 = vmatmul.mubr.f32.gmra.mrb[0].mxu0 %v4688
      %v4855 = vpop.f32.mrb[0].mxu0
      %v4856 = vadd.f32 %v4681, %v4855
      %v4857 = vpop.f32.mrb[0].mxu0
      %4858 = vmatprep.mubr.f32.mxu0 0.0
      %4859 = vmatmul.mubr.f32.gmra.mrb[0].mxu0 %v4691
      %v4860 = vpop.f32.mrb[0].mxu0
      %v4861 = vadd.f32 %v4681, %v4860
      %v4862 = vpop.f32.mrb[0].mxu0
      %4863 = vmatprep.mubr.f32.mxu0 0.0
      %4864 = vmatmul.mubr.f32.gmra.mrb[0].mxu0 %v4694
      %v4865 = vpop.f32.mrb[0].mxu0
      %v4866 = vadd.f32 %v4681, %v4865
      %v4867 = vpop.f32.mrb[0].mxu0
      %4868 = vmatprep.mubr.f32.mxu0 0.0
      %4869 = vmatmul.mubr.f32.gmra.mrb[0].mxu0 %v4697
      %v4870 = vpop.f32.mrb[0].mxu0
      %v4871 = vadd.f32 %v4681, %v4870
      %v4872 = vpop.f32.mrb[0].mxu0
      %4873 = vmatprep.mubr.f32.mxu0 0.0
      %4874 = vmatmul.mubr.f32.gmra.mrb[0].mxu0 %v4700
      %v4875 = vpop.f32.mrb[0].mxu0
      %v4876 = vadd.f32 %v4681, %v4875
      %v4877 = vpop.f32.mrb[0].mxu0
      %4878 = vmatprep.mubr.f32.mxu0 0.0
      %4879 = vmatmul.mubr.f32.gmra.mrb[0].mxu0 %v4703
      %v4880 = vpop.f32.mrb[0].mxu0
      %v4881 = vadd.f32 %v4681, %v4880
      %v4882 = vpop.f32.mrb[0].mxu0
      %4883 = vmatprep.mubr.f32.mxu0 0.0
      %4884 = vmatmul.mubr.f32.gmra.mrb[0].mxu0 %v4706
      %v4885 = vpop.f32.mrb[0].mxu0
      %v4886 = vadd.f32 %v4681, %v4885
      %v4887 = vpop.f32.mrb[0].mxu0
      %4888 = vmatprep.mubr.f32.mxu0 0.0
      %4889 = vmatmul.mubr.f32.gmra.mrb[0].mxu0 %v4709
      %v4890 = vpop.f32.mrb[0].mxu0
      %v4891 = vadd.f32 %v4681, %v4890
      %v4892 = vpop.f32.mrb[0].mxu0
      %4893 = vmatprep.mubr.f32.mxu0 0.0
      %4894 = vmatmul.mubr.f32.gmra.mrb[0].mxu0 %v4712
      %v4895 = vpop.f32.mrb[0].mxu0
      %v4896 = vadd.f32 %v4681, %v4895
      %v4897 = vpop.f32.mrb[0].mxu0
      %4898 = vmatprep.mubr.f32.mxu0 0.0
      %4899 = vmatmul.mubr.f32.gmra.mrb[0].mxu0 %v4715
      %v4900 = vpop.f32.mrb[0].mxu0
      %v4901 = vadd.f32 %v4681, %v4900
      %v4902 = vpop.f32.mrb[0].mxu0
      %4903 = vmatprep.mubr.f32.mxu0 0.0
      %4904 = vmatmul.mubr.f32.gmra.mrb[0].mxu0 %v4718
      %v4905 = vpop.f32.mrb[0].mxu0
      %v4906 = vadd.f32 %v4681, %v4905
      %v4907 = vpop.f32.mrb[0].mxu0
      %4908 = vmatprep.mubr.f32.mxu0 0.0
      %4909 = vmatmul.mubr.f32.gmra.mrb[0].mxu0 %v4721
      %v4910 = vpop.f32.mrb[0].mxu0
      %v4911 = vadd.f32 %v4681, %v4910
      %v4912 = vpop.f32.mrb[0].mxu0
      %4913 = vmatprep.mubr.f32.mxu0 0.0
      %4914 = vmatmul.mubr.f32.gmra.mrb[0].mxu0 %v4724
      %v4915 = vpop.f32.mrb[0].mxu0
      %v4916 = vadd.f32 %v4681, %v4915
      %v4917 = vpop.f32.mrb[0].mxu0
      %4918 = vmatprep.mubr.f32.mxu0 0.0
      %4919 = vmatmul.mubr.f32.gmra.mrb[0].mxu0 %v4727
      %v4920 = vpop.f32.mrb[0].mxu0
      %v4921 = vadd.f32 %v4681, %v4920
      %v4922 = vpop.f32.mrb[0].mxu0
      %4923 = vmatprep.mubr.f32.mxu0 0.0
      %4924 = vmatmul.mubr.f32.gmra.mrb[0].mxu0 %v4730
      %v4925 = vpop.f32.mrb[0].mxu0
      %v4926 = vadd.f32 %v4681, %v4925
      %v4927 = vpop.f32.mrb[0].mxu0
      %4928 = vmatprep.mubr.f32.mxu0 0.0
      %4929 = vmatmul.mubr.f32.gmra.mrb[0].mxu0 %v4733
      %v4930 = vpop.f32.mrb[0].mxu0
      %v4931 = vadd.f32 %v4681, %v4930
      %v4932 = vpop.f32.mrb[0].mxu0
      %4933 = vmatprep.mubr.f32.mxu0 0.0
      %4934 = vmatmul.mubr.f32.gmra.mrb[0].mxu0 %v4736
      %v4935 = vpop.f32.mrb[0].mxu0
      %v4936 = vadd.f32 %v4681, %v4935
      %v4937 = vpop.f32.mrb[0].mxu0
      %4938 = vmatprep.mubr.f32.mxu0 0.0
      %4939 = vmatmul.mubr.f32.gmra.mrb[0].mxu0 %v4739
      %v4940 = vpop.f32.mrb[0].mxu0
      %v4941 = vadd.f32 %v4681, %v4940
      %v4942 = vpop.f32.mrb[0].mxu0
      %4943 = vmatprep.mubr.f32.mxu0 0.0
      %4944 = vmatmul.mubr.f32.gmra.mrb[0].mxu0 %v4742
      %v4945 = vpop.f32.mrb[0].mxu0
      %v4946 = vadd.f32 %v4681, %v4945
      %v4947 = vpop.f32.mrb[0].mxu0
      %4948 = vmatprep.mubr.f32.mxu0 0.0
      %4949 = vmatmul.mubr.f32.gmra.mrb[0].mxu0 %v4745
      %v4950 = vpop.f32.mrb[0].mxu0
      %v4951 = vadd.f32 %v4681, %v4950
      %v4952 = vpop.f32.mrb[0].mxu0
      %4953 = vmatprep.mubr.f32.mxu0 0.0
      %4954 = vmatmul.mubr.f32.gmra.mrb[0].mxu0 %v4748
      %v4955 = vpop.f32.mrb[0].mxu0
      %v4956 = vadd.f32 %v4681, %v4955
      %v4957 = vpop.f32.mrb[0].mxu0
      %4958 = vmatprep.mubr.f32.mxu0 0.0
      %4959 = vmatmul.mubr.f32.gmra.mrb[0].mxu0 %v4751
      %v4960 = vpop.f32.mrb[0].mxu0
      %v4961 = vadd.f32 %v4681, %v4960
      %v4962 = vpop.f32.mrb[0].mxu0
      %4963 = vmatprep.mubr.f32.mxu0 0.0
      %4964 = vmatmul.mubr.f32.gmra.mrb[0].mxu0 %v4754
      %v4965 = vpop.f32.mrb[0].mxu0
      %v4966 = vadd.f32 %v4681, %v4965
      %v4967 = vpop.f32.mrb[0].mxu0
      %4968 = vmatprep.mubr.f32.mxu0 0.0
      %4969 = vmatmul.mubr.f32.gmra.mrb[0].mxu0 %v4757
      %v4970 = vpop.f32.mrb[0].mxu0
      %v4971 = vadd.f32 %v4681, %v4970
      %v4972 = vpop.f32.mrb[0].mxu0
      %4973 = vmatprep.mubr.f32.mxu0 0.0
      %4974 = vmatmul.mubr.f32.gmra.mrb[0].mxu0 %v4760
      %v4975 = vpop.f32.mrb[0].mxu0
      %v4976 = vadd.f32 %v4681, %v4975
      %v4977 = vpop.f32.mrb[0].mxu0
      %4978 = vmatprep.mubr.f32.mxu0 0.0
      %4979 = vmatmul.mubr.f32.gmra.mrb[0].mxu0 %v4763
      %v4980 = vpop.f32.mrb[0].mxu0
      %v4981 = vadd.f32 %v4681, %v4980
      %v4982 = vpop.f32.mrb[0].mxu0
      %4983 = vmatprep.mubr.f32.mxu0 0.0
      %4984 = vmatmul.mubr.f32.gmra.mrb[0].mxu0 %v4766
      %v4985 = vpop.f32.mrb[0].mxu0
      %v4986 = vadd.f32 %v4681, %v4985
      %v4987 = vpop.f32.mrb[0].mxu0
      %4988 = vmatprep.mubr.f32.mxu0 0.0
      %4989 = vmatmul.mubr.f32.gmra.mrb[0].mxu0 %v4769
      %v4990 = vpop.f32.mrb[0].mxu0
      %v4991 = vadd.f32 %v4681, %v4990
      %v4992 = vpop.f32.mrb[0].mxu0
      %4993 = vmatprep.mubr.f32.mxu0 0.0
      %4994 = vmatmul.mubr.f32.gmra.mrb[0].mxu0 %v4772
      %v4995 = vpop.f32.mrb[0].mxu0
      %v4996 = vadd.f32 %v4681, %v4995
      %v4997 = vpop.f32.mrb[0].mxu0
      %4998 = vmatprep.mubr.f32.mxu0 0.0
      %4999 = vmatmul.mubr.f32.gmra.mrb[0].mxu0 %v4775
      %v5000 = vpop.f32.mrb[0].mxu0
      %v5001 = vadd.f32 %v4681, %v5000
      %v5002 = vpop.f32.mrb[0].mxu0
      %5003 = vmatprep.mubr.f32.mxu0 0.0
      %5004 = vmatmul.mubr.f32.gmra.mrb[0].mxu0 %v4778
      %v5005 = vpop.f32.mrb[0].mxu0
      %v5006 = vadd.f32 %v4681, %v5005
      %v5007 = vpop.f32.mrb[0].mxu0
      %5008 = vdwg.mxu0
      %v5009 = vmul.f32 %v4851, 0.01
      %v5010 = vmul.f32 %v4856, 0.01
      %v5011 = vmul.f32 %v4861, 0.01
      %v5012 = vmul.f32 %v4866, 0.01
      %v5013 = vmul.f32 %v4871, 0.01
      %v5014 = vmul.f32 %v4876, 0.01
      %v5015 = vmul.f32 %v4881, 0.01
      %v5016 = vmul.f32 %v4886, 0.01
      %v5017 = vmul.f32 %v4891, 0.01
      %v5018 = vmul.f32 %v4896, 0.01
      %v5019 = vmul.f32 %v4901, 0.01
      %v5020 = vmul.f32 %v4906, 0.01
      %v5021 = vmul.f32 %v4911, 0.01
      %v5022 = vmul.f32 %v4916, 0.01
      %v5023 = vmul.f32 %v4921, 0.01
      %v5024 = vmul.f32 %v4926, 0.01
      %v5025 = vmul.f32 %v4931, 0.01
      %v5026 = vmul.f32 %v4936, 0.01
      %v5027 = vmul.f32 %v4941, 0.01
      %v5028 = vmul.f32 %v4946, 0.01
      %v5029 = vmul.f32 %v4951, 0.01
      %v5030 = vmul.f32 %v4956, 0.01
      %v5031 = vmul.f32 %v4961, 0.01
      %v5032 = vmul.f32 %v4966, 0.01
      %v5033 = vmul.f32 %v4971, 0.01
      %v5034 = vmul.f32 %v4976, 0.01
      %v5035 = vmul.f32 %v4981, 0.01
      %v5036 = vmul.f32 %v4986, 0.01
      %v5037 = vmul.f32 %v4991, 0.01
      %v5038 = vmul.f32 %v4996, 0.01
      %v5039 = vmul.f32 %v5001, 0.01
      %v5040 = vmul.f32 %v5006, 0.01
      %v5041 = vmax.f32 %v4851, %v5009
      %v5042 = vmax.f32 %v4856, %v5010
      %v5043 = vmax.f32 %v4861, %v5011
      %v5044 = vmax.f32 %v4866, %v5012
      %v5045 = vmax.f32 %v4871, %v5013
      %v5046 = vmax.f32 %v4876, %v5014
      %v5047 = vmax.f32 %v4881, %v5015
      %v5048 = vmax.f32 %v4886, %v5016
      %v5049 = vmax.f32 %v4891, %v5017
      %v5050 = vmax.f32 %v4896, %v5018
      %v5051 = vmax.f32 %v4901, %v5019
      %v5052 = vmax.f32 %v4906, %v5020
      %v5053 = vmax.f32 %v4911, %v5021
      %v5054 = vmax.f32 %v4916, %v5022
      %v5055 = vmax.f32 %v4921, %v5023
      %v5056 = vmax.f32 %v4926, %v5024
      %v5057 = vmax.f32 %v4931, %v5025
      %v5058 = vmax.f32 %v4936, %v5026
      %v5059 = vmax.f32 %v4941, %v5027
      %v5060 = vmax.f32 %v4946, %v5028
      %v5061 = vmax.f32 %v4951, %v5029
      %v5062 = vmax.f32 %v4956, %v5030
      %v5063 = vmax.f32 %v4961, %v5031
      %v5064 = vmax.f32 %v4966, %v5032
      %v5065 = vmax.f32 %v4971, %v5033
      %v5066 = vmax.f32 %v4976, %v5034
      %v5067 = vmax.f32 %v4981, %v5035
      %v5068 = vmax.f32 %v4986, %v5036
      %v5069 = vmax.f32 %v4991, %v5037
      %v5070 = vmax.f32 %v4996, %v5038
      %v5071 = vmax.f32 %v5001, %v5039
      %v5072 = vmax.f32 %v5006, %v5040
      %5073 = vst.msk [vmem:[#allocation2] sm:$0xff] %vm613, 0.0
      %5074 = vst.msk [vmem:[#allocation2 + $0x8] sm:$0xff] %vm613, 0.0
      %5075 = vst.msk [vmem:[#allocation2 + $0x10] sm:$0x3] %vm2786, 0.0
      %5076 = vst.msk [vmem:[#allocation2 + $0x18] sm:$0xff] %vm613, 0.0
      %5077 = vst.msk [vmem:[#allocation2 + $0x20] sm:$0xff] %vm613, 0.0
      %5078 = vst.msk [vmem:[#allocation2 + $0x28] sm:$0x3] %vm2786, 0.0
      %5079 = vst.msk [vmem:[#allocation2 + $0x30] sm:$0xff] %vm613, 0.0
      %5080 = vst.msk [vmem:[#allocation2 + $0x38] sm:$0xff] %vm613, 0.0
      %5081 = vst.msk [vmem:[#allocation2 + $0x40] sm:$0x3] %vm2786, 0.0
      %5082 = vst.msk [vmem:[#allocation2 + $0x48] sm:$0xff] %vm613, 0.0
      %5083 = vst.msk [vmem:[#allocation2 + $0x50] sm:$0xff] %vm613, 0.0
      %5084 = vst.msk [vmem:[#allocation2 + $0x58] sm:$0x3] %vm2786, 0.0
      %5085 = vst.msk [vmem:[#allocation2 + $0x60] sm:$0xff] %vm613, 0.0
      %5086 = vst.msk [vmem:[#allocation2 + $0x68] sm:$0xff] %vm613, 0.0
      %5087 = vst.msk [vmem:[#allocation2 + $0x70] sm:$0x3] %vm2786, 0.0
      %5088 = vst.msk [vmem:[#allocation2 + $0x78] sm:$0xff] %vm613, 0.0
      %5089 = vst.msk [vmem:[#allocation2 + $0x80] sm:$0xff] %vm613, 0.0
      %5090 = vst.msk [vmem:[#allocation2 + $0x88] sm:$0x3] %vm2786, 0.0
      %5091 = vst.msk [vmem:[#allocation2 + $0x90] sm:$0xff] %vm613, 0.0
      %5092 = vst.msk [vmem:[#allocation2 + $0x98] sm:$0xff] %vm613, 0.0
      %5093 = vst.msk [vmem:[#allocation2 + $0xa0] sm:$0x3] %vm2786, 0.0
      %5094 = vst.msk [vmem:[#allocation2 + $0xa8] sm:$0xff] %vm613, 0.0
      %5095 = vst.msk [vmem:[#allocation2 + $0xb0] sm:$0xff] %vm613, 0.0
      %5096 = vst.msk [vmem:[#allocation2 + $0xb8] sm:$0x3] %vm2786, 0.0
      %5097 = vst.msk [vmem:[#allocation2 + $0xc0] sm:$0xff] %vm613, 0.0
      %5098 = vst.msk [vmem:[#allocation2 + $0xc8] sm:$0xff] %vm613, 0.0
      %5099 = vst.msk [vmem:[#allocation2 + $0xd0] sm:$0x3] %vm2786, 0.0
      %5100 = vst.msk [vmem:[#allocation2 + $0xd8] sm:$0xff] %vm613, 0.0
      %5101 = vst.msk [vmem:[#allocation2 + $0xe0] sm:$0xff] %vm613, 0.0
      %5102 = vst.msk [vmem:[#allocation2 + $0xe8] sm:$0x3] %vm2786, 0.0
      %5103 = vst.msk [vmem:[#allocation2 + $0xf0] sm:$0xff] %vm613, 0.0
      %5104 = vst.msk [vmem:[#allocation2 + $0xf8] sm:$0xff] %vm613, 0.0
      %5105 = vst.msk [vmem:[#allocation2 + $0x100] sm:$0x3] %vm2786, 0.0
      %5106 = vst.msk [vmem:[#allocation2 + $0x108] sm:$0xff] %vm613, 0.0
      %5107 = vst.msk [vmem:[#allocation2 + $0x110] sm:$0xff] %vm613, 0.0
      %5108 = vst.msk [vmem:[#allocation2 + $0x118] sm:$0x3] %vm2786, 0.0
      %5109 = vst.msk [vmem:[#allocation2 + $0x120] sm:$0xff] %vm613, 0.0
      %5110 = vst.msk [vmem:[#allocation2 + $0x128] sm:$0xff] %vm613, 0.0
      %5111 = vst.msk [vmem:[#allocation2 + $0x130] sm:$0x3] %vm2786, 0.0
      %5112 = vst.msk [vmem:[#allocation2 + $0x138] sm:$0xff] %vm613, 0.0
      %5113 = vst.msk [vmem:[#allocation2 + $0x140] sm:$0xff] %vm613, 0.0
      %5114 = vst.msk [vmem:[#allocation2 + $0x148] sm:$0x3] %vm2786, 0.0
      %5115 = vst.msk [vmem:[#allocation2 + $0x150] sm:$0xff] %vm613, 0.0
      %5116 = vst.msk [vmem:[#allocation2 + $0x158] sm:$0xff] %vm613, 0.0
      %5117 = vst.msk [vmem:[#allocation2 + $0x160] sm:$0x3] %vm2786, 0.0
      %5118 = vst.msk [vmem:[#allocation2 + $0x168] sm:$0xff] %vm613, 0.0
      %5119 = vst.msk [vmem:[#allocation2 + $0x170] sm:$0xff] %vm613, 0.0
      %5120 = vst.msk [vmem:[#allocation2 + $0x178] sm:$0x3] %vm2786, 0.0
      %5121 = vst.msk [vmem:[#allocation2 + $0x180] sm:$0xff] %vm613, 0.0
      %5122 = vst.msk [vmem:[#allocation2 + $0x188] sm:$0xff] %vm613, 0.0
      %5123 = vst.msk [vmem:[#allocation2 + $0x190] sm:$0x3] %vm2786, 0.0
      %5124 = vst.msk [vmem:[#allocation2 + $0x198] sm:$0xff] %vm613, 0.0
      %5125 = vst.msk [vmem:[#allocation2 + $0x1a0] sm:$0xff] %vm613, 0.0
      %5126 = vst.msk [vmem:[#allocation2 + $0x1a8] sm:$0x3] %vm2786, 0.0
      %5127 = vst.msk [vmem:[%s2839 + $0x1] sm:$0xff] %vm613, %v5041
      %5128 = vst.msk [vmem:[%s2839 + $0x9] sm:$0xff] %vm613, %v5042
      %5129 = vst.msk [vmem:[%s2839 + $0x19] sm:$0xff] %vm613, %v5043
      %5130 = vst.msk [vmem:[%s2839 + $0x21] sm:$0xff] %vm613, %v5044
      %5131 = vst.msk [vmem:[%s2839 + $0x31] sm:$0xff] %vm613, %v5045
      %5132 = vst.msk [vmem:[%s2839 + $0x39] sm:$0xff] %vm613, %v5046
      %5133 = vst.msk [vmem:[%s2839 + $0x49] sm:$0xff] %vm613, %v5047
      %5134 = vst.msk [vmem:[%s2839 + $0x51] sm:$0xff] %vm613, %v5048
      %5135 = vst.msk [vmem:[%s2839 + $0x61] sm:$0xff] %vm613, %v5049
      %5136 = vst.msk [vmem:[%s2839 + $0x69] sm:$0xff] %vm613, %v5050
      %5137 = vst.msk [vmem:[%s2839 + $0x79] sm:$0xff] %vm613, %v5051
      %5138 = vst.msk [vmem:[%s2839 + $0x81] sm:$0xff] %vm613, %v5052
      %5139 = vst.msk [vmem:[%s2839 + $0x91] sm:$0xff] %vm613, %v5053
      %5140 = vst.msk [vmem:[%s2839 + $0x99] sm:$0xff] %vm613, %v5054
      %5141 = vst.msk [vmem:[%s2839 + $0xa9] sm:$0xff] %vm613, %v5055
      %5142 = vst.msk [vmem:[%s2839 + $0xb1] sm:$0xff] %vm613, %v5056
      %5143 = vst.msk [vmem:[%s2839 + $0xc1] sm:$0xff] %vm613, %v5057
      %5144 = vst.msk [vmem:[%s2839 + $0xc9] sm:$0xff] %vm613, %v5058
      %5145 = vst.msk [vmem:[%s2839 + $0xd9] sm:$0xff] %vm613, %v5059
      %5146 = vst.msk [vmem:[%s2839 + $0xe1] sm:$0xff] %vm613, %v5060
      %5147 = vst.msk [vmem:[%s2839 + $0xf1] sm:$0xff] %vm613, %v5061
      %5148 = vst.msk [vmem:[%s2839 + $0xf9] sm:$0xff] %vm613, %v5062
      %5149 = vst.msk [vmem:[%s2839 + $0x109] sm:$0xff] %vm613, %v5063
      %5150 = vst.msk [vmem:[%s2839 + $0x111] sm:$0xff] %vm613, %v5064
      %5151 = vst.msk [vmem:[%s2839 + $0x121] sm:$0xff] %vm613, %v5065
      %5152 = vst.msk [vmem:[%s2839 + $0x129] sm:$0xff] %vm613, %v5066
      %5153 = vst.msk [vmem:[%s2839 + $0x139] sm:$0xff] %vm613, %v5067
      %5154 = vst.msk [vmem:[%s2839 + $0x141] sm:$0xff] %vm613, %v5068
      %5155 = vst.msk [vmem:[%s2839 + $0x151] sm:$0xff] %vm613, %v5069
      %5156 = vst.msk [vmem:[%s2839 + $0x159] sm:$0xff] %vm613, %v5070
      %5157 = vst.msk [vmem:[%s2839 + $0x169] sm:$0xff] %vm613, %v5071
      %5158 = vst.msk [vmem:[%s2839 + $0x171] sm:$0xff] %vm613, %v5072
      %v5159 = vld [vmem:[#allocation2] sm:$0xff]
      %v5160 = vld [vmem:[#allocation2 + $0x8] sm:$0xff]
      %v5161 = vld [vmem:[#allocation2 + $0x10] sm:$0x3]
      %v5162 = vld [vmem:[#allocation2 + $0x18] sm:$0xff]
      %v5163 = vld [vmem:[#allocation2 + $0x20] sm:$0xff]
      %v5164 = vld [vmem:[#allocation2 + $0x28] sm:$0x3]
      %v5165 = vld [vmem:[#allocation2 + $0x30] sm:$0xff]
      %v5166 = vld [vmem:[#allocation2 + $0x38] sm:$0xff]
      %v5167 = vld [vmem:[#allocation2 + $0x40] sm:$0x3]
      %v5168 = vld [vmem:[#allocation2 + $0x48] sm:$0xff]
      %v5169 = vld [vmem:[#allocation2 + $0x50] sm:$0xff]
      %v5170 = vld [vmem:[#allocation2 + $0x58] sm:$0x3]
      %v5171 = vld [vmem:[#allocation2 + $0x60] sm:$0xff]
      %v5172 = vld [vmem:[#allocation2 + $0x68] sm:$0xff]
      %v5173 = vld [vmem:[#allocation2 + $0x70] sm:$0x3]
      %v5174 = vld [vmem:[#allocation2 + $0x78] sm:$0xff]
      %v5175 = vld [vmem:[#allocation2 + $0x80] sm:$0xff]
      %v5176 = vld [vmem:[#allocation2 + $0x88] sm:$0x3]
      %v5177 = vld [vmem:[#allocation2 + $0x90] sm:$0xff]
      %v5178 = vld [vmem:[#allocation2 + $0x98] sm:$0xff]
      %v5179 = vld [vmem:[#allocation2 + $0xa0] sm:$0x3]
      %v5180 = vld [vmem:[#allocation2 + $0xa8] sm:$0xff]
      %v5181 = vld [vmem:[#allocation2 + $0xb0] sm:$0xff]
      %v5182 = vld [vmem:[#allocation2 + $0xb8] sm:$0x3]
      %v5183 = vld [vmem:[#allocation2 + $0xc0] sm:$0xff]
      %v5184 = vld [vmem:[#allocation2 + $0xc8] sm:$0xff]
      %v5185 = vld [vmem:[#allocation2 + $0xd0] sm:$0x3]
      %v5186 = vld [vmem:[#allocation2 + $0xd8] sm:$0xff]
      %v5187 = vld [vmem:[#allocation2 + $0xe0] sm:$0xff]
      %v5188 = vld [vmem:[#allocation2 + $0xe8] sm:$0x3]
      %v5189 = vld [vmem:[#allocation2 + $0xf0] sm:$0xff]
      %v5190 = vld [vmem:[#allocation2 + $0xf8] sm:$0xff]
      %v5191 = vld [vmem:[#allocation2 + $0x100] sm:$0x3]
      %v5192 = vld [vmem:[#allocation2 + $0x108] sm:$0xff]
      %v5193 = vld [vmem:[#allocation2 + $0x110] sm:$0xff]
      %v5194 = vld [vmem:[#allocation2 + $0x118] sm:$0x3]
      %v5195 = vld [vmem:[#allocation2 + $0x120] sm:$0xff]
      %v5196 = vld [vmem:[#allocation2 + $0x128] sm:$0xff]
      %v5197 = vld [vmem:[#allocation2 + $0x130] sm:$0x3]
      %v5198 = vld [vmem:[#allocation2 + $0x138] sm:$0xff]
      %v5199 = vld [vmem:[#allocation2 + $0x140] sm:$0xff]
      %v5200 = vld [vmem:[#allocation2 + $0x148] sm:$0x3]
      %v5201 = vld [vmem:[#allocation2 + $0x150] sm:$0xff]
      %v5202 = vld [vmem:[#allocation2 + $0x158] sm:$0xff]
      %v5203 = vld [vmem:[#allocation2 + $0x160] sm:$0x3]
      %v5204 = vld [vmem:[#allocation2 + $0x168] sm:$0xff]
      %v5205 = vld [vmem:[#allocation2 + $0x170] sm:$0xff]
      %v5206 = vld [vmem:[#allocation2 + $0x178] sm:$0x3]
      %v5207 = vld [vmem:[#allocation2 + $0x180] sm:$0xff]
      %v5208 = vld [vmem:[#allocation2 + $0x188] sm:$0xff]
      %v5209 = vld [vmem:[#allocation2 + $0x190] sm:$0x3]
      %v5210 = vld [vmem:[#allocation2 + $0x198] sm:$0xff]
      %v5211 = vld [vmem:[#allocation2 + $0x1a0] sm:$0xff]
      %v5212 = vld [vmem:[#allocation2 + $0x1a8] sm:$0x3]
      %v5261 = vrot.slane %v5159, 1
      %v5262 = vrot.slane %v5160, 1
      %v5263 = vsel %vm2974, %v5261, %v5262
      %v5264 = vrot.slane %v5161, 1
      %v5265 = vsel %vm2974, %v5262, %v5264
      %v5266 = vrot.slane %v5162, 1
      %v5267 = vrot.slane %v5163, 1
      %v5268 = vsel %vm2974, %v5266, %v5267
      %v5269 = vrot.slane %v5164, 1
      %v5270 = vsel %vm2974, %v5267, %v5269
      %v5271 = vrot.slane %v5165, 1
      %v5272 = vrot.slane %v5166, 1
      %v5273 = vsel %vm2974, %v5271, %v5272
      %v5274 = vrot.slane %v5167, 1
      %v5275 = vsel %vm2974, %v5272, %v5274
      %v5276 = vrot.slane %v5168, 1
      %v5277 = vrot.slane %v5169, 1
      %v5278 = vsel %vm2974, %v5276, %v5277
      %v5279 = vrot.slane %v5170, 1
      %v5280 = vsel %vm2974, %v5277, %v5279
      %v5281 = vrot.slane %v5171, 1
      %v5282 = vrot.slane %v5172, 1
      %v5283 = vsel %vm2974, %v5281, %v5282
      %v5284 = vrot.slane %v5173, 1
      %v5285 = vsel %vm2974, %v5282, %v5284
      %v5286 = vrot.slane %v5174, 1
      %v5287 = vrot.slane %v5175, 1
      %v5288 = vsel %vm2974, %v5286, %v5287
      %v5289 = vrot.slane %v5176, 1
      %v5290 = vsel %vm2974, %v5287, %v5289
      %v5291 = vrot.slane %v5177, 1
      %v5292 = vrot.slane %v5178, 1
      %v5293 = vsel %vm2974, %v5291, %v5292
      %v5294 = vrot.slane %v5179, 1
      %v5295 = vsel %vm2974, %v5292, %v5294
      %v5296 = vrot.slane %v5180, 1
      %v5297 = vrot.slane %v5181, 1
      %v5298 = vsel %vm2974, %v5296, %v5297
      %v5299 = vrot.slane %v5182, 1
      %v5300 = vsel %vm2974, %v5297, %v5299
      %v5301 = vrot.slane %v5183, 1
      %v5302 = vrot.slane %v5184, 1
      %v5303 = vsel %vm2974, %v5301, %v5302
      %v5304 = vrot.slane %v5185, 1
      %v5305 = vsel %vm2974, %v5302, %v5304
      %v5306 = vrot.slane %v5186, 1
      %v5307 = vrot.slane %v5187, 1
      %v5308 = vsel %vm2974, %v5306, %v5307
      %v5309 = vrot.slane %v5188, 1
      %v5310 = vsel %vm2974, %v5307, %v5309
      %v5311 = vrot.slane %v5189, 1
      %v5312 = vrot.slane %v5190, 1
      %v5313 = vsel %vm2974, %v5311, %v5312
      %v5314 = vrot.slane %v5191, 1
      %v5315 = vsel %vm2974, %v5312, %v5314
      %v5316 = vrot.slane %v5192, 1
      %v5317 = vrot.slane %v5193, 1
      %v5318 = vsel %vm2974, %v5316, %v5317
      %v5319 = vrot.slane %v5194, 1
      %v5320 = vsel %vm2974, %v5317, %v5319
      %v5321 = vrot.slane %v5195, 1
      %v5322 = vrot.slane %v5196, 1
      %v5323 = vsel %vm2974, %v5321, %v5322
      %v5324 = vrot.slane %v5197, 1
      %v5325 = vsel %vm2974, %v5322, %v5324
      %v5326 = vrot.slane %v5198, 1
      %v5327 = vrot.slane %v5199, 1
      %v5328 = vsel %vm2974, %v5326, %v5327
      %v5329 = vrot.slane %v5200, 1
      %v5330 = vsel %vm2974, %v5327, %v5329
      %v5331 = vrot.slane %v5201, 1
      %v5332 = vrot.slane %v5202, 1
      %v5333 = vsel %vm2974, %v5331, %v5332
      %v5334 = vrot.slane %v5203, 1
      %v5335 = vsel %vm2974, %v5332, %v5334
      %v5336 = vrot.slane %v5204, 1
      %v5337 = vrot.slane %v5205, 1
      %v5338 = vsel %vm2974, %v5336, %v5337
      %v5339 = vrot.slane %v5206, 1
      %v5340 = vsel %vm2974, %v5337, %v5339
      %v5341 = vrot.slane %v5159, 2
      %v5342 = vrot.slane %v5160, 2
      %v5343 = vsel %vm3055, %v5341, %v5342
      %v5344 = vrot.slane %v5161, 2
      %v5345 = vsel %vm3055, %v5342, %v5344
      %v5346 = vrot.slane %v5162, 2
      %v5347 = vrot.slane %v5163, 2
      %v5348 = vsel %vm3055, %v5346, %v5347
      %v5349 = vrot.slane %v5164, 2
      %v5350 = vsel %vm3055, %v5347, %v5349
      %v5351 = vrot.slane %v5165, 2
      %v5352 = vrot.slane %v5166, 2
      %v5353 = vsel %vm3055, %v5351, %v5352
      %v5354 = vrot.slane %v5167, 2
      %v5355 = vsel %vm3055, %v5352, %v5354
      %v5356 = vrot.slane %v5168, 2
      %v5357 = vrot.slane %v5169, 2
      %v5358 = vsel %vm3055, %v5356, %v5357
      %v5359 = vrot.slane %v5170, 2
      %v5360 = vsel %vm3055, %v5357, %v5359
      %v5361 = vrot.slane %v5171, 2
      %v5362 = vrot.slane %v5172, 2
      %v5363 = vsel %vm3055, %v5361, %v5362
      %v5364 = vrot.slane %v5173, 2
      %v5365 = vsel %vm3055, %v5362, %v5364
      %v5366 = vrot.slane %v5174, 2
      %v5367 = vrot.slane %v5175, 2
      %v5368 = vsel %vm3055, %v5366, %v5367
      %v5369 = vrot.slane %v5176, 2
      %v5370 = vsel %vm3055, %v5367, %v5369
      %v5371 = vrot.slane %v5177, 2
      %v5372 = vrot.slane %v5178, 2
      %v5373 = vsel %vm3055, %v5371, %v5372
      %v5374 = vrot.slane %v5179, 2
      %v5375 = vsel %vm3055, %v5372, %v5374
      %v5376 = vrot.slane %v5180, 2
      %v5377 = vrot.slane %v5181, 2
      %v5378 = vsel %vm3055, %v5376, %v5377
      %v5379 = vrot.slane %v5182, 2
      %v5380 = vsel %vm3055, %v5377, %v5379
      %v5381 = vrot.slane %v5183, 2
      %v5382 = vrot.slane %v5184, 2
      %v5383 = vsel %vm3055, %v5381, %v5382
      %v5384 = vrot.slane %v5185, 2
      %v5385 = vsel %vm3055, %v5382, %v5384
      %v5386 = vrot.slane %v5186, 2
      %v5387 = vrot.slane %v5187, 2
      %v5388 = vsel %vm3055, %v5386, %v5387
      %v5389 = vrot.slane %v5188, 2
      %v5390 = vsel %vm3055, %v5387, %v5389
      %v5391 = vrot.slane %v5189, 2
      %v5392 = vrot.slane %v5190, 2
      %v5393 = vsel %vm3055, %v5391, %v5392
      %v5394 = vrot.slane %v5191, 2
      %v5395 = vsel %vm3055, %v5392, %v5394
      %v5396 = vrot.slane %v5192, 2
      %v5397 = vrot.slane %v5193, 2
      %v5398 = vsel %vm3055, %v5396, %v5397
      %v5399 = vrot.slane %v5194, 2
      %v5400 = vsel %vm3055, %v5397, %v5399
      %v5401 = vrot.slane %v5195, 2
      %v5402 = vrot.slane %v5196, 2
      %v5403 = vsel %vm3055, %v5401, %v5402
      %v5404 = vrot.slane %v5197, 2
      %v5405 = vsel %vm3055, %v5402, %v5404
      %v5406 = vrot.slane %v5198, 2
      %v5407 = vrot.slane %v5199, 2
      %v5408 = vsel %vm3055, %v5406, %v5407
      %v5409 = vrot.slane %v5200, 2
      %v5410 = vsel %vm3055, %v5407, %v5409
      %v5411 = vrot.slane %v5201, 2
      %v5412 = vrot.slane %v5202, 2
      %v5413 = vsel %vm3055, %v5411, %v5412
      %v5414 = vrot.slane %v5203, 2
      %v5415 = vsel %vm3055, %v5412, %v5414
      %v5416 = vrot.slane %v5204, 2
      %v5417 = vrot.slane %v5205, 2
      %v5418 = vsel %vm3055, %v5416, %v5417
      %v5419 = vrot.slane %v5206, 2
      %v5420 = vsel %vm3055, %v5417, %v5419
      %v5424 = vrot.slane %v5207, 1
      %v5425 = vrot.slane %v5208, 1
      %v5426 = vsel %vm2974, %v5424, %v5425
      %v5427 = vrot.slane %v5209, 1
      %v5428 = vsel %vm2974, %v5425, %v5427
      %v5429 = vrot.slane %v5207, 2
      %v5430 = vrot.slane %v5208, 2
      %v5431 = vsel %vm3055, %v5429, %v5430
      %v5432 = vrot.slane %v5209, 2
      %v5433 = vsel %vm3055, %v5430, %v5432
      %v5437 = vrot.slane %v5210, 1
      %v5438 = vrot.slane %v5211, 1
      %v5439 = vsel %vm2974, %v5437, %v5438
      %v5440 = vrot.slane %v5212, 1
      %v5441 = vsel %vm2974, %v5438, %v5440
      %v5442 = vrot.slane %v5210, 2
      %v5443 = vrot.slane %v5211, 2
      %v5444 = vsel %vm3055, %v5442, %v5443
      %v5445 = vrot.slane %v5212, 2
      %v5446 = vsel %vm3055, %v5443, %v5445
      %5447 = vrot.lane.b32.xlu0 %v5263, 16
      %v5448 = vpop.permute.xlu0 %5447
      %5449 = vrot.lane.b32.xlu0 %v5265, 16
      %v5450 = vpop.permute.xlu0 %5449
      %5451 = vrot.lane.b32.xlu0 %v5268, 16
      %v5452 = vpop.permute.xlu0 %5451
      %5453 = vrot.lane.b32.xlu0 %v5270, 16
      %v5454 = vpop.permute.xlu0 %5453
      %5455 = vrot.lane.b32.xlu0 %v5273, 16
      %v5456 = vpop.permute.xlu0 %5455
      %5457 = vrot.lane.b32.xlu0 %v5275, 16
      %v5458 = vpop.permute.xlu0 %5457
      %5459 = vrot.lane.b32.xlu0 %v5278, 16
      %v5460 = vpop.permute.xlu0 %5459
      %5461 = vrot.lane.b32.xlu0 %v5280, 16
      %v5462 = vpop.permute.xlu0 %5461
      %5463 = vrot.lane.b32.xlu0 %v5283, 16
      %v5464 = vpop.permute.xlu0 %5463
      %5465 = vrot.lane.b32.xlu0 %v5285, 16
      %v5466 = vpop.permute.xlu0 %5465
      %5467 = vrot.lane.b32.xlu0 %v5288, 16
      %v5468 = vpop.permute.xlu0 %5467
      %5469 = vrot.lane.b32.xlu0 %v5290, 16
      %v5470 = vpop.permute.xlu0 %5469
      %5471 = vrot.lane.b32.xlu0 %v5293, 16
      %v5472 = vpop.permute.xlu0 %5471
      %5473 = vrot.lane.b32.xlu0 %v5295, 16
      %v5474 = vpop.permute.xlu0 %5473
      %5475 = vrot.lane.b32.xlu0 %v5298, 16
      %v5476 = vpop.permute.xlu0 %5475
      %5477 = vrot.lane.b32.xlu0 %v5300, 16
      %v5478 = vpop.permute.xlu0 %5477
      %5479 = vrot.lane.b32.xlu0 %v5303, 16
      %v5480 = vpop.permute.xlu0 %5479
      %5481 = vrot.lane.b32.xlu0 %v5305, 16
      %v5482 = vpop.permute.xlu0 %5481
      %5483 = vrot.lane.b32.xlu0 %v5308, 16
      %v5484 = vpop.permute.xlu0 %5483
      %5485 = vrot.lane.b32.xlu0 %v5310, 16
      %v5486 = vpop.permute.xlu0 %5485
      %5487 = vrot.lane.b32.xlu0 %v5313, 16
      %v5488 = vpop.permute.xlu0 %5487
      %5489 = vrot.lane.b32.xlu0 %v5315, 16
      %v5490 = vpop.permute.xlu0 %5489
      %5491 = vrot.lane.b32.xlu0 %v5318, 16
      %v5492 = vpop.permute.xlu0 %5491
      %5493 = vrot.lane.b32.xlu0 %v5320, 16
      %v5494 = vpop.permute.xlu0 %5493
      %5495 = vrot.lane.b32.xlu0 %v5323, 16
      %v5496 = vpop.permute.xlu0 %5495
      %5497 = vrot.lane.b32.xlu0 %v5325, 16
      %v5498 = vpop.permute.xlu0 %5497
      %5499 = vrot.lane.b32.xlu0 %v5328, 16
      %v5500 = vpop.permute.xlu0 %5499
      %5501 = vrot.lane.b32.xlu0 %v5330, 16
      %v5502 = vpop.permute.xlu0 %5501
      %5503 = vrot.lane.b32.xlu0 %v5333, 16
      %v5504 = vpop.permute.xlu0 %5503
      %5505 = vrot.lane.b32.xlu0 %v5335, 16
      %v5506 = vpop.permute.xlu0 %5505
      %5507 = vrot.lane.b32.xlu0 %v5338, 16
      %v5508 = vpop.permute.xlu0 %5507
      %5509 = vrot.lane.b32.xlu0 %v5340, 16
      %v5510 = vpop.permute.xlu0 %5509
      %5543 = vrot.lane.b32.xlu0 %v5343, 32
      %v5544 = vpop.permute.xlu0 %5543
      %5545 = vrot.lane.b32.xlu0 %v5345, 32
      %v5546 = vpop.permute.xlu0 %5545
      %5547 = vrot.lane.b32.xlu0 %v5348, 32
      %v5548 = vpop.permute.xlu0 %5547
      %5549 = vrot.lane.b32.xlu0 %v5350, 32
      %v5550 = vpop.permute.xlu0 %5549
      %5551 = vrot.lane.b32.xlu0 %v5353, 32
      %v5552 = vpop.permute.xlu0 %5551
      %5553 = vrot.lane.b32.xlu0 %v5355, 32
      %v5554 = vpop.permute.xlu0 %5553
      %5555 = vrot.lane.b32.xlu0 %v5358, 32
      %v5556 = vpop.permute.xlu0 %5555
      %5557 = vrot.lane.b32.xlu0 %v5360, 32
      %v5558 = vpop.permute.xlu0 %5557
      %5559 = vrot.lane.b32.xlu0 %v5363, 32
      %v5560 = vpop.permute.xlu0 %5559
      %5561 = vrot.lane.b32.xlu0 %v5365, 32
      %v5562 = vpop.permute.xlu0 %5561
      %5563 = vrot.lane.b32.xlu0 %v5368, 32
      %v5564 = vpop.permute.xlu0 %5563
      %5565 = vrot.lane.b32.xlu0 %v5370, 32
      %v5566 = vpop.permute.xlu0 %5565
      %5567 = vrot.lane.b32.xlu0 %v5373, 32
      %v5568 = vpop.permute.xlu0 %5567
      %5569 = vrot.lane.b32.xlu0 %v5375, 32
      %v5570 = vpop.permute.xlu0 %5569
      %5571 = vrot.lane.b32.xlu0 %v5378, 32
      %v5572 = vpop.permute.xlu0 %5571
      %5573 = vrot.lane.b32.xlu0 %v5380, 32
      %v5574 = vpop.permute.xlu0 %5573
      %5575 = vrot.lane.b32.xlu0 %v5383, 32
      %v5576 = vpop.permute.xlu0 %5575
      %5577 = vrot.lane.b32.xlu0 %v5385, 32
      %v5578 = vpop.permute.xlu0 %5577
      %5579 = vrot.lane.b32.xlu0 %v5388, 32
      %v5580 = vpop.permute.xlu0 %5579
      %5581 = vrot.lane.b32.xlu0 %v5390, 32
      %v5582 = vpop.permute.xlu0 %5581
      %5583 = vrot.lane.b32.xlu0 %v5393, 32
      %v5584 = vpop.permute.xlu0 %5583
      %5585 = vrot.lane.b32.xlu0 %v5395, 32
      %v5586 = vpop.permute.xlu0 %5585
      %5587 = vrot.lane.b32.xlu0 %v5398, 32
      %v5588 = vpop.permute.xlu0 %5587
      %5589 = vrot.lane.b32.xlu0 %v5400, 32
      %v5590 = vpop.permute.xlu0 %5589
      %5591 = vrot.lane.b32.xlu0 %v5403, 32
      %v5592 = vpop.permute.xlu0 %5591
      %5593 = vrot.lane.b32.xlu0 %v5405, 32
      %v5594 = vpop.permute.xlu0 %5593
      %5595 = vrot.lane.b32.xlu0 %v5408, 32
      %v5596 = vpop.permute.xlu0 %5595
      %5597 = vrot.lane.b32.xlu0 %v5410, 32
      %v5598 = vpop.permute.xlu0 %5597
      %5599 = vrot.lane.b32.xlu0 %v5413, 32
      %v5600 = vpop.permute.xlu0 %5599
      %5601 = vrot.lane.b32.xlu0 %v5415, 32
      %v5602 = vpop.permute.xlu0 %5601
      %5603 = vrot.lane.b32.xlu0 %v5418, 32
      %v5604 = vpop.permute.xlu0 %5603
      %5605 = vrot.lane.b32.xlu0 %v5420, 32
      %v5606 = vpop.permute.xlu0 %5605
      %5639 = vrot.lane.b32.xlu0 %v5162, 48
      %v5640 = vpop.permute.xlu0 %5639
      %5641 = vrot.lane.b32.xlu0 %v5163, 48
      %v5642 = vpop.permute.xlu0 %5641
      %5643 = vrot.lane.b32.xlu0 %v5165, 48
      %v5644 = vpop.permute.xlu0 %5643
      %5645 = vrot.lane.b32.xlu0 %v5166, 48
      %v5646 = vpop.permute.xlu0 %5645
      %5647 = vrot.lane.b32.xlu0 %v5168, 48
      %v5648 = vpop.permute.xlu0 %5647
      %5649 = vrot.lane.b32.xlu0 %v5169, 48
      %v5650 = vpop.permute.xlu0 %5649
      %5651 = vrot.lane.b32.xlu0 %v5171, 48
      %v5652 = vpop.permute.xlu0 %5651
      %5653 = vrot.lane.b32.xlu0 %v5172, 48
      %v5654 = vpop.permute.xlu0 %5653
      %5655 = vrot.lane.b32.xlu0 %v5174, 48
      %v5656 = vpop.permute.xlu0 %5655
      %5657 = vrot.lane.b32.xlu0 %v5175, 48
      %v5658 = vpop.permute.xlu0 %5657
      %5659 = vrot.lane.b32.xlu0 %v5177, 48
      %v5660 = vpop.permute.xlu0 %5659
      %5661 = vrot.lane.b32.xlu0 %v5178, 48
      %v5662 = vpop.permute.xlu0 %5661
      %5663 = vrot.lane.b32.xlu0 %v5180, 48
      %v5664 = vpop.permute.xlu0 %5663
      %5665 = vrot.lane.b32.xlu0 %v5181, 48
      %v5666 = vpop.permute.xlu0 %5665
      %5667 = vrot.lane.b32.xlu0 %v5183, 48
      %v5668 = vpop.permute.xlu0 %5667
      %5669 = vrot.lane.b32.xlu0 %v5184, 48
      %v5670 = vpop.permute.xlu0 %5669
      %5671 = vrot.lane.b32.xlu0 %v5186, 48
      %v5672 = vpop.permute.xlu0 %5671
      %5673 = vrot.lane.b32.xlu0 %v5187, 48
      %v5674 = vpop.permute.xlu0 %5673
      %5675 = vrot.lane.b32.xlu0 %v5189, 48
      %v5676 = vpop.permute.xlu0 %5675
      %5677 = vrot.lane.b32.xlu0 %v5190, 48
      %v5678 = vpop.permute.xlu0 %5677
      %5679 = vrot.lane.b32.xlu0 %v5192, 48
      %v5680 = vpop.permute.xlu0 %5679
      %5681 = vrot.lane.b32.xlu0 %v5193, 48
      %v5682 = vpop.permute.xlu0 %5681
      %5683 = vrot.lane.b32.xlu0 %v5195, 48
      %v5684 = vpop.permute.xlu0 %5683
      %5685 = vrot.lane.b32.xlu0 %v5196, 48
      %v5686 = vpop.permute.xlu0 %5685
      %5687 = vrot.lane.b32.xlu0 %v5198, 48
      %v5688 = vpop.permute.xlu0 %5687
      %5689 = vrot.lane.b32.xlu0 %v5199, 48
      %v5690 = vpop.permute.xlu0 %5689
      %5691 = vrot.lane.b32.xlu0 %v5201, 48
      %v5692 = vpop.permute.xlu0 %5691
      %5693 = vrot.lane.b32.xlu0 %v5202, 48
      %v5694 = vpop.permute.xlu0 %5693
      %5695 = vrot.lane.b32.xlu0 %v5204, 48
      %v5696 = vpop.permute.xlu0 %5695
      %5697 = vrot.lane.b32.xlu0 %v5205, 48
      %v5698 = vpop.permute.xlu0 %5697
      %5699 = vrot.lane.b32.xlu0 %v5207, 48
      %v5700 = vpop.permute.xlu0 %5699
      %5701 = vrot.lane.b32.xlu0 %v5208, 48
      %v5702 = vpop.permute.xlu0 %5701
      %5735 = vrot.lane.b32.xlu0 %v5268, 64
      %v5736 = vpop.permute.xlu0 %5735
      %5737 = vrot.lane.b32.xlu0 %v5270, 64
      %v5738 = vpop.permute.xlu0 %5737
      %5739 = vrot.lane.b32.xlu0 %v5273, 64
      %v5740 = vpop.permute.xlu0 %5739
      %5741 = vrot.lane.b32.xlu0 %v5275, 64
      %v5742 = vpop.permute.xlu0 %5741
      %5743 = vrot.lane.b32.xlu0 %v5278, 64
      %v5744 = vpop.permute.xlu0 %5743
      %5745 = vrot.lane.b32.xlu0 %v5280, 64
      %v5746 = vpop.permute.xlu0 %5745
      %5747 = vrot.lane.b32.xlu0 %v5283, 64
      %v5748 = vpop.permute.xlu0 %5747
      %5749 = vrot.lane.b32.xlu0 %v5285, 64
      %v5750 = vpop.permute.xlu0 %5749
      %5751 = vrot.lane.b32.xlu0 %v5288, 64
      %v5752 = vpop.permute.xlu0 %5751
      %5753 = vrot.lane.b32.xlu0 %v5290, 64
      %v5754 = vpop.permute.xlu0 %5753
      %5755 = vrot.lane.b32.xlu0 %v5293, 64
      %v5756 = vpop.permute.xlu0 %5755
      %5757 = vrot.lane.b32.xlu0 %v5295, 64
      %v5758 = vpop.permute.xlu0 %5757
      %5759 = vrot.lane.b32.xlu0 %v5298, 64
      %v5760 = vpop.permute.xlu0 %5759
      %5761 = vrot.lane.b32.xlu0 %v5300, 64
      %v5762 = vpop.permute.xlu0 %5761
      %5763 = vrot.lane.b32.xlu0 %v5303, 64
      %v5764 = vpop.permute.xlu0 %5763
      %5765 = vrot.lane.b32.xlu0 %v5305, 64
      %v5766 = vpop.permute.xlu0 %5765
      %5767 = vrot.lane.b32.xlu0 %v5308, 64
      %v5768 = vpop.permute.xlu0 %5767
      %5769 = vrot.lane.b32.xlu0 %v5310, 64
      %v5770 = vpop.permute.xlu0 %5769
      %5771 = vrot.lane.b32.xlu0 %v5313, 64
      %v5772 = vpop.permute.xlu0 %5771
      %5773 = vrot.lane.b32.xlu0 %v5315, 64
      %v5774 = vpop.permute.xlu0 %5773
      %5775 = vrot.lane.b32.xlu0 %v5318, 64
      %v5776 = vpop.permute.xlu0 %5775
      %5777 = vrot.lane.b32.xlu0 %v5320, 64
      %v5778 = vpop.permute.xlu0 %5777
      %5779 = vrot.lane.b32.xlu0 %v5323, 64
      %v5780 = vpop.permute.xlu0 %5779
      %5781 = vrot.lane.b32.xlu0 %v5325, 64
      %v5782 = vpop.permute.xlu0 %5781
      %5783 = vrot.lane.b32.xlu0 %v5328, 64
      %v5784 = vpop.permute.xlu0 %5783
      %5785 = vrot.lane.b32.xlu0 %v5330, 64
      %v5786 = vpop.permute.xlu0 %5785
      %5787 = vrot.lane.b32.xlu0 %v5333, 64
      %v5788 = vpop.permute.xlu0 %5787
      %5789 = vrot.lane.b32.xlu0 %v5335, 64
      %v5790 = vpop.permute.xlu0 %5789
      %5791 = vrot.lane.b32.xlu0 %v5338, 64
      %v5792 = vpop.permute.xlu0 %5791
      %5793 = vrot.lane.b32.xlu0 %v5340, 64
      %v5794 = vpop.permute.xlu0 %5793
      %5795 = vrot.lane.b32.xlu0 %v5426, 64
      %v5796 = vpop.permute.xlu0 %5795
      %5797 = vrot.lane.b32.xlu0 %v5428, 64
      %v5798 = vpop.permute.xlu0 %5797
      %5831 = vrot.lane.b32.xlu0 %v5348, 80
      %v5832 = vpop.permute.xlu0 %5831
      %5833 = vrot.lane.b32.xlu0 %v5350, 80
      %v5834 = vpop.permute.xlu0 %5833
      %5835 = vrot.lane.b32.xlu0 %v5353, 80
      %v5836 = vpop.permute.xlu0 %5835
      %5837 = vrot.lane.b32.xlu0 %v5355, 80
      %v5838 = vpop.permute.xlu0 %5837
      %5839 = vrot.lane.b32.xlu0 %v5358, 80
      %v5840 = vpop.permute.xlu0 %5839
      %5841 = vrot.lane.b32.xlu0 %v5360, 80
      %v5842 = vpop.permute.xlu0 %5841
      %5843 = vrot.lane.b32.xlu0 %v5363, 80
      %v5844 = vpop.permute.xlu0 %5843
      %5845 = vrot.lane.b32.xlu0 %v5365, 80
      %v5846 = vpop.permute.xlu0 %5845
      %5847 = vrot.lane.b32.xlu0 %v5368, 80
      %v5848 = vpop.permute.xlu0 %5847
      %5849 = vrot.lane.b32.xlu0 %v5370, 80
      %v5850 = vpop.permute.xlu0 %5849
      %5851 = vrot.lane.b32.xlu0 %v5373, 80
      %v5852 = vpop.permute.xlu0 %5851
      %5853 = vrot.lane.b32.xlu0 %v5375, 80
      %v5854 = vpop.permute.xlu0 %5853
      %5855 = vrot.lane.b32.xlu0 %v5378, 80
      %v5856 = vpop.permute.xlu0 %5855
      %5857 = vrot.lane.b32.xlu0 %v5380, 80
      %v5858 = vpop.permute.xlu0 %5857
      %5859 = vrot.lane.b32.xlu0 %v5383, 80
      %v5860 = vpop.permute.xlu0 %5859
      %5861 = vrot.lane.b32.xlu0 %v5385, 80
      %v5862 = vpop.permute.xlu0 %5861
      %5863 = vrot.lane.b32.xlu0 %v5388, 80
      %v5864 = vpop.permute.xlu0 %5863
      %5865 = vrot.lane.b32.xlu0 %v5390, 80
      %v5866 = vpop.permute.xlu0 %5865
      %5867 = vrot.lane.b32.xlu0 %v5393, 80
      %v5868 = vpop.permute.xlu0 %5867
      %5869 = vrot.lane.b32.xlu0 %v5395, 80
      %v5870 = vpop.permute.xlu0 %5869
      %5871 = vrot.lane.b32.xlu0 %v5398, 80
      %v5872 = vpop.permute.xlu0 %5871
      %5873 = vrot.lane.b32.xlu0 %v5400, 80
      %v5874 = vpop.permute.xlu0 %5873
      %5875 = vrot.lane.b32.xlu0 %v5403, 80
      %v5876 = vpop.permute.xlu0 %5875
      %5877 = vrot.lane.b32.xlu0 %v5405, 80
      %v5878 = vpop.permute.xlu0 %5877
      %5879 = vrot.lane.b32.xlu0 %v5408, 80
      %v5880 = vpop.permute.xlu0 %5879
      %5881 = vrot.lane.b32.xlu0 %v5410, 80
      %v5882 = vpop.permute.xlu0 %5881
      %5883 = vrot.lane.b32.xlu0 %v5413, 80
      %v5884 = vpop.permute.xlu0 %5883
      %5885 = vrot.lane.b32.xlu0 %v5415, 80
      %v5886 = vpop.permute.xlu0 %5885
      %5887 = vrot.lane.b32.xlu0 %v5418, 80
      %v5888 = vpop.permute.xlu0 %5887
      %5889 = vrot.lane.b32.xlu0 %v5420, 80
      %v5890 = vpop.permute.xlu0 %5889
      %5891 = vrot.lane.b32.xlu0 %v5431, 80
      %v5892 = vpop.permute.xlu0 %5891
      %5893 = vrot.lane.b32.xlu0 %v5433, 80
      %v5894 = vpop.permute.xlu0 %5893
      %5927 = vrot.lane.b32.xlu0 %v5165, 96
      %v5928 = vpop.permute.xlu0 %5927
      %5929 = vrot.lane.b32.xlu0 %v5166, 96
      %v5930 = vpop.permute.xlu0 %5929
      %5931 = vrot.lane.b32.xlu0 %v5168, 96
      %v5932 = vpop.permute.xlu0 %5931
      %5933 = vrot.lane.b32.xlu0 %v5169, 96
      %v5934 = vpop.permute.xlu0 %5933
      %5935 = vrot.lane.b32.xlu0 %v5171, 96
      %v5936 = vpop.permute.xlu0 %5935
      %5937 = vrot.lane.b32.xlu0 %v5172, 96
      %v5938 = vpop.permute.xlu0 %5937
      %5939 = vrot.lane.b32.xlu0 %v5174, 96
      %v5940 = vpop.permute.xlu0 %5939
      %5941 = vrot.lane.b32.xlu0 %v5175, 96
      %v5942 = vpop.permute.xlu0 %5941
      %5943 = vrot.lane.b32.xlu0 %v5177, 96
      %v5944 = vpop.permute.xlu0 %5943
      %5945 = vrot.lane.b32.xlu0 %v5178, 96
      %v5946 = vpop.permute.xlu0 %5945
      %5947 = vrot.lane.b32.xlu0 %v5180, 96
      %v5948 = vpop.permute.xlu0 %5947
      %5949 = vrot.lane.b32.xlu0 %v5181, 96
      %v5950 = vpop.permute.xlu0 %5949
      %5951 = vrot.lane.b32.xlu0 %v5183, 96
      %v5952 = vpop.permute.xlu0 %5951
      %5953 = vrot.lane.b32.xlu0 %v5184, 96
      %v5954 = vpop.permute.xlu0 %5953
      %5955 = vrot.lane.b32.xlu0 %v5186, 96
      %v5956 = vpop.permute.xlu0 %5955
      %5957 = vrot.lane.b32.xlu0 %v5187, 96
      %v5958 = vpop.permute.xlu0 %5957
      %5959 = vrot.lane.b32.xlu0 %v5189, 96
      %v5960 = vpop.permute.xlu0 %5959
      %5961 = vrot.lane.b32.xlu0 %v5190, 96
      %v5962 = vpop.permute.xlu0 %5961
      %5963 = vrot.lane.b32.xlu0 %v5192, 96
      %v5964 = vpop.permute.xlu0 %5963
      %5965 = vrot.lane.b32.xlu0 %v5193, 96
      %v5966 = vpop.permute.xlu0 %5965
      %5967 = vrot.lane.b32.xlu0 %v5195, 96
      %v5968 = vpop.permute.xlu0 %5967
      %5969 = vrot.lane.b32.xlu0 %v5196, 96
      %v5970 = vpop.permute.xlu0 %5969
      %5971 = vrot.lane.b32.xlu0 %v5198, 96
      %v5972 = vpop.permute.xlu0 %5971
      %5973 = vrot.lane.b32.xlu0 %v5199, 96
      %v5974 = vpop.permute.xlu0 %5973
      %5975 = vrot.lane.b32.xlu0 %v5201, 96
      %v5976 = vpop.permute.xlu0 %5975
      %5977 = vrot.lane.b32.xlu0 %v5202, 96
      %v5978 = vpop.permute.xlu0 %5977
      %5979 = vrot.lane.b32.xlu0 %v5204, 96
      %v5980 = vpop.permute.xlu0 %5979
      %5981 = vrot.lane.b32.xlu0 %v5205, 96
      %v5982 = vpop.permute.xlu0 %5981
      %5983 = vrot.lane.b32.xlu0 %v5207, 96
      %v5984 = vpop.permute.xlu0 %5983
      %5985 = vrot.lane.b32.xlu0 %v5208, 96
      %v5986 = vpop.permute.xlu0 %5985
      %5987 = vrot.lane.b32.xlu0 %v5210, 96
      %v5988 = vpop.permute.xlu0 %5987
      %5989 = vrot.lane.b32.xlu0 %v5211, 96
      %v5990 = vpop.permute.xlu0 %5989
      %6023 = vrot.lane.b32.xlu0 %v5273, 112
      %v6024 = vpop.permute.xlu0 %6023
      %6025 = vrot.lane.b32.xlu0 %v5275, 112
      %v6026 = vpop.permute.xlu0 %6025
      %6027 = vrot.lane.b32.xlu0 %v5278, 112
      %v6028 = vpop.permute.xlu0 %6027
      %6029 = vrot.lane.b32.xlu0 %v5280, 112
      %v6030 = vpop.permute.xlu0 %6029
      %6031 = vrot.lane.b32.xlu0 %v5283, 112
      %v6032 = vpop.permute.xlu0 %6031
      %6033 = vrot.lane.b32.xlu0 %v5285, 112
      %v6034 = vpop.permute.xlu0 %6033
      %6035 = vrot.lane.b32.xlu0 %v5288, 112
      %v6036 = vpop.permute.xlu0 %6035
      %6037 = vrot.lane.b32.xlu0 %v5290, 112
      %v6038 = vpop.permute.xlu0 %6037
      %6039 = vrot.lane.b32.xlu0 %v5293, 112
      %v6040 = vpop.permute.xlu0 %6039
      %6041 = vrot.lane.b32.xlu0 %v5295, 112
      %v6042 = vpop.permute.xlu0 %6041
      %6043 = vrot.lane.b32.xlu0 %v5298, 112
      %v6044 = vpop.permute.xlu0 %6043
      %6045 = vrot.lane.b32.xlu0 %v5300, 112
      %v6046 = vpop.permute.xlu0 %6045
      %6047 = vrot.lane.b32.xlu0 %v5303, 112
      %v6048 = vpop.permute.xlu0 %6047
      %6049 = vrot.lane.b32.xlu0 %v5305, 112
      %v6050 = vpop.permute.xlu0 %6049
      %6051 = vrot.lane.b32.xlu0 %v5308, 112
      %v6052 = vpop.permute.xlu0 %6051
      %6053 = vrot.lane.b32.xlu0 %v5310, 112
      %v6054 = vpop.permute.xlu0 %6053
      %6055 = vrot.lane.b32.xlu0 %v5313, 112
      %v6056 = vpop.permute.xlu0 %6055
      %6057 = vrot.lane.b32.xlu0 %v5315, 112
      %v6058 = vpop.permute.xlu0 %6057
      %6059 = vrot.lane.b32.xlu0 %v5318, 112
      %v6060 = vpop.permute.xlu0 %6059
      %6061 = vrot.lane.b32.xlu0 %v5320, 112
      %v6062 = vpop.permute.xlu0 %6061
      %6063 = vrot.lane.b32.xlu0 %v5323, 112
      %v6064 = vpop.permute.xlu0 %6063
      %6065 = vrot.lane.b32.xlu0 %v5325, 112
      %v6066 = vpop.permute.xlu0 %6065
      %6067 = vrot.lane.b32.xlu0 %v5328, 112
      %v6068 = vpop.permute.xlu0 %6067
      %6069 = vrot.lane.b32.xlu0 %v5330, 112
      %v6070 = vpop.permute.xlu0 %6069
      %6071 = vrot.lane.b32.xlu0 %v5333, 112
      %v6072 = vpop.permute.xlu0 %6071
      %6073 = vrot.lane.b32.xlu0 %v5335, 112
      %v6074 = vpop.permute.xlu0 %6073
      %6075 = vrot.lane.b32.xlu0 %v5338, 112
      %v6076 = vpop.permute.xlu0 %6075
      %6077 = vrot.lane.b32.xlu0 %v5340, 112
      %v6078 = vpop.permute.xlu0 %6077
      %6079 = vrot.lane.b32.xlu0 %v5426, 112
      %v6080 = vpop.permute.xlu0 %6079
      %6081 = vrot.lane.b32.xlu0 %v5428, 112
      %v6082 = vpop.permute.xlu0 %6081
      %6083 = vrot.lane.b32.xlu0 %v5439, 112
      %v6084 = vpop.permute.xlu0 %6083
      %6085 = vrot.lane.b32.xlu0 %v5441, 112
      %v6086 = vpop.permute.xlu0 %6085
      %v6119 = vsel %vm613, %v5159, %v5448
      %v6120 = vsel %vm613, %v5160, %v5450
      %v6121 = vsel %vm613, %v5162, %v5452
      %v6122 = vsel %vm613, %v5163, %v5454
      %v6123 = vsel %vm613, %v5165, %v5456
      %v6124 = vsel %vm613, %v5166, %v5458
      %v6125 = vsel %vm613, %v5168, %v5460
      %v6126 = vsel %vm613, %v5169, %v5462
      %v6127 = vsel %vm613, %v5171, %v5464
      %v6128 = vsel %vm613, %v5172, %v5466
      %v6129 = vsel %vm613, %v5174, %v5468
      %v6130 = vsel %vm613, %v5175, %v5470
      %v6131 = vsel %vm613, %v5177, %v5472
      %v6132 = vsel %vm613, %v5178, %v5474
      %v6133 = vsel %vm613, %v5180, %v5476
      %v6134 = vsel %vm613, %v5181, %v5478
      %v6135 = vsel %vm613, %v5183, %v5480
      %v6136 = vsel %vm613, %v5184, %v5482
      %v6137 = vsel %vm613, %v5186, %v5484
      %v6138 = vsel %vm613, %v5187, %v5486
      %v6139 = vsel %vm613, %v5189, %v5488
      %v6140 = vsel %vm613, %v5190, %v5490
      %v6141 = vsel %vm613, %v5192, %v5492
      %v6142 = vsel %vm613, %v5193, %v5494
      %v6143 = vsel %vm613, %v5195, %v5496
      %v6144 = vsel %vm613, %v5196, %v5498
      %v6145 = vsel %vm613, %v5198, %v5500
      %v6146 = vsel %vm613, %v5199, %v5502
      %v6147 = vsel %vm613, %v5201, %v5504
      %v6148 = vsel %vm613, %v5202, %v5506
      %v6149 = vsel %vm613, %v5204, %v5508
      %v6150 = vsel %vm613, %v5205, %v5510
      %v6151 = vsel %vm3866, %v6119, %v5544
      %v6152 = vsel %vm3866, %v6120, %v5546
      %v6153 = vsel %vm3866, %v6121, %v5548
      %v6154 = vsel %vm3866, %v6122, %v5550
      %v6155 = vsel %vm3866, %v6123, %v5552
      %v6156 = vsel %vm3866, %v6124, %v5554
      %v6157 = vsel %vm3866, %v6125, %v5556
      %v6158 = vsel %vm3866, %v6126, %v5558
      %v6159 = vsel %vm3866, %v6127, %v5560
      %v6160 = vsel %vm3866, %v6128, %v5562
      %v6161 = vsel %vm3866, %v6129, %v5564
      %v6162 = vsel %vm3866, %v6130, %v5566
      %v6163 = vsel %vm3866, %v6131, %v5568
      %v6164 = vsel %vm3866, %v6132, %v5570
      %v6165 = vsel %vm3866, %v6133, %v5572
      %v6166 = vsel %vm3866, %v6134, %v5574
      %v6167 = vsel %vm3866, %v6135, %v5576
      %v6168 = vsel %vm3866, %v6136, %v5578
      %v6169 = vsel %vm3866, %v6137, %v5580
      %v6170 = vsel %vm3866, %v6138, %v5582
      %v6171 = vsel %vm3866, %v6139, %v5584
      %v6172 = vsel %vm3866, %v6140, %v5586
      %v6173 = vsel %vm3866, %v6141, %v5588
      %v6174 = vsel %vm3866, %v6142, %v5590
      %v6175 = vsel %vm3866, %v6143, %v5592
      %v6176 = vsel %vm3866, %v6144, %v5594
      %v6177 = vsel %vm3866, %v6145, %v5596
      %v6178 = vsel %vm3866, %v6146, %v5598
      %v6179 = vsel %vm3866, %v6147, %v5600
      %v6180 = vsel %vm3866, %v6148, %v5602
      %v6181 = vsel %vm3866, %v6149, %v5604
      %v6182 = vsel %vm3866, %v6150, %v5606
      %v6183 = vsel %vm3899, %v6151, %v5640
      %v6184 = vsel %vm3899, %v6152, %v5642
      %v6185 = vsel %vm3899, %v6153, %v5644
      %v6186 = vsel %vm3899, %v6154, %v5646
      %v6187 = vsel %vm3899, %v6155, %v5648
      %v6188 = vsel %vm3899, %v6156, %v5650
      %v6189 = vsel %vm3899, %v6157, %v5652
      %v6190 = vsel %vm3899, %v6158, %v5654
      %v6191 = vsel %vm3899, %v6159, %v5656
      %v6192 = vsel %vm3899, %v6160, %v5658
      %v6193 = vsel %vm3899, %v6161, %v5660
      %v6194 = vsel %vm3899, %v6162, %v5662
      %v6195 = vsel %vm3899, %v6163, %v5664
      %v6196 = vsel %vm3899, %v6164, %v5666
      %v6197 = vsel %vm3899, %v6165, %v5668
      %v6198 = vsel %vm3899, %v6166, %v5670
      %v6199 = vsel %vm3899, %v6167, %v5672
      %v6200 = vsel %vm3899, %v6168, %v5674
      %v6201 = vsel %vm3899, %v6169, %v5676
      %v6202 = vsel %vm3899, %v6170, %v5678
      %v6203 = vsel %vm3899, %v6171, %v5680
      %v6204 = vsel %vm3899, %v6172, %v5682
      %v6205 = vsel %vm3899, %v6173, %v5684
      %v6206 = vsel %vm3899, %v6174, %v5686
      %v6207 = vsel %vm3899, %v6175, %v5688
      %v6208 = vsel %vm3899, %v6176, %v5690
      %v6209 = vsel %vm3899, %v6177, %v5692
      %v6210 = vsel %vm3899, %v6178, %v5694
      %v6211 = vsel %vm3899, %v6179, %v5696
      %v6212 = vsel %vm3899, %v6180, %v5698
      %v6213 = vsel %vm3899, %v6181, %v5700
      %v6214 = vsel %vm3899, %v6182, %v5702
      %v6215 = vsel %vm3932, %v6183, %v5736
      %v6216 = vsel %vm3932, %v6184, %v5738
      %v6217 = vsel %vm3932, %v6185, %v5740
      %v6218 = vsel %vm3932, %v6186, %v5742
      %v6219 = vsel %vm3932, %v6187, %v5744
      %v6220 = vsel %vm3932, %v6188, %v5746
      %v6221 = vsel %vm3932, %v6189, %v5748
      %v6222 = vsel %vm3932, %v6190, %v5750
      %v6223 = vsel %vm3932, %v6191, %v5752
      %v6224 = vsel %vm3932, %v6192, %v5754
      %v6225 = vsel %vm3932, %v6193, %v5756
      %v6226 = vsel %vm3932, %v6194, %v5758
      %v6227 = vsel %vm3932, %v6195, %v5760
      %v6228 = vsel %vm3932, %v6196, %v5762
      %v6229 = vsel %vm3932, %v6197, %v5764
      %v6230 = vsel %vm3932, %v6198, %v5766
      %v6231 = vsel %vm3932, %v6199, %v5768
      %v6232 = vsel %vm3932, %v6200, %v5770
      %v6233 = vsel %vm3932, %v6201, %v5772
      %v6234 = vsel %vm3932, %v6202, %v5774
      %v6235 = vsel %vm3932, %v6203, %v5776
      %v6236 = vsel %vm3932, %v6204, %v5778
      %v6237 = vsel %vm3932, %v6205, %v5780
      %v6238 = vsel %vm3932, %v6206, %v5782
      %v6239 = vsel %vm3932, %v6207, %v5784
      %v6240 = vsel %vm3932, %v6208, %v5786
      %v6241 = vsel %vm3932, %v6209, %v5788
      %v6242 = vsel %vm3932, %v6210, %v5790
      %v6243 = vsel %vm3932, %v6211, %v5792
      %v6244 = vsel %vm3932, %v6212, %v5794
      %v6245 = vsel %vm3932, %v6213, %v5796
      %v6246 = vsel %vm3932, %v6214, %v5798
      %v6247 = vsel %vm3965, %v6215, %v5832
      %v6248 = vsel %vm3965, %v6216, %v5834
      %v6249 = vsel %vm3965, %v6217, %v5836
      %v6250 = vsel %vm3965, %v6218, %v5838
      %v6251 = vsel %vm3965, %v6219, %v5840
      %v6252 = vsel %vm3965, %v6220, %v5842
      %v6253 = vsel %vm3965, %v6221, %v5844
      %v6254 = vsel %vm3965, %v6222, %v5846
      %v6255 = vsel %vm3965, %v6223, %v5848
      %v6256 = vsel %vm3965, %v6224, %v5850
      %v6257 = vsel %vm3965, %v6225, %v5852
      %v6258 = vsel %vm3965, %v6226, %v5854
      %v6259 = vsel %vm3965, %v6227, %v5856
      %v6260 = vsel %vm3965, %v6228, %v5858
      %v6261 = vsel %vm3965, %v6229, %v5860
      %v6262 = vsel %vm3965, %v6230, %v5862
      %v6263 = vsel %vm3965, %v6231, %v5864
      %v6264 = vsel %vm3965, %v6232, %v5866
      %v6265 = vsel %vm3965, %v6233, %v5868
      %v6266 = vsel %vm3965, %v6234, %v5870
      %v6267 = vsel %vm3965, %v6235, %v5872
      %v6268 = vsel %vm3965, %v6236, %v5874
      %v6269 = vsel %vm3965, %v6237, %v5876
      %v6270 = vsel %vm3965, %v6238, %v5878
      %v6271 = vsel %vm3965, %v6239, %v5880
      %v6272 = vsel %vm3965, %v6240, %v5882
      %v6273 = vsel %vm3965, %v6241, %v5884
      %v6274 = vsel %vm3965, %v6242, %v5886
      %v6275 = vsel %vm3965, %v6243, %v5888
      %v6276 = vsel %vm3965, %v6244, %v5890
      %v6277 = vsel %vm3965, %v6245, %v5892
      %v6278 = vsel %vm3965, %v6246, %v5894
      %v6279 = vsel %vm3998, %v6247, %v5928
      %v6280 = vsel %vm3998, %v6248, %v5930
      %v6281 = vsel %vm3998, %v6249, %v5932
      %v6282 = vsel %vm3998, %v6250, %v5934
      %v6283 = vsel %vm3998, %v6251, %v5936
      %v6284 = vsel %vm3998, %v6252, %v5938
      %v6285 = vsel %vm3998, %v6253, %v5940
      %v6286 = vsel %vm3998, %v6254, %v5942
      %v6287 = vsel %vm3998, %v6255, %v5944
      %v6288 = vsel %vm3998, %v6256, %v5946
      %v6289 = vsel %vm3998, %v6257, %v5948
      %v6290 = vsel %vm3998, %v6258, %v5950
      %v6291 = vsel %vm3998, %v6259, %v5952
      %v6292 = vsel %vm3998, %v6260, %v5954
      %v6293 = vsel %vm3998, %v6261, %v5956
      %v6294 = vsel %vm3998, %v6262, %v5958
      %v6295 = vsel %vm3998, %v6263, %v5960
      %v6296 = vsel %vm3998, %v6264, %v5962
      %v6297 = vsel %vm3998, %v6265, %v5964
      %v6298 = vsel %vm3998, %v6266, %v5966
      %v6299 = vsel %vm3998, %v6267, %v5968
      %v6300 = vsel %vm3998, %v6268, %v5970
      %v6301 = vsel %vm3998, %v6269, %v5972
      %v6302 = vsel %vm3998, %v6270, %v5974
      %v6303 = vsel %vm3998, %v6271, %v5976
      %v6304 = vsel %vm3998, %v6272, %v5978
      %v6305 = vsel %vm3998, %v6273, %v5980
      %v6306 = vsel %vm3998, %v6274, %v5982
      %v6307 = vsel %vm3998, %v6275, %v5984
      %v6308 = vsel %vm3998, %v6276, %v5986
      %v6309 = vsel %vm3998, %v6277, %v5988
      %v6310 = vsel %vm3998, %v6278, %v5990
      %v6311 = vsel %vm4031, %v6279, %v6024
      %v6312 = vsel %vm4031, %v6280, %v6026
      %v6313 = vsel %vm4031, %v6281, %v6028
      %v6314 = vsel %vm4031, %v6282, %v6030
      %v6315 = vsel %vm4031, %v6283, %v6032
      %v6316 = vsel %vm4031, %v6284, %v6034
      %v6317 = vsel %vm4031, %v6285, %v6036
      %v6318 = vsel %vm4031, %v6286, %v6038
      %v6319 = vsel %vm4031, %v6287, %v6040
      %v6320 = vsel %vm4031, %v6288, %v6042
      %v6321 = vsel %vm4031, %v6289, %v6044
      %v6322 = vsel %vm4031, %v6290, %v6046
      %v6323 = vsel %vm4031, %v6291, %v6048
      %v6324 = vsel %vm4031, %v6292, %v6050
      %v6325 = vsel %vm4031, %v6293, %v6052
      %v6326 = vsel %vm4031, %v6294, %v6054
      %v6327 = vsel %vm4031, %v6295, %v6056
      %v6328 = vsel %vm4031, %v6296, %v6058
      %v6329 = vsel %vm4031, %v6297, %v6060
      %v6330 = vsel %vm4031, %v6298, %v6062
      %v6331 = vsel %vm4031, %v6299, %v6064
      %v6332 = vsel %vm4031, %v6300, %v6066
      %v6333 = vsel %vm4031, %v6301, %v6068
      %v6334 = vsel %vm4031, %v6302, %v6070
      %v6335 = vsel %vm4031, %v6303, %v6072
      %v6336 = vsel %vm4031, %v6304, %v6074
      %v6337 = vsel %vm4031, %v6305, %v6076
      %v6338 = vsel %vm4031, %v6306, %v6078
      %v6339 = vsel %vm4031, %v6307, %v6080
      %v6340 = vsel %vm4031, %v6308, %v6082
      %v6341 = vsel %vm4031, %v6309, %v6084
      %v6342 = vsel %vm4031, %v6310, %v6086
      %v6343 = vld [vmem:[%s13] sm:$0xff]
      %v6344 = vld [vmem:[%s13 + $0x8] sm:$0xff]
      %v6345 = vld [vmem:[%s13 + $0x10] sm:$0xff]
      %v6346 = vld [vmem:[%s13 + $0x18] sm:$0xff]
      %v6347 = vld [vmem:[%s13 + $0x20] sm:$0xff]
      %v6348 = vld [vmem:[%s13 + $0x28] sm:$0xff]
      %v6349 = vld [vmem:[%s13 + $0x30] sm:$0xff]
      %v6350 = vld [vmem:[%s13 + $0x38] sm:$0xff]
      %v6351 = vld [vmem:[%s13 + $0x40] sm:$0xff]
      %v6352 = vld [vmem:[%s13 + $0x48] sm:$0xff]
      %v6353 = vld [vmem:[%s13 + $0x50] sm:$0xff]
      %v6354 = vld [vmem:[%s13 + $0x58] sm:$0xff]
      %v6355 = vld [vmem:[%s13 + $0x60] sm:$0xff]
      %v6356 = vld [vmem:[%s13 + $0x68] sm:$0xff]
      %v6357 = vld [vmem:[%s13 + $0x70] sm:$0xff]
      %v6358 = vld [vmem:[%s13 + $0x78] sm:$0xff]
      %v6359 = vld [vmem:[%s13 + $0x80] sm:$0xff]
      %v6360 = vld [vmem:[%s13 + $0x88] sm:$0xff]
      %v6361 = vsel %vm613, %v5353, 0
      %v6363 = vsel %vm613, %v5355, 0
      %v6365 = vsel %vm613, %v5358, 0
      %v6367 = vsel %vm613, %v5360, 0
      %v6369 = vsel %vm613, %v5363, 0
      %v6371 = vsel %vm613, %v5365, 0
      %v6373 = vsel %vm613, %v5368, 0
      %v6375 = vsel %vm613, %v5370, 0
      %v6377 = vsel %vm613, %v5373, 0
      %v6379 = vsel %vm613, %v5375, 0
      %v6381 = vsel %vm613, %v5378, 0
      %v6383 = vsel %vm613, %v5380, 0
      %v6385 = vsel %vm613, %v5383, 0
      %v6387 = vsel %vm613, %v5385, 0
      %v6389 = vsel %vm613, %v5388, 0
      %v6391 = vsel %vm613, %v5390, 0
      %v6393 = vsel %vm613, %v5393, 0
      %v6395 = vsel %vm613, %v5395, 0
      %v6397 = vsel %vm613, %v5398, 0
      %v6399 = vsel %vm613, %v5400, 0
      %v6401 = vsel %vm613, %v5403, 0
      %v6403 = vsel %vm613, %v5405, 0
      %v6405 = vsel %vm613, %v5408, 0
      %v6407 = vsel %vm613, %v5410, 0
      %v6409 = vsel %vm613, %v5413, 0
      %v6411 = vsel %vm613, %v5415, 0
      %v6413 = vsel %vm613, %v5418, 0
      %v6415 = vsel %vm613, %v5420, 0
      %v6417 = vsel %vm613, %v5431, 0
      %v6419 = vsel %vm613, %v5433, 0
      %v6421 = vsel %vm613, %v5444, 0
      %v6423 = vsel %vm613, %v5446, 0
      %6425 = vmatprep.subr.mxu0 0.0
      %6426 = vmatpush1.msra.mxu0 %v6343
      %6427 = vmatprep.subr.mxu0 0.0
      %6428 = vmatpush1.msra.mxu0 %v6344
      %6429 = vmatprep.subr.mxu0 0.0
      %6430 = vmatpush1.msra.mxu0 %v6345
      %6431 = vmatprep.subr.mxu0 0.0
      %6432 = vmatpush1.msra.mxu0 %v6346
      %6433 = vmatprep.subr.mxu0 0.0
      %6434 = vmatpush1.msra.mxu0 %v6347
      %6435 = vmatprep.subr.mxu0 0.0
      %6436 = vmatpush1.msra.mxu0 %v6348
      %6437 = vmatprep.subr.mxu0 0.0
      %6438 = vmatpush1.msra.mxu0 %v6349
      %6439 = vmatprep.subr.mxu0 0.0
      %6440 = vmatpush1.msra.mxu0 %v6350
      %6441 = vmatprep.subr.mxu0 0.0
      %6442 = vmatpush1.msra.mxu0 %v6351
      %6443 = vmatprep.subr.mxu0 0.0
      %6444 = vmatpush1.msra.mxu0 %v6352
      %6445 = vmatprep.subr.mxu0 0.0
      %6446 = vmatpush1.msra.mxu0 %v6353
      %6447 = vmatprep.subr.mxu0 0.0
      %6448 = vmatpush1.msra.mxu0 %v6354
      %6449 = vmatprep.subr.mxu0 0.0
      %6450 = vmatpush1.msra.mxu0 %v6355
      %6451 = vmatprep.subr.mxu0 0.0
      %6452 = vmatpush1.msra.mxu0 %v6356
      %6453 = vmatprep.subr.mxu0 0.0
      %6454 = vmatpush1.msra.mxu0 %v6357
      %6455 = vmatprep.subr.mxu0 0.0
      %6456 = vmatpush1.msra.mxu0 %v6358
      %6457 = vmatprep.subr.mxu0 0.0
      %6458 = vmatpush1.msra.mxu0 %v6359
      %6459 = vmatprep.subr.mxu0 0.0
      %6460 = vmatpush1.msra.mxu0 %v6360
      %6461 = vmatprep.subr.mxu0 0.0
      %6462 = vmatpush1.msra.mxu0 0.0
      %6463 = vmatprep.subr.mxu0 0.0
      %6464 = vmatpush1.msra.mxu0 0.0
      %6465 = vmatprep.subr.mxu0 0.0
      %6466 = vmatpush1.msra.mxu0 0.0
      %6467 = vmatprep.subr.mxu0 0.0
      %6468 = vmatpush1.msra.mxu0 0.0
      %6469 = vmatprep.subr.mxu0 0.0
      %6470 = vmatpush1.msra.mxu0 0.0
      %6471 = vmatprep.subr.mxu0 0.0
      %6472 = vmatpush1.msra.mxu0 0.0
      %6473 = vmatprep.subr.mxu0 0.0
      %6474 = vmatpush1.msra.mxu0 0.0
      %6475 = vmatprep.subr.mxu0 0.0
      %6476 = vmatpush1.msra.mxu0 0.0
      %6477 = vmatprep.subr.mxu0 0.0
      %6478 = vmatpush1.msra.mxu0 0.0
      %6479 = vmatprep.subr.mxu0 0.0
      %6480 = vmatpush1.msra.mxu0 0.0
      %6481 = vmatprep.subr.mxu0 0.0
      %6482 = vmatpush1.msra.mxu0 0.0
      %6483 = vmatprep.subr.mxu0 0.0
      %6484 = vmatpush1.msra.mxu0 0.0
      %6485 = vmatprep.subr.mxu0 0.0
      %6486 = vmatpush1.msra.mxu0 0.0
      %6487 = vmatprep.subr.mxu0 0.0
      %6488 = vmatpush1.msra.mxu0 0.0
      %6489 = vmatprep.mubr.f32.mxu0 %v6361
      %6490 = vmatmul.mubr.f32.gmra.mrb[0].mxu0 %v6311
      %v6491 = vpop.f32.mrb[0].mxu0
      %v6492 = vadd.f32 0.0, %v6491
      %v6493 = vpop.f32.mrb[0].mxu0
      %6494 = vmatprep.mubr.f32.mxu0 %v6363
      %6495 = vmatmul.mubr.f32.gmra.mrb[0].mxu0 %v6312
      %v6496 = vpop.f32.mrb[0].mxu0
      %v6497 = vadd.f32 0.0, %v6496
      %v6498 = vpop.f32.mrb[0].mxu0
      %6499 = vmatprep.mubr.f32.mxu0 %v6365
      %6500 = vmatmul.mubr.f32.gmra.mrb[0].mxu0 %v6313
      %v6501 = vpop.f32.mrb[0].mxu0
      %v6502 = vadd.f32 0.0, %v6501
      %v6503 = vpop.f32.mrb[0].mxu0
      %6504 = vmatprep.mubr.f32.mxu0 %v6367
      %6505 = vmatmul.mubr.f32.gmra.mrb[0].mxu0 %v6314
      %v6506 = vpop.f32.mrb[0].mxu0
      %v6507 = vadd.f32 0.0, %v6506
      %v6508 = vpop.f32.mrb[0].mxu0
      %6509 = vmatprep.mubr.f32.mxu0 %v6369
      %6510 = vmatmul.mubr.f32.gmra.mrb[0].mxu0 %v6315
      %v6511 = vpop.f32.mrb[0].mxu0
      %v6512 = vadd.f32 0.0, %v6511
      %v6513 = vpop.f32.mrb[0].mxu0
      %6514 = vmatprep.mubr.f32.mxu0 %v6371
      %6515 = vmatmul.mubr.f32.gmra.mrb[0].mxu0 %v6316
      %v6516 = vpop.f32.mrb[0].mxu0
      %v6517 = vadd.f32 0.0, %v6516
      %v6518 = vpop.f32.mrb[0].mxu0
      %6519 = vmatprep.mubr.f32.mxu0 %v6373
      %6520 = vmatmul.mubr.f32.gmra.mrb[0].mxu0 %v6317
      %v6521 = vpop.f32.mrb[0].mxu0
      %v6522 = vadd.f32 0.0, %v6521
      %v6523 = vpop.f32.mrb[0].mxu0
      %6524 = vmatprep.mubr.f32.mxu0 %v6375
      %6525 = vmatmul.mubr.f32.gmra.mrb[0].mxu0 %v6318
      %v6526 = vpop.f32.mrb[0].mxu0
      %v6527 = vadd.f32 0.0, %v6526
      %v6528 = vpop.f32.mrb[0].mxu0
      %6529 = vmatprep.mubr.f32.mxu0 %v6377
      %6530 = vmatmul.mubr.f32.gmra.mrb[0].mxu0 %v6319
      %v6531 = vpop.f32.mrb[0].mxu0
      %v6532 = vadd.f32 0.0, %v6531
      %v6533 = vpop.f32.mrb[0].mxu0
      %6534 = vmatprep.mubr.f32.mxu0 %v6379
      %6535 = vmatmul.mubr.f32.gmra.mrb[0].mxu0 %v6320
      %v6536 = vpop.f32.mrb[0].mxu0
      %v6537 = vadd.f32 0.0, %v6536
      %v6538 = vpop.f32.mrb[0].mxu0
      %6539 = vmatprep.mubr.f32.mxu0 %v6381
      %6540 = vmatmul.mubr.f32.gmra.mrb[0].mxu0 %v6321
      %v6541 = vpop.f32.mrb[0].mxu0
      %v6542 = vadd.f32 0.0, %v6541
      %v6543 = vpop.f32.mrb[0].mxu0
      %6544 = vmatprep.mubr.f32.mxu0 %v6383
      %6545 = vmatmul.mubr.f32.gmra.mrb[0].mxu0 %v6322
      %v6546 = vpop.f32.mrb[0].mxu0
      %v6547 = vadd.f32 0.0, %v6546
      %v6548 = vpop.f32.mrb[0].mxu0
      %6549 = vmatprep.mubr.f32.mxu0 %v6385
      %6550 = vmatmul.mubr.f32.gmra.mrb[0].mxu0 %v6323
      %v6551 = vpop.f32.mrb[0].mxu0
      %v6552 = vadd.f32 0.0, %v6551
      %v6553 = vpop.f32.mrb[0].mxu0
      %6554 = vmatprep.mubr.f32.mxu0 %v6387
      %6555 = vmatmul.mubr.f32.gmra.mrb[0].mxu0 %v6324
      %v6556 = vpop.f32.mrb[0].mxu0
      %v6557 = vadd.f32 0.0, %v6556
      %v6558 = vpop.f32.mrb[0].mxu0
      %6559 = vmatprep.mubr.f32.mxu0 %v6389
      %6560 = vmatmul.mubr.f32.gmra.mrb[0].mxu0 %v6325
      %v6561 = vpop.f32.mrb[0].mxu0
      %v6562 = vadd.f32 0.0, %v6561
      %v6563 = vpop.f32.mrb[0].mxu0
      %6564 = vmatprep.mubr.f32.mxu0 %v6391
      %6565 = vmatmul.mubr.f32.gmra.mrb[0].mxu0 %v6326
      %v6566 = vpop.f32.mrb[0].mxu0
      %v6567 = vadd.f32 0.0, %v6566
      %v6568 = vpop.f32.mrb[0].mxu0
      %6569 = vmatprep.mubr.f32.mxu0 %v6393
      %6570 = vmatmul.mubr.f32.gmra.mrb[0].mxu0 %v6327
      %v6571 = vpop.f32.mrb[0].mxu0
      %v6572 = vadd.f32 0.0, %v6571
      %v6573 = vpop.f32.mrb[0].mxu0
      %6574 = vmatprep.mubr.f32.mxu0 %v6395
      %6575 = vmatmul.mubr.f32.gmra.mrb[0].mxu0 %v6328
      %v6576 = vpop.f32.mrb[0].mxu0
      %v6577 = vadd.f32 0.0, %v6576
      %v6578 = vpop.f32.mrb[0].mxu0
      %6579 = vmatprep.mubr.f32.mxu0 %v6397
      %6580 = vmatmul.mubr.f32.gmra.mrb[0].mxu0 %v6329
      %v6581 = vpop.f32.mrb[0].mxu0
      %v6582 = vadd.f32 0.0, %v6581
      %v6583 = vpop.f32.mrb[0].mxu0
      %6584 = vmatprep.mubr.f32.mxu0 %v6399
      %6585 = vmatmul.mubr.f32.gmra.mrb[0].mxu0 %v6330
      %v6586 = vpop.f32.mrb[0].mxu0
      %v6587 = vadd.f32 0.0, %v6586
      %v6588 = vpop.f32.mrb[0].mxu0
      %6589 = vmatprep.mubr.f32.mxu0 %v6401
      %6590 = vmatmul.mubr.f32.gmra.mrb[0].mxu0 %v6331
      %v6591 = vpop.f32.mrb[0].mxu0
      %v6592 = vadd.f32 0.0, %v6591
      %v6593 = vpop.f32.mrb[0].mxu0
      %6594 = vmatprep.mubr.f32.mxu0 %v6403
      %6595 = vmatmul.mubr.f32.gmra.mrb[0].mxu0 %v6332
      %v6596 = vpop.f32.mrb[0].mxu0
      %v6597 = vadd.f32 0.0, %v6596
      %v6598 = vpop.f32.mrb[0].mxu0
      %6599 = vmatprep.mubr.f32.mxu0 %v6405
      %6600 = vmatmul.mubr.f32.gmra.mrb[0].mxu0 %v6333
      %v6601 = vpop.f32.mrb[0].mxu0
      %v6602 = vadd.f32 0.0, %v6601
      %v6603 = vpop.f32.mrb[0].mxu0
      %6604 = vmatprep.mubr.f32.mxu0 %v6407
      %6605 = vmatmul.mubr.f32.gmra.mrb[0].mxu0 %v6334
      %v6606 = vpop.f32.mrb[0].mxu0
      %v6607 = vadd.f32 0.0, %v6606
      %v6608 = vpop.f32.mrb[0].mxu0
      %6609 = vmatprep.mubr.f32.mxu0 %v6409
      %6610 = vmatmul.mubr.f32.gmra.mrb[0].mxu0 %v6335
      %v6611 = vpop.f32.mrb[0].mxu0
      %v6612 = vadd.f32 0.0, %v6611
      %v6613 = vpop.f32.mrb[0].mxu0
      %6614 = vmatprep.mubr.f32.mxu0 %v6411
      %6615 = vmatmul.mubr.f32.gmra.mrb[0].mxu0 %v6336
      %v6616 = vpop.f32.mrb[0].mxu0
      %v6617 = vadd.f32 0.0, %v6616
      %v6618 = vpop.f32.mrb[0].mxu0
      %6619 = vmatprep.mubr.f32.mxu0 %v6413
      %6620 = vmatmul.mubr.f32.gmra.mrb[0].mxu0 %v6337
      %v6621 = vpop.f32.mrb[0].mxu0
      %v6622 = vadd.f32 0.0, %v6621
      %v6623 = vpop.f32.mrb[0].mxu0
      %6624 = vmatprep.mubr.f32.mxu0 %v6415
      %6625 = vmatmul.mubr.f32.gmra.mrb[0].mxu0 %v6338
      %v6626 = vpop.f32.mrb[0].mxu0
      %v6627 = vadd.f32 0.0, %v6626
      %v6628 = vpop.f32.mrb[0].mxu0
      %6629 = vmatprep.mubr.f32.mxu0 %v6417
      %6630 = vmatmul.mubr.f32.gmra.mrb[0].mxu0 %v6339
      %v6631 = vpop.f32.mrb[0].mxu0
      %v6632 = vadd.f32 0.0, %v6631
      %v6633 = vpop.f32.mrb[0].mxu0
      %6634 = vmatprep.mubr.f32.mxu0 %v6419
      %6635 = vmatmul.mubr.f32.gmra.mrb[0].mxu0 %v6340
      %v6636 = vpop.f32.mrb[0].mxu0
      %v6637 = vadd.f32 0.0, %v6636
      %v6638 = vpop.f32.mrb[0].mxu0
      %6639 = vmatprep.mubr.f32.mxu0 %v6421
      %6640 = vmatmul.mubr.f32.gmra.mrb[0].mxu0 %v6341
      %v6641 = vpop.f32.mrb[0].mxu0
      %v6642 = vadd.f32 0.0, %v6641
      %v6643 = vpop.f32.mrb[0].mxu0
      %6644 = vmatprep.mubr.f32.mxu0 %v6423
      %6645 = vmatmul.mubr.f32.gmra.mrb[0].mxu0 %v6342
      %v6646 = vpop.f32.mrb[0].mxu0
      %v6647 = vadd.f32 0.0, %v6646
      %v6648 = vpop.f32.mrb[0].mxu0
      %6649 = vdwg.mxu0
      %6682 = vrot.lane.b32.xlu0 %v6492, 20
      %v6683 = vpop.permute.xlu0 %6682
      %6684 = vrot.lane.b32.xlu0 %v6497, 20
      %v6685 = vpop.permute.xlu0 %6684
      %6686 = vrot.lane.b32.xlu0 %v6502, 20
      %v6687 = vpop.permute.xlu0 %6686
      %6688 = vrot.lane.b32.xlu0 %v6507, 20
      %v6689 = vpop.permute.xlu0 %6688
      %6690 = vrot.lane.b32.xlu0 %v6512, 20
      %v6691 = vpop.permute.xlu0 %6690
      %6692 = vrot.lane.b32.xlu0 %v6517, 20
      %v6693 = vpop.permute.xlu0 %6692
      %6694 = vrot.lane.b32.xlu0 %v6522, 20
      %v6695 = vpop.permute.xlu0 %6694
      %6696 = vrot.lane.b32.xlu0 %v6527, 20
      %v6697 = vpop.permute.xlu0 %6696
      %6698 = vrot.lane.b32.xlu0 %v6532, 20
      %v6699 = vpop.permute.xlu0 %6698
      %6700 = vrot.lane.b32.xlu0 %v6537, 20
      %v6701 = vpop.permute.xlu0 %6700
      %6702 = vrot.lane.b32.xlu0 %v6542, 20
      %v6703 = vpop.permute.xlu0 %6702
      %6704 = vrot.lane.b32.xlu0 %v6547, 20
      %v6705 = vpop.permute.xlu0 %6704
      %6706 = vrot.lane.b32.xlu0 %v6552, 20
      %v6707 = vpop.permute.xlu0 %6706
      %6708 = vrot.lane.b32.xlu0 %v6557, 20
      %v6709 = vpop.permute.xlu0 %6708
      %6710 = vrot.lane.b32.xlu0 %v6562, 20
      %v6711 = vpop.permute.xlu0 %6710
      %6712 = vrot.lane.b32.xlu0 %v6567, 20
      %v6713 = vpop.permute.xlu0 %6712
      %6714 = vrot.lane.b32.xlu0 %v6572, 20
      %v6715 = vpop.permute.xlu0 %6714
      %6716 = vrot.lane.b32.xlu0 %v6577, 20
      %v6717 = vpop.permute.xlu0 %6716
      %6718 = vrot.lane.b32.xlu0 %v6582, 20
      %v6719 = vpop.permute.xlu0 %6718
      %6720 = vrot.lane.b32.xlu0 %v6587, 20
      %v6721 = vpop.permute.xlu0 %6720
      %6722 = vrot.lane.b32.xlu0 %v6592, 20
      %v6723 = vpop.permute.xlu0 %6722
      %6724 = vrot.lane.b32.xlu0 %v6597, 20
      %v6725 = vpop.permute.xlu0 %6724
      %6726 = vrot.lane.b32.xlu0 %v6602, 20
      %v6727 = vpop.permute.xlu0 %6726
      %6728 = vrot.lane.b32.xlu0 %v6607, 20
      %v6729 = vpop.permute.xlu0 %6728
      %6730 = vrot.lane.b32.xlu0 %v6612, 20
      %v6731 = vpop.permute.xlu0 %6730
      %6732 = vrot.lane.b32.xlu0 %v6617, 20
      %v6733 = vpop.permute.xlu0 %6732
      %6734 = vrot.lane.b32.xlu0 %v6622, 20
      %v6735 = vpop.permute.xlu0 %6734
      %6736 = vrot.lane.b32.xlu0 %v6627, 20
      %v6737 = vpop.permute.xlu0 %6736
      %6738 = vrot.lane.b32.xlu0 %v6632, 20
      %v6739 = vpop.permute.xlu0 %6738
      %6740 = vrot.lane.b32.xlu0 %v6637, 20
      %v6741 = vpop.permute.xlu0 %6740
      %6742 = vrot.lane.b32.xlu0 %v6642, 20
      %v6743 = vpop.permute.xlu0 %6742
      %6744 = vrot.lane.b32.xlu0 %v6647, 20
      %v6745 = vpop.permute.xlu0 %6744
      %v6778 = vsel %vm4683, %v4499, %v6683
      %v6779 = vsel %vm4683, %v4500, %v6685
      %v6780 = vsel %vm4683, %v4501, %v6687
      %v6781 = vsel %vm4683, %v4502, %v6689
      %v6782 = vsel %vm4683, %v4503, %v6691
      %v6783 = vsel %vm4683, %v4504, %v6693
      %v6784 = vsel %vm4683, %v4505, %v6695
      %v6785 = vsel %vm4683, %v4506, %v6697
      %v6786 = vsel %vm4683, %v4507, %v6699
      %v6787 = vsel %vm4683, %v4508, %v6701
      %v6788 = vsel %vm4683, %v4509, %v6703
      %v6789 = vsel %vm4683, %v4510, %v6705
      %v6790 = vsel %vm4683, %v4511, %v6707
      %v6791 = vsel %vm4683, %v4512, %v6709
      %v6792 = vsel %vm4683, %v4513, %v6711
      %v6793 = vsel %vm4683, %v4514, %v6713
      %v6794 = vsel %vm4683, %v4515, %v6715
      %v6795 = vsel %vm4683, %v4516, %v6717
      %v6796 = vsel %vm4683, %v4517, %v6719
      %v6797 = vsel %vm4683, %v4518, %v6721
      %v6798 = vsel %vm4683, %v4519, %v6723
      %v6799 = vsel %vm4683, %v4520, %v6725
      %v6800 = vsel %vm4683, %v4521, %v6727
      %v6801 = vsel %vm4683, %v4522, %v6729
      %v6802 = vsel %vm4683, %v4523, %v6731
      %v6803 = vsel %vm4683, %v4524, %v6733
      %v6804 = vsel %vm4683, %v4525, %v6735
      %v6805 = vsel %vm4683, %v4526, %v6737
      %v6806 = vsel %vm4683, %v4527, %v6739
      %v6807 = vsel %vm4683, %v4528, %v6741
      %v6808 = vsel %vm4683, %v4529, %v6743
      %v6809 = vsel %vm4683, %v4530, %v6745
      %v6810 = vld [vmem:[%s14] sm:$0xff]
      %v6811 = vld [vmem:[%s14 + $0x8] sm:$0xff]
      %v6812 = vld [vmem:[%s14 + $0x10] sm:$0xff]
      %vm6813 = vcmask 195584
      %v6815 = vsel %vm6813, %v6778, 0
      %v6818 = vsel %vm6813, %v6779, 0
      %v6821 = vsel %vm6813, %v6780, 0
      %v6824 = vsel %vm6813, %v6781, 0
      %v6827 = vsel %vm6813, %v6782, 0
      %v6830 = vsel %vm6813, %v6783, 0
      %v6833 = vsel %vm6813, %v6784, 0
      %v6836 = vsel %vm6813, %v6785, 0
      %v6839 = vsel %vm6813, %v6786, 0
      %v6842 = vsel %vm6813, %v6787, 0
      %v6845 = vsel %vm6813, %v6788, 0
      %v6848 = vsel %vm6813, %v6789, 0
      %v6851 = vsel %vm6813, %v6790, 0
      %v6854 = vsel %vm6813, %v6791, 0
      %v6857 = vsel %vm6813, %v6792, 0
      %v6860 = vsel %vm6813, %v6793, 0
      %v6863 = vsel %vm6813, %v6794, 0
      %v6866 = vsel %vm6813, %v6795, 0
      %v6869 = vsel %vm6813, %v6796, 0
      %v6872 = vsel %vm6813, %v6797, 0
      %v6875 = vsel %vm6813, %v6798, 0
      %v6878 = vsel %vm6813, %v6799, 0
      %v6881 = vsel %vm6813, %v6800, 0
      %v6884 = vsel %vm6813, %v6801, 0
      %v6887 = vsel %vm6813, %v6802, 0
      %v6890 = vsel %vm6813, %v6803, 0
      %v6893 = vsel %vm6813, %v6804, 0
      %v6896 = vsel %vm6813, %v6805, 0
      %v6899 = vsel %vm6813, %v6806, 0
      %v6902 = vsel %vm6813, %v6807, 0
      %v6905 = vsel %vm6813, %v6808, 0
      %v6908 = vsel %vm6813, %v6809, 0
      %6910 = vmatprep.subr.mxu0 0.0
      %6911 = vmatpush1.msra.mxu0 %v6810
      %6912 = vmatprep.subr.mxu0 0.0
      %6913 = vmatpush1.msra.mxu0 %v6811
      %6914 = vmatprep.subr.mxu0 0.0
      %6915 = vmatpush1.msra.mxu0 %v6812
      %6916 = vmatprep.subr.mxu0 0.0
      %6917 = vmatpush1.msra.mxu0 0.0
      %6918 = vmatprep.subr.mxu0 0.0
      %6919 = vmatpush1.msra.mxu0 0.0
      %6920 = vmatprep.subr.mxu0 0.0
      %6921 = vmatpush1.msra.mxu0 0.0
      %6922 = vmatprep.subr.mxu0 0.0
      %6923 = vmatpush1.msra.mxu0 0.0
      %6924 = vmatprep.subr.mxu0 0.0
      %6925 = vmatpush1.msra.mxu0 0.0
      %6926 = vmatprep.subr.mxu0 0.0
      %6927 = vmatpush1.msra.mxu0 0.0
      %6928 = vmatprep.subr.mxu0 0.0
      %6929 = vmatpush1.msra.mxu0 0.0
      %6930 = vmatprep.subr.mxu0 0.0
      %6931 = vmatpush1.msra.mxu0 0.0
      %6932 = vmatprep.subr.mxu0 0.0
      %6933 = vmatpush1.msra.mxu0 0.0
      %6934 = vmatprep.subr.mxu0 0.0
      %6935 = vmatpush1.msra.mxu0 0.0
      %6936 = vmatprep.subr.mxu0 0.0
      %6937 = vmatpush1.msra.mxu0 0.0
      %6938 = vmatprep.subr.mxu0 0.0
      %6939 = vmatpush1.msra.mxu0 0.0
      %6940 = vmatprep.subr.mxu0 0.0
      %6941 = vmatpush1.msra.mxu0 0.0
      %6942 = vmatprep.subr.mxu0 0.0
      %6943 = vmatpush1.msra.mxu0 0.0
      %6944 = vmatprep.subr.mxu0 0.0
      %6945 = vmatpush1.msra.mxu0 0.0
      %6946 = vmatprep.subr.mxu0 0.0
      %6947 = vmatpush1.msra.mxu0 0.0
      %6948 = vmatprep.subr.mxu0 0.0
      %6949 = vmatpush1.msra.mxu0 0.0
      %6950 = vmatprep.subr.mxu0 0.0
      %6951 = vmatpush1.msra.mxu0 0.0
      %6952 = vmatprep.subr.mxu0 0.0
      %6953 = vmatpush1.msra.mxu0 0.0
      %6954 = vmatprep.subr.mxu0 0.0
      %6955 = vmatpush1.msra.mxu0 0.0
      %6956 = vmatprep.subr.mxu0 0.0
      %6957 = vmatpush1.msra.mxu0 0.0
      %6958 = vmatprep.subr.mxu0 0.0
      %6959 = vmatpush1.msra.mxu0 0.0
      %6960 = vmatprep.subr.mxu0 0.0
      %6961 = vmatpush1.msra.mxu0 0.0
      %6962 = vmatprep.subr.mxu0 0.0
      %6963 = vmatpush1.msra.mxu0 0.0
      %6964 = vmatprep.subr.mxu0 0.0
      %6965 = vmatpush1.msra.mxu0 0.0
      %6966 = vmatprep.subr.mxu0 0.0
      %6967 = vmatpush1.msra.mxu0 0.0
      %6968 = vmatprep.subr.mxu0 0.0
      %6969 = vmatpush1.msra.mxu0 0.0
      %6970 = vmatprep.subr.mxu0 0.0
      %6971 = vmatpush1.msra.mxu0 0.0
      %6972 = vmatprep.subr.mxu0 0.0
      %6973 = vmatpush1.msra.mxu0 0.0
      %6974 = vmatprep.mubr.f32.mxu0 0.0
      %6975 = vmatmul.mubr.f32.gmra.mrb[0].mxu0 %v6815
      %v6976 = vpop.f32.mrb[0].mxu0
      %v6977 = vadd.f32 0.0, %v6976
      %v6978 = vpop.f32.mrb[0].mxu0
      %6979 = vmatprep.mubr.f32.mxu0 0.0
      %6980 = vmatmul.mubr.f32.gmra.mrb[0].mxu0 %v6818
      %v6981 = vpop.f32.mrb[0].mxu0
      %v6982 = vadd.f32 0.0, %v6981
      %v6983 = vpop.f32.mrb[0].mxu0
      %6984 = vmatprep.mubr.f32.mxu0 0.0
      %6985 = vmatmul.mubr.f32.gmra.mrb[0].mxu0 %v6821
      %v6986 = vpop.f32.mrb[0].mxu0
      %v6987 = vadd.f32 0.0, %v6986
      %v6988 = vpop.f32.mrb[0].mxu0
      %6989 = vmatprep.mubr.f32.mxu0 0.0
      %6990 = vmatmul.mubr.f32.gmra.mrb[0].mxu0 %v6824
      %v6991 = vpop.f32.mrb[0].mxu0
      %v6992 = vadd.f32 0.0, %v6991
      %v6993 = vpop.f32.mrb[0].mxu0
      %6994 = vmatprep.mubr.f32.mxu0 0.0
      %6995 = vmatmul.mubr.f32.gmra.mrb[0].mxu0 %v6827
      %v6996 = vpop.f32.mrb[0].mxu0
      %v6997 = vadd.f32 0.0, %v6996
      %v6998 = vpop.f32.mrb[0].mxu0
      %6999 = vmatprep.mubr.f32.mxu0 0.0
      %7000 = vmatmul.mubr.f32.gmra.mrb[0].mxu0 %v6830
      %v7001 = vpop.f32.mrb[0].mxu0
      %v7002 = vadd.f32 0.0, %v7001
      %v7003 = vpop.f32.mrb[0].mxu0
      %7004 = vmatprep.mubr.f32.mxu0 0.0
      %7005 = vmatmul.mubr.f32.gmra.mrb[0].mxu0 %v6833
      %v7006 = vpop.f32.mrb[0].mxu0
      %v7007 = vadd.f32 0.0, %v7006
      %v7008 = vpop.f32.mrb[0].mxu0
      %7009 = vmatprep.mubr.f32.mxu0 0.0
      %7010 = vmatmul.mubr.f32.gmra.mrb[0].mxu0 %v6836
      %v7011 = vpop.f32.mrb[0].mxu0
      %v7012 = vadd.f32 0.0, %v7011
      %v7013 = vpop.f32.mrb[0].mxu0
      %7014 = vmatprep.mubr.f32.mxu0 0.0
      %7015 = vmatmul.mubr.f32.gmra.mrb[0].mxu0 %v6839
      %v7016 = vpop.f32.mrb[0].mxu0
      %v7017 = vadd.f32 0.0, %v7016
      %v7018 = vpop.f32.mrb[0].mxu0
      %7019 = vmatprep.mubr.f32.mxu0 0.0
      %7020 = vmatmul.mubr.f32.gmra.mrb[0].mxu0 %v6842
      %v7021 = vpop.f32.mrb[0].mxu0
      %v7022 = vadd.f32 0.0, %v7021
      %v7023 = vpop.f32.mrb[0].mxu0
      %7024 = vmatprep.mubr.f32.mxu0 0.0
      %7025 = vmatmul.mubr.f32.gmra.mrb[0].mxu0 %v6845
      %v7026 = vpop.f32.mrb[0].mxu0
      %v7027 = vadd.f32 0.0, %v7026
      %v7028 = vpop.f32.mrb[0].mxu0
      %7029 = vmatprep.mubr.f32.mxu0 0.0
      %7030 = vmatmul.mubr.f32.gmra.mrb[0].mxu0 %v6848
      %v7031 = vpop.f32.mrb[0].mxu0
      %v7032 = vadd.f32 0.0, %v7031
      %v7033 = vpop.f32.mrb[0].mxu0
      %7034 = vmatprep.mubr.f32.mxu0 0.0
      %7035 = vmatmul.mubr.f32.gmra.mrb[0].mxu0 %v6851
      %v7036 = vpop.f32.mrb[0].mxu0
      %v7037 = vadd.f32 0.0, %v7036
      %v7038 = vpop.f32.mrb[0].mxu0
      %7039 = vmatprep.mubr.f32.mxu0 0.0
      %7040 = vmatmul.mubr.f32.gmra.mrb[0].mxu0 %v6854
      %v7041 = vpop.f32.mrb[0].mxu0
      %v7042 = vadd.f32 0.0, %v7041
      %v7043 = vpop.f32.mrb[0].mxu0
      %7044 = vmatprep.mubr.f32.mxu0 0.0
      %7045 = vmatmul.mubr.f32.gmra.mrb[0].mxu0 %v6857
      %v7046 = vpop.f32.mrb[0].mxu0
      %v7047 = vadd.f32 0.0, %v7046
      %v7048 = vpop.f32.mrb[0].mxu0
      %7049 = vmatprep.mubr.f32.mxu0 0.0
      %7050 = vmatmul.mubr.f32.gmra.mrb[0].mxu0 %v6860
      %v7051 = vpop.f32.mrb[0].mxu0
      %v7052 = vadd.f32 0.0, %v7051
      %v7053 = vpop.f32.mrb[0].mxu0
      %7054 = vmatprep.mubr.f32.mxu0 0.0
      %7055 = vmatmul.mubr.f32.gmra.mrb[0].mxu0 %v6863
      %v7056 = vpop.f32.mrb[0].mxu0
      %v7057 = vadd.f32 0.0, %v7056
      %v7058 = vpop.f32.mrb[0].mxu0
      %7059 = vmatprep.mubr.f32.mxu0 0.0
      %7060 = vmatmul.mubr.f32.gmra.mrb[0].mxu0 %v6866
      %v7061 = vpop.f32.mrb[0].mxu0
      %v7062 = vadd.f32 0.0, %v7061
      %v7063 = vpop.f32.mrb[0].mxu0
      %7064 = vmatprep.mubr.f32.mxu0 0.0
      %7065 = vmatmul.mubr.f32.gmra.mrb[0].mxu0 %v6869
      %v7066 = vpop.f32.mrb[0].mxu0
      %v7067 = vadd.f32 0.0, %v7066
      %v7068 = vpop.f32.mrb[0].mxu0
      %7069 = vmatprep.mubr.f32.mxu0 0.0
      %7070 = vmatmul.mubr.f32.gmra.mrb[0].mxu0 %v6872
      %v7071 = vpop.f32.mrb[0].mxu0
      %v7072 = vadd.f32 0.0, %v7071
      %v7073 = vpop.f32.mrb[0].mxu0
      %7074 = vmatprep.mubr.f32.mxu0 0.0
      %7075 = vmatmul.mubr.f32.gmra.mrb[0].mxu0 %v6875
      %v7076 = vpop.f32.mrb[0].mxu0
      %v7077 = vadd.f32 0.0, %v7076
      %v7078 = vpop.f32.mrb[0].mxu0
      %7079 = vmatprep.mubr.f32.mxu0 0.0
      %7080 = vmatmul.mubr.f32.gmra.mrb[0].mxu0 %v6878
      %v7081 = vpop.f32.mrb[0].mxu0
      %v7082 = vadd.f32 0.0, %v7081
      %v7083 = vpop.f32.mrb[0].mxu0
      %7084 = vmatprep.mubr.f32.mxu0 0.0
      %7085 = vmatmul.mubr.f32.gmra.mrb[0].mxu0 %v6881
      %v7086 = vpop.f32.mrb[0].mxu0
      %v7087 = vadd.f32 0.0, %v7086
      %v7088 = vpop.f32.mrb[0].mxu0
      %7089 = vmatprep.mubr.f32.mxu0 0.0
      %7090 = vmatmul.mubr.f32.gmra.mrb[0].mxu0 %v6884
      %v7091 = vpop.f32.mrb[0].mxu0
      %v7092 = vadd.f32 0.0, %v7091
      %v7093 = vpop.f32.mrb[0].mxu0
      %7094 = vmatprep.mubr.f32.mxu0 0.0
      %7095 = vmatmul.mubr.f32.gmra.mrb[0].mxu0 %v6887
      %v7096 = vpop.f32.mrb[0].mxu0
      %v7097 = vadd.f32 0.0, %v7096
      %v7098 = vpop.f32.mrb[0].mxu0
      %7099 = vmatprep.mubr.f32.mxu0 0.0
      %7100 = vmatmul.mubr.f32.gmra.mrb[0].mxu0 %v6890
      %v7101 = vpop.f32.mrb[0].mxu0
      %v7102 = vadd.f32 0.0, %v7101
      %v7103 = vpop.f32.mrb[0].mxu0
      %7104 = vmatprep.mubr.f32.mxu0 0.0
      %7105 = vmatmul.mubr.f32.gmra.mrb[0].mxu0 %v6893
      %v7106 = vpop.f32.mrb[0].mxu0
      %v7107 = vadd.f32 0.0, %v7106
      %v7108 = vpop.f32.mrb[0].mxu0
      %7109 = vmatprep.mubr.f32.mxu0 0.0
      %7110 = vmatmul.mubr.f32.gmra.mrb[0].mxu0 %v6896
      %v7111 = vpop.f32.mrb[0].mxu0
      %v7112 = vadd.f32 0.0, %v7111
      %v7113 = vpop.f32.mrb[0].mxu0
      %7114 = vmatprep.mubr.f32.mxu0 0.0
      %7115 = vmatmul.mubr.f32.gmra.mrb[0].mxu0 %v6899
      %v7116 = vpop.f32.mrb[0].mxu0
      %v7117 = vadd.f32 0.0, %v7116
      %v7118 = vpop.f32.mrb[0].mxu0
      %7119 = vmatprep.mubr.f32.mxu0 0.0
      %7120 = vmatmul.mubr.f32.gmra.mrb[0].mxu0 %v6902
      %v7121 = vpop.f32.mrb[0].mxu0
      %v7122 = vadd.f32 0.0, %v7121
      %v7123 = vpop.f32.mrb[0].mxu0
      %7124 = vmatprep.mubr.f32.mxu0 0.0
      %7125 = vmatmul.mubr.f32.gmra.mrb[0].mxu0 %v6905
      %v7126 = vpop.f32.mrb[0].mxu0
      %v7127 = vadd.f32 0.0, %v7126
      %v7128 = vpop.f32.mrb[0].mxu0
      %7129 = vmatprep.mubr.f32.mxu0 0.0
      %7130 = vmatmul.mubr.f32.gmra.mrb[0].mxu0 %v6908
      %v7131 = vpop.f32.mrb[0].mxu0
      %v7132 = vadd.f32 0.0, %v7131
      %v7133 = vpop.f32.mrb[0].mxu0
      %7134 = vdwg.mxu0
      %vm7135 = vcmask 31744
      %7136 = vst.msk [vmem:[%s514] sm:$0xff] %vm7135, %v6977
      %7137 = vst.msk [vmem:[%s514 + $0x8] sm:$0xff] %vm7135, %v6982
      %7138 = vst.msk [vmem:[%s514 + $0x10] sm:$0xff] %vm7135, %v6987
      %7139 = vst.msk [vmem:[%s514 + $0x18] sm:$0xff] %vm7135, %v6992
      %7140 = vst.msk [vmem:[%s514 + $0x20] sm:$0xff] %vm7135, %v6997
      %7141 = vst.msk [vmem:[%s514 + $0x28] sm:$0xff] %vm7135, %v7002
      %7142 = vst.msk [vmem:[%s514 + $0x30] sm:$0xff] %vm7135, %v7007
      %7143 = vst.msk [vmem:[%s514 + $0x38] sm:$0xff] %vm7135, %v7012
      %7144 = vst.msk [vmem:[%s514 + $0x40] sm:$0xff] %vm7135, %v7017
      %7145 = vst.msk [vmem:[%s514 + $0x48] sm:$0xff] %vm7135, %v7022
      %7146 = vst.msk [vmem:[%s514 + $0x50] sm:$0xff] %vm7135, %v7027
      %7147 = vst.msk [vmem:[%s514 + $0x58] sm:$0xff] %vm7135, %v7032
      %7148 = vst.msk [vmem:[%s514 + $0x60] sm:$0xff] %vm7135, %v7037
      %7149 = vst.msk [vmem:[%s514 + $0x68] sm:$0xff] %vm7135, %v7042
      %7150 = vst.msk [vmem:[%s514 + $0x70] sm:$0xff] %vm7135, %v7047
      %7151 = vst.msk [vmem:[%s514 + $0x78] sm:$0xff] %vm7135, %v7052
      %7152 = vst.msk [vmem:[%s514 + $0x80] sm:$0xff] %vm7135, %v7057
      %7153 = vst.msk [vmem:[%s514 + $0x88] sm:$0xff] %vm7135, %v7062
      %7154 = vst.msk [vmem:[%s514 + $0x90] sm:$0xff] %vm7135, %v7067
      %7155 = vst.msk [vmem:[%s514 + $0x98] sm:$0xff] %vm7135, %v7072
      %7156 = vst.msk [vmem:[%s514 + $0xa0] sm:$0xff] %vm7135, %v7077
      %7157 = vst.msk [vmem:[%s514 + $0xa8] sm:$0xff] %vm7135, %v7082
      %7158 = vst.msk [vmem:[%s514 + $0xb0] sm:$0xff] %vm7135, %v7087
      %7159 = vst.msk [vmem:[%s514 + $0xb8] sm:$0xff] %vm7135, %v7092
      %7160 = vst.msk [vmem:[%s514 + $0xc0] sm:$0xff] %vm7135, %v7097
      %7161 = vst.msk [vmem:[%s514 + $0xc8] sm:$0xff] %vm7135, %v7102
      %7162 = vst.msk [vmem:[%s514 + $0xd0] sm:$0xff] %vm7135, %v7107
      %7163 = vst.msk [vmem:[%s514 + $0xd8] sm:$0xff] %vm7135, %v7112
      %7164 = vst.msk [vmem:[%s514 + $0xe0] sm:$0xff] %vm7135, %v7117
      %7165 = vst.msk [vmem:[%s514 + $0xe8] sm:$0xff] %vm7135, %v7122
      %7166 = vst.msk [vmem:[%s514 + $0xf0] sm:$0xff] %vm7135, %v7127
      %7167 = vst.msk [vmem:[%s514 + $0xf8] sm:$0xff] %vm7135, %v7132
      %p7168 = scmp.lt.s32.totalorder %s26, 1
      %s7169 = scalar_select %p7168, %s26, 1
      %s7170 = smul.addr %s7169, 32
      %s7171 = smul.addr %s7170, 8
      %s7172 = scalar_lea.vmem %s15, %s7171
      // Predicated region
      $region81: #{_lambda_.1} parent=79 // pred_check
        %p7173 = pneg %p369
      $region82: #{_lambda_.1} parent=79 // pred_check_branch
        %7175 = sbr.rel (%p7173) target = $region84
      $region83: #{_lambda_.1} parent=79 // pred_region
        _
      $region84: #{_lambda_.1} parent=79 // pred_fallthru
        _
    $region80: #{_lambda_.1} parent=5 // pred_fallthru
      _
    %p7176 = scmp.le.s32.totalorder 2, %s21
    // Predicated region
    $region85: #{_lambda_.1} parent=5 // pred_check
      %p7177 = pneg %p7176
    $region86: #{_lambda_.1} parent=5 // pred_check_branch
      %7179 = sbr.rel (%p7177) target = $region88
    $region87: #{_lambda_.1} parent=5 // pred_region
      %s7180 = ssub.s32 %s21, 2
      // Predicated region
      $region89: #{_lambda_.1} parent=87 // pred_check
        %p7181 = pneg %p375
      $region90: #{_lambda_.1} parent=87 // pred_check_branch
        %7183 = sbr.rel (%p7181) target = $region92
      $region91: #{_lambda_.1} parent=87 // pred_region
        %p7184 = scmp.lt.s32.totalorder %s27, 1
        %s7185 = scalar_select %p7184, %s27, 1
        %s7186 = smul.addr %s7185, 32
        %s7187 = smul.addr %s7186, 8
        %s7188 = scalar_lea.vmem %s15, %s7187
      $region92: #{_lambda_.1} parent=87 // pred_fallthru
        _
    $region88: #{_lambda_.1} parent=5 // pred_fallthru
      _
  $region6: #{_lambda_.1} parent=0 // loop_footer
    %s25 = sadd.s32 1, %s21
  $region7: #{_lambda_.1} parent=0 // loop_footer_branch
    %20 = sbr.rel target = $region3
  $region8: #{_lambda_.1} parent=0 // loop_exit
    _

</llo_original>
